<compile_context>
chip_gen: v6e
topology: v6e:2x2x1
jax: 0.10.0
libtpu: 0.0.40
codegen_flags: <defaults>
</compile_context>

<pallas_src>
import functools

import jax
import jax.numpy as jnp
from jax.experimental import pallas as pl
from jax.experimental.pallas import tpu as pltpu

LEAKY_SLOPE = 0.01  # nn.LeakyReLU default negative_slope


def _whole_spec(shape):
    """Whole-array VMEM block for a grid=(1,) pallas_call."""
    ndim = len(shape)
    return pl.BlockSpec(shape, lambda i, _n=ndim: (0,) * _n)


def _leaky(y):
    return jnp.where(y >= 0.0, y, LEAKY_SLOPE * y)


# ---------------------------------------------------------------------------
# Pallas kernel: fused  y = act(x @ W + b)   (used for the conv1/conv2 matmuls)
# ---------------------------------------------------------------------------
def _fused_linear_kernel(x_ref, w_ref, b_ref, o_ref, *, act):
    y = jnp.dot(x_ref[...], w_ref[...], preferred_element_type=jnp.float32) + b_ref[...]
    if act == "leaky_relu":
        y = _leaky(y)
    # act == "none": identity
    o_ref[...] = y.astype(o_ref.dtype)


def fused_linear(x, w, b, act="none"):
    """x: (M, K) f32, w: (K, N) f32, b: (N,) f32 -> (M, N) f32."""
    M, K = x.shape
    K2, N = w.shape
    assert K == K2, (K, K2)
    b2 = b.reshape(1, N)
    return pl.pallas_call(
        functools.partial(_fused_linear_kernel, act=act),
        out_shape=jax.ShapeDtypeStruct((M, N), jnp.float32),
        grid=(1,),
        in_specs=[_whole_spec((M, K)), _whole_spec((K, N)), _whole_spec((1, N))],
        out_specs=_whole_spec((M, N)),
        compiler_params=pltpu.CompilerParams(dimension_semantics=("arbitrary",)),
    )(x, w, b2)


# ---------------------------------------------------------------------------
# Convolution = NHWC im2col (glue) + fused Pallas matmul (no NCHW round-trips)
# ---------------------------------------------------------------------------
def im2col_nhwc(x, kh, kw, stride):
    """x: (N, H, W, C) -> patches (N*OH*OW, KH*KW*C), feature order (KH, KW, C)."""
    n, h, w, c = x.shape
    oh = (h - kh) // stride + 1
    ow = (w - kw) // stride + 1
    cols = []
    for i in range(kh):
        for j in range(kw):
            cols.append(x[:, i:i + stride * oh:stride, j:j + stride * ow:stride, :])
    p = jnp.stack(cols, axis=3)                        # (N, OH, OW, KH*KW, C)
    return p.reshape(n * oh * ow, kh * kw * c), oh, ow


def conv2d_nhwc(x, w, b, stride, act):
    """x: (N, H, W, IC), torch weight w: (OC, IC, KH, KW) -> (N, OH, OW, OC)."""
    oc, ic, kh, kw = w.shape
    p, oh, ow = im2col_nhwc(x, kh, kw, stride)
    wm = jnp.transpose(w, (2, 3, 1, 0)).reshape(kh * kw * ic, oc)   # (KH,KW,IC) x OC
    y = fused_linear(p, wm, b, act=act)                # (N*OH*OW, OC)
    return y.reshape(x.shape[0], oh, ow, oc)


# ---------------------------------------------------------------------------
# Mega-kernel: conv3 + feature fc + inverse net + forward net + 8 shared resid.
# ---------------------------------------------------------------------------
def _icm_head_kernel(
    p3_ref, a_ref,
    w3_ref, b3_ref,
    fc_w_ref, fc_b_ref,
    inv1_ws_ref, inv1_wn_ref, inv1_b_ref,
    inv2_w_ref, inv2_b_ref,
    f1_wx_ref, f1_wa_ref, f1_b_ref,
    r1_wx_ref, r1_wa_ref, r1_b_ref,
    r2_w_ref, r2_b_ref,
    f2_wx_ref, f2_wa_ref, f2_b_ref,
    enc_ns_ref, pred_next_ref, probs_ref,
    *, batch, n_hw,
):
    def mm(x, w):
        return jnp.dot(x, w, preferred_element_type=jnp.float32)

    # conv3 (+LeakyReLU) + flatten + feature fc, fused: loop over the conv3
    # output spatial positions; fc weight is pre-regrouped per (hw) position so
    # the flatten never materializes.
    enc = jnp.zeros((2 * batch, 512), jnp.float32)
    for hw in range(n_hw):
        y3 = _leaky(mm(p3_ref[hw], w3_ref[...]) + b3_ref[...])   # (2B, 64)
        enc = enc + mm(y3, fc_w_ref[hw])                         # (2B, 512)
    enc = enc + fc_b_ref[...]                                    # (2B, 512)

    enc_s = enc[:batch, :]
    enc_ns = enc[batch:, :]
    enc_ns_ref[...] = enc_ns

    # inverse model: cat([enc_s, enc_ns]) @ W  ==  enc_s @ W[:512] + enc_ns @ W[512:]
    h = jnp.maximum(
        mm(enc_s, inv1_ws_ref[...]) + mm(enc_ns, inv1_wn_ref[...]) + inv1_b_ref[...],
        0.0)
    logits = mm(h, inv2_w_ref[...]) + inv2_b_ref[...]
    logits = logits - jnp.max(logits, axis=-1, keepdims=True)
    e = jnp.exp(logits)
    probs_ref[...] = e / jnp.sum(e, axis=-1, keepdims=True)

    # forward model: 513-wide concats folded into rank-1 action bias updates
    a = a_ref[...]                                               # (B, 1)
    pred_orig = _leaky(mm(enc_s, f1_wx_ref[...]) + a * f1_wa_ref[...] + f1_b_ref[...])
    r1_bias = a * r1_wa_ref[...] + r1_b_ref[...]                 # (B, 512)
    f2_bias = a * f2_wa_ref[...] + f2_b_ref[...]                 # (B, 512)

    def residual(x):
        hh = _leaky(mm(x, r1_wx_ref[...]) + r1_bias)
        return mm(hh, r2_w_ref[...]) + r2_b_ref[...]

    # `[Sequential]*8` in torch => ONE shared residual block applied 8 times.
    for _ in range(4):
        pred = residual(pred_orig)
        pred_orig = residual(pred) + pred_orig

    pred_next_ref[...] = mm(pred_orig, f2_wx_ref[...]) + f2_bias


# ---------------------------------------------------------------------------
# ICM forward
# ---------------------------------------------------------------------------
def icm_forward(params, states, next_states, actions):
    B = states.shape[0]

    # Both encoders in one pass (concat on batch), conv stack stays NHWC.
    x = jnp.concatenate([states, next_states], axis=0)           # (2B, C, H, W)
    x = jnp.transpose(x, (0, 2, 3, 1))                           # NHWC
    y = conv2d_nhwc(x, params["c1_w"], params["c1_b"], 4, "leaky_relu")
    y = conv2d_nhwc(y, params["c2_w"], params["c2_b"], 2, "leaky_relu")

    # conv3 is fused into the mega head kernel; only its im2col is glue here.
    oc3, ic3, kh3, kw3 = params["c3_w"].shape
    p3, oh3, ow3 = im2col_nhwc(y, kh3, kw3, 1)                   # (2B*n_hw, K3)
    n_hw = oh3 * ow3
    k3 = kh3 * kw3 * ic3
    p3 = p3.reshape(2 * B, n_hw, k3).transpose(1, 0, 2)          # (n_hw, 2B, K3)
    w3m = jnp.transpose(params["c3_w"], (2, 3, 1, 0)).reshape(k3, oc3)   # (K3, 64)

    # Reorder fc rows from torch's (C,H,W) flatten order into per-(hw) blocks
    # of (C, 512) so the in-kernel conv3 loop can consume them directly.
    fc_w = params["fc_w"].reshape(oc3, oh3, ow3, -1)
    fc_w = jnp.transpose(fc_w, (1, 2, 0, 3)).reshape(n_hw, oc3, -1)      # (n_hw,64,512)

    a = actions[:, None].astype(jnp.float32)                     # (B, 1)
    out_size = params["inv2_w"].shape[1]

    args = (
        p3, a,
        w3m, params["c3_b"].reshape(1, -1),
        fc_w, params["fc_b"].reshape(1, -1),
        params["inv1_w"][:512], params["inv1_w"][512:], params["inv1_b"].reshape(1, -1),
        params["inv2_w"], params["inv2_b"].reshape(1, -1),
        params["f1_w"][:512], params["f1_w"][512:513], params["f1_b"].reshape(1, -1),
        params["r1_w"][:512], params["r1_w"][512:513], params["r1_b"].reshape(1, -1),
        params["r2_w"], params["r2_b"].reshape(1, -1),
        params["f2_w"][:512], params["f2_w"][512:513], params["f2_b"].reshape(1, -1),
    )

    enc_ns, pred_next, probs = pl.pallas_call(
        functools.partial(_icm_head_kernel, batch=B, n_hw=n_hw),
        out_shape=(
            jax.ShapeDtypeStruct((B, 512), jnp.float32),
            jax.ShapeDtypeStruct((B, 512), jnp.float32),
            jax.ShapeDtypeStruct((B, out_size), jnp.float32),
        ),
        grid=(1,),
        in_specs=[_whole_spec(v.shape) for v in args],
        out_specs=(
            _whole_spec((B, 512)),
            _whole_spec((B, 512)),
            _whole_spec((B, out_size)),
        ),
        compiler_params=pltpu.CompilerParams(
            dimension_semantics=("arbitrary",),
            vmem_limit_bytes=32 * 1024 * 1024,   # ~14 MiB used; fits all TPU gens
        ),
    )(*args)

    # real_next_state_feature, pred_next_state_feature, pred_action_probs
    return enc_ns, pred_next, probs


# ---------------------------------------------------------------------------
# Deterministic parameter init (kaiming_uniform_, zero biases)
# ---------------------------------------------------------------------------
def _kaiming_uniform(key, shape, fan_in, a):
    gain = (2.0 / (1.0 + a * a)) ** 0.5
    bound = gain * (3.0 / fan_in) ** 0.5
    return jax.random.uniform(key, shape, jnp.float32, -bound, bound)


def init_params(key, spatial, output_size):
    # conv output spatial sizes
    s1 = (spatial - 8) // 4 + 1
    s2 = (s1 - 4) // 2 + 1
    s3 = s2 - 3 + 1
    feature_output = s3 * s3 * 64

    keys = jax.random.split(key, 12)
    p = {}
    # convs: kaiming_uniform_ with default a=0
    p["c1_w"] = _kaiming_uniform(keys[0], (32, 4, 8, 8), 4 * 8 * 8, a=0.0)
    p["c1_b"] = jnp.zeros((32,), jnp.float32)
    p["c2_w"] = _kaiming_uniform(keys[1], (64, 32, 4, 4), 32 * 4 * 4, a=0.0)
    p["c2_b"] = jnp.zeros((64,), jnp.float32)
    p["c3_w"] = _kaiming_uniform(keys[2], (64, 64, 3, 3), 64 * 3 * 3, a=0.0)
    p["c3_b"] = jnp.zeros((64,), jnp.float32)

    # linears: kaiming_uniform_ with a=1.0 ; stored as (in, out)
    def lin(k, fin, fout):
        return _kaiming_uniform(k, (fin, fout), fin, a=1.0), jnp.zeros((fout,), jnp.float32)

    p["fc_w"], p["fc_b"] = lin(keys[3], feature_output, 512)
    p["inv1_w"], p["inv1_b"] = lin(keys[4], 512 * 2, 512)
    p["inv2_w"], p["inv2_b"] = lin(keys[5], 512, output_size)
    p["r1_w"], p["r1_b"] = lin(keys[6], 1 + 512, 512)
    p["r2_w"], p["r2_b"] = lin(keys[7], 512, 512)
    p["f1_w"], p["f1_b"] = lin(keys[8], 1 + 512, 512)
    p["f2_w"], p["f2_b"] = lin(keys[9], 1 + 512, 512)
    return p


if __name__ == "__main__":
    BATCH = 2
    SPATIAL = 48          # small input; conv stack -> 11 -> 4 -> 2 spatial
    OUTPUT_SIZE = 6

    root = jax.random.PRNGKey(0)
    k_par, k_s, k_ns, k_a = jax.random.split(root, 4)

    params = init_params(k_par, SPATIAL, OUTPUT_SIZE)
    states = jax.random.normal(k_s, (BATCH, 4, SPATIAL, SPATIAL), jnp.float32)
    next_states = jax.random.normal(k_ns, (BATCH, 4, SPATIAL, SPATIAL), jnp.float32)
    actions = jax.random.randint(k_a, (BATCH,), 0, OUTPUT_SIZE).astype(jnp.float32)

    fwd = jax.jit(icm_forward)
    real_next_feat, pred_next_feat, pred_action_probs = fwd(
        params, states, next_states, actions
    )
    jax.block_until_ready((real_next_feat, pred_next_feat, pred_action_probs))

    assert real_next_feat.shape == (BATCH, 512)
    assert pred_next_feat.shape == (BATCH, 512)
    assert pred_action_probs.shape == (BATCH, OUTPUT_SIZE)
    assert bool(jnp.allclose(jnp.sum(pred_action_probs, axis=1), 1.0, atol=1e-5))
    print("KERNEL_OK")
</pallas_src>

<mosaic_0001>
module attributes {stable_mosaic.version = 11 : i64} {
  func.func @_fused_linear_kernel(%arg0: i32, %arg1: memref<484x256xf32, #tpu.memory_space<vmem>>, %arg2: memref<256x32xf32, #tpu.memory_space<vmem>>, %arg3: memref<1x32xf32, #tpu.memory_space<vmem>>, %arg4: memref<484x32xf32, #tpu.memory_space<vmem>>) attributes {dimension_semantics = [#tpu.dimension_semantics<arbitrary>], iteration_bounds = array<i64: 1>, scalar_prefetch = 0 : i64, scratch_operands = 0 : i64, tpu.core_type = #tpu.core_type<tc>, window_params = [{pipeline_mode = #tpu.pipeline_mode<synchronous>, transform_indices = @transform_0, window_bounds = array<i64: 484, 256>}, {pipeline_mode = #tpu.pipeline_mode<synchronous>, transform_indices = @transform_1, window_bounds = array<i64: 256, 32>}, {pipeline_mode = #tpu.pipeline_mode<synchronous>, transform_indices = @transform_2, window_bounds = array<i64: 1, 32>}, {pipeline_mode = #tpu.pipeline_mode<synchronous>, transform_indices = @transform_3, window_bounds = array<i64: 484, 32>}]} {
    %c0 = arith.constant 0 : index
    %c0_0 = arith.constant 0 : index
    %0 = vector.load %arg1[%c0, %c0_0] : memref<484x256xf32, #tpu.memory_space<vmem>>, vector<484x256xf32>
    %c0_1 = arith.constant 0 : index
    %c0_2 = arith.constant 0 : index
    %1 = vector.load %arg2[%c0_1, %c0_2] : memref<256x32xf32, #tpu.memory_space<vmem>>, vector<256x32xf32>
    %cst = arith.constant dense<0.000000e+00> : vector<484x32xf32>
    %2 = tpu.matmul %0, %1, %cst {dimension_numbers = #tpu.dot_dimension_numbers<[1], [0], [0], [1], [0, 0, 1, 1], [], []>} : vector<484x256xf32>, vector<256x32xf32>, vector<484x32xf32> -> vector<484x32xf32>
    %c0_3 = arith.constant 0 : index
    %c0_4 = arith.constant 0 : index
    %3 = vector.load %arg3[%c0_3, %c0_4] : memref<1x32xf32, #tpu.memory_space<vmem>>, vector<1x32xf32>
    %4 = vector.broadcast %3 : vector<1x32xf32> to vector<484x32xf32>
    %5 = arith.addf %2, %4 : vector<484x32xf32>
    %cst_5 = arith.constant 0.000000e+00 : f32
    %6 = vector.broadcast %cst_5 : f32 to vector<484x32xf32>
    %7 = arith.cmpf oge, %5, %6 : vector<484x32xf32>
    %cst_6 = arith.constant 0.00999999977 : f32
    %8 = vector.broadcast %cst_6 : f32 to vector<484x32xf32>
    %9 = arith.mulf %8, %5 : vector<484x32xf32>
    %10 = arith.select %7, %5, %9 : vector<484x32xi1>, vector<484x32xf32>
    %c0_7 = arith.constant 0 : index
    %c0_8 = arith.constant 0 : index
    %11 = vector.load %arg4[%c0_7, %c0_8] : memref<484x32xf32, #tpu.memory_space<vmem>>, vector<484x32xf32>
    tpu.vector_store %arg4[%c0_7, %c0_8], %10 {strides = array<i32>} : memref<484x32xf32, #tpu.memory_space<vmem>>, vector<484x32xf32>,
    return
  }
  func.func @transform_0(%arg0: i32) -> (i32, i32) {
    %c0_i32 = arith.constant 0 : i32
    %c0_i32_0 = arith.constant 0 : i32
    %c0_i32_1 = arith.constant 0 : i32
    return %c0_i32, %c0_i32_0 : i32, i32
  }
  func.func @transform_1(%arg0: i32) -> (i32, i32) {
    %c0_i32 = arith.constant 0 : i32
    %c0_i32_0 = arith.constant 0 : i32
    %c0_i32_1 = arith.constant 0 : i32
    return %c0_i32, %c0_i32_0 : i32, i32
  }
  func.func @transform_2(%arg0: i32) -> (i32, i32) {
    %c0_i32 = arith.constant 0 : i32
    %c0_i32_0 = arith.constant 0 : i32
    %c0_i32_1 = arith.constant 0 : i32
    return %c0_i32, %c0_i32_0 : i32, i32
  }
  func.func @transform_3(%arg0: i32) -> (i32, i32) {
    %c0_i32 = arith.constant 0 : i32
    %c0_i32_0 = arith.constant 0 : i32
    %c0_i32_1 = arith.constant 0 : i32
    return %c0_i32, %c0_i32_0 : i32, i32
  }
}

module attributes {stable_mosaic.version = 11 : i64} {
  func.func @_fused_linear_kernel(%arg0: i32, %arg1: memref<64x512xf32, #tpu.memory_space<vmem>>, %arg2: memref<512x64xf32, #tpu.memory_space<vmem>>, %arg3: memref<1x64xf32, #tpu.memory_space<vmem>>, %arg4: memref<64x64xf32, #tpu.memory_space<vmem>>) attributes {dimension_semantics = [#tpu.dimension_semantics<arbitrary>], iteration_bounds = array<i64: 1>, scalar_prefetch = 0 : i64, scratch_operands = 0 : i64, tpu.core_type = #tpu.core_type<tc>, window_params = [{pipeline_mode = #tpu.pipeline_mode<synchronous>, transform_indices = @transform_0, window_bounds = array<i64: 64, 512>}, {pipeline_mode = #tpu.pipeline_mode<synchronous>, transform_indices = @transform_1, window_bounds = array<i64: 512, 64>}, {pipeline_mode = #tpu.pipeline_mode<synchronous>, transform_indices = @transform_2, window_bounds = array<i64: 1, 64>}, {pipeline_mode = #tpu.pipeline_mode<synchronous>, transform_indices = @transform_3, window_bounds = array<i64: 64, 64>}]} {
    %c0 = arith.constant 0 : index
    %c0_0 = arith.constant 0 : index
    %0 = vector.load %arg1[%c0, %c0_0] : memref<64x512xf32, #tpu.memory_space<vmem>>, vector<64x512xf32>
    %c0_1 = arith.constant 0 : index
    %c0_2 = arith.constant 0 : index
    %1 = vector.load %arg2[%c0_1, %c0_2] : memref<512x64xf32, #tpu.memory_space<vmem>>, vector<512x64xf32>
    %cst = arith.constant dense<0.000000e+00> : vector<64x64xf32>
    %2 = tpu.matmul %0, %1, %cst {dimension_numbers = #tpu.dot_dimension_numbers<[1], [0], [0], [1], [0, 0, 1, 1], [], []>} : vector<64x512xf32>, vector<512x64xf32>, vector<64x64xf32> -> vector<64x64xf32>
    %c0_3 = arith.constant 0 : index
    %c0_4 = arith.constant 0 : index
    %3 = vector.load %arg3[%c0_3, %c0_4] : memref<1x64xf32, #tpu.memory_space<vmem>>, vector<1x64xf32>
    %4 = vector.broadcast %3 : vector<1x64xf32> to vector<64x64xf32>
    %5 = arith.addf %2, %4 : vector<64x64xf32>
    %cst_5 = arith.constant 0.000000e+00 : f32
    %6 = vector.broadcast %cst_5 : f32 to vector<64x64xf32>
    %7 = arith.cmpf oge, %5, %6 : vector<64x64xf32>
    %cst_6 = arith.constant 0.00999999977 : f32
    %8 = vector.broadcast %cst_6 : f32 to vector<64x64xf32>
    %9 = arith.mulf %8, %5 : vector<64x64xf32>
    %10 = arith.select %7, %5, %9 : vector<64x64xi1>, vector<64x64xf32>
    %c0_7 = arith.constant 0 : index
    %c0_8 = arith.constant 0 : index
    %11 = vector.load %arg4[%c0_7, %c0_8] : memref<64x64xf32, #tpu.memory_space<vmem>>, vector<64x64xf32>
    tpu.vector_store %arg4[%c0_7, %c0_8], %10 {strides = array<i32>} : memref<64x64xf32, #tpu.memory_space<vmem>>, vector<64x64xf32>,
    return
  }
  func.func @transform_0(%arg0: i32) -> (i32, i32) {
    %c0_i32 = arith.constant 0 : i32
    %c0_i32_0 = arith.constant 0 : i32
    %c0_i32_1 = arith.constant 0 : i32
    return %c0_i32, %c0_i32_0 : i32, i32
  }
  func.func @transform_1(%arg0: i32) -> (i32, i32) {
    %c0_i32 = arith.constant 0 : i32
    %c0_i32_0 = arith.constant 0 : i32
    %c0_i32_1 = arith.constant 0 : i32
    return %c0_i32, %c0_i32_0 : i32, i32
  }
  func.func @transform_2(%arg0: i32) -> (i32, i32) {
    %c0_i32 = arith.constant 0 : i32
    %c0_i32_0 = arith.constant 0 : i32
    %c0_i32_1 = arith.constant 0 : i32
    return %c0_i32, %c0_i32_0 : i32, i32
  }
  func.func @transform_3(%arg0: i32) -> (i32, i32) {
    %c0_i32 = arith.constant 0 : i32
    %c0_i32_0 = arith.constant 0 : i32
    %c0_i32_1 = arith.constant 0 : i32
    return %c0_i32, %c0_i32_0 : i32, i32
  }
}

module attributes {stable_mosaic.version = 11 : i64} {
  func.func @_icm_head_kernel(%arg0: i32, %arg1: memref<4x4x576xf32, #tpu.memory_space<vmem>>, %arg2: memref<2x1xf32, #tpu.memory_space<vmem>>, %arg3: memref<576x64xf32, #tpu.memory_space<vmem>>, %arg4: memref<1x64xf32, #tpu.memory_space<vmem>>, %arg5: memref<4x64x512xf32, #tpu.memory_space<vmem>>, %arg6: memref<1x512xf32, #tpu.memory_space<vmem>>, %arg7: memref<512x512xf32, #tpu.memory_space<vmem>>, %arg8: memref<512x512xf32, #tpu.memory_space<vmem>>, %arg9: memref<1x512xf32, #tpu.memory_space<vmem>>, %arg10: memref<512x6xf32, #tpu.memory_space<vmem>>, %arg11: memref<1x6xf32, #tpu.memory_space<vmem>>, %arg12: memref<512x512xf32, #tpu.memory_space<vmem>>, %arg13: memref<1x512xf32, #tpu.memory_space<vmem>>, %arg14: memref<1x512xf32, #tpu.memory_space<vmem>>, %arg15: memref<512x512xf32, #tpu.memory_space<vmem>>, %arg16: memref<1x512xf32, #tpu.memory_space<vmem>>, %arg17: memref<1x512xf32, #tpu.memory_space<vmem>>, %arg18: memref<512x512xf32, #tpu.memory_space<vmem>>, %arg19: memref<1x512xf32, #tpu.memory_space<vmem>>, %arg20: memref<512x512xf32, #tpu.memory_space<vmem>>, %arg21: memref<1x512xf32, #tpu.memory_space<vmem>>, %arg22: memref<1x512xf32, #tpu.memory_space<vmem>>, %arg23: memref<2x512xf32, #tpu.memory_space<vmem>>, %arg24: memref<2x512xf32, #tpu.memory_space<vmem>>, %arg25: memref<2x6xf32, #tpu.memory_space<vmem>>) attributes {dimension_semantics = [#tpu.dimension_semantics<arbitrary>], iteration_bounds = array<i64: 1>, scalar_prefetch = 0 : i64, scratch_operands = 0 : i64, tpu.core_type = #tpu.core_type<tc>, window_params = [{pipeline_mode = #tpu.pipeline_mode<synchronous>, transform_indices = @transform_0, window_bounds = array<i64: 4, 4, 576>}, {pipeline_mode = #tpu.pipeline_mode<synchronous>, transform_indices = @transform_1, window_bounds = array<i64: 2, 1>}, {pipeline_mode = #tpu.pipeline_mode<synchronous>, transform_indices = @transform_2, window_bounds = array<i64: 576, 64>}, {pipeline_mode = #tpu.pipeline_mode<synchronous>, transform_indices = @transform_3, window_bounds = array<i64: 1, 64>}, {pipeline_mode = #tpu.pipeline_mode<synchronous>, transform_indices = @transform_4, window_bounds = array<i64: 4, 64, 512>}, {pipeline_mode = #tpu.pipeline_mode<synchronous>, transform_indices = @transform_5, window_bounds = array<i64: 1, 512>}, {pipeline_mode = #tpu.pipeline_mode<synchronous>, transform_indices = @transform_6, window_bounds = array<i64: 512, 512>}, {pipeline_mode = #tpu.pipeline_mode<synchronous>, transform_indices = @transform_7, window_bounds = array<i64: 512, 512>}, {pipeline_mode = #tpu.pipeline_mode<synchronous>, transform_indices = @transform_8, window_bounds = array<i64: 1, 512>}, {pipeline_mode = #tpu.pipeline_mode<synchronous>, transform_indices = @transform_9, window_bounds = array<i64: 512, 6>}, {pipeline_mode = #tpu.pipeline_mode<synchronous>, transform_indices = @transform_10, window_bounds = array<i64: 1, 6>}, {pipeline_mode = #tpu.pipeline_mode<synchronous>, transform_indices = @transform_11, window_bounds = array<i64: 512, 512>}, {pipeline_mode = #tpu.pipeline_mode<synchronous>, transform_indices = @transform_12, window_bounds = array<i64: 1, 512>}, {pipeline_mode = #tpu.pipeline_mode<synchronous>, transform_indices = @transform_13, window_bounds = array<i64: 1, 512>}, {pipeline_mode = #tpu.pipeline_mode<synchronous>, transform_indices = @transform_14, window_bounds = array<i64: 512, 512>}, {pipeline_mode = #tpu.pipeline_mode<synchronous>, transform_indices = @transform_15, window_bounds = array<i64: 1, 512>}, {pipeline_mode = #tpu.pipeline_mode<synchronous>, transform_indices = @transform_16, window_bounds = array<i64: 1, 512>}, {pipeline_mode = #tpu.pipeline_mode<synchronous>, transform_indices = @transform_17, window_bounds = array<i64: 512, 512>}, {pipeline_mode = #tpu.pipeline_mode<synchronous>, transform_indices = @transform_18, window_bounds = array<i64: 1, 512>}, {pipeline_mode = #tpu.pipeline_mode<synchronous>, transform_indices = @transform_19, window_bounds = array<i64: 512, 512>}, {pipeline_mode = #tpu.pipeline_mode<synchronous>, transform_indices = @transform_20, window_bounds = array<i64: 1, 512>}, {pipeline_mode = #tpu.pipeline_mode<synchronous>, transform_indices = @transform_21, window_bounds = array<i64: 1, 512>}, {pipeline_mode = #tpu.pipeline_mode<synchronous>, transform_indices = @transform_22, window_bounds = array<i64: 2, 512>}, {pipeline_mode = #tpu.pipeline_mode<synchronous>, transform_indices = @transform_23, window_bounds = array<i64: 2, 512>}, {pipeline_mode = #tpu.pipeline_mode<synchronous>, transform_indices = @transform_24, window_bounds = array<i64: 2, 6>}]} {
    %cst = arith.constant 0.000000e+00 : f32
    %0 = vector.broadcast %cst : f32 to vector<4x512xf32>
    %c0 = arith.constant 0 : index
    %c0_0 = arith.constant 0 : index
    %c0_1 = arith.constant 0 : index
    %1 = vector.load %arg1[%c0, %c0_0, %c0_1] : memref<4x4x576xf32, #tpu.memory_space<vmem>>, vector<1x4x576xf32>
    %2 = vector.shape_cast %1 : vector<1x4x576xf32> to vector<4x576xf32>
    %c0_2 = arith.constant 0 : index
    %c0_3 = arith.constant 0 : index
    %3 = vector.load %arg3[%c0_2, %c0_3] : memref<576x64xf32, #tpu.memory_space<vmem>>, vector<576x64xf32>
    %cst_4 = arith.constant dense<0.000000e+00> : vector<4x64xf32>
    %4 = tpu.matmul %2, %3, %cst_4 {dimension_numbers = #tpu.dot_dimension_numbers<[1], [0], [0], [1], [0, 0, 1, 1], [], []>} : vector<4x576xf32>, vector<576x64xf32>, vector<4x64xf32> -> vector<4x64xf32>
    %c0_5 = arith.constant 0 : index
    %c0_6 = arith.constant 0 : index
    %5 = vector.load %arg4[%c0_5, %c0_6] : memref<1x64xf32, #tpu.memory_space<vmem>>, vector<1x64xf32>
    %6 = vector.broadcast %5 : vector<1x64xf32> to vector<4x64xf32>
    %7 = arith.addf %4, %6 : vector<4x64xf32>
    %cst_7 = arith.constant 0.000000e+00 : f32
    %8 = vector.broadcast %cst_7 : f32 to vector<4x64xf32>
    %9 = arith.cmpf oge, %7, %8 : vector<4x64xf32>
    %cst_8 = arith.constant 0.00999999977 : f32
    %10 = vector.broadcast %cst_8 : f32 to vector<4x64xf32>
    %11 = arith.mulf %10, %7 : vector<4x64xf32>
    %12 = arith.select %9, %7, %11 : vector<4x64xi1>, vector<4x64xf32>
    %c0_9 = arith.constant 0 : index
    %c0_10 = arith.constant 0 : index
    %c0_11 = arith.constant 0 : index
    %13 = vector.load %arg5[%c0_9, %c0_10, %c0_11] : memref<4x64x512xf32, #tpu.memory_space<vmem>>, vector<1x64x512xf32>
    %14 = vector.shape_cast %13 : vector<1x64x512xf32> to vector<64x512xf32>
    %cst_12 = arith.constant dense<0.000000e+00> : vector<4x512xf32>
    %15 = tpu.matmul %12, %14, %cst_12 {dimension_numbers = #tpu.dot_dimension_numbers<[1], [0], [0], [1], [0, 0, 1, 1], [], []>} : vector<4x64xf32>, vector<64x512xf32>, vector<4x512xf32> -> vector<4x512xf32>
    %16 = arith.addf %0, %15 : vector<4x512xf32>
    %c1 = arith.constant 1 : index
    %c0_13 = arith.constant 0 : index
    %c0_14 = arith.constant 0 : index
    %17 = vector.load %arg1[%c1, %c0_13, %c0_14] : memref<4x4x576xf32, #tpu.memory_space<vmem>>, vector<1x4x576xf32>
    %18 = vector.shape_cast %17 : vector<1x4x576xf32> to vector<4x576xf32>
    %c0_15 = arith.constant 0 : index
    %c0_16 = arith.constant 0 : index
    %19 = vector.load %arg3[%c0_15, %c0_16] : memref<576x64xf32, #tpu.memory_space<vmem>>, vector<576x64xf32>
    %cst_17 = arith.constant dense<0.000000e+00> : vector<4x64xf32>
    %20 = tpu.matmul %18, %19, %cst_17 {dimension_numbers = #tpu.dot_dimension_numbers<[1], [0], [0], [1], [0, 0, 1, 1], [], []>} : vector<4x576xf32>, vector<576x64xf32>, vector<4x64xf32> -> vector<4x64xf32>
    %c0_18 = arith.constant 0 : index
    %c0_19 = arith.constant 0 : index
    %21 = vector.load %arg4[%c0_18, %c0_19] : memref<1x64xf32, #tpu.memory_space<vmem>>, vector<1x64xf32>
    %22 = vector.broadcast %21 : vector<1x64xf32> to vector<4x64xf32>
    %23 = arith.addf %20, %22 : vector<4x64xf32>
    %cst_20 = arith.constant 0.000000e+00 : f32
    %24 = vector.broadcast %cst_20 : f32 to vector<4x64xf32>
    %25 = arith.cmpf oge, %23, %24 : vector<4x64xf32>
    %cst_21 = arith.constant 0.00999999977 : f32
    %26 = vector.broadcast %cst_21 : f32 to vector<4x64xf32>
    %27 = arith.mulf %26, %23 : vector<4x64xf32>
    %28 = arith.select %25, %23, %27 : vector<4x64xi1>, vector<4x64xf32>
    %c1_22 = arith.constant 1 : index
    %c0_23 = arith.constant 0 : index
    %c0_24 = arith.constant 0 : index
    %29 = vector.load %arg5[%c1_22, %c0_23, %c0_24] : memref<4x64x512xf32, #tpu.memory_space<vmem>>, vector<1x64x512xf32>
    %30 = vector.shape_cast %29 : vector<1x64x512xf32> to vector<64x512xf32>
    %cst_25 = arith.constant dense<0.000000e+00> : vector<4x512xf32>
    %31 = tpu.matmul %28, %30, %cst_25 {dimension_numbers = #tpu.dot_dimension_numbers<[1], [0], [0], [1], [0, 0, 1, 1], [], []>} : vector<4x64xf32>, vector<64x512xf32>, vector<4x512xf32> -> vector<4x512xf32>
    %32 = arith.addf %16, %31 : vector<4x512xf32>
    %c2 = arith.constant 2 : index
    %c0_26 = arith.constant 0 : index
    %c0_27 = arith.constant 0 : index
    %33 = vector.load %arg1[%c2, %c0_26, %c0_27] : memref<4x4x576xf32, #tpu.memory_space<vmem>>, vector<1x4x576xf32>
    %34 = vector.shape_cast %33 : vector<1x4x576xf32> to vector<4x576xf32>
    %c0_28 = arith.constant 0 : index
    %c0_29 = arith.constant 0 : index
    %35 = vector.load %arg3[%c0_28, %c0_29] : memref<576x64xf32, #tpu.memory_space<vmem>>, vector<576x64xf32>
    %cst_30 = arith.constant dense<0.000000e+00> : vector<4x64xf32>
    %36 = tpu.matmul %34, %35, %cst_30 {dimension_numbers = #tpu.dot_dimension_numbers<[1], [0], [0], [1], [0, 0, 1, 1], [], []>} : vector<4x576xf32>, vector<576x64xf32>, vector<4x64xf32> -> vector<4x64xf32>
    %c0_31 = arith.constant 0 : index
    %c0_32 = arith.constant 0 : index
    %37 = vector.load %arg4[%c0_31, %c0_32] : memref<1x64xf32, #tpu.memory_space<vmem>>, vector<1x64xf32>
    %38 = vector.broadcast %37 : vector<1x64xf32> to vector<4x64xf32>
    %39 = arith.addf %36, %38 : vector<4x64xf32>
    %cst_33 = arith.constant 0.000000e+00 : f32
    %40 = vector.broadcast %cst_33 : f32 to vector<4x64xf32>
    %41 = arith.cmpf oge, %39, %40 : vector<4x64xf32>
    %cst_34 = arith.constant 0.00999999977 : f32
    %42 = vector.broadcast %cst_34 : f32 to vector<4x64xf32>
    %43 = arith.mulf %42, %39 : vector<4x64xf32>
    %44 = arith.select %41, %39, %43 : vector<4x64xi1>, vector<4x64xf32>
    %c2_35 = arith.constant 2 : index
    %c0_36 = arith.constant 0 : index
    %c0_37 = arith.constant 0 : index
    %45 = vector.load %arg5[%c2_35, %c0_36, %c0_37] : memref<4x64x512xf32, #tpu.memory_space<vmem>>, vector<1x64x512xf32>
    %46 = vector.shape_cast %45 : vector<1x64x512xf32> to vector<64x512xf32>
    %cst_38 = arith.constant dense<0.000000e+00> : vector<4x512xf32>
    %47 = tpu.matmul %44, %46, %cst_38 {dimension_numbers = #tpu.dot_dimension_numbers<[1], [0], [0], [1], [0, 0, 1, 1], [], []>} : vector<4x64xf32>, vector<64x512xf32>, vector<4x512xf32> -> vector<4x512xf32>
    %48 = arith.addf %32, %47 : vector<4x512xf32>
    %c3 = arith.constant 3 : index
    %c0_39 = arith.constant 0 : index
    %c0_40 = arith.constant 0 : index
    %49 = vector.load %arg1[%c3, %c0_39, %c0_40] : memref<4x4x576xf32, #tpu.memory_space<vmem>>, vector<1x4x576xf32>
    %50 = vector.shape_cast %49 : vector<1x4x576xf32> to vector<4x576xf32>
    %c0_41 = arith.constant 0 : index
    %c0_42 = arith.constant 0 : index
    %51 = vector.load %arg3[%c0_41, %c0_42] : memref<576x64xf32, #tpu.memory_space<vmem>>, vector<576x64xf32>
    %cst_43 = arith.constant dense<0.000000e+00> : vector<4x64xf32>
    %52 = tpu.matmul %50, %51, %cst_43 {dimension_numbers = #tpu.dot_dimension_numbers<[1], [0], [0], [1], [0, 0, 1, 1], [], []>} : vector<4x576xf32>, vector<576x64xf32>, vector<4x64xf32> -> vector<4x64xf32>
    %c0_44 = arith.constant 0 : index
    %c0_45 = arith.constant 0 : index
    %53 = vector.load %arg4[%c0_44, %c0_45] : memref<1x64xf32, #tpu.memory_space<vmem>>, vector<1x64xf32>
    %54 = vector.broadcast %53 : vector<1x64xf32> to vector<4x64xf32>
    %55 = arith.addf %52, %54 : vector<4x64xf32>
    %cst_46 = arith.constant 0.000000e+00 : f32
    %56 = vector.broadcast %cst_46 : f32 to vector<4x64xf32>
    %57 = arith.cmpf oge, %55, %56 : vector<4x64xf32>
    %cst_47 = arith.constant 0.00999999977 : f32
    %58 = vector.broadcast %cst_47 : f32 to vector<4x64xf32>
    %59 = arith.mulf %58, %55 : vector<4x64xf32>
    %60 = arith.select %57, %55, %59 : vector<4x64xi1>, vector<4x64xf32>
    %c3_48 = arith.constant 3 : index
    %c0_49 = arith.constant 0 : index
    %c0_50 = arith.constant 0 : index
    %61 = vector.load %arg5[%c3_48, %c0_49, %c0_50] : memref<4x64x512xf32, #tpu.memory_space<vmem>>, vector<1x64x512xf32>
    %62 = vector.shape_cast %61 : vector<1x64x512xf32> to vector<64x512xf32>
    %cst_51 = arith.constant dense<0.000000e+00> : vector<4x512xf32>
    %63 = tpu.matmul %60, %62, %cst_51 {dimension_numbers = #tpu.dot_dimension_numbers<[1], [0], [0], [1], [0, 0, 1, 1], [], []>} : vector<4x64xf32>, vector<64x512xf32>, vector<4x512xf32> -> vector<4x512xf32>
    %64 = arith.addf %48, %63 : vector<4x512xf32>
    %c0_52 = arith.constant 0 : index
    %c0_53 = arith.constant 0 : index
    %65 = vector.load %arg6[%c0_52, %c0_53] : memref<1x512xf32, #tpu.memory_space<vmem>>, vector<1x512xf32>
    %66 = vector.broadcast %65 : vector<1x512xf32> to vector<4x512xf32>
    %67 = arith.addf %64, %66 : vector<4x512xf32>
    %68 = vector.extract_strided_slice %67 {offsets = [0, 0], sizes = [2, 512], strides = [1, 1]} : vector<4x512xf32> to vector<2x512xf32>
    %69 = vector.extract_strided_slice %67 {offsets = [2, 0], sizes = [2, 512], strides = [1, 1]} : vector<4x512xf32> to vector<2x512xf32>
    %c0_54 = arith.constant 0 : index
    %c0_55 = arith.constant 0 : index
    %70 = vector.load %arg23[%c0_54, %c0_55] : memref<2x512xf32, #tpu.memory_space<vmem>>, vector<2x512xf32>
    tpu.vector_store %arg23[%c0_54, %c0_55], %69 {strides = array<i32>} : memref<2x512xf32, #tpu.memory_space<vmem>>, vector<2x512xf32>,
    %c0_56 = arith.constant 0 : index
    %c0_57 = arith.constant 0 : index
    %71 = vector.load %arg7[%c0_56, %c0_57] : memref<512x512xf32, #tpu.memory_space<vmem>>, vector<512x512xf32>
    %cst_58 = arith.constant dense<0.000000e+00> : vector<2x512xf32>
    %72 = tpu.matmul %68, %71, %cst_58 {dimension_numbers = #tpu.dot_dimension_numbers<[1], [0], [0], [1], [0, 0, 1, 1], [], []>} : vector<2x512xf32>, vector<512x512xf32>, vector<2x512xf32> -> vector<2x512xf32>
    %c0_59 = arith.constant 0 : index
    %c0_60 = arith.constant 0 : index
    %73 = vector.load %arg8[%c0_59, %c0_60] : memref<512x512xf32, #tpu.memory_space<vmem>>, vector<512x512xf32>
    %cst_61 = arith.constant dense<0.000000e+00> : vector<2x512xf32>
    %74 = tpu.matmul %69, %73, %cst_61 {dimension_numbers = #tpu.dot_dimension_numbers<[1], [0], [0], [1], [0, 0, 1, 1], [], []>} : vector<2x512xf32>, vector<512x512xf32>, vector<2x512xf32> -> vector<2x512xf32>
    %75 = arith.addf %72, %74 : vector<2x512xf32>
    %c0_62 = arith.constant 0 : index
    %c0_63 = arith.constant 0 : index
    %76 = vector.load %arg9[%c0_62, %c0_63] : memref<1x512xf32, #tpu.memory_space<vmem>>, vector<1x512xf32>
    %77 = vector.broadcast %76 : vector<1x512xf32> to vector<2x512xf32>
    %78 = arith.addf %75, %77 : vector<2x512xf32>
    %cst_64 = arith.constant 0.000000e+00 : f32
    %79 = vector.broadcast %cst_64 : f32 to vector<2x512xf32>
    %80 = arith.maximumf %78, %79 : vector<2x512xf32>
    %c0_65 = arith.constant 0 : index
    %c0_66 = arith.constant 0 : index
    %81 = vector.load %arg10[%c0_65, %c0_66] : memref<512x6xf32, #tpu.memory_space<vmem>>, vector<512x6xf32>
    %cst_67 = arith.constant dense<0.000000e+00> : vector<2x6xf32>
    %82 = tpu.matmul %80, %81, %cst_67 {dimension_numbers = #tpu.dot_dimension_numbers<[1], [0], [0], [1], [0, 0, 1, 1], [], []>} : vector<2x512xf32>, vector<512x6xf32>, vector<2x6xf32> -> vector<2x6xf32>
    %c0_68 = arith.constant 0 : index
    %c0_69 = arith.constant 0 : index
    %83 = vector.load %arg11[%c0_68, %c0_69] : memref<1x6xf32, #tpu.memory_space<vmem>>, vector<1x6xf32>
    %84 = vector.broadcast %83 : vector<1x6xf32> to vector<2x6xf32>
    %85 = arith.addf %82, %84 : vector<2x6xf32>
    %cst_70 = arith.constant dense<0xFF800000> : vector<2xf32>
    %86 = vector.multi_reduction <maximumf>, %85, %cst_70 [1] : vector<2x6xf32> to vector<2xf32>
    %87 = vector.shape_cast %86 : vector<2xf32> to vector<2x1xf32>
    %88 = vector.broadcast %87 : vector<2x1xf32> to vector<2x6xf32>
    %89 = arith.subf %85, %88 : vector<2x6xf32>
    %90 = math.exp %89 : vector<2x6xf32>
    %cst_71 = arith.constant dense<0.000000e+00> : vector<2xf32>
    %91 = vector.multi_reduction <add>, %90, %cst_71 [1] : vector<2x6xf32> to vector<2xf32>
    %92 = vector.shape_cast %91 : vector<2xf32> to vector<2x1xf32>
    %93 = vector.broadcast %92 : vector<2x1xf32> to vector<2x6xf32>
    %94 = arith.divf %90, %93 : vector<2x6xf32>
    %c0_72 = arith.constant 0 : index
    %c0_73 = arith.constant 0 : index
    %95 = vector.load %arg25[%c0_72, %c0_73] : memref<2x6xf32, #tpu.memory_space<vmem>>, vector<2x6xf32>
    tpu.vector_store %arg25[%c0_72, %c0_73], %94 {strides = array<i32>} : memref<2x6xf32, #tpu.memory_space<vmem>>, vector<2x6xf32>,
    %c0_74 = arith.constant 0 : index
    %c0_75 = arith.constant 0 : index
    %96 = vector.load %arg2[%c0_74, %c0_75] : memref<2x1xf32, #tpu.memory_space<vmem>>, vector<2x1xf32>
    %c0_76 = arith.constant 0 : index
    %c0_77 = arith.constant 0 : index
    %97 = vector.load %arg12[%c0_76, %c0_77] : memref<512x512xf32, #tpu.memory_space<vmem>>, vector<512x512xf32>
    %cst_78 = arith.constant dense<0.000000e+00> : vector<2x512xf32>
    %98 = tpu.matmul %68, %97, %cst_78 {dimension_numbers = #tpu.dot_dimension_numbers<[1], [0], [0], [1], [0, 0, 1, 1], [], []>} : vector<2x512xf32>, vector<512x512xf32>, vector<2x512xf32> -> vector<2x512xf32>
    %c0_79 = arith.constant 0 : index
    %c0_80 = arith.constant 0 : index
    %99 = vector.load %arg13[%c0_79, %c0_80] : memref<1x512xf32, #tpu.memory_space<vmem>>, vector<1x512xf32>
    %100 = vector.broadcast %96 : vector<2x1xf32> to vector<2x512xf32>
    %101 = vector.broadcast %99 : vector<1x512xf32> to vector<2x512xf32>
    %102 = arith.mulf %100, %101 : vector<2x512xf32>
    %103 = arith.addf %98, %102 : vector<2x512xf32>
    %c0_81 = arith.constant 0 : index
    %c0_82 = arith.constant 0 : index
    %104 = vector.load %arg14[%c0_81, %c0_82] : memref<1x512xf32, #tpu.memory_space<vmem>>, vector<1x512xf32>
    %105 = vector.broadcast %104 : vector<1x512xf32> to vector<2x512xf32>
    %106 = arith.addf %103, %105 : vector<2x512xf32>
    %cst_83 = arith.constant 0.000000e+00 : f32
    %107 = vector.broadcast %cst_83 : f32 to vector<2x512xf32>
    %108 = arith.cmpf oge, %106, %107 : vector<2x512xf32>
    %cst_84 = arith.constant 0.00999999977 : f32
    %109 = vector.broadcast %cst_84 : f32 to vector<2x512xf32>
    %110 = arith.mulf %109, %106 : vector<2x512xf32>
    %111 = arith.select %108, %106, %110 : vector<2x512xi1>, vector<2x512xf32>
    %c0_85 = arith.constant 0 : index
    %c0_86 = arith.constant 0 : index
    %112 = vector.load %arg16[%c0_85, %c0_86] : memref<1x512xf32, #tpu.memory_space<vmem>>, vector<1x512xf32>
    %113 = vector.broadcast %96 : vector<2x1xf32> to vector<2x512xf32>
    %114 = vector.broadcast %112 : vector<1x512xf32> to vector<2x512xf32>
    %115 = arith.mulf %113, %114 : vector<2x512xf32>
    %c0_87 = arith.constant 0 : index
    %c0_88 = arith.constant 0 : index
    %116 = vector.load %arg17[%c0_87, %c0_88] : memref<1x512xf32, #tpu.memory_space<vmem>>, vector<1x512xf32>
    %117 = vector.broadcast %116 : vector<1x512xf32> to vector<2x512xf32>
    %118 = arith.addf %115, %117 : vector<2x512xf32>
    %c0_89 = arith.constant 0 : index
    %c0_90 = arith.constant 0 : index
    %119 = vector.load %arg21[%c0_89, %c0_90] : memref<1x512xf32, #tpu.memory_space<vmem>>, vector<1x512xf32>
    %120 = vector.broadcast %96 : vector<2x1xf32> to vector<2x512xf32>
    %121 = vector.broadcast %119 : vector<1x512xf32> to vector<2x512xf32>
    %122 = arith.mulf %120, %121 : vector<2x512xf32>
    %c0_91 = arith.constant 0 : index
    %c0_92 = arith.constant 0 : index
    %123 = vector.load %arg22[%c0_91, %c0_92] : memref<1x512xf32, #tpu.memory_space<vmem>>, vector<1x512xf32>
    %124 = vector.broadcast %123 : vector<1x512xf32> to vector<2x512xf32>
    %125 = arith.addf %122, %124 : vector<2x512xf32>
    %c0_93 = arith.constant 0 : index
    %c0_94 = arith.constant 0 : index
    %126 = vector.load %arg15[%c0_93, %c0_94] : memref<512x512xf32, #tpu.memory_space<vmem>>, vector<512x512xf32>
    %cst_95 = arith.constant dense<0.000000e+00> : vector<2x512xf32>
    %127 = tpu.matmul %111, %126, %cst_95 {dimension_numbers = #tpu.dot_dimension_numbers<[1], [0], [0], [1], [0, 0, 1, 1], [], []>} : vector<2x512xf32>, vector<512x512xf32>, vector<2x512xf32> -> vector<2x512xf32>
    %128 = arith.addf %127, %118 : vector<2x512xf32>
    %cst_96 = arith.constant 0.000000e+00 : f32
    %129 = vector.broadcast %cst_96 : f32 to vector<2x512xf32>
    %130 = arith.cmpf oge, %128, %129 : vector<2x512xf32>
    %cst_97 = arith.constant 0.00999999977 : f32
    %131 = vector.broadcast %cst_97 : f32 to vector<2x512xf32>
    %132 = arith.mulf %131, %128 : vector<2x512xf32>
    %133 = arith.select %130, %128, %132 : vector<2x512xi1>, vector<2x512xf32>
    %c0_98 = arith.constant 0 : index
    %c0_99 = arith.constant 0 : index
    %134 = vector.load %arg18[%c0_98, %c0_99] : memref<512x512xf32, #tpu.memory_space<vmem>>, vector<512x512xf32>
    %cst_100 = arith.constant dense<0.000000e+00> : vector<2x512xf32>
    %135 = tpu.matmul %133, %134, %cst_100 {dimension_numbers = #tpu.dot_dimension_numbers<[1], [0], [0], [1], [0, 0, 1, 1], [], []>} : vector<2x512xf32>, vector<512x512xf32>, vector<2x512xf32> -> vector<2x512xf32>
    %c0_101 = arith.constant 0 : index
    %c0_102 = arith.constant 0 : index
    %136 = vector.load %arg19[%c0_101, %c0_102] : memref<1x512xf32, #tpu.memory_space<vmem>>, vector<1x512xf32>
    %137 = vector.broadcast %136 : vector<1x512xf32> to vector<2x512xf32>
    %138 = arith.addf %135, %137 : vector<2x512xf32>
    %c0_103 = arith.constant 0 : index
    %c0_104 = arith.constant 0 : index
    %139 = vector.load %arg15[%c0_103, %c0_104] : memref<512x512xf32, #tpu.memory_space<vmem>>, vector<512x512xf32>
    %cst_105 = arith.constant dense<0.000000e+00> : vector<2x512xf32>
    %140 = tpu.matmul %138, %139, %cst_105 {dimension_numbers = #tpu.dot_dimension_numbers<[1], [0], [0], [1], [0, 0, 1, 1], [], []>} : vector<2x512xf32>, vector<512x512xf32>, vector<2x512xf32> -> vector<2x512xf32>
    %141 = arith.addf %140, %118 : vector<2x512xf32>
    %cst_106 = arith.constant 0.000000e+00 : f32
    %142 = vector.broadcast %cst_106 : f32 to vector<2x512xf32>
    %143 = arith.cmpf oge, %141, %142 : vector<2x512xf32>
    %cst_107 = arith.constant 0.00999999977 : f32
    %144 = vector.broadcast %cst_107 : f32 to vector<2x512xf32>
    %145 = arith.mulf %144, %141 : vector<2x512xf32>
    %146 = arith.select %143, %141, %145 : vector<2x512xi1>, vector<2x512xf32>
    %c0_108 = arith.constant 0 : index
    %c0_109 = arith.constant 0 : index
    %147 = vector.load %arg18[%c0_108, %c0_109] : memref<512x512xf32, #tpu.memory_space<vmem>>, vector<512x512xf32>
    %cst_110 = arith.constant dense<0.000000e+00> : vector<2x512xf32>
    %148 = tpu.matmul %146, %147, %cst_110 {dimension_numbers = #tpu.dot_dimension_numbers<[1], [0], [0], [1], [0, 0, 1, 1], [], []>} : vector<2x512xf32>, vector<512x512xf32>, vector<2x512xf32> -> vector<2x512xf32>
    %c0_111 = arith.constant 0 : index
    %c0_112 = arith.constant 0 : index
    %149 = vector.load %arg19[%c0_111, %c0_112] : memref<1x512xf32, #tpu.memory_space<vmem>>, vector<1x512xf32>
    %150 = vector.broadcast %149 : vector<1x512xf32> to vector<2x512xf32>
    %151 = arith.addf %148, %150 : vector<2x512xf32>
    %152 = arith.addf %151, %111 : vector<2x512xf32>
    %c0_113 = arith.constant 0 : index
    %c0_114 = arith.constant 0 : index
    %153 = vector.load %arg15[%c0_113, %c0_114] : memref<512x512xf32, #tpu.memory_space<vmem>>, vector<512x512xf32>
    %cst_115 = arith.constant dense<0.000000e+00> : vector<2x512xf32>
    %154 = tpu.matmul %152, %153, %cst_115 {dimension_numbers = #tpu.dot_dimension_numbers<[1], [0], [0], [1], [0, 0, 1, 1], [], []>} : vector<2x512xf32>, vector<512x512xf32>, vector<2x512xf32> -> vector<2x512xf32>
    %155 = arith.addf %154, %118 : vector<2x512xf32>
    %cst_116 = arith.constant 0.000000e+00 : f32
    %156 = vector.broadcast %cst_116 : f32 to vector<2x512xf32>
    %157 = arith.cmpf oge, %155, %156 : vector<2x512xf32>
    %cst_117 = arith.constant 0.00999999977 : f32
    %158 = vector.broadcast %cst_117 : f32 to vector<2x512xf32>
    %159 = arith.mulf %158, %155 : vector<2x512xf32>
    %160 = arith.select %157, %155, %159 : vector<2x512xi1>, vector<2x512xf32>
    %c0_118 = arith.constant 0 : index
    %c0_119 = arith.constant 0 : index
    %161 = vector.load %arg18[%c0_118, %c0_119] : memref<512x512xf32, #tpu.memory_space<vmem>>, vector<512x512xf32>
    %cst_120 = arith.constant dense<0.000000e+00> : vector<2x512xf32>
    %162 = tpu.matmul %160, %161, %cst_120 {dimension_numbers = #tpu.dot_dimension_numbers<[1], [0], [0], [1], [0, 0, 1, 1], [], []>} : vector<2x512xf32>, vector<512x512xf32>, vector<2x512xf32> -> vector<2x512xf32>
    %c0_121 = arith.constant 0 : index
    %c0_122 = arith.constant 0 : index
    %163 = vector.load %arg19[%c0_121, %c0_122] : memref<1x512xf32, #tpu.memory_space<vmem>>, vector<1x512xf32>
    %164 = vector.broadcast %163 : vector<1x512xf32> to vector<2x512xf32>
    %165 = arith.addf %162, %164 : vector<2x512xf32>
    %c0_123 = arith.constant 0 : index
    %c0_124 = arith.constant 0 : index
    %166 = vector.load %arg15[%c0_123, %c0_124] : memref<512x512xf32, #tpu.memory_space<vmem>>, vector<512x512xf32>
    %cst_125 = arith.constant dense<0.000000e+00> : vector<2x512xf32>
    %167 = tpu.matmul %165, %166, %cst_125 {dimension_numbers = #tpu.dot_dimension_numbers<[1], [0], [0], [1], [0, 0, 1, 1], [], []>} : vector<2x512xf32>, vector<512x512xf32>, vector<2x512xf32> -> vector<2x512xf32>
    %168 = arith.addf %167, %118 : vector<2x512xf32>
    %cst_126 = arith.constant 0.000000e+00 : f32
    %169 = vector.broadcast %cst_126 : f32 to vector<2x512xf32>
    %170 = arith.cmpf oge, %168, %169 : vector<2x512xf32>
    %cst_127 = arith.constant 0.00999999977 : f32
    %171 = vector.broadcast %cst_127 : f32 to vector<2x512xf32>
    %172 = arith.mulf %171, %168 : vector<2x512xf32>
    %173 = arith.select %170, %168, %172 : vector<2x512xi1>, vector<2x512xf32>
    %c0_128 = arith.constant 0 : index
    %c0_129 = arith.constant 0 : index
    %174 = vector.load %arg18[%c0_128, %c0_129] : memref<512x512xf32, #tpu.memory_space<vmem>>, vector<512x512xf32>
    %cst_130 = arith.constant dense<0.000000e+00> : vector<2x512xf32>
    %175 = tpu.matmul %173, %174, %cst_130 {dimension_numbers = #tpu.dot_dimension_numbers<[1], [0], [0], [1], [0, 0, 1, 1], [], []>} : vector<2x512xf32>, vector<512x512xf32>, vector<2x512xf32> -> vector<2x512xf32>
    %c0_131 = arith.constant 0 : index
    %c0_132 = arith.constant 0 : index
    %176 = vector.load %arg19[%c0_131, %c0_132] : memref<1x512xf32, #tpu.memory_space<vmem>>, vector<1x512xf32>
    %177 = vector.broadcast %176 : vector<1x512xf32> to vector<2x512xf32>
    %178 = arith.addf %175, %177 : vector<2x512xf32>
    %179 = arith.addf %178, %152 : vector<2x512xf32>
    %c0_133 = arith.constant 0 : index
    %c0_134 = arith.constant 0 : index
    %180 = vector.load %arg15[%c0_133, %c0_134] : memref<512x512xf32, #tpu.memory_space<vmem>>, vector<512x512xf32>
    %cst_135 = arith.constant dense<0.000000e+00> : vector<2x512xf32>
    %181 = tpu.matmul %179, %180, %cst_135 {dimension_numbers = #tpu.dot_dimension_numbers<[1], [0], [0], [1], [0, 0, 1, 1], [], []>} : vector<2x512xf32>, vector<512x512xf32>, vector<2x512xf32> -> vector<2x512xf32>
    %182 = arith.addf %181, %118 : vector<2x512xf32>
    %cst_136 = arith.constant 0.000000e+00 : f32
    %183 = vector.broadcast %cst_136 : f32 to vector<2x512xf32>
    %184 = arith.cmpf oge, %182, %183 : vector<2x512xf32>
    %cst_137 = arith.constant 0.00999999977 : f32
    %185 = vector.broadcast %cst_137 : f32 to vector<2x512xf32>
    %186 = arith.mulf %185, %182 : vector<2x512xf32>
    %187 = arith.select %184, %182, %186 : vector<2x512xi1>, vector<2x512xf32>
    %c0_138 = arith.constant 0 : index
    %c0_139 = arith.constant 0 : index
    %188 = vector.load %arg18[%c0_138, %c0_139] : memref<512x512xf32, #tpu.memory_space<vmem>>, vector<512x512xf32>
    %cst_140 = arith.constant dense<0.000000e+00> : vector<2x512xf32>
    %189 = tpu.matmul %187, %188, %cst_140 {dimension_numbers = #tpu.dot_dimension_numbers<[1], [0], [0], [1], [0, 0, 1, 1], [], []>} : vector<2x512xf32>, vector<512x512xf32>, vector<2x512xf32> -> vector<2x512xf32>
    %c0_141 = arith.constant 0 : index
    %c0_142 = arith.constant 0 : index
    %190 = vector.load %arg19[%c0_141, %c0_142] : memref<1x512xf32, #tpu.memory_space<vmem>>, vector<1x512xf32>
    %191 = vector.broadcast %190 : vector<1x512xf32> to vector<2x512xf32>
    %192 = arith.addf %189, %191 : vector<2x512xf32>
    %c0_143 = arith.constant 0 : index
    %c0_144 = arith.constant 0 : index
    %193 = vector.load %arg15[%c0_143, %c0_144] : memref<512x512xf32, #tpu.memory_space<vmem>>, vector<512x512xf32>
    %cst_145 = arith.constant dense<0.000000e+00> : vector<2x512xf32>
    %194 = tpu.matmul %192, %193, %cst_145 {dimension_numbers = #tpu.dot_dimension_numbers<[1], [0], [0], [1], [0, 0, 1, 1], [], []>} : vector<2x512xf32>, vector<512x512xf32>, vector<2x512xf32> -> vector<2x512xf32>
    %195 = arith.addf %194, %118 : vector<2x512xf32>
    %cst_146 = arith.constant 0.000000e+00 : f32
    %196 = vector.broadcast %cst_146 : f32 to vector<2x512xf32>
    %197 = arith.cmpf oge, %195, %196 : vector<2x512xf32>
    %cst_147 = arith.constant 0.00999999977 : f32
    %198 = vector.broadcast %cst_147 : f32 to vector<2x512xf32>
    %199 = arith.mulf %198, %195 : vector<2x512xf32>
    %200 = arith.select %197, %195, %199 : vector<2x512xi1>, vector<2x512xf32>
    %c0_148 = arith.constant 0 : index
    %c0_149 = arith.constant 0 : index
    %201 = vector.load %arg18[%c0_148, %c0_149] : memref<512x512xf32, #tpu.memory_space<vmem>>, vector<512x512xf32>
    %cst_150 = arith.constant dense<0.000000e+00> : vector<2x512xf32>
    %202 = tpu.matmul %200, %201, %cst_150 {dimension_numbers = #tpu.dot_dimension_numbers<[1], [0], [0], [1], [0, 0, 1, 1], [], []>} : vector<2x512xf32>, vector<512x512xf32>, vector<2x512xf32> -> vector<2x512xf32>
    %c0_151 = arith.constant 0 : index
    %c0_152 = arith.constant 0 : index
    %203 = vector.load %arg19[%c0_151, %c0_152] : memref<1x512xf32, #tpu.memory_space<vmem>>, vector<1x512xf32>
    %204 = vector.broadcast %203 : vector<1x512xf32> to vector<2x512xf32>
    %205 = arith.addf %202, %204 : vector<2x512xf32>
    %206 = arith.addf %205, %179 : vector<2x512xf32>
    %c0_153 = arith.constant 0 : index
    %c0_154 = arith.constant 0 : index
    %207 = vector.load %arg15[%c0_153, %c0_154] : memref<512x512xf32, #tpu.memory_space<vmem>>, vector<512x512xf32>
    %cst_155 = arith.constant dense<0.000000e+00> : vector<2x512xf32>
    %208 = tpu.matmul %206, %207, %cst_155 {dimension_numbers = #tpu.dot_dimension_numbers<[1], [0], [0], [1], [0, 0, 1, 1], [], []>} : vector<2x512xf32>, vector<512x512xf32>, vector<2x512xf32> -> vector<2x512xf32>
    %209 = arith.addf %208, %118 : vector<2x512xf32>
    %cst_156 = arith.constant 0.000000e+00 : f32
    %210 = vector.broadcast %cst_156 : f32 to vector<2x512xf32>
    %211 = arith.cmpf oge, %209, %210 : vector<2x512xf32>
    %cst_157 = arith.constant 0.00999999977 : f32
    %212 = vector.broadcast %cst_157 : f32 to vector<2x512xf32>
    %213 = arith.mulf %212, %209 : vector<2x512xf32>
    %214 = arith.select %211, %209, %213 : vector<2x512xi1>, vector<2x512xf32>
    %c0_158 = arith.constant 0 : index
    %c0_159 = arith.constant 0 : index
    %215 = vector.load %arg18[%c0_158, %c0_159] : memref<512x512xf32, #tpu.memory_space<vmem>>, vector<512x512xf32>
    %cst_160 = arith.constant dense<0.000000e+00> : vector<2x512xf32>
    %216 = tpu.matmul %214, %215, %cst_160 {dimension_numbers = #tpu.dot_dimension_numbers<[1], [0], [0], [1], [0, 0, 1, 1], [], []>} : vector<2x512xf32>, vector<512x512xf32>, vector<2x512xf32> -> vector<2x512xf32>
    %c0_161 = arith.constant 0 : index
    %c0_162 = arith.constant 0 : index
    %217 = vector.load %arg19[%c0_161, %c0_162] : memref<1x512xf32, #tpu.memory_space<vmem>>, vector<1x512xf32>
    %218 = vector.broadcast %217 : vector<1x512xf32> to vector<2x512xf32>
    %219 = arith.addf %216, %218 : vector<2x512xf32>
    %c0_163 = arith.constant 0 : index
    %c0_164 = arith.constant 0 : index
    %220 = vector.load %arg15[%c0_163, %c0_164] : memref<512x512xf32, #tpu.memory_space<vmem>>, vector<512x512xf32>
    %cst_165 = arith.constant dense<0.000000e+00> : vector<2x512xf32>
    %221 = tpu.matmul %219, %220, %cst_165 {dimension_numbers = #tpu.dot_dimension_numbers<[1], [0], [0], [1], [0, 0, 1, 1], [], []>} : vector<2x512xf32>, vector<512x512xf32>, vector<2x512xf32> -> vector<2x512xf32>
    %222 = arith.addf %221, %118 : vector<2x512xf32>
    %cst_166 = arith.constant 0.000000e+00 : f32
    %223 = vector.broadcast %cst_166 : f32 to vector<2x512xf32>
    %224 = arith.cmpf oge, %222, %223 : vector<2x512xf32>
    %cst_167 = arith.constant 0.00999999977 : f32
    %225 = vector.broadcast %cst_167 : f32 to vector<2x512xf32>
    %226 = arith.mulf %225, %222 : vector<2x512xf32>
    %227 = arith.select %224, %222, %226 : vector<2x512xi1>, vector<2x512xf32>
    %c0_168 = arith.constant 0 : index
    %c0_169 = arith.constant 0 : index
    %228 = vector.load %arg18[%c0_168, %c0_169] : memref<512x512xf32, #tpu.memory_space<vmem>>, vector<512x512xf32>
    %cst_170 = arith.constant dense<0.000000e+00> : vector<2x512xf32>
    %229 = tpu.matmul %227, %228, %cst_170 {dimension_numbers = #tpu.dot_dimension_numbers<[1], [0], [0], [1], [0, 0, 1, 1], [], []>} : vector<2x512xf32>, vector<512x512xf32>, vector<2x512xf32> -> vector<2x512xf32>
    %c0_171 = arith.constant 0 : index
    %c0_172 = arith.constant 0 : index
    %230 = vector.load %arg19[%c0_171, %c0_172] : memref<1x512xf32, #tpu.memory_space<vmem>>, vector<1x512xf32>
    %231 = vector.broadcast %230 : vector<1x512xf32> to vector<2x512xf32>
    %232 = arith.addf %229, %231 : vector<2x512xf32>
    %233 = arith.addf %232, %206 : vector<2x512xf32>
    %c0_173 = arith.constant 0 : index
    %c0_174 = arith.constant 0 : index
    %234 = vector.load %arg20[%c0_173, %c0_174] : memref<512x512xf32, #tpu.memory_space<vmem>>, vector<512x512xf32>
    %cst_175 = arith.constant dense<0.000000e+00> : vector<2x512xf32>
    %235 = tpu.matmul %233, %234, %cst_175 {dimension_numbers = #tpu.dot_dimension_numbers<[1], [0], [0], [1], [0, 0, 1, 1], [], []>} : vector<2x512xf32>, vector<512x512xf32>, vector<2x512xf32> -> vector<2x512xf32>
    %236 = arith.addf %235, %125 : vector<2x512xf32>
    %c0_176 = arith.constant 0 : index
    %c0_177 = arith.constant 0 : index
    %237 = vector.load %arg24[%c0_176, %c0_177] : memref<2x512xf32, #tpu.memory_space<vmem>>, vector<2x512xf32>
    tpu.vector_store %arg24[%c0_176, %c0_177], %236 {strides = array<i32>} : memref<2x512xf32, #tpu.memory_space<vmem>>, vector<2x512xf32>,
    return
  }
  func.func @transform_0(%arg0: i32) -> (i32, i32, i32) {
    %c0_i32 = arith.constant 0 : i32
    %c0_i32_0 = arith.constant 0 : i32
    %c0_i32_1 = arith.constant 0 : i32
    %c0_i32_2 = arith.constant 0 : i32
    return %c0_i32, %c0_i32_0, %c0_i32_1 : i32, i32, i32
  }
  func.func @transform_1(%arg0: i32) -> (i32, i32) {
    %c0_i32 = arith.constant 0 : i32
    %c0_i32_0 = arith.constant 0 : i32
    %c0_i32_1 = arith.constant 0 : i32
    return %c0_i32, %c0_i32_0 : i32, i32
  }
  func.func @transform_2(%arg0: i32) -> (i32, i32) {
    %c0_i32 = arith.constant 0 : i32
    %c0_i32_0 = arith.constant 0 : i32
    %c0_i32_1 = arith.constant 0 : i32
    return %c0_i32, %c0_i32_0 : i32, i32
  }
  func.func @transform_3(%arg0: i32) -> (i32, i32) {
    %c0_i32 = arith.constant 0 : i32
    %c0_i32_0 = arith.constant 0 : i32
    %c0_i32_1 = arith.constant 0 : i32
    return %c0_i32, %c0_i32_0 : i32, i32
  }
  func.func @transform_4(%arg0: i32) -> (i32, i32, i32) {
    %c0_i32 = arith.constant 0 : i32
    %c0_i32_0 = arith.constant 0 : i32
    %c0_i32_1 = arith.constant 0 : i32
    %c0_i32_2 = arith.constant 0 : i32
    return %c0_i32, %c0_i32_0, %c0_i32_1 : i32, i32, i32
  }
  func.func @transform_5(%arg0: i32) -> (i32, i32) {
    %c0_i32 = arith.constant 0 : i32
    %c0_i32_0 = arith.constant 0 : i32
    %c0_i32_1 = arith.constant 0 : i32
    return %c0_i32, %c0_i32_0 : i32, i32
  }
  func.func @transform_6(%arg0: i32) -> (i32, i32) {
    %c0_i32 = arith.constant 0 : i32
    %c0_i32_0 = arith.constant 0 : i32
    %c0_i32_1 = arith.constant 0 : i32
    return %c0_i32, %c0_i32_0 : i32, i32
  }
  func.func @transform_7(%arg0: i32) -> (i32, i32) {
    %c0_i32 = arith.constant 0 : i32
    %c0_i32_0 = arith.constant 0 : i32
    %c0_i32_1 = arith.constant 0 : i32
    return %c0_i32, %c0_i32_0 : i32, i32
  }
  func.func @transform_8(%arg0: i32) -> (i32, i32) {
    %c0_i32 = arith.constant 0 : i32
    %c0_i32_0 = arith.constant 0 : i32
    %c0_i32_1 = arith.constant 0 : i32
    return %c0_i32, %c0_i32_0 : i32, i32
  }
  func.func @transform_9(%arg0: i32) -> (i32, i32) {
    %c0_i32 = arith.constant 0 : i32
    %c0_i32_0 = arith.constant 0 : i32
    %c0_i32_1 = arith.constant 0 : i32
    return %c0_i32, %c0_i32_0 : i32, i32
  }
  func.func @transform_10(%arg0: i32) -> (i32, i32) {
    %c0_i32 = arith.constant 0 : i32
    %c0_i32_0 = arith.constant 0 : i32
    %c0_i32_1 = arith.constant 0 : i32
    return %c0_i32, %c0_i32_0 : i32, i32
  }
  func.func @transform_11(%arg0: i32) -> (i32, i32) {
    %c0_i32 = arith.constant 0 : i32
    %c0_i32_0 = arith.constant 0 : i32
    %c0_i32_1 = arith.constant 0 : i32
    return %c0_i32, %c0_i32_0 : i32, i32
  }
  func.func @transform_12(%arg0: i32) -> (i32, i32) {
    %c0_i32 = arith.constant 0 : i32
    %c0_i32_0 = arith.constant 0 : i32
    %c0_i32_1 = arith.constant 0 : i32
    return %c0_i32, %c0_i32_0 : i32, i32
  }
  func.func @transform_13(%arg0: i32) -> (i32, i32) {
    %c0_i32 = arith.constant 0 : i32
    %c0_i32_0 = arith.constant 0 : i32
    %c0_i32_1 = arith.constant 0 : i32
    return %c0_i32, %c0_i32_0 : i32, i32
  }
  func.func @transform_14(%arg0: i32) -> (i32, i32) {
    %c0_i32 = arith.constant 0 : i32
    %c0_i32_0 = arith.constant 0 : i32
    %c0_i32_1 = arith.constant 0 : i32
    return %c0_i32, %c0_i32_0 : i32, i32
  }
  func.func @transform_15(%arg0: i32) -> (i32, i32) {
    %c0_i32 = arith.constant 0 : i32
    %c0_i32_0 = arith.constant 0 : i32
    %c0_i32_1 = arith.constant 0 : i32
    return %c0_i32, %c0_i32_0 : i32, i32
  }
  func.func @transform_16(%arg0: i32) -> (i32, i32) {
    %c0_i32 = arith.constant 0 : i32
    %c0_i32_0 = arith.constant 0 : i32
    %c0_i32_1 = arith.constant 0 : i32
    return %c0_i32, %c0_i32_0 : i32, i32
  }
  func.func @transform_17(%arg0: i32) -> (i32, i32) {
    %c0_i32 = arith.constant 0 : i32
    %c0_i32_0 = arith.constant 0 : i32
    %c0_i32_1 = arith.constant 0 : i32
    return %c0_i32, %c0_i32_0 : i32, i32
  }
  func.func @transform_18(%arg0: i32) -> (i32, i32) {
    %c0_i32 = arith.constant 0 : i32
    %c0_i32_0 = arith.constant 0 : i32
    %c0_i32_1 = arith.constant 0 : i32
    return %c0_i32, %c0_i32_0 : i32, i32
  }
  func.func @transform_19(%arg0: i32) -> (i32, i32) {
    %c0_i32 = arith.constant 0 : i32
    %c0_i32_0 = arith.constant 0 : i32
    %c0_i32_1 = arith.constant 0 : i32
    return %c0_i32, %c0_i32_0 : i32, i32
  }
  func.func @transform_20(%arg0: i32) -> (i32, i32) {
    %c0_i32 = arith.constant 0 : i32
    %c0_i32_0 = arith.constant 0 : i32
    %c0_i32_1 = arith.constant 0 : i32
    return %c0_i32, %c0_i32_0 : i32, i32
  }
  func.func @transform_21(%arg0: i32) -> (i32, i32) {
    %c0_i32 = arith.constant 0 : i32
    %c0_i32_0 = arith.constant 0 : i32
    %c0_i32_1 = arith.constant 0 : i32
    return %c0_i32, %c0_i32_0 : i32, i32
  }
  func.func @transform_22(%arg0: i32) -> (i32, i32) {
    %c0_i32 = arith.constant 0 : i32
    %c0_i32_0 = arith.constant 0 : i32
    %c0_i32_1 = arith.constant 0 : i32
    return %c0_i32, %c0_i32_0 : i32, i32
  }
  func.func @transform_23(%arg0: i32) -> (i32, i32) {
    %c0_i32 = arith.constant 0 : i32
    %c0_i32_0 = arith.constant 0 : i32
    %c0_i32_1 = arith.constant 0 : i32
    return %c0_i32, %c0_i32_0 : i32, i32
  }
  func.func @transform_24(%arg0: i32) -> (i32, i32) {
    %c0_i32 = arith.constant 0 : i32
    %c0_i32_0 = arith.constant 0 : i32
    %c0_i32_1 = arith.constant 0 : i32
    return %c0_i32, %c0_i32_0 : i32, i32
  }
}

</mosaic_0001>

<llo_original>
// kernel: icm_forward.3
$region0: #{icm_forward.3}
  #allocation0 [shape = 'u32[]', space=smem, size = 0x4, offset = 0x4, fixed_abs, tag = 'smem constant byte address 0x4 - core index']
  #allocation1 [shape = 'u32[144,128]{1,0:T(1,128)}', space=vmem, size = 0x12000, scoped, tag = 'internal scratch']
  %s0 = inlined_call_operand.vmem [shape: f32[484,256], index: 0, kind: input, shape index: {}]
  %s1 = inlined_call_operand.vmem [shape: f32[256,32], index: 1, kind: input, shape index: {}]
  %s2 = inlined_call_operand.vmem [shape: f32[1,32], index: 2, kind: input, shape index: {}]
  %s3 = inlined_call_operand.vmem [shape: f32[484,32], index: 3, kind: output, shape index: {}]
  %s4 = sld [smem:[#allocation0]]
  $region22: #{icm_forward.3} parent=0
    _
  %s6 = ssub.s32 1, %s4
  %s7 = scalar_select 0, %s6, %s4
  // Predicated region
  $region2: #{icm_forward.3} parent=0 // pred_check
    _
  $region3: #{icm_forward.3} parent=0 // pred_check_branch
    %9 = sbr.rel (0) target = $region5
  $region4: #{icm_forward.3} parent=0 // pred_region
    _
  $region5: #{icm_forward.3} parent=0 // pred_fallthru
    _
  // Predicated region
  $region6: #{icm_forward.3} parent=0 // pred_check
    _
  $region7: #{icm_forward.3} parent=0 // pred_check_branch
    %11 = sbr.rel (0) target = $region9
  $region8: #{icm_forward.3} parent=0 // pred_region
    _
  $region9: #{icm_forward.3} parent=0 // pred_fallthru
    _
  // Predicated region
  $region10: #{icm_forward.3} parent=0 // pred_check
    _
  $region11: #{icm_forward.3} parent=0 // pred_check_branch
    %13 = sbr.rel (0) target = $region13
  $region12: #{icm_forward.3} parent=0 // pred_region
    _
  $region13: #{icm_forward.3} parent=0 // pred_fallthru
    _
  %v14 = vld [vmem:[%s0] sm:$0xff]
  %v15 = vld [vmem:[%s0 + $0x8] sm:$0xff]
  %v16 = vld [vmem:[%s0 + $0x10] sm:$0xff]
  %v17 = vld [vmem:[%s0 + $0x18] sm:$0xff]
  %v18 = vld [vmem:[%s0 + $0x20] sm:$0xff]
  %v19 = vld [vmem:[%s0 + $0x28] sm:$0xff]
  %v20 = vld [vmem:[%s0 + $0x30] sm:$0xff]
  %v21 = vld [vmem:[%s0 + $0x38] sm:$0xff]
  %v22 = vld [vmem:[%s0 + $0x40] sm:$0xff]
  %v23 = vld [vmem:[%s0 + $0x48] sm:$0xff]
  %v24 = vld [vmem:[%s0 + $0x50] sm:$0xff]
  %v25 = vld [vmem:[%s0 + $0x58] sm:$0xff]
  %v26 = vld [vmem:[%s0 + $0x60] sm:$0xff]
  %v27 = vld [vmem:[%s0 + $0x68] sm:$0xff]
  %v28 = vld [vmem:[%s0 + $0x70] sm:$0xff]
  %v29 = vld [vmem:[%s0 + $0x78] sm:$0xff]
  %v30 = vld [vmem:[%s0 + $0x80] sm:$0xff]
  %v31 = vld [vmem:[%s0 + $0x88] sm:$0xff]
  %v32 = vld [vmem:[%s0 + $0x90] sm:$0xff]
  %v33 = vld [vmem:[%s0 + $0x98] sm:$0xff]
  %v34 = vld [vmem:[%s0 + $0xa0] sm:$0xff]
  %v35 = vld [vmem:[%s0 + $0xa8] sm:$0xff]
  %v36 = vld [vmem:[%s0 + $0xb0] sm:$0xff]
  %v37 = vld [vmem:[%s0 + $0xb8] sm:$0xff]
  %v38 = vld [vmem:[%s0 + $0xc0] sm:$0xff]
  %v39 = vld [vmem:[%s0 + $0xc8] sm:$0xff]
  %v40 = vld [vmem:[%s0 + $0xd0] sm:$0xff]
  %v41 = vld [vmem:[%s0 + $0xd8] sm:$0xff]
  %v42 = vld [vmem:[%s0 + $0xe0] sm:$0xff]
  %v43 = vld [vmem:[%s0 + $0xe8] sm:$0xff]
  %v44 = vld [vmem:[%s0 + $0xf0] sm:$0xff]
  %v45 = vld [vmem:[%s0 + $0xf8] sm:$0xff]
  %v46 = vld [vmem:[%s0 + $0x100] sm:$0xff]
  %v47 = vld [vmem:[%s0 + $0x108] sm:$0xff]
  %v48 = vld [vmem:[%s0 + $0x110] sm:$0xff]
  %v49 = vld [vmem:[%s0 + $0x118] sm:$0xff]
  %v50 = vld [vmem:[%s0 + $0x120] sm:$0xff]
  %v51 = vld [vmem:[%s0 + $0x128] sm:$0xff]
  %v52 = vld [vmem:[%s0 + $0x130] sm:$0xff]
  %v53 = vld [vmem:[%s0 + $0x138] sm:$0xff]
  %v54 = vld [vmem:[%s0 + $0x140] sm:$0xff]
  %v55 = vld [vmem:[%s0 + $0x148] sm:$0xff]
  %v56 = vld [vmem:[%s0 + $0x150] sm:$0xff]
  %v57 = vld [vmem:[%s0 + $0x158] sm:$0xff]
  %v58 = vld [vmem:[%s0 + $0x160] sm:$0xff]
  %v59 = vld [vmem:[%s0 + $0x168] sm:$0xff]
  %v60 = vld [vmem:[%s0 + $0x170] sm:$0xff]
  %v61 = vld [vmem:[%s0 + $0x178] sm:$0xff]
  %v62 = vld [vmem:[%s0 + $0x180] sm:$0xff]
  %v63 = vld [vmem:[%s0 + $0x188] sm:$0xff]
  %v64 = vld [vmem:[%s0 + $0x190] sm:$0xff]
  %v65 = vld [vmem:[%s0 + $0x198] sm:$0xff]
  %v66 = vld [vmem:[%s0 + $0x1a0] sm:$0xff]
  %v67 = vld [vmem:[%s0 + $0x1a8] sm:$0xff]
  %v68 = vld [vmem:[%s0 + $0x1b0] sm:$0xff]
  %v69 = vld [vmem:[%s0 + $0x1b8] sm:$0xff]
  %v70 = vld [vmem:[%s0 + $0x1c0] sm:$0xff]
  %v71 = vld [vmem:[%s0 + $0x1c8] sm:$0xff]
  %v72 = vld [vmem:[%s0 + $0x1d0] sm:$0xff]
  %v73 = vld [vmem:[%s0 + $0x1d8] sm:$0xff]
  %v74 = vld [vmem:[%s0 + $0x1e0] sm:$0xff]
  %v75 = vld [vmem:[%s0 + $0x1e8] sm:$0xff]
  %v76 = vld [vmem:[%s0 + $0x1f0] sm:$0xff]
  %v77 = vld [vmem:[%s0 + $0x1f8] sm:$0xff]
  %v78 = vld [vmem:[%s0 + $0x200] sm:$0xff]
  %v79 = vld [vmem:[%s0 + $0x208] sm:$0xff]
  %v80 = vld [vmem:[%s0 + $0x210] sm:$0xff]
  %v81 = vld [vmem:[%s0 + $0x218] sm:$0xff]
  %v82 = vld [vmem:[%s0 + $0x220] sm:$0xff]
  %v83 = vld [vmem:[%s0 + $0x228] sm:$0xff]
  %v84 = vld [vmem:[%s0 + $0x230] sm:$0xff]
  %v85 = vld [vmem:[%s0 + $0x238] sm:$0xff]
  %v86 = vld [vmem:[%s0 + $0x240] sm:$0xff]
  %v87 = vld [vmem:[%s0 + $0x248] sm:$0xff]
  %v88 = vld [vmem:[%s0 + $0x250] sm:$0xff]
  %v89 = vld [vmem:[%s0 + $0x258] sm:$0xff]
  %v90 = vld [vmem:[%s0 + $0x260] sm:$0xff]
  %v91 = vld [vmem:[%s0 + $0x268] sm:$0xff]
  %v92 = vld [vmem:[%s0 + $0x270] sm:$0xff]
  %v93 = vld [vmem:[%s0 + $0x278] sm:$0xff]
  %v94 = vld [vmem:[%s0 + $0x280] sm:$0xff]
  %v95 = vld [vmem:[%s0 + $0x288] sm:$0xff]
  %v96 = vld [vmem:[%s0 + $0x290] sm:$0xff]
  %v97 = vld [vmem:[%s0 + $0x298] sm:$0xff]
  %v98 = vld [vmem:[%s0 + $0x2a0] sm:$0xff]
  %v99 = vld [vmem:[%s0 + $0x2a8] sm:$0xff]
  %v100 = vld [vmem:[%s0 + $0x2b0] sm:$0xff]
  %v101 = vld [vmem:[%s0 + $0x2b8] sm:$0xff]
  %v102 = vld [vmem:[%s0 + $0x2c0] sm:$0xff]
  %v103 = vld [vmem:[%s0 + $0x2c8] sm:$0xff]
  %v104 = vld [vmem:[%s0 + $0x2d0] sm:$0xff]
  %v105 = vld [vmem:[%s0 + $0x2d8] sm:$0xff]
  %v106 = vld [vmem:[%s0 + $0x2e0] sm:$0xff]
  %v107 = vld [vmem:[%s0 + $0x2e8] sm:$0xff]
  %v108 = vld [vmem:[%s0 + $0x2f0] sm:$0xff]
  %v109 = vld [vmem:[%s0 + $0x2f8] sm:$0xff]
  %v110 = vld [vmem:[%s0 + $0x300] sm:$0xff]
  %v111 = vld [vmem:[%s0 + $0x308] sm:$0xff]
  %v112 = vld [vmem:[%s0 + $0x310] sm:$0xff]
  %v113 = vld [vmem:[%s0 + $0x318] sm:$0xff]
  %v114 = vld [vmem:[%s0 + $0x320] sm:$0xff]
  %v115 = vld [vmem:[%s0 + $0x328] sm:$0xff]
  %v116 = vld [vmem:[%s0 + $0x330] sm:$0xff]
  %v117 = vld [vmem:[%s0 + $0x338] sm:$0xff]
  %v118 = vld [vmem:[%s0 + $0x340] sm:$0xff]
  %v119 = vld [vmem:[%s0 + $0x348] sm:$0xff]
  %v120 = vld [vmem:[%s0 + $0x350] sm:$0xff]
  %v121 = vld [vmem:[%s0 + $0x358] sm:$0xff]
  %v122 = vld [vmem:[%s0 + $0x360] sm:$0xff]
  %v123 = vld [vmem:[%s0 + $0x368] sm:$0xff]
  %v124 = vld [vmem:[%s0 + $0x370] sm:$0xff]
  %v125 = vld [vmem:[%s0 + $0x378] sm:$0xff]
  %v126 = vld [vmem:[%s0 + $0x380] sm:$0xff]
  %v127 = vld [vmem:[%s0 + $0x388] sm:$0xff]
  %v128 = vld [vmem:[%s0 + $0x390] sm:$0xff]
  %v129 = vld [vmem:[%s0 + $0x398] sm:$0xff]
  %v130 = vld [vmem:[%s0 + $0x3a0] sm:$0xff]
  %v131 = vld [vmem:[%s0 + $0x3a8] sm:$0xff]
  %v132 = vld [vmem:[%s0 + $0x3b0] sm:$0xff]
  %v133 = vld [vmem:[%s0 + $0x3b8] sm:$0xff]
  %v134 = vld [vmem:[%s0 + $0x3c0] sm:$0xf]
  %v135 = vld [vmem:[%s0 + $0x3c8] sm:$0xf]
  %v136 = vld [vmem:[%s1] sm:$0xff]
  %v137 = vld [vmem:[%s1 + $0x8] sm:$0xff]
  %v138 = vld [vmem:[%s1 + $0x10] sm:$0xff]
  %v139 = vld [vmem:[%s1 + $0x18] sm:$0xff]
  %v140 = vld [vmem:[%s1 + $0x20] sm:$0xff]
  %v141 = vld [vmem:[%s1 + $0x28] sm:$0xff]
  %v142 = vld [vmem:[%s1 + $0x30] sm:$0xff]
  %v143 = vld [vmem:[%s1 + $0x38] sm:$0xff]
  %v144 = vld [vmem:[%s1 + $0x40] sm:$0xff]
  %v145 = vld [vmem:[%s1 + $0x48] sm:$0xff]
  %v146 = vld [vmem:[%s1 + $0x50] sm:$0xff]
  %v147 = vld [vmem:[%s1 + $0x58] sm:$0xff]
  %v148 = vld [vmem:[%s1 + $0x60] sm:$0xff]
  %v149 = vld [vmem:[%s1 + $0x68] sm:$0xff]
  %v150 = vld [vmem:[%s1 + $0x70] sm:$0xff]
  %v151 = vld [vmem:[%s1 + $0x78] sm:$0xff]
  %v152 = vld [vmem:[%s1 + $0x80] sm:$0xff]
  %v153 = vld [vmem:[%s1 + $0x88] sm:$0xff]
  %v154 = vld [vmem:[%s1 + $0x90] sm:$0xff]
  %v155 = vld [vmem:[%s1 + $0x98] sm:$0xff]
  %v156 = vld [vmem:[%s1 + $0xa0] sm:$0xff]
  %v157 = vld [vmem:[%s1 + $0xa8] sm:$0xff]
  %v158 = vld [vmem:[%s1 + $0xb0] sm:$0xff]
  %v159 = vld [vmem:[%s1 + $0xb8] sm:$0xff]
  %v160 = vld [vmem:[%s1 + $0xc0] sm:$0xff]
  %v161 = vld [vmem:[%s1 + $0xc8] sm:$0xff]
  %v162 = vld [vmem:[%s1 + $0xd0] sm:$0xff]
  %v163 = vld [vmem:[%s1 + $0xd8] sm:$0xff]
  %v164 = vld [vmem:[%s1 + $0xe0] sm:$0xff]
  %v165 = vld [vmem:[%s1 + $0xe8] sm:$0xff]
  %v166 = vld [vmem:[%s1 + $0xf0] sm:$0xff]
  %v167 = vld [vmem:[%s1 + $0xf8] sm:$0xff]
  %v168 = vld [vmem:[%s2] sm:$0x1]
  %v170 = vlaneseq
  %v171 = vshrl.u32 %v170, 7
  %v172 = vsub.s32 0, %v171
  %v173 = vrot.slane %v168, %v172
  %175 = vmatprep.subr.mxu0 0.0
  %176 = vmatpush1.msra.mxu0 %v151
  %177 = vmatprep.subr.mxu0 0.0
  %178 = vmatpush1.msra.mxu0 %v150
  %179 = vmatprep.subr.mxu0 0.0
  %180 = vmatpush1.msra.mxu0 %v149
  %181 = vmatprep.subr.mxu0 0.0
  %182 = vmatpush1.msra.mxu0 %v148
  %183 = vmatprep.subr.mxu0 0.0
  %184 = vmatpush1.msra.mxu0 %v147
  %185 = vmatprep.subr.mxu0 0.0
  %186 = vmatpush1.msra.mxu0 %v146
  %187 = vmatprep.subr.mxu0 0.0
  %188 = vmatpush1.msra.mxu0 %v145
  %189 = vmatprep.subr.mxu0 0.0
  %190 = vmatpush1.msra.mxu0 %v144
  %191 = vmatprep.subr.mxu0 0.0
  %192 = vmatpush1.msra.mxu0 %v143
  %193 = vmatprep.subr.mxu0 0.0
  %194 = vmatpush1.msra.mxu0 %v142
  %195 = vmatprep.subr.mxu0 0.0
  %196 = vmatpush1.msra.mxu0 %v141
  %197 = vmatprep.subr.mxu0 0.0
  %198 = vmatpush1.msra.mxu0 %v140
  %199 = vmatprep.subr.mxu0 0.0
  %200 = vmatpush1.msra.mxu0 %v139
  %201 = vmatprep.subr.mxu0 0.0
  %202 = vmatpush1.msra.mxu0 %v138
  %203 = vmatprep.subr.mxu0 0.0
  %204 = vmatpush1.msra.mxu0 %v137
  %205 = vmatprep.subr.mxu0 0.0
  %206 = vmatpush1.msra.mxu0 %v136
  %207 = vmatprep.subr.mxu0 0.0
  %208 = vmatpush2.msra.mxu0 %v167
  %209 = vmatprep.subr.mxu0 0.0
  %210 = vmatpush2.msra.mxu0 %v166
  %211 = vmatprep.subr.mxu0 0.0
  %212 = vmatpush2.msra.mxu0 %v165
  %213 = vmatprep.subr.mxu0 0.0
  %214 = vmatpush2.msra.mxu0 %v164
  %215 = vmatprep.subr.mxu0 0.0
  %216 = vmatpush2.msra.mxu0 %v163
  %217 = vmatprep.subr.mxu0 0.0
  %218 = vmatpush2.msra.mxu0 %v162
  %219 = vmatprep.subr.mxu0 0.0
  %220 = vmatpush2.msra.mxu0 %v161
  %221 = vmatprep.subr.mxu0 0.0
  %222 = vmatpush2.msra.mxu0 %v160
  %223 = vmatprep.subr.mxu0 0.0
  %224 = vmatpush2.msra.mxu0 %v159
  %225 = vmatprep.subr.mxu0 0.0
  %226 = vmatpush2.msra.mxu0 %v158
  %227 = vmatprep.subr.mxu0 0.0
  %228 = vmatpush2.msra.mxu0 %v157
  %229 = vmatprep.subr.mxu0 0.0
  %230 = vmatpush2.msra.mxu0 %v156
  %231 = vmatprep.subr.mxu0 0.0
  %232 = vmatpush2.msra.mxu0 %v155
  %233 = vmatprep.subr.mxu0 0.0
  %234 = vmatpush2.msra.mxu0 %v154
  %235 = vmatprep.subr.mxu0 0.0
  %236 = vmatpush2.msra.mxu0 %v153
  %237 = vmatprep.subr.mxu0 0.0
  %238 = vmatpush2.msra.mxu0 %v152
  %239 = vmatprep.mubr.f32.mxu0 %v15
  %240 = vmatmul.mubr.f32.gmra.mxu0 %v14
  %v241 = vpop.f32.mrf.mxu0
  %v242 = vadd.f32 %v173, %v241
  %v243 = vpop.f32.mrf.mxu0
  %244 = vmatprep.mubr.f32.mxu0 %v17
  %245 = vmatmul.mubr.f32.gmra.mxu0 %v16
  %v246 = vpop.f32.mrf.mxu0
  %v247 = vadd.f32 %v173, %v246
  %v248 = vpop.f32.mrf.mxu0
  %249 = vmatprep.mubr.f32.mxu0 %v19
  %250 = vmatmul.mubr.f32.gmra.mxu0 %v18
  %v251 = vpop.f32.mrf.mxu0
  %v252 = vadd.f32 %v173, %v251
  %v253 = vpop.f32.mrf.mxu0
  %254 = vmatprep.mubr.f32.mxu0 %v21
  %255 = vmatmul.mubr.f32.gmra.mxu0 %v20
  %v256 = vpop.f32.mrf.mxu0
  %v257 = vadd.f32 %v173, %v256
  %v258 = vpop.f32.mrf.mxu0
  %259 = vmatprep.mubr.f32.mxu0 %v23
  %260 = vmatmul.mubr.f32.gmra.mxu0 %v22
  %v261 = vpop.f32.mrf.mxu0
  %v262 = vadd.f32 %v173, %v261
  %v263 = vpop.f32.mrf.mxu0
  %264 = vmatprep.mubr.f32.mxu0 %v25
  %265 = vmatmul.mubr.f32.gmra.mxu0 %v24
  %v266 = vpop.f32.mrf.mxu0
  %v267 = vadd.f32 %v173, %v266
  %v268 = vpop.f32.mrf.mxu0
  %269 = vmatprep.mubr.f32.mxu0 %v27
  %270 = vmatmul.mubr.f32.gmra.mxu0 %v26
  %v271 = vpop.f32.mrf.mxu0
  %v272 = vadd.f32 %v173, %v271
  %v273 = vpop.f32.mrf.mxu0
  %274 = vmatprep.mubr.f32.mxu0 %v29
  %275 = vmatmul.mubr.f32.gmra.mxu0 %v28
  %v276 = vpop.f32.mrf.mxu0
  %v277 = vadd.f32 %v173, %v276
  %v278 = vpop.f32.mrf.mxu0
  %279 = vmatprep.mubr.f32.mxu0 %v31
  %280 = vmatmul.mubr.f32.gmra.mxu0 %v30
  %v281 = vpop.f32.mrf.mxu0
  %v282 = vadd.f32 %v173, %v281
  %v283 = vpop.f32.mrf.mxu0
  %284 = vmatprep.mubr.f32.mxu0 %v33
  %285 = vmatmul.mubr.f32.gmra.mxu0 %v32
  %v286 = vpop.f32.mrf.mxu0
  %v287 = vadd.f32 %v173, %v286
  %v288 = vpop.f32.mrf.mxu0
  %289 = vmatprep.mubr.f32.mxu0 %v35
  %290 = vmatmul.mubr.f32.gmra.mxu0 %v34
  %v291 = vpop.f32.mrf.mxu0
  %v292 = vadd.f32 %v173, %v291
  %v293 = vpop.f32.mrf.mxu0
  %294 = vmatprep.mubr.f32.mxu0 %v37
  %295 = vmatmul.mubr.f32.gmra.mxu0 %v36
  %v296 = vpop.f32.mrf.mxu0
  %v297 = vadd.f32 %v173, %v296
  %v298 = vpop.f32.mrf.mxu0
  %299 = vmatprep.mubr.f32.mxu0 %v39
  %300 = vmatmul.mubr.f32.gmra.mxu0 %v38
  %v301 = vpop.f32.mrf.mxu0
  %v302 = vadd.f32 %v173, %v301
  %v303 = vpop.f32.mrf.mxu0
  %304 = vmatprep.mubr.f32.mxu0 %v41
  %305 = vmatmul.mubr.f32.gmra.mxu0 %v40
  %v306 = vpop.f32.mrf.mxu0
  %v307 = vadd.f32 %v173, %v306
  %v308 = vpop.f32.mrf.mxu0
  %309 = vmatprep.mubr.f32.mxu0 %v43
  %310 = vmatmul.mubr.f32.gmra.mxu0 %v42
  %v311 = vpop.f32.mrf.mxu0
  %v312 = vadd.f32 %v173, %v311
  %v313 = vpop.f32.mrf.mxu0
  %314 = vmatprep.mubr.f32.mxu0 %v45
  %315 = vmatmul.mubr.f32.gmra.mxu0 %v44
  %v316 = vpop.f32.mrf.mxu0
  %v317 = vadd.f32 %v173, %v316
  %v318 = vpop.f32.mrf.mxu0
  %319 = vmatprep.mubr.f32.mxu0 %v47
  %320 = vmatmul.mubr.f32.gmra.mxu0 %v46
  %v321 = vpop.f32.mrf.mxu0
  %v322 = vadd.f32 %v173, %v321
  %v323 = vpop.f32.mrf.mxu0
  %324 = vmatprep.mubr.f32.mxu0 %v49
  %325 = vmatmul.mubr.f32.gmra.mxu0 %v48
  %v326 = vpop.f32.mrf.mxu0
  %v327 = vadd.f32 %v173, %v326
  %v328 = vpop.f32.mrf.mxu0
  %329 = vmatprep.mubr.f32.mxu0 %v51
  %330 = vmatmul.mubr.f32.gmra.mxu0 %v50
  %v331 = vpop.f32.mrf.mxu0
  %v332 = vadd.f32 %v173, %v331
  %v333 = vpop.f32.mrf.mxu0
  %334 = vmatprep.mubr.f32.mxu0 %v53
  %335 = vmatmul.mubr.f32.gmra.mxu0 %v52
  %v336 = vpop.f32.mrf.mxu0
  %v337 = vadd.f32 %v173, %v336
  %v338 = vpop.f32.mrf.mxu0
  %339 = vmatprep.mubr.f32.mxu0 %v55
  %340 = vmatmul.mubr.f32.gmra.mxu0 %v54
  %v341 = vpop.f32.mrf.mxu0
  %v342 = vadd.f32 %v173, %v341
  %v343 = vpop.f32.mrf.mxu0
  %344 = vmatprep.mubr.f32.mxu0 %v57
  %345 = vmatmul.mubr.f32.gmra.mxu0 %v56
  %v346 = vpop.f32.mrf.mxu0
  %v347 = vadd.f32 %v173, %v346
  %v348 = vpop.f32.mrf.mxu0
  %349 = vmatprep.mubr.f32.mxu0 %v59
  %350 = vmatmul.mubr.f32.gmra.mxu0 %v58
  %v351 = vpop.f32.mrf.mxu0
  %v352 = vadd.f32 %v173, %v351
  %v353 = vpop.f32.mrf.mxu0
  %354 = vmatprep.mubr.f32.mxu0 %v61
  %355 = vmatmul.mubr.f32.gmra.mxu0 %v60
  %v356 = vpop.f32.mrf.mxu0
  %v357 = vadd.f32 %v173, %v356
  %v358 = vpop.f32.mrf.mxu0
  %359 = vmatprep.mubr.f32.mxu0 %v63
  %360 = vmatmul.mubr.f32.gmra.mxu0 %v62
  %v361 = vpop.f32.mrf.mxu0
  %v362 = vadd.f32 %v173, %v361
  %v363 = vpop.f32.mrf.mxu0
  %364 = vmatprep.mubr.f32.mxu0 %v65
  %365 = vmatmul.mubr.f32.gmra.mxu0 %v64
  %v366 = vpop.f32.mrf.mxu0
  %v367 = vadd.f32 %v173, %v366
  %v368 = vpop.f32.mrf.mxu0
  %369 = vmatprep.mubr.f32.mxu0 %v67
  %370 = vmatmul.mubr.f32.gmra.mxu0 %v66
  %v371 = vpop.f32.mrf.mxu0
  %v372 = vadd.f32 %v173, %v371
  %v373 = vpop.f32.mrf.mxu0
  %374 = vmatprep.mubr.f32.mxu0 %v69
  %375 = vmatmul.mubr.f32.gmra.mxu0 %v68
  %v376 = vpop.f32.mrf.mxu0
  %v377 = vadd.f32 %v173, %v376
  %v378 = vpop.f32.mrf.mxu0
  %379 = vmatprep.mubr.f32.mxu0 %v71
  %380 = vmatmul.mubr.f32.gmra.mxu0 %v70
  %v381 = vpop.f32.mrf.mxu0
  %v382 = vadd.f32 %v173, %v381
  %v383 = vpop.f32.mrf.mxu0
  %384 = vmatprep.mubr.f32.mxu0 %v73
  %385 = vmatmul.mubr.f32.gmra.mxu0 %v72
  %v386 = vpop.f32.mrf.mxu0
  %v387 = vadd.f32 %v173, %v386
  %v388 = vpop.f32.mrf.mxu0
  %389 = vmatprep.mubr.f32.mxu0 %v75
  %390 = vmatmul.mubr.f32.gmra.mxu0 %v74
  %v391 = vpop.f32.mrf.mxu0
  %v392 = vadd.f32 %v173, %v391
  %v393 = vpop.f32.mrf.mxu0
  %394 = vmatprep.mubr.f32.mxu0 %v77
  %395 = vmatmul.mubr.f32.gmra.mxu0 %v76
  %v396 = vpop.f32.mrf.mxu0
  %v397 = vadd.f32 %v173, %v396
  %v398 = vpop.f32.mrf.mxu0
  %399 = vmatprep.mubr.f32.mxu0 %v79
  %400 = vmatmul.mubr.f32.gmra.mxu0 %v78
  %v401 = vpop.f32.mrf.mxu0
  %v402 = vadd.f32 %v173, %v401
  %v403 = vpop.f32.mrf.mxu0
  %404 = vmatprep.mubr.f32.mxu0 %v81
  %405 = vmatmul.mubr.f32.gmra.mxu0 %v80
  %v406 = vpop.f32.mrf.mxu0
  %v407 = vadd.f32 %v173, %v406
  %v408 = vpop.f32.mrf.mxu0
  %409 = vmatprep.mubr.f32.mxu0 %v83
  %410 = vmatmul.mubr.f32.gmra.mxu0 %v82
  %v411 = vpop.f32.mrf.mxu0
  %v412 = vadd.f32 %v173, %v411
  %v413 = vpop.f32.mrf.mxu0
  %414 = vmatprep.mubr.f32.mxu0 %v85
  %415 = vmatmul.mubr.f32.gmra.mxu0 %v84
  %v416 = vpop.f32.mrf.mxu0
  %v417 = vadd.f32 %v173, %v416
  %v418 = vpop.f32.mrf.mxu0
  %419 = vmatprep.mubr.f32.mxu0 %v87
  %420 = vmatmul.mubr.f32.gmra.mxu0 %v86
  %v421 = vpop.f32.mrf.mxu0
  %v422 = vadd.f32 %v173, %v421
  %v423 = vpop.f32.mrf.mxu0
  %424 = vmatprep.mubr.f32.mxu0 %v89
  %425 = vmatmul.mubr.f32.gmra.mxu0 %v88
  %v426 = vpop.f32.mrf.mxu0
  %v427 = vadd.f32 %v173, %v426
  %v428 = vpop.f32.mrf.mxu0
  %429 = vmatprep.mubr.f32.mxu0 %v91
  %430 = vmatmul.mubr.f32.gmra.mxu0 %v90
  %v431 = vpop.f32.mrf.mxu0
  %v432 = vadd.f32 %v173, %v431
  %v433 = vpop.f32.mrf.mxu0
  %434 = vmatprep.mubr.f32.mxu0 %v93
  %435 = vmatmul.mubr.f32.gmra.mxu0 %v92
  %v436 = vpop.f32.mrf.mxu0
  %v437 = vadd.f32 %v173, %v436
  %v438 = vpop.f32.mrf.mxu0
  %439 = vmatprep.mubr.f32.mxu0 %v95
  %440 = vmatmul.mubr.f32.gmra.mxu0 %v94
  %v441 = vpop.f32.mrf.mxu0
  %v442 = vadd.f32 %v173, %v441
  %v443 = vpop.f32.mrf.mxu0
  %444 = vmatprep.mubr.f32.mxu0 %v97
  %445 = vmatmul.mubr.f32.gmra.mxu0 %v96
  %v446 = vpop.f32.mrf.mxu0
  %v447 = vadd.f32 %v173, %v446
  %v448 = vpop.f32.mrf.mxu0
  %449 = vmatprep.mubr.f32.mxu0 %v99
  %450 = vmatmul.mubr.f32.gmra.mxu0 %v98
  %v451 = vpop.f32.mrf.mxu0
  %v452 = vadd.f32 %v173, %v451
  %v453 = vpop.f32.mrf.mxu0
  %454 = vmatprep.mubr.f32.mxu0 %v101
  %455 = vmatmul.mubr.f32.gmra.mxu0 %v100
  %v456 = vpop.f32.mrf.mxu0
  %v457 = vadd.f32 %v173, %v456
  %v458 = vpop.f32.mrf.mxu0
  %459 = vmatprep.mubr.f32.mxu0 %v103
  %460 = vmatmul.mubr.f32.gmra.mxu0 %v102
  %v461 = vpop.f32.mrf.mxu0
  %v462 = vadd.f32 %v173, %v461
  %v463 = vpop.f32.mrf.mxu0
  %464 = vmatprep.mubr.f32.mxu0 %v105
  %465 = vmatmul.mubr.f32.gmra.mxu0 %v104
  %v466 = vpop.f32.mrf.mxu0
  %v467 = vadd.f32 %v173, %v466
  %v468 = vpop.f32.mrf.mxu0
  %469 = vmatprep.mubr.f32.mxu0 %v107
  %470 = vmatmul.mubr.f32.gmra.mxu0 %v106
  %v471 = vpop.f32.mrf.mxu0
  %v472 = vadd.f32 %v173, %v471
  %v473 = vpop.f32.mrf.mxu0
  %474 = vmatprep.mubr.f32.mxu0 %v109
  %475 = vmatmul.mubr.f32.gmra.mxu0 %v108
  %v476 = vpop.f32.mrf.mxu0
  %v477 = vadd.f32 %v173, %v476
  %v478 = vpop.f32.mrf.mxu0
  %479 = vmatprep.mubr.f32.mxu0 %v111
  %480 = vmatmul.mubr.f32.gmra.mxu0 %v110
  %v481 = vpop.f32.mrf.mxu0
  %v482 = vadd.f32 %v173, %v481
  %v483 = vpop.f32.mrf.mxu0
  %484 = vmatprep.mubr.f32.mxu0 %v113
  %485 = vmatmul.mubr.f32.gmra.mxu0 %v112
  %v486 = vpop.f32.mrf.mxu0
  %v487 = vadd.f32 %v173, %v486
  %v488 = vpop.f32.mrf.mxu0
  %489 = vmatprep.mubr.f32.mxu0 %v115
  %490 = vmatmul.mubr.f32.gmra.mxu0 %v114
  %v491 = vpop.f32.mrf.mxu0
  %v492 = vadd.f32 %v173, %v491
  %v493 = vpop.f32.mrf.mxu0
  %494 = vmatprep.mubr.f32.mxu0 %v117
  %495 = vmatmul.mubr.f32.gmra.mxu0 %v116
  %v496 = vpop.f32.mrf.mxu0
  %v497 = vadd.f32 %v173, %v496
  %v498 = vpop.f32.mrf.mxu0
  %499 = vmatprep.mubr.f32.mxu0 %v119
  %500 = vmatmul.mubr.f32.gmra.mxu0 %v118
  %v501 = vpop.f32.mrf.mxu0
  %v502 = vadd.f32 %v173, %v501
  %v503 = vpop.f32.mrf.mxu0
  %504 = vmatprep.mubr.f32.mxu0 %v121
  %505 = vmatmul.mubr.f32.gmra.mxu0 %v120
  %v506 = vpop.f32.mrf.mxu0
  %v507 = vadd.f32 %v173, %v506
  %v508 = vpop.f32.mrf.mxu0
  %509 = vmatprep.mubr.f32.mxu0 %v123
  %510 = vmatmul.mubr.f32.gmra.mxu0 %v122
  %v511 = vpop.f32.mrf.mxu0
  %v512 = vadd.f32 %v173, %v511
  %v513 = vpop.f32.mrf.mxu0
  %514 = vmatprep.mubr.f32.mxu0 %v125
  %515 = vmatmul.mubr.f32.gmra.mxu0 %v124
  %v516 = vpop.f32.mrf.mxu0
  %v517 = vadd.f32 %v173, %v516
  %v518 = vpop.f32.mrf.mxu0
  %519 = vmatprep.mubr.f32.mxu0 %v127
  %520 = vmatmul.mubr.f32.gmra.mxu0 %v126
  %v521 = vpop.f32.mrf.mxu0
  %v522 = vadd.f32 %v173, %v521
  %v523 = vpop.f32.mrf.mxu0
  %524 = vmatprep.mubr.f32.mxu0 %v129
  %525 = vmatmul.mubr.f32.gmra.mxu0 %v128
  %v526 = vpop.f32.mrf.mxu0
  %v527 = vadd.f32 %v173, %v526
  %v528 = vpop.f32.mrf.mxu0
  %529 = vmatprep.mubr.f32.mxu0 %v131
  %530 = vmatmul.mubr.f32.gmra.mxu0 %v130
  %v531 = vpop.f32.mrf.mxu0
  %v532 = vadd.f32 %v173, %v531
  %v533 = vpop.f32.mrf.mxu0
  %534 = vmatprep.mubr.f32.mxu0 %v133
  %535 = vmatmul.mubr.f32.gmra.mxu0 %v132
  %v536 = vpop.f32.mrf.mxu0
  %v537 = vadd.f32 %v173, %v536
  %v538 = vpop.f32.mrf.mxu0
  %539 = vmatprep.mubr.f32.mxu0 %v135
  %540 = vmatmul.mubr.f32.gmra.mxu0 %v134
  %v541 = vpop.f32.mrf.mxu0
  %v542 = vadd.f32 %v173, %v541
  %v543 = vpop.f32.mrf.mxu0
  %544 = vdwg.mxu0
  %vm545 = vcmp.ge.f32.partialorder %v242, 0.0
  %vm546 = vcmp.ge.f32.partialorder %v247, 0.0
  %vm547 = vcmp.ge.f32.partialorder %v252, 0.0
  %vm548 = vcmp.ge.f32.partialorder %v257, 0.0
  %vm549 = vcmp.ge.f32.partialorder %v262, 0.0
  %vm550 = vcmp.ge.f32.partialorder %v267, 0.0
  %vm551 = vcmp.ge.f32.partialorder %v272, 0.0
  %vm552 = vcmp.ge.f32.partialorder %v277, 0.0
  %vm553 = vcmp.ge.f32.partialorder %v282, 0.0
  %vm554 = vcmp.ge.f32.partialorder %v287, 0.0
  %vm555 = vcmp.ge.f32.partialorder %v292, 0.0
  %vm556 = vcmp.ge.f32.partialorder %v297, 0.0
  %vm557 = vcmp.ge.f32.partialorder %v302, 0.0
  %vm558 = vcmp.ge.f32.partialorder %v307, 0.0
  %vm559 = vcmp.ge.f32.partialorder %v312, 0.0
  %vm560 = vcmp.ge.f32.partialorder %v317, 0.0
  %vm561 = vcmp.ge.f32.partialorder %v322, 0.0
  %vm562 = vcmp.ge.f32.partialorder %v327, 0.0
  %vm563 = vcmp.ge.f32.partialorder %v332, 0.0
  %vm564 = vcmp.ge.f32.partialorder %v337, 0.0
  %vm565 = vcmp.ge.f32.partialorder %v342, 0.0
  %vm566 = vcmp.ge.f32.partialorder %v347, 0.0
  %vm567 = vcmp.ge.f32.partialorder %v352, 0.0
  %vm568 = vcmp.ge.f32.partialorder %v357, 0.0
  %vm569 = vcmp.ge.f32.partialorder %v362, 0.0
  %vm570 = vcmp.ge.f32.partialorder %v367, 0.0
  %vm571 = vcmp.ge.f32.partialorder %v372, 0.0
  %vm572 = vcmp.ge.f32.partialorder %v377, 0.0
  %vm573 = vcmp.ge.f32.partialorder %v382, 0.0
  %vm574 = vcmp.ge.f32.partialorder %v387, 0.0
  %vm575 = vcmp.ge.f32.partialorder %v392, 0.0
  %vm576 = vcmp.ge.f32.partialorder %v397, 0.0
  %vm577 = vcmp.ge.f32.partialorder %v402, 0.0
  %vm578 = vcmp.ge.f32.partialorder %v407, 0.0
  %vm579 = vcmp.ge.f32.partialorder %v412, 0.0
  %vm580 = vcmp.ge.f32.partialorder %v417, 0.0
  %vm581 = vcmp.ge.f32.partialorder %v422, 0.0
  %vm582 = vcmp.ge.f32.partialorder %v427, 0.0
  %vm583 = vcmp.ge.f32.partialorder %v432, 0.0
  %vm584 = vcmp.ge.f32.partialorder %v437, 0.0
  %vm585 = vcmp.ge.f32.partialorder %v442, 0.0
  %vm586 = vcmp.ge.f32.partialorder %v447, 0.0
  %vm587 = vcmp.ge.f32.partialorder %v452, 0.0
  %vm588 = vcmp.ge.f32.partialorder %v457, 0.0
  %vm589 = vcmp.ge.f32.partialorder %v462, 0.0
  %vm590 = vcmp.ge.f32.partialorder %v467, 0.0
  %vm591 = vcmp.ge.f32.partialorder %v472, 0.0
  %vm592 = vcmp.ge.f32.partialorder %v477, 0.0
  %vm593 = vcmp.ge.f32.partialorder %v482, 0.0
  %vm594 = vcmp.ge.f32.partialorder %v487, 0.0
  %vm595 = vcmp.ge.f32.partialorder %v492, 0.0
  %vm596 = vcmp.ge.f32.partialorder %v497, 0.0
  %vm597 = vcmp.ge.f32.partialorder %v502, 0.0
  %vm598 = vcmp.ge.f32.partialorder %v507, 0.0
  %vm599 = vcmp.ge.f32.partialorder %v512, 0.0
  %vm600 = vcmp.ge.f32.partialorder %v517, 0.0
  %vm601 = vcmp.ge.f32.partialorder %v522, 0.0
  %vm602 = vcmp.ge.f32.partialorder %v527, 0.0
  %vm603 = vcmp.ge.f32.partialorder %v532, 0.0
  %vm604 = vcmp.ge.f32.partialorder %v537, 0.0
  %vm605 = vcmp.ge.f32.partialorder %v542, 0.0
  %v606 = vmul.f32 %v242, 0.01
  %v607 = vmul.f32 %v247, 0.01
  %v608 = vmul.f32 %v252, 0.01
  %v609 = vmul.f32 %v257, 0.01
  %v610 = vmul.f32 %v262, 0.01
  %v611 = vmul.f32 %v267, 0.01
  %v612 = vmul.f32 %v272, 0.01
  %v613 = vmul.f32 %v277, 0.01
  %v614 = vmul.f32 %v282, 0.01
  %v615 = vmul.f32 %v287, 0.01
  %v616 = vmul.f32 %v292, 0.01
  %v617 = vmul.f32 %v297, 0.01
  %v618 = vmul.f32 %v302, 0.01
  %v619 = vmul.f32 %v307, 0.01
  %v620 = vmul.f32 %v312, 0.01
  %v621 = vmul.f32 %v317, 0.01
  %v622 = vmul.f32 %v322, 0.01
  %v623 = vmul.f32 %v327, 0.01
  %v624 = vmul.f32 %v332, 0.01
  %v625 = vmul.f32 %v337, 0.01
  %v626 = vmul.f32 %v342, 0.01
  %v627 = vmul.f32 %v347, 0.01
  %v628 = vmul.f32 %v352, 0.01
  %v629 = vmul.f32 %v357, 0.01
  %v630 = vmul.f32 %v362, 0.01
  %v631 = vmul.f32 %v367, 0.01
  %v632 = vmul.f32 %v372, 0.01
  %v633 = vmul.f32 %v377, 0.01
  %v634 = vmul.f32 %v382, 0.01
  %v635 = vmul.f32 %v387, 0.01
  %v636 = vmul.f32 %v392, 0.01
  %v637 = vmul.f32 %v397, 0.01
  %v638 = vmul.f32 %v402, 0.01
  %v639 = vmul.f32 %v407, 0.01
  %v640 = vmul.f32 %v412, 0.01
  %v641 = vmul.f32 %v417, 0.01
  %v642 = vmul.f32 %v422, 0.01
  %v643 = vmul.f32 %v427, 0.01
  %v644 = vmul.f32 %v432, 0.01
  %v645 = vmul.f32 %v437, 0.01
  %v646 = vmul.f32 %v442, 0.01
  %v647 = vmul.f32 %v447, 0.01
  %v648 = vmul.f32 %v452, 0.01
  %v649 = vmul.f32 %v457, 0.01
  %v650 = vmul.f32 %v462, 0.01
  %v651 = vmul.f32 %v467, 0.01
  %v652 = vmul.f32 %v472, 0.01
  %v653 = vmul.f32 %v477, 0.01
  %v654 = vmul.f32 %v482, 0.01
  %v655 = vmul.f32 %v487, 0.01
  %v656 = vmul.f32 %v492, 0.01
  %v657 = vmul.f32 %v497, 0.01
  %v658 = vmul.f32 %v502, 0.01
  %v659 = vmul.f32 %v507, 0.01
  %v660 = vmul.f32 %v512, 0.01
  %v661 = vmul.f32 %v517, 0.01
  %v662 = vmul.f32 %v522, 0.01
  %v663 = vmul.f32 %v527, 0.01
  %v664 = vmul.f32 %v532, 0.01
  %v665 = vmul.f32 %v537, 0.01
  %v666 = vmul.f32 %v542, 0.01
  %v667 = vsel %vm545, %v242, %v606
  %v668 = vsel %vm546, %v247, %v607
  %v669 = vsel %vm547, %v252, %v608
  %v670 = vsel %vm548, %v257, %v609
  %v671 = vsel %vm549, %v262, %v610
  %v672 = vsel %vm550, %v267, %v611
  %v673 = vsel %vm551, %v272, %v612
  %v674 = vsel %vm552, %v277, %v613
  %v675 = vsel %vm553, %v282, %v614
  %v676 = vsel %vm554, %v287, %v615
  %v677 = vsel %vm555, %v292, %v616
  %v678 = vsel %vm556, %v297, %v617
  %v679 = vsel %vm557, %v302, %v618
  %v680 = vsel %vm558, %v307, %v619
  %v681 = vsel %vm559, %v312, %v620
  %v682 = vsel %vm560, %v317, %v621
  %v683 = vsel %vm561, %v322, %v622
  %v684 = vsel %vm562, %v327, %v623
  %v685 = vsel %vm563, %v332, %v624
  %v686 = vsel %vm564, %v337, %v625
  %v687 = vsel %vm565, %v342, %v626
  %v688 = vsel %vm566, %v347, %v627
  %v689 = vsel %vm567, %v352, %v628
  %v690 = vsel %vm568, %v357, %v629
  %v691 = vsel %vm569, %v362, %v630
  %v692 = vsel %vm570, %v367, %v631
  %v693 = vsel %vm571, %v372, %v632
  %v694 = vsel %vm572, %v377, %v633
  %v695 = vsel %vm573, %v382, %v634
  %v696 = vsel %vm574, %v387, %v635
  %v697 = vsel %vm575, %v392, %v636
  %v698 = vsel %vm576, %v397, %v637
  %v699 = vsel %vm577, %v402, %v638
  %v700 = vsel %vm578, %v407, %v639
  %v701 = vsel %vm579, %v412, %v640
  %v702 = vsel %vm580, %v417, %v641
  %v703 = vsel %vm581, %v422, %v642
  %v704 = vsel %vm582, %v427, %v643
  %v705 = vsel %vm583, %v432, %v644
  %v706 = vsel %vm584, %v437, %v645
  %v707 = vsel %vm585, %v442, %v646
  %v708 = vsel %vm586, %v447, %v647
  %v709 = vsel %vm587, %v452, %v648
  %v710 = vsel %vm588, %v457, %v649
  %v711 = vsel %vm589, %v462, %v650
  %v712 = vsel %vm590, %v467, %v651
  %v713 = vsel %vm591, %v472, %v652
  %v714 = vsel %vm592, %v477, %v653
  %v715 = vsel %vm593, %v482, %v654
  %v716 = vsel %vm594, %v487, %v655
  %v717 = vsel %vm595, %v492, %v656
  %v718 = vsel %vm596, %v497, %v657
  %v719 = vsel %vm597, %v502, %v658
  %v720 = vsel %vm598, %v507, %v659
  %v721 = vsel %vm599, %v512, %v660
  %v722 = vsel %vm600, %v517, %v661
  %v723 = vsel %vm601, %v522, %v662
  %v724 = vsel %vm602, %v527, %v663
  %v725 = vsel %vm603, %v532, %v664
  %v726 = vsel %vm604, %v537, %v665
  %v727 = vsel %vm605, %v542, %v666
  %vm728 = vcmask 261120
  %729 = vst.msk [vmem:[%s3] sm:$0xff] %vm728, %v667
  %730 = vst.msk [vmem:[%s3 + $0x8] sm:$0xff] %vm728, %v668
  %731 = vst.msk [vmem:[%s3 + $0x10] sm:$0xff] %vm728, %v669
  %732 = vst.msk [vmem:[%s3 + $0x18] sm:$0xff] %vm728, %v670
  %733 = vst.msk [vmem:[%s3 + $0x20] sm:$0xff] %vm728, %v671
  %734 = vst.msk [vmem:[%s3 + $0x28] sm:$0xff] %vm728, %v672
  %735 = vst.msk [vmem:[%s3 + $0x30] sm:$0xff] %vm728, %v673
  %736 = vst.msk [vmem:[%s3 + $0x38] sm:$0xff] %vm728, %v674
  %737 = vst.msk [vmem:[%s3 + $0x40] sm:$0xff] %vm728, %v675
  %738 = vst.msk [vmem:[%s3 + $0x48] sm:$0xff] %vm728, %v676
  %739 = vst.msk [vmem:[%s3 + $0x50] sm:$0xff] %vm728, %v677
  %740 = vst.msk [vmem:[%s3 + $0x58] sm:$0xff] %vm728, %v678
  %741 = vst.msk [vmem:[%s3 + $0x60] sm:$0xff] %vm728, %v679
  %742 = vst.msk [vmem:[%s3 + $0x68] sm:$0xff] %vm728, %v680
  %743 = vst.msk [vmem:[%s3 + $0x70] sm:$0xff] %vm728, %v681
  %744 = vst.msk [vmem:[%s3 + $0x78] sm:$0xff] %vm728, %v682
  %745 = vst.msk [vmem:[%s3 + $0x80] sm:$0xff] %vm728, %v683
  %746 = vst.msk [vmem:[%s3 + $0x88] sm:$0xff] %vm728, %v684
  %747 = vst.msk [vmem:[%s3 + $0x90] sm:$0xff] %vm728, %v685
  %748 = vst.msk [vmem:[%s3 + $0x98] sm:$0xff] %vm728, %v686
  %749 = vst.msk [vmem:[%s3 + $0xa0] sm:$0xff] %vm728, %v687
  %750 = vst.msk [vmem:[%s3 + $0xa8] sm:$0xff] %vm728, %v688
  %751 = vst.msk [vmem:[%s3 + $0xb0] sm:$0xff] %vm728, %v689
  %752 = vst.msk [vmem:[%s3 + $0xb8] sm:$0xff] %vm728, %v690
  %753 = vst.msk [vmem:[%s3 + $0xc0] sm:$0xff] %vm728, %v691
  %754 = vst.msk [vmem:[%s3 + $0xc8] sm:$0xff] %vm728, %v692
  %755 = vst.msk [vmem:[%s3 + $0xd0] sm:$0xff] %vm728, %v693
  %756 = vst.msk [vmem:[%s3 + $0xd8] sm:$0xff] %vm728, %v694
  %757 = vst.msk [vmem:[%s3 + $0xe0] sm:$0xff] %vm728, %v695
  %758 = vst.msk [vmem:[%s3 + $0xe8] sm:$0xff] %vm728, %v696
  %759 = vst.msk [vmem:[%s3 + $0xf0] sm:$0xff] %vm728, %v697
  %760 = vst.msk [vmem:[%s3 + $0xf8] sm:$0xff] %vm728, %v698
  %761 = vst.msk [vmem:[%s3 + $0x100] sm:$0xff] %vm728, %v699
  %762 = vst.msk [vmem:[%s3 + $0x108] sm:$0xff] %vm728, %v700
  %763 = vst.msk [vmem:[%s3 + $0x110] sm:$0xff] %vm728, %v701
  %764 = vst.msk [vmem:[%s3 + $0x118] sm:$0xff] %vm728, %v702
  %765 = vst.msk [vmem:[%s3 + $0x120] sm:$0xff] %vm728, %v703
  %766 = vst.msk [vmem:[%s3 + $0x128] sm:$0xff] %vm728, %v704
  %767 = vst.msk [vmem:[%s3 + $0x130] sm:$0xff] %vm728, %v705
  %768 = vst.msk [vmem:[%s3 + $0x138] sm:$0xff] %vm728, %v706
  %769 = vst.msk [vmem:[%s3 + $0x140] sm:$0xff] %vm728, %v707
  %770 = vst.msk [vmem:[%s3 + $0x148] sm:$0xff] %vm728, %v708
  %771 = vst.msk [vmem:[%s3 + $0x150] sm:$0xff] %vm728, %v709
  %772 = vst.msk [vmem:[%s3 + $0x158] sm:$0xff] %vm728, %v710
  %773 = vst.msk [vmem:[%s3 + $0x160] sm:$0xff] %vm728, %v711
  %774 = vst.msk [vmem:[%s3 + $0x168] sm:$0xff] %vm728, %v712
  %775 = vst.msk [vmem:[%s3 + $0x170] sm:$0xff] %vm728, %v713
  %776 = vst.msk [vmem:[%s3 + $0x178] sm:$0xff] %vm728, %v714
  %777 = vst.msk [vmem:[%s3 + $0x180] sm:$0xff] %vm728, %v715
  %778 = vst.msk [vmem:[%s3 + $0x188] sm:$0xff] %vm728, %v716
  %779 = vst.msk [vmem:[%s3 + $0x190] sm:$0xff] %vm728, %v717
  %780 = vst.msk [vmem:[%s3 + $0x198] sm:$0xff] %vm728, %v718
  %781 = vst.msk [vmem:[%s3 + $0x1a0] sm:$0xff] %vm728, %v719
  %782 = vst.msk [vmem:[%s3 + $0x1a8] sm:$0xff] %vm728, %v720
  %783 = vst.msk [vmem:[%s3 + $0x1b0] sm:$0xff] %vm728, %v721
  %784 = vst.msk [vmem:[%s3 + $0x1b8] sm:$0xff] %vm728, %v722
  %785 = vst.msk [vmem:[%s3 + $0x1c0] sm:$0xff] %vm728, %v723
  %786 = vst.msk [vmem:[%s3 + $0x1c8] sm:$0xff] %vm728, %v724
  %787 = vst.msk [vmem:[%s3 + $0x1d0] sm:$0xff] %vm728, %v725
  %788 = vst.msk [vmem:[%s3 + $0x1d8] sm:$0xff] %vm728, %v726
  %vm789 = vcmask 257024
  %790 = vst.msk [vmem:[%s3 + $0x1e0] sm:$0xf] %vm789, %v727
  // Predicated region
  $region14: #{icm_forward.3} parent=0 // pred_check
    _
  $region15: #{icm_forward.3} parent=0 // pred_check_branch
    %792 = sbr.rel (0) target = $region17
  $region16: #{icm_forward.3} parent=0 // pred_region
    _
  $region17: #{icm_forward.3} parent=0 // pred_fallthru
    _
  // Predicated region
  $region18: #{icm_forward.3} parent=0 // pred_check
    _
  $region19: #{icm_forward.3} parent=0 // pred_check_branch
    %794 = sbr.rel (0) target = $region21
  $region20: #{icm_forward.3} parent=0 // pred_region
    _
  $region21: #{icm_forward.3} parent=0 // pred_fallthru
    _

// kernel: icm_forward.4
$region0: #{icm_forward.4}
  #allocation0 [shape = 'u32[]', space=smem, size = 0x4, offset = 0x4, fixed_abs, tag = 'smem constant byte address 0x4 - core index']
  #allocation1 [shape = 'u32[144,128]{1,0:T(1,128)}', space=vmem, size = 0x12000, scoped, tag = 'internal scratch']
  %s0 = inlined_call_operand.vmem [shape: f32[64,512], index: 0, kind: input, shape index: {}]
  %s1 = inlined_call_operand.vmem [shape: f32[512,64], index: 1, kind: input, shape index: {}]
  %s2 = inlined_call_operand.vmem [shape: f32[1,64], index: 2, kind: input, shape index: {}]
  %s3 = inlined_call_operand.vmem [shape: f32[64,64], index: 3, kind: output, shape index: {}]
  %s4 = sld [smem:[#allocation0]]
  $region22: #{icm_forward.4} parent=0
    _
  %s6 = ssub.s32 1, %s4
  %s7 = scalar_select 0, %s6, %s4
  // Predicated region
  $region2: #{icm_forward.4} parent=0 // pred_check
    _
  $region3: #{icm_forward.4} parent=0 // pred_check_branch
    %9 = sbr.rel (0) target = $region5
  $region4: #{icm_forward.4} parent=0 // pred_region
    _
  $region5: #{icm_forward.4} parent=0 // pred_fallthru
    _
  // Predicated region
  $region6: #{icm_forward.4} parent=0 // pred_check
    _
  $region7: #{icm_forward.4} parent=0 // pred_check_branch
    %11 = sbr.rel (0) target = $region9
  $region8: #{icm_forward.4} parent=0 // pred_region
    _
  $region9: #{icm_forward.4} parent=0 // pred_fallthru
    _
  // Predicated region
  $region10: #{icm_forward.4} parent=0 // pred_check
    _
  $region11: #{icm_forward.4} parent=0 // pred_check_branch
    %13 = sbr.rel (0) target = $region13
  $region12: #{icm_forward.4} parent=0 // pred_region
    _
  $region13: #{icm_forward.4} parent=0 // pred_fallthru
    _
  %v14 = vld [vmem:[%s0] sm:$0xff]
  %v15 = vld [vmem:[%s0 + $0x8] sm:$0xff]
  %v16 = vld [vmem:[%s0 + $0x10] sm:$0xff]
  %v17 = vld [vmem:[%s0 + $0x18] sm:$0xff]
  %v18 = vld [vmem:[%s0 + $0x20] sm:$0xff]
  %v19 = vld [vmem:[%s0 + $0x28] sm:$0xff]
  %v20 = vld [vmem:[%s0 + $0x30] sm:$0xff]
  %v21 = vld [vmem:[%s0 + $0x38] sm:$0xff]
  %v22 = vld [vmem:[%s0 + $0x40] sm:$0xff]
  %v23 = vld [vmem:[%s0 + $0x48] sm:$0xff]
  %v24 = vld [vmem:[%s0 + $0x50] sm:$0xff]
  %v25 = vld [vmem:[%s0 + $0x58] sm:$0xff]
  %v26 = vld [vmem:[%s0 + $0x60] sm:$0xff]
  %v27 = vld [vmem:[%s0 + $0x68] sm:$0xff]
  %v28 = vld [vmem:[%s0 + $0x70] sm:$0xff]
  %v29 = vld [vmem:[%s0 + $0x78] sm:$0xff]
  %v30 = vld [vmem:[%s0 + $0x80] sm:$0xff]
  %v31 = vld [vmem:[%s0 + $0x88] sm:$0xff]
  %v32 = vld [vmem:[%s0 + $0x90] sm:$0xff]
  %v33 = vld [vmem:[%s0 + $0x98] sm:$0xff]
  %v34 = vld [vmem:[%s0 + $0xa0] sm:$0xff]
  %v35 = vld [vmem:[%s0 + $0xa8] sm:$0xff]
  %v36 = vld [vmem:[%s0 + $0xb0] sm:$0xff]
  %v37 = vld [vmem:[%s0 + $0xb8] sm:$0xff]
  %v38 = vld [vmem:[%s0 + $0xc0] sm:$0xff]
  %v39 = vld [vmem:[%s0 + $0xc8] sm:$0xff]
  %v40 = vld [vmem:[%s0 + $0xd0] sm:$0xff]
  %v41 = vld [vmem:[%s0 + $0xd8] sm:$0xff]
  %v42 = vld [vmem:[%s0 + $0xe0] sm:$0xff]
  %v43 = vld [vmem:[%s0 + $0xe8] sm:$0xff]
  %v44 = vld [vmem:[%s0 + $0xf0] sm:$0xff]
  %v45 = vld [vmem:[%s0 + $0xf8] sm:$0xff]
  %v46 = vld [vmem:[%s1] sm:$0xff]
  %v47 = vld [vmem:[%s1 + $0x8] sm:$0xff]
  %v48 = vld [vmem:[%s1 + $0x10] sm:$0xff]
  %v49 = vld [vmem:[%s1 + $0x18] sm:$0xff]
  %v50 = vld [vmem:[%s1 + $0x20] sm:$0xff]
  %v51 = vld [vmem:[%s1 + $0x28] sm:$0xff]
  %v52 = vld [vmem:[%s1 + $0x30] sm:$0xff]
  %v53 = vld [vmem:[%s1 + $0x38] sm:$0xff]
  %v54 = vld [vmem:[%s1 + $0x40] sm:$0xff]
  %v55 = vld [vmem:[%s1 + $0x48] sm:$0xff]
  %v56 = vld [vmem:[%s1 + $0x50] sm:$0xff]
  %v57 = vld [vmem:[%s1 + $0x58] sm:$0xff]
  %v58 = vld [vmem:[%s1 + $0x60] sm:$0xff]
  %v59 = vld [vmem:[%s1 + $0x68] sm:$0xff]
  %v60 = vld [vmem:[%s1 + $0x70] sm:$0xff]
  %v61 = vld [vmem:[%s1 + $0x78] sm:$0xff]
  %v62 = vld [vmem:[%s1 + $0x80] sm:$0xff]
  %v63 = vld [vmem:[%s1 + $0x88] sm:$0xff]
  %v64 = vld [vmem:[%s1 + $0x90] sm:$0xff]
  %v65 = vld [vmem:[%s1 + $0x98] sm:$0xff]
  %v66 = vld [vmem:[%s1 + $0xa0] sm:$0xff]
  %v67 = vld [vmem:[%s1 + $0xa8] sm:$0xff]
  %v68 = vld [vmem:[%s1 + $0xb0] sm:$0xff]
  %v69 = vld [vmem:[%s1 + $0xb8] sm:$0xff]
  %v70 = vld [vmem:[%s1 + $0xc0] sm:$0xff]
  %v71 = vld [vmem:[%s1 + $0xc8] sm:$0xff]
  %v72 = vld [vmem:[%s1 + $0xd0] sm:$0xff]
  %v73 = vld [vmem:[%s1 + $0xd8] sm:$0xff]
  %v74 = vld [vmem:[%s1 + $0xe0] sm:$0xff]
  %v75 = vld [vmem:[%s1 + $0xe8] sm:$0xff]
  %v76 = vld [vmem:[%s1 + $0xf0] sm:$0xff]
  %v77 = vld [vmem:[%s1 + $0xf8] sm:$0xff]
  %v78 = vld [vmem:[%s1 + $0x100] sm:$0xff]
  %v79 = vld [vmem:[%s1 + $0x108] sm:$0xff]
  %v80 = vld [vmem:[%s1 + $0x110] sm:$0xff]
  %v81 = vld [vmem:[%s1 + $0x118] sm:$0xff]
  %v82 = vld [vmem:[%s1 + $0x120] sm:$0xff]
  %v83 = vld [vmem:[%s1 + $0x128] sm:$0xff]
  %v84 = vld [vmem:[%s1 + $0x130] sm:$0xff]
  %v85 = vld [vmem:[%s1 + $0x138] sm:$0xff]
  %v86 = vld [vmem:[%s1 + $0x140] sm:$0xff]
  %v87 = vld [vmem:[%s1 + $0x148] sm:$0xff]
  %v88 = vld [vmem:[%s1 + $0x150] sm:$0xff]
  %v89 = vld [vmem:[%s1 + $0x158] sm:$0xff]
  %v90 = vld [vmem:[%s1 + $0x160] sm:$0xff]
  %v91 = vld [vmem:[%s1 + $0x168] sm:$0xff]
  %v92 = vld [vmem:[%s1 + $0x170] sm:$0xff]
  %v93 = vld [vmem:[%s1 + $0x178] sm:$0xff]
  %v94 = vld [vmem:[%s1 + $0x180] sm:$0xff]
  %v95 = vld [vmem:[%s1 + $0x188] sm:$0xff]
  %v96 = vld [vmem:[%s1 + $0x190] sm:$0xff]
  %v97 = vld [vmem:[%s1 + $0x198] sm:$0xff]
  %v98 = vld [vmem:[%s1 + $0x1a0] sm:$0xff]
  %v99 = vld [vmem:[%s1 + $0x1a8] sm:$0xff]
  %v100 = vld [vmem:[%s1 + $0x1b0] sm:$0xff]
  %v101 = vld [vmem:[%s1 + $0x1b8] sm:$0xff]
  %v102 = vld [vmem:[%s1 + $0x1c0] sm:$0xff]
  %v103 = vld [vmem:[%s1 + $0x1c8] sm:$0xff]
  %v104 = vld [vmem:[%s1 + $0x1d0] sm:$0xff]
  %v105 = vld [vmem:[%s1 + $0x1d8] sm:$0xff]
  %v106 = vld [vmem:[%s1 + $0x1e0] sm:$0xff]
  %v107 = vld [vmem:[%s1 + $0x1e8] sm:$0xff]
  %v108 = vld [vmem:[%s1 + $0x1f0] sm:$0xff]
  %v109 = vld [vmem:[%s1 + $0x1f8] sm:$0xff]
  %v110 = vld [vmem:[%s2] sm:$0x1]
  %v112 = vlaneseq
  %v113 = vshrl.u32 %v112, 7
  %v114 = vsub.s32 0, %v113
  %v115 = vrot.slane %v110, %v114
  %117 = vmatprep.subr.mxu0 0.0
  %118 = vmatpush1.msra.mxu0 %v61
  %119 = vmatprep.subr.mxu0 0.0
  %120 = vmatpush1.msra.mxu0 %v60
  %121 = vmatprep.subr.mxu0 0.0
  %122 = vmatpush1.msra.mxu0 %v59
  %123 = vmatprep.subr.mxu0 0.0
  %124 = vmatpush1.msra.mxu0 %v58
  %125 = vmatprep.subr.mxu0 0.0
  %126 = vmatpush1.msra.mxu0 %v57
  %127 = vmatprep.subr.mxu0 0.0
  %128 = vmatpush1.msra.mxu0 %v56
  %129 = vmatprep.subr.mxu0 0.0
  %130 = vmatpush1.msra.mxu0 %v55
  %131 = vmatprep.subr.mxu0 0.0
  %132 = vmatpush1.msra.mxu0 %v54
  %133 = vmatprep.subr.mxu0 0.0
  %134 = vmatpush1.msra.mxu0 %v53
  %135 = vmatprep.subr.mxu0 0.0
  %136 = vmatpush1.msra.mxu0 %v52
  %137 = vmatprep.subr.mxu0 0.0
  %138 = vmatpush1.msra.mxu0 %v51
  %139 = vmatprep.subr.mxu0 0.0
  %140 = vmatpush1.msra.mxu0 %v50
  %141 = vmatprep.subr.mxu0 0.0
  %142 = vmatpush1.msra.mxu0 %v49
  %143 = vmatprep.subr.mxu0 0.0
  %144 = vmatpush1.msra.mxu0 %v48
  %145 = vmatprep.subr.mxu0 0.0
  %146 = vmatpush1.msra.mxu0 %v47
  %147 = vmatprep.subr.mxu0 0.0
  %148 = vmatpush1.msra.mxu0 %v46
  %149 = vmatprep.subr.mxu0 0.0
  %150 = vmatpush2.msra.mxu0 %v77
  %151 = vmatprep.subr.mxu0 0.0
  %152 = vmatpush2.msra.mxu0 %v76
  %153 = vmatprep.subr.mxu0 0.0
  %154 = vmatpush2.msra.mxu0 %v75
  %155 = vmatprep.subr.mxu0 0.0
  %156 = vmatpush2.msra.mxu0 %v74
  %157 = vmatprep.subr.mxu0 0.0
  %158 = vmatpush2.msra.mxu0 %v73
  %159 = vmatprep.subr.mxu0 0.0
  %160 = vmatpush2.msra.mxu0 %v72
  %161 = vmatprep.subr.mxu0 0.0
  %162 = vmatpush2.msra.mxu0 %v71
  %163 = vmatprep.subr.mxu0 0.0
  %164 = vmatpush2.msra.mxu0 %v70
  %165 = vmatprep.subr.mxu0 0.0
  %166 = vmatpush2.msra.mxu0 %v69
  %167 = vmatprep.subr.mxu0 0.0
  %168 = vmatpush2.msra.mxu0 %v68
  %169 = vmatprep.subr.mxu0 0.0
  %170 = vmatpush2.msra.mxu0 %v67
  %171 = vmatprep.subr.mxu0 0.0
  %172 = vmatpush2.msra.mxu0 %v66
  %173 = vmatprep.subr.mxu0 0.0
  %174 = vmatpush2.msra.mxu0 %v65
  %175 = vmatprep.subr.mxu0 0.0
  %176 = vmatpush2.msra.mxu0 %v64
  %177 = vmatprep.subr.mxu0 0.0
  %178 = vmatpush2.msra.mxu0 %v63
  %179 = vmatprep.subr.mxu0 0.0
  %180 = vmatpush2.msra.mxu0 %v62
  %181 = vmatprep.mubr.f32.mxu0 %v15
  %182 = vmatmul.mubr.f32.gmra.mxu0 %v14
  %v183 = vpop.f32.mrf.mxu0
  %v184 = vadd.f32 %v115, %v183
  %v185 = vpop.f32.mrf.mxu0
  %186 = vmatprep.mubr.f32.mxu0 %v19
  %187 = vmatmul.mubr.f32.gmra.mxu0 %v18
  %v188 = vpop.f32.mrf.mxu0
  %v189 = vadd.f32 %v115, %v188
  %v190 = vpop.f32.mrf.mxu0
  %191 = vmatprep.mubr.f32.mxu0 %v23
  %192 = vmatmul.mubr.f32.gmra.mxu0 %v22
  %v193 = vpop.f32.mrf.mxu0
  %v194 = vadd.f32 %v115, %v193
  %v195 = vpop.f32.mrf.mxu0
  %196 = vmatprep.mubr.f32.mxu0 %v27
  %197 = vmatmul.mubr.f32.gmra.mxu0 %v26
  %v198 = vpop.f32.mrf.mxu0
  %v199 = vadd.f32 %v115, %v198
  %v200 = vpop.f32.mrf.mxu0
  %201 = vmatprep.mubr.f32.mxu0 %v31
  %202 = vmatmul.mubr.f32.gmra.mxu0 %v30
  %v203 = vpop.f32.mrf.mxu0
  %v204 = vadd.f32 %v115, %v203
  %v205 = vpop.f32.mrf.mxu0
  %206 = vmatprep.mubr.f32.mxu0 %v35
  %207 = vmatmul.mubr.f32.gmra.mxu0 %v34
  %v208 = vpop.f32.mrf.mxu0
  %v209 = vadd.f32 %v115, %v208
  %v210 = vpop.f32.mrf.mxu0
  %211 = vmatprep.mubr.f32.mxu0 %v39
  %212 = vmatmul.mubr.f32.gmra.mxu0 %v38
  %v213 = vpop.f32.mrf.mxu0
  %v214 = vadd.f32 %v115, %v213
  %v215 = vpop.f32.mrf.mxu0
  %216 = vmatprep.mubr.f32.mxu0 %v43
  %217 = vmatmul.mubr.f32.gmra.mxu0 %v42
  %v218 = vpop.f32.mrf.mxu0
  %v219 = vadd.f32 %v115, %v218
  %v220 = vpop.f32.mrf.mxu0
  %221 = vdwg.mxu0
  %222 = vmatprep.subr.mxu0 0.0
  %223 = vmatpush1.msra.mxu0 %v93
  %224 = vmatprep.subr.mxu0 0.0
  %225 = vmatpush1.msra.mxu0 %v92
  %226 = vmatprep.subr.mxu0 0.0
  %227 = vmatpush1.msra.mxu0 %v91
  %228 = vmatprep.subr.mxu0 0.0
  %229 = vmatpush1.msra.mxu0 %v90
  %230 = vmatprep.subr.mxu0 0.0
  %231 = vmatpush1.msra.mxu0 %v89
  %232 = vmatprep.subr.mxu0 0.0
  %233 = vmatpush1.msra.mxu0 %v88
  %234 = vmatprep.subr.mxu0 0.0
  %235 = vmatpush1.msra.mxu0 %v87
  %236 = vmatprep.subr.mxu0 0.0
  %237 = vmatpush1.msra.mxu0 %v86
  %238 = vmatprep.subr.mxu0 0.0
  %239 = vmatpush1.msra.mxu0 %v85
  %240 = vmatprep.subr.mxu0 0.0
  %241 = vmatpush1.msra.mxu0 %v84
  %242 = vmatprep.subr.mxu0 0.0
  %243 = vmatpush1.msra.mxu0 %v83
  %244 = vmatprep.subr.mxu0 0.0
  %245 = vmatpush1.msra.mxu0 %v82
  %246 = vmatprep.subr.mxu0 0.0
  %247 = vmatpush1.msra.mxu0 %v81
  %248 = vmatprep.subr.mxu0 0.0
  %249 = vmatpush1.msra.mxu0 %v80
  %250 = vmatprep.subr.mxu0 0.0
  %251 = vmatpush1.msra.mxu0 %v79
  %252 = vmatprep.subr.mxu0 0.0
  %253 = vmatpush1.msra.mxu0 %v78
  %254 = vmatprep.subr.mxu0 0.0
  %255 = vmatpush2.msra.mxu0 %v109
  %256 = vmatprep.subr.mxu0 0.0
  %257 = vmatpush2.msra.mxu0 %v108
  %258 = vmatprep.subr.mxu0 0.0
  %259 = vmatpush2.msra.mxu0 %v107
  %260 = vmatprep.subr.mxu0 0.0
  %261 = vmatpush2.msra.mxu0 %v106
  %262 = vmatprep.subr.mxu0 0.0
  %263 = vmatpush2.msra.mxu0 %v105
  %264 = vmatprep.subr.mxu0 0.0
  %265 = vmatpush2.msra.mxu0 %v104
  %266 = vmatprep.subr.mxu0 0.0
  %267 = vmatpush2.msra.mxu0 %v103
  %268 = vmatprep.subr.mxu0 0.0
  %269 = vmatpush2.msra.mxu0 %v102
  %270 = vmatprep.subr.mxu0 0.0
  %271 = vmatpush2.msra.mxu0 %v101
  %272 = vmatprep.subr.mxu0 0.0
  %273 = vmatpush2.msra.mxu0 %v100
  %274 = vmatprep.subr.mxu0 0.0
  %275 = vmatpush2.msra.mxu0 %v99
  %276 = vmatprep.subr.mxu0 0.0
  %277 = vmatpush2.msra.mxu0 %v98
  %278 = vmatprep.subr.mxu0 0.0
  %279 = vmatpush2.msra.mxu0 %v97
  %280 = vmatprep.subr.mxu0 0.0
  %281 = vmatpush2.msra.mxu0 %v96
  %282 = vmatprep.subr.mxu0 0.0
  %283 = vmatpush2.msra.mxu0 %v95
  %284 = vmatprep.subr.mxu0 0.0
  %285 = vmatpush2.msra.mxu0 %v94
  %286 = vmatprep.mubr.f32.mxu0 %v17
  %287 = vmatmul.mubr.f32.gmra.mxu0 %v16
  %v288 = vpop.f32.mrf.mxu0
  %v289 = vadd.f32 %v184, %v288
  %v290 = vpop.f32.mrf.mxu0
  %291 = vmatprep.mubr.f32.mxu0 %v21
  %292 = vmatmul.mubr.f32.gmra.mxu0 %v20
  %v293 = vpop.f32.mrf.mxu0
  %v294 = vadd.f32 %v189, %v293
  %v295 = vpop.f32.mrf.mxu0
  %296 = vmatprep.mubr.f32.mxu0 %v25
  %297 = vmatmul.mubr.f32.gmra.mxu0 %v24
  %v298 = vpop.f32.mrf.mxu0
  %v299 = vadd.f32 %v194, %v298
  %v300 = vpop.f32.mrf.mxu0
  %301 = vmatprep.mubr.f32.mxu0 %v29
  %302 = vmatmul.mubr.f32.gmra.mxu0 %v28
  %v303 = vpop.f32.mrf.mxu0
  %v304 = vadd.f32 %v199, %v303
  %v305 = vpop.f32.mrf.mxu0
  %306 = vmatprep.mubr.f32.mxu0 %v33
  %307 = vmatmul.mubr.f32.gmra.mxu0 %v32
  %v308 = vpop.f32.mrf.mxu0
  %v309 = vadd.f32 %v204, %v308
  %v310 = vpop.f32.mrf.mxu0
  %311 = vmatprep.mubr.f32.mxu0 %v37
  %312 = vmatmul.mubr.f32.gmra.mxu0 %v36
  %v313 = vpop.f32.mrf.mxu0
  %v314 = vadd.f32 %v209, %v313
  %v315 = vpop.f32.mrf.mxu0
  %316 = vmatprep.mubr.f32.mxu0 %v41
  %317 = vmatmul.mubr.f32.gmra.mxu0 %v40
  %v318 = vpop.f32.mrf.mxu0
  %v319 = vadd.f32 %v214, %v318
  %v320 = vpop.f32.mrf.mxu0
  %321 = vmatprep.mubr.f32.mxu0 %v45
  %322 = vmatmul.mubr.f32.gmra.mxu0 %v44
  %v323 = vpop.f32.mrf.mxu0
  %v324 = vadd.f32 %v219, %v323
  %v325 = vpop.f32.mrf.mxu0
  %326 = vdwg.mxu0
  %vm327 = vcmp.ge.f32.partialorder %v289, 0.0
  %vm328 = vcmp.ge.f32.partialorder %v294, 0.0
  %vm329 = vcmp.ge.f32.partialorder %v299, 0.0
  %vm330 = vcmp.ge.f32.partialorder %v304, 0.0
  %vm331 = vcmp.ge.f32.partialorder %v309, 0.0
  %vm332 = vcmp.ge.f32.partialorder %v314, 0.0
  %vm333 = vcmp.ge.f32.partialorder %v319, 0.0
  %vm334 = vcmp.ge.f32.partialorder %v324, 0.0
  %v335 = vmul.f32 %v289, 0.01
  %v336 = vmul.f32 %v294, 0.01
  %v337 = vmul.f32 %v299, 0.01
  %v338 = vmul.f32 %v304, 0.01
  %v339 = vmul.f32 %v309, 0.01
  %v340 = vmul.f32 %v314, 0.01
  %v341 = vmul.f32 %v319, 0.01
  %v342 = vmul.f32 %v324, 0.01
  %v343 = vsel %vm327, %v289, %v335
  %v344 = vsel %vm328, %v294, %v336
  %v345 = vsel %vm329, %v299, %v337
  %v346 = vsel %vm330, %v304, %v338
  %v347 = vsel %vm331, %v309, %v339
  %v348 = vsel %vm332, %v314, %v340
  %v349 = vsel %vm333, %v319, %v341
  %v350 = vsel %vm334, %v324, %v342
  %vm351 = vcmask 523264
  %352 = vst.msk [vmem:[%s3] sm:$0xff] %vm351, %v343
  %353 = vst.msk [vmem:[%s3 + $0x8] sm:$0xff] %vm351, %v344
  %354 = vst.msk [vmem:[%s3 + $0x10] sm:$0xff] %vm351, %v345
  %355 = vst.msk [vmem:[%s3 + $0x18] sm:$0xff] %vm351, %v346
  %356 = vst.msk [vmem:[%s3 + $0x20] sm:$0xff] %vm351, %v347
  %357 = vst.msk [vmem:[%s3 + $0x28] sm:$0xff] %vm351, %v348
  %358 = vst.msk [vmem:[%s3 + $0x30] sm:$0xff] %vm351, %v349
  %359 = vst.msk [vmem:[%s3 + $0x38] sm:$0xff] %vm351, %v350
  // Predicated region
  $region14: #{icm_forward.4} parent=0 // pred_check
    _
  $region15: #{icm_forward.4} parent=0 // pred_check_branch
    %361 = sbr.rel (0) target = $region17
  $region16: #{icm_forward.4} parent=0 // pred_region
    _
  $region17: #{icm_forward.4} parent=0 // pred_fallthru
    _
  // Predicated region
  $region18: #{icm_forward.4} parent=0 // pred_check
    _
  $region19: #{icm_forward.4} parent=0 // pred_check_branch
    %363 = sbr.rel (0) target = $region21
  $region20: #{icm_forward.4} parent=0 // pred_region
    _
  $region21: #{icm_forward.4} parent=0 // pred_fallthru
    _

// kernel: icm_forward.5
$region0: #{icm_forward.5}
  #allocation0 [shape = 'u32[]', space=smem, size = 0x4, offset = 0x4, fixed_abs, tag = 'smem constant byte address 0x4 - core index']
  #allocation1 [shape = 'u32[144,128]{1,0:T(1,128)}', space=vmem, size = 0x12000, scoped, tag = 'internal scratch']
  %s0 = inlined_call_operand.vmem [shape: f32[4,4,576], index: 0, kind: input, shape index: {}]
  %s1 = inlined_call_operand.vmem [shape: f32[2,1], index: 1, kind: input, shape index: {}]
  %s2 = inlined_call_operand.vmem [shape: f32[576,64], index: 2, kind: input, shape index: {}]
  %s3 = inlined_call_operand.vmem [shape: f32[1,64], index: 3, kind: input, shape index: {}]
  %s4 = inlined_call_operand.vmem [shape: f32[4,64,512], index: 4, kind: input, shape index: {}]
  %s5 = inlined_call_operand.vmem [shape: f32[1,512], index: 5, kind: input, shape index: {}]
  %s6 = inlined_call_operand.vmem [shape: f32[512,512], index: 6, kind: input, shape index: {}]
  %s7 = inlined_call_operand.vmem [shape: f32[512,512], index: 7, kind: input, shape index: {}]
  %s8 = inlined_call_operand.vmem [shape: f32[1,512], index: 8, kind: input, shape index: {}]
  %s9 = inlined_call_operand.vmem [shape: f32[512,6], index: 9, kind: input, shape index: {}]
  %s10 = inlined_call_operand.vmem [shape: f32[1,6], index: 10, kind: input, shape index: {}]
  %s11 = inlined_call_operand.vmem [shape: f32[512,512], index: 11, kind: input, shape index: {}]
  %s12 = inlined_call_operand.vmem [shape: f32[1,512], index: 12, kind: input, shape index: {}]
  %s13 = inlined_call_operand.vmem [shape: f32[1,512], index: 13, kind: input, shape index: {}]
  %s14 = inlined_call_operand.vmem [shape: f32[512,512], index: 14, kind: input, shape index: {}]
  %s15 = inlined_call_operand.vmem [shape: f32[1,512], index: 15, kind: input, shape index: {}]
  %s16 = inlined_call_operand.vmem [shape: f32[1,512], index: 16, kind: input, shape index: {}]
  %s17 = inlined_call_operand.vmem [shape: f32[512,512], index: 17, kind: input, shape index: {}]
  %s18 = inlined_call_operand.vmem [shape: f32[1,512], index: 18, kind: input, shape index: {}]
  %s19 = inlined_call_operand.vmem [shape: f32[512,512], index: 19, kind: input, shape index: {}]
  %s20 = inlined_call_operand.vmem [shape: f32[1,512], index: 20, kind: input, shape index: {}]
  %s21 = inlined_call_operand.vmem [shape: f32[1,512], index: 21, kind: input, shape index: {}]
  %s22 = inlined_call_operand.hbm [shape: f32[2,512], index: 22, kind: output, shape index: {0}]
  %s23 = inlined_call_operand.hbm [shape: f32[2,512], index: 23, kind: output, shape index: {1}]
  %s24 = inlined_call_operand.hbm [shape: f32[2,6], index: 24, kind: output, shape index: {2}]
  %25 = xla_tuple %s22, %s23, %s24
  %s26 = sld [smem:[#allocation0]]
  $region114: #{icm_forward.5} parent=0
    _
  %s28 = ssub.s32 1, %s26
  %s29 = scalar_select 0, %s28, %s26
  $region1: #{icm_forward.5} parent=0
    #allocation2 [shape = 'u8[4096]{0}', space=vmem, size = 0x1000, scoped, tag = 'output window, operand 0, single buffered']
    #allocation3 [shape = 's32[1]{0}', space=sflag, size = 0x4, scoped, tag = 'scoped memory for icm_forward.5']
    #allocation4 [shape = 'u8[4096]{0}', space=vmem, size = 0x1000, scoped, tag = 'output window, operand 1, single buffered']
    #allocation5 [shape = 's32[1]{0}', space=sflag, size = 0x4, scoped, tag = 'scoped memory for icm_forward.5']
    #allocation6 [shape = 'u8[1024]{0}', space=vmem, size = 0x400, scoped, tag = 'output window, operand 2, single buffered']
    %30 = vsyncpa [#allocation3], 0
    %31 = vsyncpa [#allocation5], 0
    // Predicated region
    $region2: #{icm_forward.5} parent=1 // pred_check
      _
    $region3: #{icm_forward.5} parent=1 // pred_check_branch
      %33 = sbr.rel (0) target = $region5
    $region4: #{icm_forward.5} parent=1 // pred_region
      _
    $region5: #{icm_forward.5} parent=1 // pred_fallthru
      _
    // Predicated region
    $region6: #{icm_forward.5} parent=1 // pred_check
      _
    $region7: #{icm_forward.5} parent=1 // pred_check_branch
      %35 = sbr.rel (0) target = $region9
    $region8: #{icm_forward.5} parent=1 // pred_region
      _
    $region9: #{icm_forward.5} parent=1 // pred_fallthru
      _
    // Predicated region
    $region10: #{icm_forward.5} parent=1 // pred_check
      _
    $region11: #{icm_forward.5} parent=1 // pred_check_branch
      %37 = sbr.rel (0) target = $region13
    $region12: #{icm_forward.5} parent=1 // pred_region
      _
    $region13: #{icm_forward.5} parent=1 // pred_fallthru
      _
    // Predicated region
    $region14: #{icm_forward.5} parent=1 // pred_check
      _
    $region15: #{icm_forward.5} parent=1 // pred_check_branch
      %39 = sbr.rel (0) target = $region17
    $region16: #{icm_forward.5} parent=1 // pred_region
      _
    $region17: #{icm_forward.5} parent=1 // pred_fallthru
      _
    // Predicated region
    $region18: #{icm_forward.5} parent=1 // pred_check
      _
    $region19: #{icm_forward.5} parent=1 // pred_check_branch
      %41 = sbr.rel (0) target = $region21
    $region20: #{icm_forward.5} parent=1 // pred_region
      _
    $region21: #{icm_forward.5} parent=1 // pred_fallthru
      _
    // Predicated region
    $region22: #{icm_forward.5} parent=1 // pred_check
      _
    $region23: #{icm_forward.5} parent=1 // pred_check_branch
      %43 = sbr.rel (0) target = $region25
    $region24: #{icm_forward.5} parent=1 // pred_region
      _
    $region25: #{icm_forward.5} parent=1 // pred_fallthru
      _
    // Predicated region
    $region26: #{icm_forward.5} parent=1 // pred_check
      _
    $region27: #{icm_forward.5} parent=1 // pred_check_branch
      %45 = sbr.rel (0) target = $region29
    $region28: #{icm_forward.5} parent=1 // pred_region
      _
    $region29: #{icm_forward.5} parent=1 // pred_fallthru
      _
    // Predicated region
    $region30: #{icm_forward.5} parent=1 // pred_check
      _
    $region31: #{icm_forward.5} parent=1 // pred_check_branch
      %47 = sbr.rel (0) target = $region33
    $region32: #{icm_forward.5} parent=1 // pred_region
      _
    $region33: #{icm_forward.5} parent=1 // pred_fallthru
      _
    // Predicated region
    $region34: #{icm_forward.5} parent=1 // pred_check
      _
    $region35: #{icm_forward.5} parent=1 // pred_check_branch
      %49 = sbr.rel (0) target = $region37
    $region36: #{icm_forward.5} parent=1 // pred_region
      _
    $region37: #{icm_forward.5} parent=1 // pred_fallthru
      _
    // Predicated region
    $region38: #{icm_forward.5} parent=1 // pred_check
      _
    $region39: #{icm_forward.5} parent=1 // pred_check_branch
      %51 = sbr.rel (0) target = $region41
    $region40: #{icm_forward.5} parent=1 // pred_region
      _
    $region41: #{icm_forward.5} parent=1 // pred_fallthru
      _
    // Predicated region
    $region42: #{icm_forward.5} parent=1 // pred_check
      _
    $region43: #{icm_forward.5} parent=1 // pred_check_branch
      %53 = sbr.rel (0) target = $region45
    $region44: #{icm_forward.5} parent=1 // pred_region
      _
    $region45: #{icm_forward.5} parent=1 // pred_fallthru
      _
    // Predicated region
    $region46: #{icm_forward.5} parent=1 // pred_check
      _
    $region47: #{icm_forward.5} parent=1 // pred_check_branch
      %55 = sbr.rel (0) target = $region49
    $region48: #{icm_forward.5} parent=1 // pred_region
      _
    $region49: #{icm_forward.5} parent=1 // pred_fallthru
      _
    // Predicated region
    $region50: #{icm_forward.5} parent=1 // pred_check
      _
    $region51: #{icm_forward.5} parent=1 // pred_check_branch
      %57 = sbr.rel (0) target = $region53
    $region52: #{icm_forward.5} parent=1 // pred_region
      _
    $region53: #{icm_forward.5} parent=1 // pred_fallthru
      _
    // Predicated region
    $region54: #{icm_forward.5} parent=1 // pred_check
      _
    $region55: #{icm_forward.5} parent=1 // pred_check_branch
      %59 = sbr.rel (0) target = $region57
    $region56: #{icm_forward.5} parent=1 // pred_region
      _
    $region57: #{icm_forward.5} parent=1 // pred_fallthru
      _
    // Predicated region
    $region58: #{icm_forward.5} parent=1 // pred_check
      _
    $region59: #{icm_forward.5} parent=1 // pred_check_branch
      %61 = sbr.rel (0) target = $region61
    $region60: #{icm_forward.5} parent=1 // pred_region
      _
    $region61: #{icm_forward.5} parent=1 // pred_fallthru
      _
    // Predicated region
    $region62: #{icm_forward.5} parent=1 // pred_check
      _
    $region63: #{icm_forward.5} parent=1 // pred_check_branch
      %63 = sbr.rel (0) target = $region65
    $region64: #{icm_forward.5} parent=1 // pred_region
      _
    $region65: #{icm_forward.5} parent=1 // pred_fallthru
      _
    // Predicated region
    $region66: #{icm_forward.5} parent=1 // pred_check
      _
    $region67: #{icm_forward.5} parent=1 // pred_check_branch
      %65 = sbr.rel (0) target = $region69
    $region68: #{icm_forward.5} parent=1 // pred_region
      _
    $region69: #{icm_forward.5} parent=1 // pred_fallthru
      _
    // Predicated region
    $region70: #{icm_forward.5} parent=1 // pred_check
      _
    $region71: #{icm_forward.5} parent=1 // pred_check_branch
      %67 = sbr.rel (0) target = $region73
    $region72: #{icm_forward.5} parent=1 // pred_region
      _
    $region73: #{icm_forward.5} parent=1 // pred_fallthru
      _
    // Predicated region
    $region74: #{icm_forward.5} parent=1 // pred_check
      _
    $region75: #{icm_forward.5} parent=1 // pred_check_branch
      %69 = sbr.rel (0) target = $region77
    $region76: #{icm_forward.5} parent=1 // pred_region
      _
    $region77: #{icm_forward.5} parent=1 // pred_fallthru
      _
    // Predicated region
    $region78: #{icm_forward.5} parent=1 // pred_check
      _
    $region79: #{icm_forward.5} parent=1 // pred_check_branch
      %71 = sbr.rel (0) target = $region81
    $region80: #{icm_forward.5} parent=1 // pred_region
      _
    $region81: #{icm_forward.5} parent=1 // pred_fallthru
      _
    // Predicated region
    $region82: #{icm_forward.5} parent=1 // pred_check
      _
    $region83: #{icm_forward.5} parent=1 // pred_check_branch
      %73 = sbr.rel (0) target = $region85
    $region84: #{icm_forward.5} parent=1 // pred_region
      _
    $region85: #{icm_forward.5} parent=1 // pred_fallthru
      _
    // Predicated region
    $region86: #{icm_forward.5} parent=1 // pred_check
      _
    $region87: #{icm_forward.5} parent=1 // pred_check_branch
      %75 = sbr.rel (0) target = $region89
    $region88: #{icm_forward.5} parent=1 // pred_region
      _
    $region89: #{icm_forward.5} parent=1 // pred_fallthru
      _
    %v76 = vld [vmem:[%s0] sm:$0xff]
    %v77 = vld [vmem:[%s0 + $0x8] sm:$0xff]
    %v78 = vld [vmem:[%s0 + $0x10] sm:$0xf]
    %v79 = vld [vmem:[%s2] sm:$0xff]
    %v80 = vld [vmem:[%s2 + $0x8] sm:$0xff]
    %v81 = vld [vmem:[%s2 + $0x10] sm:$0xff]
    %v82 = vld [vmem:[%s2 + $0x18] sm:$0xff]
    %v83 = vld [vmem:[%s2 + $0x20] sm:$0xff]
    %v84 = vld [vmem:[%s2 + $0x28] sm:$0xff]
    %v85 = vld [vmem:[%s2 + $0x30] sm:$0xff]
    %v86 = vld [vmem:[%s2 + $0x38] sm:$0xff]
    %v87 = vld [vmem:[%s2 + $0x40] sm:$0xff]
    %v88 = vld [vmem:[%s2 + $0x48] sm:$0xff]
    %v89 = vld [vmem:[%s2 + $0x50] sm:$0xff]
    %v90 = vld [vmem:[%s2 + $0x58] sm:$0xff]
    %v91 = vld [vmem:[%s2 + $0x60] sm:$0xff]
    %v92 = vld [vmem:[%s2 + $0x68] sm:$0xff]
    %v93 = vld [vmem:[%s2 + $0x70] sm:$0xff]
    %v94 = vld [vmem:[%s2 + $0x78] sm:$0xff]
    %v95 = vld [vmem:[%s2 + $0x80] sm:$0xff]
    %v96 = vld [vmem:[%s2 + $0x88] sm:$0xff]
    %v97 = vld [vmem:[%s2 + $0x90] sm:$0xff]
    %v98 = vld [vmem:[%s2 + $0x98] sm:$0xff]
    %v99 = vld [vmem:[%s2 + $0xa0] sm:$0xff]
    %v100 = vld [vmem:[%s2 + $0xa8] sm:$0xff]
    %v101 = vld [vmem:[%s2 + $0xb0] sm:$0xff]
    %v102 = vld [vmem:[%s2 + $0xb8] sm:$0xff]
    %v103 = vld [vmem:[%s2 + $0xc0] sm:$0xff]
    %v104 = vld [vmem:[%s2 + $0xc8] sm:$0xff]
    %v105 = vld [vmem:[%s2 + $0xd0] sm:$0xff]
    %v106 = vld [vmem:[%s2 + $0xd8] sm:$0xff]
    %v107 = vld [vmem:[%s2 + $0xe0] sm:$0xff]
    %v108 = vld [vmem:[%s2 + $0xe8] sm:$0xff]
    %v109 = vld [vmem:[%s2 + $0xf0] sm:$0xff]
    %v110 = vld [vmem:[%s2 + $0xf8] sm:$0xff]
    %v111 = vld [vmem:[%s2 + $0x100] sm:$0xff]
    %v112 = vld [vmem:[%s2 + $0x108] sm:$0xff]
    %v113 = vld [vmem:[%s2 + $0x110] sm:$0xff]
    %v114 = vld [vmem:[%s2 + $0x118] sm:$0xff]
    %v115 = vld [vmem:[%s2 + $0x120] sm:$0xff]
    %v116 = vld [vmem:[%s2 + $0x128] sm:$0xff]
    %v117 = vld [vmem:[%s2 + $0x130] sm:$0xff]
    %v118 = vld [vmem:[%s2 + $0x138] sm:$0xff]
    %v119 = vld [vmem:[%s2 + $0x140] sm:$0xff]
    %v120 = vld [vmem:[%s2 + $0x148] sm:$0xff]
    %v121 = vld [vmem:[%s2 + $0x150] sm:$0xff]
    %v122 = vld [vmem:[%s2 + $0x158] sm:$0xff]
    %v123 = vld [vmem:[%s2 + $0x160] sm:$0xff]
    %v124 = vld [vmem:[%s2 + $0x168] sm:$0xff]
    %v125 = vld [vmem:[%s2 + $0x170] sm:$0xff]
    %v126 = vld [vmem:[%s2 + $0x178] sm:$0xff]
    %v127 = vld [vmem:[%s2 + $0x180] sm:$0xff]
    %v128 = vld [vmem:[%s2 + $0x188] sm:$0xff]
    %v129 = vld [vmem:[%s2 + $0x190] sm:$0xff]
    %v130 = vld [vmem:[%s2 + $0x198] sm:$0xff]
    %v131 = vld [vmem:[%s2 + $0x1a0] sm:$0xff]
    %v132 = vld [vmem:[%s2 + $0x1a8] sm:$0xff]
    %v133 = vld [vmem:[%s2 + $0x1b0] sm:$0xff]
    %v134 = vld [vmem:[%s2 + $0x1b8] sm:$0xff]
    %v135 = vld [vmem:[%s2 + $0x1c0] sm:$0xff]
    %v136 = vld [vmem:[%s2 + $0x1c8] sm:$0xff]
    %v137 = vld [vmem:[%s2 + $0x1d0] sm:$0xff]
    %v138 = vld [vmem:[%s2 + $0x1d8] sm:$0xff]
    %v139 = vld [vmem:[%s2 + $0x1e0] sm:$0xff]
    %v140 = vld [vmem:[%s2 + $0x1e8] sm:$0xff]
    %v141 = vld [vmem:[%s2 + $0x1f0] sm:$0xff]
    %v142 = vld [vmem:[%s2 + $0x1f8] sm:$0xff]
    %v143 = vld [vmem:[%s2 + $0x200] sm:$0xff]
    %v144 = vld [vmem:[%s2 + $0x208] sm:$0xff]
    %v145 = vld [vmem:[%s2 + $0x210] sm:$0xff]
    %v146 = vld [vmem:[%s2 + $0x218] sm:$0xff]
    %v147 = vld [vmem:[%s2 + $0x220] sm:$0xff]
    %v148 = vld [vmem:[%s2 + $0x228] sm:$0xff]
    %v149 = vld [vmem:[%s2 + $0x230] sm:$0xff]
    %v150 = vld [vmem:[%s2 + $0x238] sm:$0xff]
    %v151 = vld [vmem:[%s3] sm:$0x1]
    %v153 = vlaneseq
    %v154 = vshrl.u32 %v153, 7
    %v155 = vsub.s32 0, %v154
    %v156 = vrot.slane %v151, %v155
    %v161 = vcombine.high %v76, %v76
    %v162 = vcombine.high %v77, %v77
    %vm165 = vcmask 523264
    %v166 = vsel %vm165, %v78, 0
    %168 = vmatprep.subr.mxu0 0.0
    %169 = vmatpush1.msra.mxu0 %v94
    %170 = vmatprep.subr.mxu0 0.0
    %171 = vmatpush1.msra.mxu0 %v93
    %172 = vmatprep.subr.mxu0 0.0
    %173 = vmatpush1.msra.mxu0 %v92
    %174 = vmatprep.subr.mxu0 0.0
    %175 = vmatpush1.msra.mxu0 %v91
    %176 = vmatprep.subr.mxu0 0.0
    %177 = vmatpush1.msra.mxu0 %v90
    %178 = vmatprep.subr.mxu0 0.0
    %179 = vmatpush1.msra.mxu0 %v89
    %180 = vmatprep.subr.mxu0 0.0
    %181 = vmatpush1.msra.mxu0 %v88
    %182 = vmatprep.subr.mxu0 0.0
    %183 = vmatpush1.msra.mxu0 %v87
    %184 = vmatprep.subr.mxu0 0.0
    %185 = vmatpush1.msra.mxu0 %v86
    %186 = vmatprep.subr.mxu0 0.0
    %187 = vmatpush1.msra.mxu0 %v85
    %188 = vmatprep.subr.mxu0 0.0
    %189 = vmatpush1.msra.mxu0 %v84
    %190 = vmatprep.subr.mxu0 0.0
    %191 = vmatpush1.msra.mxu0 %v83
    %192 = vmatprep.subr.mxu0 0.0
    %193 = vmatpush1.msra.mxu0 %v82
    %194 = vmatprep.subr.mxu0 0.0
    %195 = vmatpush1.msra.mxu0 %v81
    %196 = vmatprep.subr.mxu0 0.0
    %197 = vmatpush1.msra.mxu0 %v80
    %198 = vmatprep.subr.mxu0 0.0
    %199 = vmatpush1.msra.mxu0 %v79
    %200 = vmatprep.subr.mxu0 0.0
    %201 = vmatpush2.msra.mxu0 %v110
    %202 = vmatprep.subr.mxu0 0.0
    %203 = vmatpush2.msra.mxu0 %v109
    %204 = vmatprep.subr.mxu0 0.0
    %205 = vmatpush2.msra.mxu0 %v108
    %206 = vmatprep.subr.mxu0 0.0
    %207 = vmatpush2.msra.mxu0 %v107
    %208 = vmatprep.subr.mxu0 0.0
    %209 = vmatpush2.msra.mxu0 %v106
    %210 = vmatprep.subr.mxu0 0.0
    %211 = vmatpush2.msra.mxu0 %v105
    %212 = vmatprep.subr.mxu0 0.0
    %213 = vmatpush2.msra.mxu0 %v104
    %214 = vmatprep.subr.mxu0 0.0
    %215 = vmatpush2.msra.mxu0 %v103
    %216 = vmatprep.subr.mxu0 0.0
    %217 = vmatpush2.msra.mxu0 %v102
    %218 = vmatprep.subr.mxu0 0.0
    %219 = vmatpush2.msra.mxu0 %v101
    %220 = vmatprep.subr.mxu0 0.0
    %221 = vmatpush2.msra.mxu0 %v100
    %222 = vmatprep.subr.mxu0 0.0
    %223 = vmatpush2.msra.mxu0 %v99
    %224 = vmatprep.subr.mxu0 0.0
    %225 = vmatpush2.msra.mxu0 %v98
    %226 = vmatprep.subr.mxu0 0.0
    %227 = vmatpush2.msra.mxu0 %v97
    %228 = vmatprep.subr.mxu0 0.0
    %229 = vmatpush2.msra.mxu0 %v96
    %230 = vmatprep.subr.mxu0 0.0
    %231 = vmatpush2.msra.mxu0 %v95
    %232 = vmatprep.mubr.f32.mxu0 %v161
    %233 = vmatmul.mubr.f32.gmra.mxu0 %v76
    %v234 = vpop.f32.mrf.mxu0
    %v235 = vadd.f32 %v156, %v234
    %v236 = vpop.f32.mrf.mxu0
    %237 = vdwg.mxu0
    %238 = vmatprep.subr.mxu0 0.0
    %239 = vmatpush1.msra.mxu0 %v126
    %240 = vmatprep.subr.mxu0 0.0
    %241 = vmatpush1.msra.mxu0 %v125
    %242 = vmatprep.subr.mxu0 0.0
    %243 = vmatpush1.msra.mxu0 %v124
    %244 = vmatprep.subr.mxu0 0.0
    %245 = vmatpush1.msra.mxu0 %v123
    %246 = vmatprep.subr.mxu0 0.0
    %247 = vmatpush1.msra.mxu0 %v122
    %248 = vmatprep.subr.mxu0 0.0
    %249 = vmatpush1.msra.mxu0 %v121
    %250 = vmatprep.subr.mxu0 0.0
    %251 = vmatpush1.msra.mxu0 %v120
    %252 = vmatprep.subr.mxu0 0.0
    %253 = vmatpush1.msra.mxu0 %v119
    %254 = vmatprep.subr.mxu0 0.0
    %255 = vmatpush1.msra.mxu0 %v118
    %256 = vmatprep.subr.mxu0 0.0
    %257 = vmatpush1.msra.mxu0 %v117
    %258 = vmatprep.subr.mxu0 0.0
    %259 = vmatpush1.msra.mxu0 %v116
    %260 = vmatprep.subr.mxu0 0.0
    %261 = vmatpush1.msra.mxu0 %v115
    %262 = vmatprep.subr.mxu0 0.0
    %263 = vmatpush1.msra.mxu0 %v114
    %264 = vmatprep.subr.mxu0 0.0
    %265 = vmatpush1.msra.mxu0 %v113
    %266 = vmatprep.subr.mxu0 0.0
    %267 = vmatpush1.msra.mxu0 %v112
    %268 = vmatprep.subr.mxu0 0.0
    %269 = vmatpush1.msra.mxu0 %v111
    %270 = vmatprep.subr.mxu0 0.0
    %271 = vmatpush2.msra.mxu0 %v142
    %272 = vmatprep.subr.mxu0 0.0
    %273 = vmatpush2.msra.mxu0 %v141
    %274 = vmatprep.subr.mxu0 0.0
    %275 = vmatpush2.msra.mxu0 %v140
    %276 = vmatprep.subr.mxu0 0.0
    %277 = vmatpush2.msra.mxu0 %v139
    %278 = vmatprep.subr.mxu0 0.0
    %279 = vmatpush2.msra.mxu0 %v138
    %280 = vmatprep.subr.mxu0 0.0
    %281 = vmatpush2.msra.mxu0 %v137
    %282 = vmatprep.subr.mxu0 0.0
    %283 = vmatpush2.msra.mxu0 %v136
    %284 = vmatprep.subr.mxu0 0.0
    %285 = vmatpush2.msra.mxu0 %v135
    %286 = vmatprep.subr.mxu0 0.0
    %287 = vmatpush2.msra.mxu0 %v134
    %288 = vmatprep.subr.mxu0 0.0
    %289 = vmatpush2.msra.mxu0 %v133
    %290 = vmatprep.subr.mxu0 0.0
    %291 = vmatpush2.msra.mxu0 %v132
    %292 = vmatprep.subr.mxu0 0.0
    %293 = vmatpush2.msra.mxu0 %v131
    %294 = vmatprep.subr.mxu0 0.0
    %295 = vmatpush2.msra.mxu0 %v130
    %296 = vmatprep.subr.mxu0 0.0
    %297 = vmatpush2.msra.mxu0 %v129
    %298 = vmatprep.subr.mxu0 0.0
    %299 = vmatpush2.msra.mxu0 %v128
    %300 = vmatprep.subr.mxu0 0.0
    %301 = vmatpush2.msra.mxu0 %v127
    %302 = vmatprep.mubr.f32.mxu0 %v162
    %303 = vmatmul.mubr.f32.gmra.mxu0 %v77
    %v304 = vpop.f32.mrf.mxu0
    %v305 = vadd.f32 %v235, %v304
    %v306 = vpop.f32.mrf.mxu0
    %307 = vdwg.mxu0
    %308 = vmatprep.subr.mxu0 0.0
    %309 = vmatpush1.msra.mxu0 0.0
    %310 = vmatprep.subr.mxu0 0.0
    %311 = vmatpush1.msra.mxu0 0.0
    %312 = vmatprep.subr.mxu0 0.0
    %313 = vmatpush1.msra.mxu0 0.0
    %314 = vmatprep.subr.mxu0 0.0
    %315 = vmatpush1.msra.mxu0 0.0
    %316 = vmatprep.subr.mxu0 0.0
    %317 = vmatpush1.msra.mxu0 0.0
    %318 = vmatprep.subr.mxu0 0.0
    %319 = vmatpush1.msra.mxu0 0.0
    %320 = vmatprep.subr.mxu0 0.0
    %321 = vmatpush1.msra.mxu0 0.0
    %322 = vmatprep.subr.mxu0 0.0
    %323 = vmatpush1.msra.mxu0 0.0
    %324 = vmatprep.subr.mxu0 0.0
    %325 = vmatpush1.msra.mxu0 %v150
    %326 = vmatprep.subr.mxu0 0.0
    %327 = vmatpush1.msra.mxu0 %v149
    %328 = vmatprep.subr.mxu0 0.0
    %329 = vmatpush1.msra.mxu0 %v148
    %330 = vmatprep.subr.mxu0 0.0
    %331 = vmatpush1.msra.mxu0 %v147
    %332 = vmatprep.subr.mxu0 0.0
    %333 = vmatpush1.msra.mxu0 %v146
    %334 = vmatprep.subr.mxu0 0.0
    %335 = vmatpush1.msra.mxu0 %v145
    %336 = vmatprep.subr.mxu0 0.0
    %337 = vmatpush1.msra.mxu0 %v144
    %338 = vmatprep.subr.mxu0 0.0
    %339 = vmatpush1.msra.mxu0 %v143
    %340 = vmatprep.subr.mxu0 0.0
    %341 = vmatpush2.msra.mxu0 0.0
    %342 = vmatprep.subr.mxu0 0.0
    %343 = vmatpush2.msra.mxu0 0.0
    %344 = vmatprep.subr.mxu0 0.0
    %345 = vmatpush2.msra.mxu0 0.0
    %346 = vmatprep.subr.mxu0 0.0
    %347 = vmatpush2.msra.mxu0 0.0
    %348 = vmatprep.subr.mxu0 0.0
    %349 = vmatpush2.msra.mxu0 0.0
    %350 = vmatprep.subr.mxu0 0.0
    %351 = vmatpush2.msra.mxu0 0.0
    %352 = vmatprep.subr.mxu0 0.0
    %353 = vmatpush2.msra.mxu0 0.0
    %354 = vmatprep.subr.mxu0 0.0
    %355 = vmatpush2.msra.mxu0 0.0
    %356 = vmatprep.subr.mxu0 0.0
    %357 = vmatpush2.msra.mxu0 0.0
    %358 = vmatprep.subr.mxu0 0.0
    %359 = vmatpush2.msra.mxu0 0.0
    %360 = vmatprep.subr.mxu0 0.0
    %361 = vmatpush2.msra.mxu0 0.0
    %362 = vmatprep.subr.mxu0 0.0
    %363 = vmatpush2.msra.mxu0 0.0
    %364 = vmatprep.subr.mxu0 0.0
    %365 = vmatpush2.msra.mxu0 0.0
    %366 = vmatprep.subr.mxu0 0.0
    %367 = vmatpush2.msra.mxu0 0.0
    %368 = vmatprep.subr.mxu0 0.0
    %369 = vmatpush2.msra.mxu0 0.0
    %370 = vmatprep.subr.mxu0 0.0
    %371 = vmatpush2.msra.mxu0 0.0
    %372 = vmatprep.mubr.f32.mxu0 0.0
    %373 = vmatmul.mubr.f32.gmra.mxu0 %v166
    %v374 = vpop.f32.mrf.mxu0
    %v375 = vadd.f32 %v305, %v374
    %v376 = vpop.f32.mrf.mxu0
    %377 = vdwg.mxu0
    %vm378 = vcmp.ge.f32.partialorder %v375, 0.0
    %v379 = vmul.f32 %v375, 0.01
    %v380 = vsel %vm378, %v375, %v379
    %v381 = vld [vmem:[%s4] sm:$0xff]
    %v382 = vld [vmem:[%s4 + $0x8] sm:$0xff]
    %v383 = vld [vmem:[%s4 + $0x10] sm:$0xff]
    %v384 = vld [vmem:[%s4 + $0x18] sm:$0xff]
    %v385 = vld [vmem:[%s4 + $0x20] sm:$0xff]
    %v386 = vld [vmem:[%s4 + $0x28] sm:$0xff]
    %v387 = vld [vmem:[%s4 + $0x30] sm:$0xff]
    %v388 = vld [vmem:[%s4 + $0x38] sm:$0xff]
    %v389 = vld [vmem:[%s4 + $0x40] sm:$0xff]
    %v390 = vld [vmem:[%s4 + $0x48] sm:$0xff]
    %v391 = vld [vmem:[%s4 + $0x50] sm:$0xff]
    %v392 = vld [vmem:[%s4 + $0x58] sm:$0xff]
    %v393 = vld [vmem:[%s4 + $0x60] sm:$0xff]
    %v394 = vld [vmem:[%s4 + $0x68] sm:$0xff]
    %v395 = vld [vmem:[%s4 + $0x70] sm:$0xff]
    %v396 = vld [vmem:[%s4 + $0x78] sm:$0xff]
    %v397 = vld [vmem:[%s4 + $0x80] sm:$0xff]
    %v398 = vld [vmem:[%s4 + $0x88] sm:$0xff]
    %v399 = vld [vmem:[%s4 + $0x90] sm:$0xff]
    %v400 = vld [vmem:[%s4 + $0x98] sm:$0xff]
    %v401 = vld [vmem:[%s4 + $0xa0] sm:$0xff]
    %v402 = vld [vmem:[%s4 + $0xa8] sm:$0xff]
    %v403 = vld [vmem:[%s4 + $0xb0] sm:$0xff]
    %v404 = vld [vmem:[%s4 + $0xb8] sm:$0xff]
    %v405 = vld [vmem:[%s4 + $0xc0] sm:$0xff]
    %v406 = vld [vmem:[%s4 + $0xc8] sm:$0xff]
    %v407 = vld [vmem:[%s4 + $0xd0] sm:$0xff]
    %v408 = vld [vmem:[%s4 + $0xd8] sm:$0xff]
    %v409 = vld [vmem:[%s4 + $0xe0] sm:$0xff]
    %v410 = vld [vmem:[%s4 + $0xe8] sm:$0xff]
    %v411 = vld [vmem:[%s4 + $0xf0] sm:$0xff]
    %v412 = vld [vmem:[%s4 + $0xf8] sm:$0xff]
    %s413 = scalar_lea.vmem %s0, 20
    %v414 = vld [vmem:[%s413] sm:$0xff]
    %v415 = vld [vmem:[%s413 + $0x8] sm:$0xff]
    %v416 = vld [vmem:[%s413 + $0x10] sm:$0xf]
    %v420 = vcombine.high %v414, %v414
    %v421 = vcombine.high %v415, %v415
    %v424 = vsel %vm165, %v416, 0
    %426 = vmatprep.subr.mxu0 0.0
    %427 = vmatpush1.msra.mxu0 %v94
    %428 = vmatprep.subr.mxu0 0.0
    %429 = vmatpush1.msra.mxu0 %v93
    %430 = vmatprep.subr.mxu0 0.0
    %431 = vmatpush1.msra.mxu0 %v92
    %432 = vmatprep.subr.mxu0 0.0
    %433 = vmatpush1.msra.mxu0 %v91
    %434 = vmatprep.subr.mxu0 0.0
    %435 = vmatpush1.msra.mxu0 %v90
    %436 = vmatprep.subr.mxu0 0.0
    %437 = vmatpush1.msra.mxu0 %v89
    %438 = vmatprep.subr.mxu0 0.0
    %439 = vmatpush1.msra.mxu0 %v88
    %440 = vmatprep.subr.mxu0 0.0
    %441 = vmatpush1.msra.mxu0 %v87
    %442 = vmatprep.subr.mxu0 0.0
    %443 = vmatpush1.msra.mxu0 %v86
    %444 = vmatprep.subr.mxu0 0.0
    %445 = vmatpush1.msra.mxu0 %v85
    %446 = vmatprep.subr.mxu0 0.0
    %447 = vmatpush1.msra.mxu0 %v84
    %448 = vmatprep.subr.mxu0 0.0
    %449 = vmatpush1.msra.mxu0 %v83
    %450 = vmatprep.subr.mxu0 0.0
    %451 = vmatpush1.msra.mxu0 %v82
    %452 = vmatprep.subr.mxu0 0.0
    %453 = vmatpush1.msra.mxu0 %v81
    %454 = vmatprep.subr.mxu0 0.0
    %455 = vmatpush1.msra.mxu0 %v80
    %456 = vmatprep.subr.mxu0 0.0
    %457 = vmatpush1.msra.mxu0 %v79
    %458 = vmatprep.subr.mxu0 0.0
    %459 = vmatpush2.msra.mxu0 %v110
    %460 = vmatprep.subr.mxu0 0.0
    %461 = vmatpush2.msra.mxu0 %v109
    %462 = vmatprep.subr.mxu0 0.0
    %463 = vmatpush2.msra.mxu0 %v108
    %464 = vmatprep.subr.mxu0 0.0
    %465 = vmatpush2.msra.mxu0 %v107
    %466 = vmatprep.subr.mxu0 0.0
    %467 = vmatpush2.msra.mxu0 %v106
    %468 = vmatprep.subr.mxu0 0.0
    %469 = vmatpush2.msra.mxu0 %v105
    %470 = vmatprep.subr.mxu0 0.0
    %471 = vmatpush2.msra.mxu0 %v104
    %472 = vmatprep.subr.mxu0 0.0
    %473 = vmatpush2.msra.mxu0 %v103
    %474 = vmatprep.subr.mxu0 0.0
    %475 = vmatpush2.msra.mxu0 %v102
    %476 = vmatprep.subr.mxu0 0.0
    %477 = vmatpush2.msra.mxu0 %v101
    %478 = vmatprep.subr.mxu0 0.0
    %479 = vmatpush2.msra.mxu0 %v100
    %480 = vmatprep.subr.mxu0 0.0
    %481 = vmatpush2.msra.mxu0 %v99
    %482 = vmatprep.subr.mxu0 0.0
    %483 = vmatpush2.msra.mxu0 %v98
    %484 = vmatprep.subr.mxu0 0.0
    %485 = vmatpush2.msra.mxu0 %v97
    %486 = vmatprep.subr.mxu0 0.0
    %487 = vmatpush2.msra.mxu0 %v96
    %488 = vmatprep.subr.mxu0 0.0
    %489 = vmatpush2.msra.mxu0 %v95
    %490 = vmatprep.mubr.f32.mxu0 %v420
    %491 = vmatmul.mubr.f32.gmra.mxu0 %v414
    %v492 = vpop.f32.mrf.mxu0
    %v493 = vadd.f32 %v156, %v492
    %v494 = vpop.f32.mrf.mxu0
    %495 = vdwg.mxu0
    %496 = vmatprep.subr.mxu0 0.0
    %497 = vmatpush1.msra.mxu0 %v126
    %498 = vmatprep.subr.mxu0 0.0
    %499 = vmatpush1.msra.mxu0 %v125
    %500 = vmatprep.subr.mxu0 0.0
    %501 = vmatpush1.msra.mxu0 %v124
    %502 = vmatprep.subr.mxu0 0.0
    %503 = vmatpush1.msra.mxu0 %v123
    %504 = vmatprep.subr.mxu0 0.0
    %505 = vmatpush1.msra.mxu0 %v122
    %506 = vmatprep.subr.mxu0 0.0
    %507 = vmatpush1.msra.mxu0 %v121
    %508 = vmatprep.subr.mxu0 0.0
    %509 = vmatpush1.msra.mxu0 %v120
    %510 = vmatprep.subr.mxu0 0.0
    %511 = vmatpush1.msra.mxu0 %v119
    %512 = vmatprep.subr.mxu0 0.0
    %513 = vmatpush1.msra.mxu0 %v118
    %514 = vmatprep.subr.mxu0 0.0
    %515 = vmatpush1.msra.mxu0 %v117
    %516 = vmatprep.subr.mxu0 0.0
    %517 = vmatpush1.msra.mxu0 %v116
    %518 = vmatprep.subr.mxu0 0.0
    %519 = vmatpush1.msra.mxu0 %v115
    %520 = vmatprep.subr.mxu0 0.0
    %521 = vmatpush1.msra.mxu0 %v114
    %522 = vmatprep.subr.mxu0 0.0
    %523 = vmatpush1.msra.mxu0 %v113
    %524 = vmatprep.subr.mxu0 0.0
    %525 = vmatpush1.msra.mxu0 %v112
    %526 = vmatprep.subr.mxu0 0.0
    %527 = vmatpush1.msra.mxu0 %v111
    %528 = vmatprep.subr.mxu0 0.0
    %529 = vmatpush2.msra.mxu0 %v142
    %530 = vmatprep.subr.mxu0 0.0
    %531 = vmatpush2.msra.mxu0 %v141
    %532 = vmatprep.subr.mxu0 0.0
    %533 = vmatpush2.msra.mxu0 %v140
    %534 = vmatprep.subr.mxu0 0.0
    %535 = vmatpush2.msra.mxu0 %v139
    %536 = vmatprep.subr.mxu0 0.0
    %537 = vmatpush2.msra.mxu0 %v138
    %538 = vmatprep.subr.mxu0 0.0
    %539 = vmatpush2.msra.mxu0 %v137
    %540 = vmatprep.subr.mxu0 0.0
    %541 = vmatpush2.msra.mxu0 %v136
    %542 = vmatprep.subr.mxu0 0.0
    %543 = vmatpush2.msra.mxu0 %v135
    %544 = vmatprep.subr.mxu0 0.0
    %545 = vmatpush2.msra.mxu0 %v134
    %546 = vmatprep.subr.mxu0 0.0
    %547 = vmatpush2.msra.mxu0 %v133
    %548 = vmatprep.subr.mxu0 0.0
    %549 = vmatpush2.msra.mxu0 %v132
    %550 = vmatprep.subr.mxu0 0.0
    %551 = vmatpush2.msra.mxu0 %v131
    %552 = vmatprep.subr.mxu0 0.0
    %553 = vmatpush2.msra.mxu0 %v130
    %554 = vmatprep.subr.mxu0 0.0
    %555 = vmatpush2.msra.mxu0 %v129
    %556 = vmatprep.subr.mxu0 0.0
    %557 = vmatpush2.msra.mxu0 %v128
    %558 = vmatprep.subr.mxu0 0.0
    %559 = vmatpush2.msra.mxu0 %v127
    %560 = vmatprep.mubr.f32.mxu0 %v421
    %561 = vmatmul.mubr.f32.gmra.mxu0 %v415
    %v562 = vpop.f32.mrf.mxu0
    %v563 = vadd.f32 %v493, %v562
    %v564 = vpop.f32.mrf.mxu0
    %565 = vdwg.mxu0
    %566 = vmatprep.subr.mxu0 0.0
    %567 = vmatpush1.msra.mxu0 0.0
    %568 = vmatprep.subr.mxu0 0.0
    %569 = vmatpush1.msra.mxu0 0.0
    %570 = vmatprep.subr.mxu0 0.0
    %571 = vmatpush1.msra.mxu0 0.0
    %572 = vmatprep.subr.mxu0 0.0
    %573 = vmatpush1.msra.mxu0 0.0
    %574 = vmatprep.subr.mxu0 0.0
    %575 = vmatpush1.msra.mxu0 0.0
    %576 = vmatprep.subr.mxu0 0.0
    %577 = vmatpush1.msra.mxu0 0.0
    %578 = vmatprep.subr.mxu0 0.0
    %579 = vmatpush1.msra.mxu0 0.0
    %580 = vmatprep.subr.mxu0 0.0
    %581 = vmatpush1.msra.mxu0 0.0
    %582 = vmatprep.subr.mxu0 0.0
    %583 = vmatpush1.msra.mxu0 %v150
    %584 = vmatprep.subr.mxu0 0.0
    %585 = vmatpush1.msra.mxu0 %v149
    %586 = vmatprep.subr.mxu0 0.0
    %587 = vmatpush1.msra.mxu0 %v148
    %588 = vmatprep.subr.mxu0 0.0
    %589 = vmatpush1.msra.mxu0 %v147
    %590 = vmatprep.subr.mxu0 0.0
    %591 = vmatpush1.msra.mxu0 %v146
    %592 = vmatprep.subr.mxu0 0.0
    %593 = vmatpush1.msra.mxu0 %v145
    %594 = vmatprep.subr.mxu0 0.0
    %595 = vmatpush1.msra.mxu0 %v144
    %596 = vmatprep.subr.mxu0 0.0
    %597 = vmatpush1.msra.mxu0 %v143
    %598 = vmatprep.subr.mxu0 0.0
    %599 = vmatpush2.msra.mxu0 0.0
    %600 = vmatprep.subr.mxu0 0.0
    %601 = vmatpush2.msra.mxu0 0.0
    %602 = vmatprep.subr.mxu0 0.0
    %603 = vmatpush2.msra.mxu0 0.0
    %604 = vmatprep.subr.mxu0 0.0
    %605 = vmatpush2.msra.mxu0 0.0
    %606 = vmatprep.subr.mxu0 0.0
    %607 = vmatpush2.msra.mxu0 0.0
    %608 = vmatprep.subr.mxu0 0.0
    %609 = vmatpush2.msra.mxu0 0.0
    %610 = vmatprep.subr.mxu0 0.0
    %611 = vmatpush2.msra.mxu0 0.0
    %612 = vmatprep.subr.mxu0 0.0
    %613 = vmatpush2.msra.mxu0 0.0
    %614 = vmatprep.subr.mxu0 0.0
    %615 = vmatpush2.msra.mxu0 0.0
    %616 = vmatprep.subr.mxu0 0.0
    %617 = vmatpush2.msra.mxu0 0.0
    %618 = vmatprep.subr.mxu0 0.0
    %619 = vmatpush2.msra.mxu0 0.0
    %620 = vmatprep.subr.mxu0 0.0
    %621 = vmatpush2.msra.mxu0 0.0
    %622 = vmatprep.subr.mxu0 0.0
    %623 = vmatpush2.msra.mxu0 0.0
    %624 = vmatprep.subr.mxu0 0.0
    %625 = vmatpush2.msra.mxu0 0.0
    %626 = vmatprep.subr.mxu0 0.0
    %627 = vmatpush2.msra.mxu0 0.0
    %628 = vmatprep.subr.mxu0 0.0
    %629 = vmatpush2.msra.mxu0 0.0
    %630 = vmatprep.mubr.f32.mxu0 0.0
    %631 = vmatmul.mubr.f32.gmra.mxu0 %v424
    %v632 = vpop.f32.mrf.mxu0
    %v633 = vadd.f32 %v563, %v632
    %v634 = vpop.f32.mrf.mxu0
    %635 = vdwg.mxu0
    %vm636 = vcmp.ge.f32.partialorder %v633, 0.0
    %v637 = vmul.f32 %v633, 0.01
    %v638 = vsel %vm636, %v633, %v637
    %s639 = scalar_lea.vmem %s4, 256
    %v640 = vld [vmem:[%s639] sm:$0xff]
    %v641 = vld [vmem:[%s639 + $0x8] sm:$0xff]
    %v642 = vld [vmem:[%s639 + $0x10] sm:$0xff]
    %v643 = vld [vmem:[%s639 + $0x18] sm:$0xff]
    %v644 = vld [vmem:[%s639 + $0x20] sm:$0xff]
    %v645 = vld [vmem:[%s639 + $0x28] sm:$0xff]
    %v646 = vld [vmem:[%s639 + $0x30] sm:$0xff]
    %v647 = vld [vmem:[%s639 + $0x38] sm:$0xff]
    %v648 = vld [vmem:[%s639 + $0x40] sm:$0xff]
    %v649 = vld [vmem:[%s639 + $0x48] sm:$0xff]
    %v650 = vld [vmem:[%s639 + $0x50] sm:$0xff]
    %v651 = vld [vmem:[%s639 + $0x58] sm:$0xff]
    %v652 = vld [vmem:[%s639 + $0x60] sm:$0xff]
    %v653 = vld [vmem:[%s639 + $0x68] sm:$0xff]
    %v654 = vld [vmem:[%s639 + $0x70] sm:$0xff]
    %v655 = vld [vmem:[%s639 + $0x78] sm:$0xff]
    %v656 = vld [vmem:[%s639 + $0x80] sm:$0xff]
    %v657 = vld [vmem:[%s639 + $0x88] sm:$0xff]
    %v658 = vld [vmem:[%s639 + $0x90] sm:$0xff]
    %v659 = vld [vmem:[%s639 + $0x98] sm:$0xff]
    %v660 = vld [vmem:[%s639 + $0xa0] sm:$0xff]
    %v661 = vld [vmem:[%s639 + $0xa8] sm:$0xff]
    %v662 = vld [vmem:[%s639 + $0xb0] sm:$0xff]
    %v663 = vld [vmem:[%s639 + $0xb8] sm:$0xff]
    %v664 = vld [vmem:[%s639 + $0xc0] sm:$0xff]
    %v665 = vld [vmem:[%s639 + $0xc8] sm:$0xff]
    %v666 = vld [vmem:[%s639 + $0xd0] sm:$0xff]
    %v667 = vld [vmem:[%s639 + $0xd8] sm:$0xff]
    %v668 = vld [vmem:[%s639 + $0xe0] sm:$0xff]
    %v669 = vld [vmem:[%s639 + $0xe8] sm:$0xff]
    %v670 = vld [vmem:[%s639 + $0xf0] sm:$0xff]
    %v671 = vld [vmem:[%s639 + $0xf8] sm:$0xff]
    %v673 = vsel %vm165, %v638, 0
    %675 = vmatprep.subr.mxu0 0.0
    %676 = vmatpush1.msra.mxu0 0.0
    %677 = vmatprep.subr.mxu0 0.0
    %678 = vmatpush1.msra.mxu0 0.0
    %679 = vmatprep.subr.mxu0 0.0
    %680 = vmatpush1.msra.mxu0 0.0
    %681 = vmatprep.subr.mxu0 0.0
    %682 = vmatpush1.msra.mxu0 0.0
    %683 = vmatprep.subr.mxu0 0.0
    %684 = vmatpush1.msra.mxu0 0.0
    %685 = vmatprep.subr.mxu0 0.0
    %686 = vmatpush1.msra.mxu0 0.0
    %687 = vmatprep.subr.mxu0 0.0
    %688 = vmatpush1.msra.mxu0 0.0
    %689 = vmatprep.subr.mxu0 0.0
    %690 = vmatpush1.msra.mxu0 0.0
    %691 = vmatprep.subr.mxu0 %v669
    %692 = vmatpush1.msra.mxu0 %v668
    %693 = vmatprep.subr.mxu0 %v665
    %694 = vmatpush1.msra.mxu0 %v664
    %695 = vmatprep.subr.mxu0 %v661
    %696 = vmatpush1.msra.mxu0 %v660
    %697 = vmatprep.subr.mxu0 %v657
    %698 = vmatpush1.msra.mxu0 %v656
    %699 = vmatprep.subr.mxu0 %v653
    %700 = vmatpush1.msra.mxu0 %v652
    %701 = vmatprep.subr.mxu0 %v649
    %702 = vmatpush1.msra.mxu0 %v648
    %703 = vmatprep.subr.mxu0 %v645
    %704 = vmatpush1.msra.mxu0 %v644
    %705 = vmatprep.subr.mxu0 %v641
    %706 = vmatpush1.msra.mxu0 %v640
    %707 = vmatprep.subr.mxu0 0.0
    %708 = vmatpush2.msra.mxu0 0.0
    %709 = vmatprep.subr.mxu0 0.0
    %710 = vmatpush2.msra.mxu0 0.0
    %711 = vmatprep.subr.mxu0 0.0
    %712 = vmatpush2.msra.mxu0 0.0
    %713 = vmatprep.subr.mxu0 0.0
    %714 = vmatpush2.msra.mxu0 0.0
    %715 = vmatprep.subr.mxu0 0.0
    %716 = vmatpush2.msra.mxu0 0.0
    %717 = vmatprep.subr.mxu0 0.0
    %718 = vmatpush2.msra.mxu0 0.0
    %719 = vmatprep.subr.mxu0 0.0
    %720 = vmatpush2.msra.mxu0 0.0
    %721 = vmatprep.subr.mxu0 0.0
    %722 = vmatpush2.msra.mxu0 0.0
    %723 = vmatprep.subr.mxu0 0.0
    %724 = vmatpush2.msra.mxu0 0.0
    %725 = vmatprep.subr.mxu0 0.0
    %726 = vmatpush2.msra.mxu0 0.0
    %727 = vmatprep.subr.mxu0 0.0
    %728 = vmatpush2.msra.mxu0 0.0
    %729 = vmatprep.subr.mxu0 0.0
    %730 = vmatpush2.msra.mxu0 0.0
    %731 = vmatprep.subr.mxu0 0.0
    %732 = vmatpush2.msra.mxu0 0.0
    %733 = vmatprep.subr.mxu0 0.0
    %734 = vmatpush2.msra.mxu0 0.0
    %735 = vmatprep.subr.mxu0 0.0
    %736 = vmatpush2.msra.mxu0 0.0
    %737 = vmatprep.subr.mxu0 0.0
    %738 = vmatpush2.msra.mxu0 0.0
    %739 = vmatprep.mubr.f32.mxu0 0.0
    %740 = vmatmul.mubr.f32.gmra.mxu0 %v673
    %v741 = vpop.f32.mrf.mxu0
    %v742 = vadd.f32 0.0, %v741
    %v743 = vpop.f32.mrf.mxu0
    %v744 = vadd.f32 0.0, %v743
    %745 = vdwg.mxu0
    %746 = vmatprep.subr.mxu0 0.0
    %747 = vmatpush1.msra.mxu0 0.0
    %748 = vmatprep.subr.mxu0 0.0
    %749 = vmatpush1.msra.mxu0 0.0
    %750 = vmatprep.subr.mxu0 0.0
    %751 = vmatpush1.msra.mxu0 0.0
    %752 = vmatprep.subr.mxu0 0.0
    %753 = vmatpush1.msra.mxu0 0.0
    %754 = vmatprep.subr.mxu0 0.0
    %755 = vmatpush1.msra.mxu0 0.0
    %756 = vmatprep.subr.mxu0 0.0
    %757 = vmatpush1.msra.mxu0 0.0
    %758 = vmatprep.subr.mxu0 0.0
    %759 = vmatpush1.msra.mxu0 0.0
    %760 = vmatprep.subr.mxu0 0.0
    %761 = vmatpush1.msra.mxu0 0.0
    %762 = vmatprep.subr.mxu0 %v671
    %763 = vmatpush1.msra.mxu0 %v670
    %764 = vmatprep.subr.mxu0 %v667
    %765 = vmatpush1.msra.mxu0 %v666
    %766 = vmatprep.subr.mxu0 %v663
    %767 = vmatpush1.msra.mxu0 %v662
    %768 = vmatprep.subr.mxu0 %v659
    %769 = vmatpush1.msra.mxu0 %v658
    %770 = vmatprep.subr.mxu0 %v655
    %771 = vmatpush1.msra.mxu0 %v654
    %772 = vmatprep.subr.mxu0 %v651
    %773 = vmatpush1.msra.mxu0 %v650
    %774 = vmatprep.subr.mxu0 %v647
    %775 = vmatpush1.msra.mxu0 %v646
    %776 = vmatprep.subr.mxu0 %v643
    %777 = vmatpush1.msra.mxu0 %v642
    %778 = vmatprep.subr.mxu0 0.0
    %779 = vmatpush2.msra.mxu0 0.0
    %780 = vmatprep.subr.mxu0 0.0
    %781 = vmatpush2.msra.mxu0 0.0
    %782 = vmatprep.subr.mxu0 0.0
    %783 = vmatpush2.msra.mxu0 0.0
    %784 = vmatprep.subr.mxu0 0.0
    %785 = vmatpush2.msra.mxu0 0.0
    %786 = vmatprep.subr.mxu0 0.0
    %787 = vmatpush2.msra.mxu0 0.0
    %788 = vmatprep.subr.mxu0 0.0
    %789 = vmatpush2.msra.mxu0 0.0
    %790 = vmatprep.subr.mxu0 0.0
    %791 = vmatpush2.msra.mxu0 0.0
    %792 = vmatprep.subr.mxu0 0.0
    %793 = vmatpush2.msra.mxu0 0.0
    %794 = vmatprep.subr.mxu0 0.0
    %795 = vmatpush2.msra.mxu0 0.0
    %796 = vmatprep.subr.mxu0 0.0
    %797 = vmatpush2.msra.mxu0 0.0
    %798 = vmatprep.subr.mxu0 0.0
    %799 = vmatpush2.msra.mxu0 0.0
    %800 = vmatprep.subr.mxu0 0.0
    %801 = vmatpush2.msra.mxu0 0.0
    %802 = vmatprep.subr.mxu0 0.0
    %803 = vmatpush2.msra.mxu0 0.0
    %804 = vmatprep.subr.mxu0 0.0
    %805 = vmatpush2.msra.mxu0 0.0
    %806 = vmatprep.subr.mxu0 0.0
    %807 = vmatpush2.msra.mxu0 0.0
    %808 = vmatprep.subr.mxu0 0.0
    %809 = vmatpush2.msra.mxu0 0.0
    %810 = vmatprep.mubr.f32.mxu0 0.0
    %811 = vmatmul.mubr.f32.gmra.mxu0 %v673
    %v812 = vpop.f32.mrf.mxu0
    %v813 = vadd.f32 0.0, %v812
    %v814 = vpop.f32.mrf.mxu0
    %v815 = vadd.f32 0.0, %v814
    %816 = vdwg.mxu0
    %v818 = vsel %vm165, %v380, 0
    %820 = vmatprep.subr.mxu0 0.0
    %821 = vmatpush1.msra.mxu0 0.0
    %822 = vmatprep.subr.mxu0 0.0
    %823 = vmatpush1.msra.mxu0 0.0
    %824 = vmatprep.subr.mxu0 0.0
    %825 = vmatpush1.msra.mxu0 0.0
    %826 = vmatprep.subr.mxu0 0.0
    %827 = vmatpush1.msra.mxu0 0.0
    %828 = vmatprep.subr.mxu0 0.0
    %829 = vmatpush1.msra.mxu0 0.0
    %830 = vmatprep.subr.mxu0 0.0
    %831 = vmatpush1.msra.mxu0 0.0
    %832 = vmatprep.subr.mxu0 0.0
    %833 = vmatpush1.msra.mxu0 0.0
    %834 = vmatprep.subr.mxu0 0.0
    %835 = vmatpush1.msra.mxu0 0.0
    %836 = vmatprep.subr.mxu0 %v410
    %837 = vmatpush1.msra.mxu0 %v409
    %838 = vmatprep.subr.mxu0 %v406
    %839 = vmatpush1.msra.mxu0 %v405
    %840 = vmatprep.subr.mxu0 %v402
    %841 = vmatpush1.msra.mxu0 %v401
    %842 = vmatprep.subr.mxu0 %v398
    %843 = vmatpush1.msra.mxu0 %v397
    %844 = vmatprep.subr.mxu0 %v394
    %845 = vmatpush1.msra.mxu0 %v393
    %846 = vmatprep.subr.mxu0 %v390
    %847 = vmatpush1.msra.mxu0 %v389
    %848 = vmatprep.subr.mxu0 %v386
    %849 = vmatpush1.msra.mxu0 %v385
    %850 = vmatprep.subr.mxu0 %v382
    %851 = vmatpush1.msra.mxu0 %v381
    %852 = vmatprep.subr.mxu0 0.0
    %853 = vmatpush2.msra.mxu0 0.0
    %854 = vmatprep.subr.mxu0 0.0
    %855 = vmatpush2.msra.mxu0 0.0
    %856 = vmatprep.subr.mxu0 0.0
    %857 = vmatpush2.msra.mxu0 0.0
    %858 = vmatprep.subr.mxu0 0.0
    %859 = vmatpush2.msra.mxu0 0.0
    %860 = vmatprep.subr.mxu0 0.0
    %861 = vmatpush2.msra.mxu0 0.0
    %862 = vmatprep.subr.mxu0 0.0
    %863 = vmatpush2.msra.mxu0 0.0
    %864 = vmatprep.subr.mxu0 0.0
    %865 = vmatpush2.msra.mxu0 0.0
    %866 = vmatprep.subr.mxu0 0.0
    %867 = vmatpush2.msra.mxu0 0.0
    %868 = vmatprep.subr.mxu0 0.0
    %869 = vmatpush2.msra.mxu0 0.0
    %870 = vmatprep.subr.mxu0 0.0
    %871 = vmatpush2.msra.mxu0 0.0
    %872 = vmatprep.subr.mxu0 0.0
    %873 = vmatpush2.msra.mxu0 0.0
    %874 = vmatprep.subr.mxu0 0.0
    %875 = vmatpush2.msra.mxu0 0.0
    %876 = vmatprep.subr.mxu0 0.0
    %877 = vmatpush2.msra.mxu0 0.0
    %878 = vmatprep.subr.mxu0 0.0
    %879 = vmatpush2.msra.mxu0 0.0
    %880 = vmatprep.subr.mxu0 0.0
    %881 = vmatpush2.msra.mxu0 0.0
    %882 = vmatprep.subr.mxu0 0.0
    %883 = vmatpush2.msra.mxu0 0.0
    %884 = vmatprep.mubr.f32.mxu0 0.0
    %885 = vmatmul.mubr.f32.gmra.mxu0 %v818
    %v886 = vpop.f32.mrf.mxu0
    %v887 = vadd.f32 %v742, %v886
    %v888 = vpop.f32.mrf.mxu0
    %v889 = vadd.f32 %v744, %v888
    %890 = vdwg.mxu0
    %891 = vmatprep.subr.mxu0 0.0
    %892 = vmatpush1.msra.mxu0 0.0
    %893 = vmatprep.subr.mxu0 0.0
    %894 = vmatpush1.msra.mxu0 0.0
    %895 = vmatprep.subr.mxu0 0.0
    %896 = vmatpush1.msra.mxu0 0.0
    %897 = vmatprep.subr.mxu0 0.0
    %898 = vmatpush1.msra.mxu0 0.0
    %899 = vmatprep.subr.mxu0 0.0
    %900 = vmatpush1.msra.mxu0 0.0
    %901 = vmatprep.subr.mxu0 0.0
    %902 = vmatpush1.msra.mxu0 0.0
    %903 = vmatprep.subr.mxu0 0.0
    %904 = vmatpush1.msra.mxu0 0.0
    %905 = vmatprep.subr.mxu0 0.0
    %906 = vmatpush1.msra.mxu0 0.0
    %907 = vmatprep.subr.mxu0 %v412
    %908 = vmatpush1.msra.mxu0 %v411
    %909 = vmatprep.subr.mxu0 %v408
    %910 = vmatpush1.msra.mxu0 %v407
    %911 = vmatprep.subr.mxu0 %v404
    %912 = vmatpush1.msra.mxu0 %v403
    %913 = vmatprep.subr.mxu0 %v400
    %914 = vmatpush1.msra.mxu0 %v399
    %915 = vmatprep.subr.mxu0 %v396
    %916 = vmatpush1.msra.mxu0 %v395
    %917 = vmatprep.subr.mxu0 %v392
    %918 = vmatpush1.msra.mxu0 %v391
    %919 = vmatprep.subr.mxu0 %v388
    %920 = vmatpush1.msra.mxu0 %v387
    %921 = vmatprep.subr.mxu0 %v384
    %922 = vmatpush1.msra.mxu0 %v383
    %923 = vmatprep.subr.mxu0 0.0
    %924 = vmatpush2.msra.mxu0 0.0
    %925 = vmatprep.subr.mxu0 0.0
    %926 = vmatpush2.msra.mxu0 0.0
    %927 = vmatprep.subr.mxu0 0.0
    %928 = vmatpush2.msra.mxu0 0.0
    %929 = vmatprep.subr.mxu0 0.0
    %930 = vmatpush2.msra.mxu0 0.0
    %931 = vmatprep.subr.mxu0 0.0
    %932 = vmatpush2.msra.mxu0 0.0
    %933 = vmatprep.subr.mxu0 0.0
    %934 = vmatpush2.msra.mxu0 0.0
    %935 = vmatprep.subr.mxu0 0.0
    %936 = vmatpush2.msra.mxu0 0.0
    %937 = vmatprep.subr.mxu0 0.0
    %938 = vmatpush2.msra.mxu0 0.0
    %939 = vmatprep.subr.mxu0 0.0
    %940 = vmatpush2.msra.mxu0 0.0
    %941 = vmatprep.subr.mxu0 0.0
    %942 = vmatpush2.msra.mxu0 0.0
    %943 = vmatprep.subr.mxu0 0.0
    %944 = vmatpush2.msra.mxu0 0.0
    %945 = vmatprep.subr.mxu0 0.0
    %946 = vmatpush2.msra.mxu0 0.0
    %947 = vmatprep.subr.mxu0 0.0
    %948 = vmatpush2.msra.mxu0 0.0
    %949 = vmatprep.subr.mxu0 0.0
    %950 = vmatpush2.msra.mxu0 0.0
    %951 = vmatprep.subr.mxu0 0.0
    %952 = vmatpush2.msra.mxu0 0.0
    %953 = vmatprep.subr.mxu0 0.0
    %954 = vmatpush2.msra.mxu0 0.0
    %955 = vmatprep.mubr.f32.mxu0 0.0
    %956 = vmatmul.mubr.f32.gmra.mxu0 %v818
    %v957 = vpop.f32.mrf.mxu0
    %v958 = vadd.f32 %v813, %v957
    %v959 = vpop.f32.mrf.mxu0
    %v960 = vadd.f32 %v815, %v959
    %961 = vdwg.mxu0
    %s962 = scalar_lea.vmem %s0, 40
    %v963 = vld [vmem:[%s962] sm:$0xff]
    %v964 = vld [vmem:[%s962 + $0x8] sm:$0xff]
    %v965 = vld [vmem:[%s962 + $0x10] sm:$0xf]
    %v969 = vcombine.high %v963, %v963
    %v970 = vcombine.high %v964, %v964
    %v973 = vsel %vm165, %v965, 0
    %975 = vmatprep.subr.mxu0 0.0
    %976 = vmatpush1.msra.mxu0 %v94
    %977 = vmatprep.subr.mxu0 0.0
    %978 = vmatpush1.msra.mxu0 %v93
    %979 = vmatprep.subr.mxu0 0.0
    %980 = vmatpush1.msra.mxu0 %v92
    %981 = vmatprep.subr.mxu0 0.0
    %982 = vmatpush1.msra.mxu0 %v91
    %983 = vmatprep.subr.mxu0 0.0
    %984 = vmatpush1.msra.mxu0 %v90
    %985 = vmatprep.subr.mxu0 0.0
    %986 = vmatpush1.msra.mxu0 %v89
    %987 = vmatprep.subr.mxu0 0.0
    %988 = vmatpush1.msra.mxu0 %v88
    %989 = vmatprep.subr.mxu0 0.0
    %990 = vmatpush1.msra.mxu0 %v87
    %991 = vmatprep.subr.mxu0 0.0
    %992 = vmatpush1.msra.mxu0 %v86
    %993 = vmatprep.subr.mxu0 0.0
    %994 = vmatpush1.msra.mxu0 %v85
    %995 = vmatprep.subr.mxu0 0.0
    %996 = vmatpush1.msra.mxu0 %v84
    %997 = vmatprep.subr.mxu0 0.0
    %998 = vmatpush1.msra.mxu0 %v83
    %999 = vmatprep.subr.mxu0 0.0
    %1000 = vmatpush1.msra.mxu0 %v82
    %1001 = vmatprep.subr.mxu0 0.0
    %1002 = vmatpush1.msra.mxu0 %v81
    %1003 = vmatprep.subr.mxu0 0.0
    %1004 = vmatpush1.msra.mxu0 %v80
    %1005 = vmatprep.subr.mxu0 0.0
    %1006 = vmatpush1.msra.mxu0 %v79
    %1007 = vmatprep.subr.mxu0 0.0
    %1008 = vmatpush2.msra.mxu0 %v110
    %1009 = vmatprep.subr.mxu0 0.0
    %1010 = vmatpush2.msra.mxu0 %v109
    %1011 = vmatprep.subr.mxu0 0.0
    %1012 = vmatpush2.msra.mxu0 %v108
    %1013 = vmatprep.subr.mxu0 0.0
    %1014 = vmatpush2.msra.mxu0 %v107
    %1015 = vmatprep.subr.mxu0 0.0
    %1016 = vmatpush2.msra.mxu0 %v106
    %1017 = vmatprep.subr.mxu0 0.0
    %1018 = vmatpush2.msra.mxu0 %v105
    %1019 = vmatprep.subr.mxu0 0.0
    %1020 = vmatpush2.msra.mxu0 %v104
    %1021 = vmatprep.subr.mxu0 0.0
    %1022 = vmatpush2.msra.mxu0 %v103
    %1023 = vmatprep.subr.mxu0 0.0
    %1024 = vmatpush2.msra.mxu0 %v102
    %1025 = vmatprep.subr.mxu0 0.0
    %1026 = vmatpush2.msra.mxu0 %v101
    %1027 = vmatprep.subr.mxu0 0.0
    %1028 = vmatpush2.msra.mxu0 %v100
    %1029 = vmatprep.subr.mxu0 0.0
    %1030 = vmatpush2.msra.mxu0 %v99
    %1031 = vmatprep.subr.mxu0 0.0
    %1032 = vmatpush2.msra.mxu0 %v98
    %1033 = vmatprep.subr.mxu0 0.0
    %1034 = vmatpush2.msra.mxu0 %v97
    %1035 = vmatprep.subr.mxu0 0.0
    %1036 = vmatpush2.msra.mxu0 %v96
    %1037 = vmatprep.subr.mxu0 0.0
    %1038 = vmatpush2.msra.mxu0 %v95
    %1039 = vmatprep.mubr.f32.mxu0 %v969
    %1040 = vmatmul.mubr.f32.gmra.mxu0 %v963
    %v1041 = vpop.f32.mrf.mxu0
    %v1042 = vadd.f32 %v156, %v1041
    %v1043 = vpop.f32.mrf.mxu0
    %1044 = vdwg.mxu0
    %1045 = vmatprep.subr.mxu0 0.0
    %1046 = vmatpush1.msra.mxu0 %v126
    %1047 = vmatprep.subr.mxu0 0.0
    %1048 = vmatpush1.msra.mxu0 %v125
    %1049 = vmatprep.subr.mxu0 0.0
    %1050 = vmatpush1.msra.mxu0 %v124
    %1051 = vmatprep.subr.mxu0 0.0
    %1052 = vmatpush1.msra.mxu0 %v123
    %1053 = vmatprep.subr.mxu0 0.0
    %1054 = vmatpush1.msra.mxu0 %v122
    %1055 = vmatprep.subr.mxu0 0.0
    %1056 = vmatpush1.msra.mxu0 %v121
    %1057 = vmatprep.subr.mxu0 0.0
    %1058 = vmatpush1.msra.mxu0 %v120
    %1059 = vmatprep.subr.mxu0 0.0
    %1060 = vmatpush1.msra.mxu0 %v119
    %1061 = vmatprep.subr.mxu0 0.0
    %1062 = vmatpush1.msra.mxu0 %v118
    %1063 = vmatprep.subr.mxu0 0.0
    %1064 = vmatpush1.msra.mxu0 %v117
    %1065 = vmatprep.subr.mxu0 0.0
    %1066 = vmatpush1.msra.mxu0 %v116
    %1067 = vmatprep.subr.mxu0 0.0
    %1068 = vmatpush1.msra.mxu0 %v115
    %1069 = vmatprep.subr.mxu0 0.0
    %1070 = vmatpush1.msra.mxu0 %v114
    %1071 = vmatprep.subr.mxu0 0.0
    %1072 = vmatpush1.msra.mxu0 %v113
    %1073 = vmatprep.subr.mxu0 0.0
    %1074 = vmatpush1.msra.mxu0 %v112
    %1075 = vmatprep.subr.mxu0 0.0
    %1076 = vmatpush1.msra.mxu0 %v111
    %1077 = vmatprep.subr.mxu0 0.0
    %1078 = vmatpush2.msra.mxu0 %v142
    %1079 = vmatprep.subr.mxu0 0.0
    %1080 = vmatpush2.msra.mxu0 %v141
    %1081 = vmatprep.subr.mxu0 0.0
    %1082 = vmatpush2.msra.mxu0 %v140
    %1083 = vmatprep.subr.mxu0 0.0
    %1084 = vmatpush2.msra.mxu0 %v139
    %1085 = vmatprep.subr.mxu0 0.0
    %1086 = vmatpush2.msra.mxu0 %v138
    %1087 = vmatprep.subr.mxu0 0.0
    %1088 = vmatpush2.msra.mxu0 %v137
    %1089 = vmatprep.subr.mxu0 0.0
    %1090 = vmatpush2.msra.mxu0 %v136
    %1091 = vmatprep.subr.mxu0 0.0
    %1092 = vmatpush2.msra.mxu0 %v135
    %1093 = vmatprep.subr.mxu0 0.0
    %1094 = vmatpush2.msra.mxu0 %v134
    %1095 = vmatprep.subr.mxu0 0.0
    %1096 = vmatpush2.msra.mxu0 %v133
    %1097 = vmatprep.subr.mxu0 0.0
    %1098 = vmatpush2.msra.mxu0 %v132
    %1099 = vmatprep.subr.mxu0 0.0
    %1100 = vmatpush2.msra.mxu0 %v131
    %1101 = vmatprep.subr.mxu0 0.0
    %1102 = vmatpush2.msra.mxu0 %v130
    %1103 = vmatprep.subr.mxu0 0.0
    %1104 = vmatpush2.msra.mxu0 %v129
    %1105 = vmatprep.subr.mxu0 0.0
    %1106 = vmatpush2.msra.mxu0 %v128
    %1107 = vmatprep.subr.mxu0 0.0
    %1108 = vmatpush2.msra.mxu0 %v127
    %1109 = vmatprep.mubr.f32.mxu0 %v970
    %1110 = vmatmul.mubr.f32.gmra.mxu0 %v964
    %v1111 = vpop.f32.mrf.mxu0
    %v1112 = vadd.f32 %v1042, %v1111
    %v1113 = vpop.f32.mrf.mxu0
    %1114 = vdwg.mxu0
    %1115 = vmatprep.subr.mxu0 0.0
    %1116 = vmatpush1.msra.mxu0 0.0
    %1117 = vmatprep.subr.mxu0 0.0
    %1118 = vmatpush1.msra.mxu0 0.0
    %1119 = vmatprep.subr.mxu0 0.0
    %1120 = vmatpush1.msra.mxu0 0.0
    %1121 = vmatprep.subr.mxu0 0.0
    %1122 = vmatpush1.msra.mxu0 0.0
    %1123 = vmatprep.subr.mxu0 0.0
    %1124 = vmatpush1.msra.mxu0 0.0
    %1125 = vmatprep.subr.mxu0 0.0
    %1126 = vmatpush1.msra.mxu0 0.0
    %1127 = vmatprep.subr.mxu0 0.0
    %1128 = vmatpush1.msra.mxu0 0.0
    %1129 = vmatprep.subr.mxu0 0.0
    %1130 = vmatpush1.msra.mxu0 0.0
    %1131 = vmatprep.subr.mxu0 0.0
    %1132 = vmatpush1.msra.mxu0 %v150
    %1133 = vmatprep.subr.mxu0 0.0
    %1134 = vmatpush1.msra.mxu0 %v149
    %1135 = vmatprep.subr.mxu0 0.0
    %1136 = vmatpush1.msra.mxu0 %v148
    %1137 = vmatprep.subr.mxu0 0.0
    %1138 = vmatpush1.msra.mxu0 %v147
    %1139 = vmatprep.subr.mxu0 0.0
    %1140 = vmatpush1.msra.mxu0 %v146
    %1141 = vmatprep.subr.mxu0 0.0
    %1142 = vmatpush1.msra.mxu0 %v145
    %1143 = vmatprep.subr.mxu0 0.0
    %1144 = vmatpush1.msra.mxu0 %v144
    %1145 = vmatprep.subr.mxu0 0.0
    %1146 = vmatpush1.msra.mxu0 %v143
    %1147 = vmatprep.subr.mxu0 0.0
    %1148 = vmatpush2.msra.mxu0 0.0
    %1149 = vmatprep.subr.mxu0 0.0
    %1150 = vmatpush2.msra.mxu0 0.0
    %1151 = vmatprep.subr.mxu0 0.0
    %1152 = vmatpush2.msra.mxu0 0.0
    %1153 = vmatprep.subr.mxu0 0.0
    %1154 = vmatpush2.msra.mxu0 0.0
    %1155 = vmatprep.subr.mxu0 0.0
    %1156 = vmatpush2.msra.mxu0 0.0
    %1157 = vmatprep.subr.mxu0 0.0
    %1158 = vmatpush2.msra.mxu0 0.0
    %1159 = vmatprep.subr.mxu0 0.0
    %1160 = vmatpush2.msra.mxu0 0.0
    %1161 = vmatprep.subr.mxu0 0.0
    %1162 = vmatpush2.msra.mxu0 0.0
    %1163 = vmatprep.subr.mxu0 0.0
    %1164 = vmatpush2.msra.mxu0 0.0
    %1165 = vmatprep.subr.mxu0 0.0
    %1166 = vmatpush2.msra.mxu0 0.0
    %1167 = vmatprep.subr.mxu0 0.0
    %1168 = vmatpush2.msra.mxu0 0.0
    %1169 = vmatprep.subr.mxu0 0.0
    %1170 = vmatpush2.msra.mxu0 0.0
    %1171 = vmatprep.subr.mxu0 0.0
    %1172 = vmatpush2.msra.mxu0 0.0
    %1173 = vmatprep.subr.mxu0 0.0
    %1174 = vmatpush2.msra.mxu0 0.0
    %1175 = vmatprep.subr.mxu0 0.0
    %1176 = vmatpush2.msra.mxu0 0.0
    %1177 = vmatprep.subr.mxu0 0.0
    %1178 = vmatpush2.msra.mxu0 0.0
    %1179 = vmatprep.mubr.f32.mxu0 0.0
    %1180 = vmatmul.mubr.f32.gmra.mxu0 %v973
    %v1181 = vpop.f32.mrf.mxu0
    %v1182 = vadd.f32 %v1112, %v1181
    %v1183 = vpop.f32.mrf.mxu0
    %1184 = vdwg.mxu0
    %vm1185 = vcmp.ge.f32.partialorder %v1182, 0.0
    %v1186 = vmul.f32 %v1182, 0.01
    %v1187 = vsel %vm1185, %v1182, %v1186
    %s1188 = scalar_lea.vmem %s4, 512
    %v1189 = vld [vmem:[%s1188] sm:$0xff]
    %v1190 = vld [vmem:[%s1188 + $0x8] sm:$0xff]
    %v1191 = vld [vmem:[%s1188 + $0x10] sm:$0xff]
    %v1192 = vld [vmem:[%s1188 + $0x18] sm:$0xff]
    %v1193 = vld [vmem:[%s1188 + $0x20] sm:$0xff]
    %v1194 = vld [vmem:[%s1188 + $0x28] sm:$0xff]
    %v1195 = vld [vmem:[%s1188 + $0x30] sm:$0xff]
    %v1196 = vld [vmem:[%s1188 + $0x38] sm:$0xff]
    %v1197 = vld [vmem:[%s1188 + $0x40] sm:$0xff]
    %v1198 = vld [vmem:[%s1188 + $0x48] sm:$0xff]
    %v1199 = vld [vmem:[%s1188 + $0x50] sm:$0xff]
    %v1200 = vld [vmem:[%s1188 + $0x58] sm:$0xff]
    %v1201 = vld [vmem:[%s1188 + $0x60] sm:$0xff]
    %v1202 = vld [vmem:[%s1188 + $0x68] sm:$0xff]
    %v1203 = vld [vmem:[%s1188 + $0x70] sm:$0xff]
    %v1204 = vld [vmem:[%s1188 + $0x78] sm:$0xff]
    %v1205 = vld [vmem:[%s1188 + $0x80] sm:$0xff]
    %v1206 = vld [vmem:[%s1188 + $0x88] sm:$0xff]
    %v1207 = vld [vmem:[%s1188 + $0x90] sm:$0xff]
    %v1208 = vld [vmem:[%s1188 + $0x98] sm:$0xff]
    %v1209 = vld [vmem:[%s1188 + $0xa0] sm:$0xff]
    %v1210 = vld [vmem:[%s1188 + $0xa8] sm:$0xff]
    %v1211 = vld [vmem:[%s1188 + $0xb0] sm:$0xff]
    %v1212 = vld [vmem:[%s1188 + $0xb8] sm:$0xff]
    %v1213 = vld [vmem:[%s1188 + $0xc0] sm:$0xff]
    %v1214 = vld [vmem:[%s1188 + $0xc8] sm:$0xff]
    %v1215 = vld [vmem:[%s1188 + $0xd0] sm:$0xff]
    %v1216 = vld [vmem:[%s1188 + $0xd8] sm:$0xff]
    %v1217 = vld [vmem:[%s1188 + $0xe0] sm:$0xff]
    %v1218 = vld [vmem:[%s1188 + $0xe8] sm:$0xff]
    %v1219 = vld [vmem:[%s1188 + $0xf0] sm:$0xff]
    %v1220 = vld [vmem:[%s1188 + $0xf8] sm:$0xff]
    %v1222 = vsel %vm165, %v1187, 0
    %1224 = vmatprep.subr.mxu0 0.0
    %1225 = vmatpush1.msra.mxu0 0.0
    %1226 = vmatprep.subr.mxu0 0.0
    %1227 = vmatpush1.msra.mxu0 0.0
    %1228 = vmatprep.subr.mxu0 0.0
    %1229 = vmatpush1.msra.mxu0 0.0
    %1230 = vmatprep.subr.mxu0 0.0
    %1231 = vmatpush1.msra.mxu0 0.0
    %1232 = vmatprep.subr.mxu0 0.0
    %1233 = vmatpush1.msra.mxu0 0.0
    %1234 = vmatprep.subr.mxu0 0.0
    %1235 = vmatpush1.msra.mxu0 0.0
    %1236 = vmatprep.subr.mxu0 0.0
    %1237 = vmatpush1.msra.mxu0 0.0
    %1238 = vmatprep.subr.mxu0 0.0
    %1239 = vmatpush1.msra.mxu0 0.0
    %1240 = vmatprep.subr.mxu0 %v1218
    %1241 = vmatpush1.msra.mxu0 %v1217
    %1242 = vmatprep.subr.mxu0 %v1214
    %1243 = vmatpush1.msra.mxu0 %v1213
    %1244 = vmatprep.subr.mxu0 %v1210
    %1245 = vmatpush1.msra.mxu0 %v1209
    %1246 = vmatprep.subr.mxu0 %v1206
    %1247 = vmatpush1.msra.mxu0 %v1205
    %1248 = vmatprep.subr.mxu0 %v1202
    %1249 = vmatpush1.msra.mxu0 %v1201
    %1250 = vmatprep.subr.mxu0 %v1198
    %1251 = vmatpush1.msra.mxu0 %v1197
    %1252 = vmatprep.subr.mxu0 %v1194
    %1253 = vmatpush1.msra.mxu0 %v1193
    %1254 = vmatprep.subr.mxu0 %v1190
    %1255 = vmatpush1.msra.mxu0 %v1189
    %1256 = vmatprep.subr.mxu0 0.0
    %1257 = vmatpush2.msra.mxu0 0.0
    %1258 = vmatprep.subr.mxu0 0.0
    %1259 = vmatpush2.msra.mxu0 0.0
    %1260 = vmatprep.subr.mxu0 0.0
    %1261 = vmatpush2.msra.mxu0 0.0
    %1262 = vmatprep.subr.mxu0 0.0
    %1263 = vmatpush2.msra.mxu0 0.0
    %1264 = vmatprep.subr.mxu0 0.0
    %1265 = vmatpush2.msra.mxu0 0.0
    %1266 = vmatprep.subr.mxu0 0.0
    %1267 = vmatpush2.msra.mxu0 0.0
    %1268 = vmatprep.subr.mxu0 0.0
    %1269 = vmatpush2.msra.mxu0 0.0
    %1270 = vmatprep.subr.mxu0 0.0
    %1271 = vmatpush2.msra.mxu0 0.0
    %1272 = vmatprep.subr.mxu0 0.0
    %1273 = vmatpush2.msra.mxu0 0.0
    %1274 = vmatprep.subr.mxu0 0.0
    %1275 = vmatpush2.msra.mxu0 0.0
    %1276 = vmatprep.subr.mxu0 0.0
    %1277 = vmatpush2.msra.mxu0 0.0
    %1278 = vmatprep.subr.mxu0 0.0
    %1279 = vmatpush2.msra.mxu0 0.0
    %1280 = vmatprep.subr.mxu0 0.0
    %1281 = vmatpush2.msra.mxu0 0.0
    %1282 = vmatprep.subr.mxu0 0.0
    %1283 = vmatpush2.msra.mxu0 0.0
    %1284 = vmatprep.subr.mxu0 0.0
    %1285 = vmatpush2.msra.mxu0 0.0
    %1286 = vmatprep.subr.mxu0 0.0
    %1287 = vmatpush2.msra.mxu0 0.0
    %1288 = vmatprep.mubr.f32.mxu0 0.0
    %1289 = vmatmul.mubr.f32.gmra.mxu0 %v1222
    %v1290 = vpop.f32.mrf.mxu0
    %v1291 = vadd.f32 0.0, %v1290
    %v1292 = vpop.f32.mrf.mxu0
    %v1293 = vadd.f32 0.0, %v1292
    %1294 = vdwg.mxu0
    %1295 = vmatprep.subr.mxu0 0.0
    %1296 = vmatpush1.msra.mxu0 0.0
    %1297 = vmatprep.subr.mxu0 0.0
    %1298 = vmatpush1.msra.mxu0 0.0
    %1299 = vmatprep.subr.mxu0 0.0
    %1300 = vmatpush1.msra.mxu0 0.0
    %1301 = vmatprep.subr.mxu0 0.0
    %1302 = vmatpush1.msra.mxu0 0.0
    %1303 = vmatprep.subr.mxu0 0.0
    %1304 = vmatpush1.msra.mxu0 0.0
    %1305 = vmatprep.subr.mxu0 0.0
    %1306 = vmatpush1.msra.mxu0 0.0
    %1307 = vmatprep.subr.mxu0 0.0
    %1308 = vmatpush1.msra.mxu0 0.0
    %1309 = vmatprep.subr.mxu0 0.0
    %1310 = vmatpush1.msra.mxu0 0.0
    %1311 = vmatprep.subr.mxu0 %v1220
    %1312 = vmatpush1.msra.mxu0 %v1219
    %1313 = vmatprep.subr.mxu0 %v1216
    %1314 = vmatpush1.msra.mxu0 %v1215
    %1315 = vmatprep.subr.mxu0 %v1212
    %1316 = vmatpush1.msra.mxu0 %v1211
    %1317 = vmatprep.subr.mxu0 %v1208
    %1318 = vmatpush1.msra.mxu0 %v1207
    %1319 = vmatprep.subr.mxu0 %v1204
    %1320 = vmatpush1.msra.mxu0 %v1203
    %1321 = vmatprep.subr.mxu0 %v1200
    %1322 = vmatpush1.msra.mxu0 %v1199
    %1323 = vmatprep.subr.mxu0 %v1196
    %1324 = vmatpush1.msra.mxu0 %v1195
    %1325 = vmatprep.subr.mxu0 %v1192
    %1326 = vmatpush1.msra.mxu0 %v1191
    %1327 = vmatprep.subr.mxu0 0.0
    %1328 = vmatpush2.msra.mxu0 0.0
    %1329 = vmatprep.subr.mxu0 0.0
    %1330 = vmatpush2.msra.mxu0 0.0
    %1331 = vmatprep.subr.mxu0 0.0
    %1332 = vmatpush2.msra.mxu0 0.0
    %1333 = vmatprep.subr.mxu0 0.0
    %1334 = vmatpush2.msra.mxu0 0.0
    %1335 = vmatprep.subr.mxu0 0.0
    %1336 = vmatpush2.msra.mxu0 0.0
    %1337 = vmatprep.subr.mxu0 0.0
    %1338 = vmatpush2.msra.mxu0 0.0
    %1339 = vmatprep.subr.mxu0 0.0
    %1340 = vmatpush2.msra.mxu0 0.0
    %1341 = vmatprep.subr.mxu0 0.0
    %1342 = vmatpush2.msra.mxu0 0.0
    %1343 = vmatprep.subr.mxu0 0.0
    %1344 = vmatpush2.msra.mxu0 0.0
    %1345 = vmatprep.subr.mxu0 0.0
    %1346 = vmatpush2.msra.mxu0 0.0
    %1347 = vmatprep.subr.mxu0 0.0
    %1348 = vmatpush2.msra.mxu0 0.0
    %1349 = vmatprep.subr.mxu0 0.0
    %1350 = vmatpush2.msra.mxu0 0.0
    %1351 = vmatprep.subr.mxu0 0.0
    %1352 = vmatpush2.msra.mxu0 0.0
    %1353 = vmatprep.subr.mxu0 0.0
    %1354 = vmatpush2.msra.mxu0 0.0
    %1355 = vmatprep.subr.mxu0 0.0
    %1356 = vmatpush2.msra.mxu0 0.0
    %1357 = vmatprep.subr.mxu0 0.0
    %1358 = vmatpush2.msra.mxu0 0.0
    %1359 = vmatprep.mubr.f32.mxu0 0.0
    %1360 = vmatmul.mubr.f32.gmra.mxu0 %v1222
    %v1361 = vpop.f32.mrf.mxu0
    %v1362 = vadd.f32 0.0, %v1361
    %v1363 = vpop.f32.mrf.mxu0
    %v1364 = vadd.f32 0.0, %v1363
    %1365 = vdwg.mxu0
    %v1366 = vadd.f32 %v887, %v1291
    %v1367 = vadd.f32 %v889, %v1293
    %v1368 = vadd.f32 %v958, %v1362
    %v1369 = vadd.f32 %v960, %v1364
    %s1370 = scalar_lea.vmem %s0, 60
    %v1371 = vld [vmem:[%s1370] sm:$0xff]
    %v1372 = vld [vmem:[%s1370 + $0x8] sm:$0xff]
    %v1373 = vld [vmem:[%s1370 + $0x10] sm:$0xf]
    %v1377 = vcombine.high %v1371, %v1371
    %v1378 = vcombine.high %v1372, %v1372
    %v1381 = vsel %vm165, %v1373, 0
    %1383 = vmatprep.subr.mxu0 0.0
    %1384 = vmatpush1.msra.mxu0 %v94
    %1385 = vmatprep.subr.mxu0 0.0
    %1386 = vmatpush1.msra.mxu0 %v93
    %1387 = vmatprep.subr.mxu0 0.0
    %1388 = vmatpush1.msra.mxu0 %v92
    %1389 = vmatprep.subr.mxu0 0.0
    %1390 = vmatpush1.msra.mxu0 %v91
    %1391 = vmatprep.subr.mxu0 0.0
    %1392 = vmatpush1.msra.mxu0 %v90
    %1393 = vmatprep.subr.mxu0 0.0
    %1394 = vmatpush1.msra.mxu0 %v89
    %1395 = vmatprep.subr.mxu0 0.0
    %1396 = vmatpush1.msra.mxu0 %v88
    %1397 = vmatprep.subr.mxu0 0.0
    %1398 = vmatpush1.msra.mxu0 %v87
    %1399 = vmatprep.subr.mxu0 0.0
    %1400 = vmatpush1.msra.mxu0 %v86
    %1401 = vmatprep.subr.mxu0 0.0
    %1402 = vmatpush1.msra.mxu0 %v85
    %1403 = vmatprep.subr.mxu0 0.0
    %1404 = vmatpush1.msra.mxu0 %v84
    %1405 = vmatprep.subr.mxu0 0.0
    %1406 = vmatpush1.msra.mxu0 %v83
    %1407 = vmatprep.subr.mxu0 0.0
    %1408 = vmatpush1.msra.mxu0 %v82
    %1409 = vmatprep.subr.mxu0 0.0
    %1410 = vmatpush1.msra.mxu0 %v81
    %1411 = vmatprep.subr.mxu0 0.0
    %1412 = vmatpush1.msra.mxu0 %v80
    %1413 = vmatprep.subr.mxu0 0.0
    %1414 = vmatpush1.msra.mxu0 %v79
    %1415 = vmatprep.subr.mxu0 0.0
    %1416 = vmatpush2.msra.mxu0 %v110
    %1417 = vmatprep.subr.mxu0 0.0
    %1418 = vmatpush2.msra.mxu0 %v109
    %1419 = vmatprep.subr.mxu0 0.0
    %1420 = vmatpush2.msra.mxu0 %v108
    %1421 = vmatprep.subr.mxu0 0.0
    %1422 = vmatpush2.msra.mxu0 %v107
    %1423 = vmatprep.subr.mxu0 0.0
    %1424 = vmatpush2.msra.mxu0 %v106
    %1425 = vmatprep.subr.mxu0 0.0
    %1426 = vmatpush2.msra.mxu0 %v105
    %1427 = vmatprep.subr.mxu0 0.0
    %1428 = vmatpush2.msra.mxu0 %v104
    %1429 = vmatprep.subr.mxu0 0.0
    %1430 = vmatpush2.msra.mxu0 %v103
    %1431 = vmatprep.subr.mxu0 0.0
    %1432 = vmatpush2.msra.mxu0 %v102
    %1433 = vmatprep.subr.mxu0 0.0
    %1434 = vmatpush2.msra.mxu0 %v101
    %1435 = vmatprep.subr.mxu0 0.0
    %1436 = vmatpush2.msra.mxu0 %v100
    %1437 = vmatprep.subr.mxu0 0.0
    %1438 = vmatpush2.msra.mxu0 %v99
    %1439 = vmatprep.subr.mxu0 0.0
    %1440 = vmatpush2.msra.mxu0 %v98
    %1441 = vmatprep.subr.mxu0 0.0
    %1442 = vmatpush2.msra.mxu0 %v97
    %1443 = vmatprep.subr.mxu0 0.0
    %1444 = vmatpush2.msra.mxu0 %v96
    %1445 = vmatprep.subr.mxu0 0.0
    %1446 = vmatpush2.msra.mxu0 %v95
    %1447 = vmatprep.mubr.f32.mxu0 %v1377
    %1448 = vmatmul.mubr.f32.gmra.mxu0 %v1371
    %v1449 = vpop.f32.mrf.mxu0
    %v1450 = vadd.f32 %v156, %v1449
    %v1451 = vpop.f32.mrf.mxu0
    %1452 = vdwg.mxu0
    %1453 = vmatprep.subr.mxu0 0.0
    %1454 = vmatpush1.msra.mxu0 %v126
    %1455 = vmatprep.subr.mxu0 0.0
    %1456 = vmatpush1.msra.mxu0 %v125
    %1457 = vmatprep.subr.mxu0 0.0
    %1458 = vmatpush1.msra.mxu0 %v124
    %1459 = vmatprep.subr.mxu0 0.0
    %1460 = vmatpush1.msra.mxu0 %v123
    %1461 = vmatprep.subr.mxu0 0.0
    %1462 = vmatpush1.msra.mxu0 %v122
    %1463 = vmatprep.subr.mxu0 0.0
    %1464 = vmatpush1.msra.mxu0 %v121
    %1465 = vmatprep.subr.mxu0 0.0
    %1466 = vmatpush1.msra.mxu0 %v120
    %1467 = vmatprep.subr.mxu0 0.0
    %1468 = vmatpush1.msra.mxu0 %v119
    %1469 = vmatprep.subr.mxu0 0.0
    %1470 = vmatpush1.msra.mxu0 %v118
    %1471 = vmatprep.subr.mxu0 0.0
    %1472 = vmatpush1.msra.mxu0 %v117
    %1473 = vmatprep.subr.mxu0 0.0
    %1474 = vmatpush1.msra.mxu0 %v116
    %1475 = vmatprep.subr.mxu0 0.0
    %1476 = vmatpush1.msra.mxu0 %v115
    %1477 = vmatprep.subr.mxu0 0.0
    %1478 = vmatpush1.msra.mxu0 %v114
    %1479 = vmatprep.subr.mxu0 0.0
    %1480 = vmatpush1.msra.mxu0 %v113
    %1481 = vmatprep.subr.mxu0 0.0
    %1482 = vmatpush1.msra.mxu0 %v112
    %1483 = vmatprep.subr.mxu0 0.0
    %1484 = vmatpush1.msra.mxu0 %v111
    %1485 = vmatprep.subr.mxu0 0.0
    %1486 = vmatpush2.msra.mxu0 %v142
    %1487 = vmatprep.subr.mxu0 0.0
    %1488 = vmatpush2.msra.mxu0 %v141
    %1489 = vmatprep.subr.mxu0 0.0
    %1490 = vmatpush2.msra.mxu0 %v140
    %1491 = vmatprep.subr.mxu0 0.0
    %1492 = vmatpush2.msra.mxu0 %v139
    %1493 = vmatprep.subr.mxu0 0.0
    %1494 = vmatpush2.msra.mxu0 %v138
    %1495 = vmatprep.subr.mxu0 0.0
    %1496 = vmatpush2.msra.mxu0 %v137
    %1497 = vmatprep.subr.mxu0 0.0
    %1498 = vmatpush2.msra.mxu0 %v136
    %1499 = vmatprep.subr.mxu0 0.0
    %1500 = vmatpush2.msra.mxu0 %v135
    %1501 = vmatprep.subr.mxu0 0.0
    %1502 = vmatpush2.msra.mxu0 %v134
    %1503 = vmatprep.subr.mxu0 0.0
    %1504 = vmatpush2.msra.mxu0 %v133
    %1505 = vmatprep.subr.mxu0 0.0
    %1506 = vmatpush2.msra.mxu0 %v132
    %1507 = vmatprep.subr.mxu0 0.0
    %1508 = vmatpush2.msra.mxu0 %v131
    %1509 = vmatprep.subr.mxu0 0.0
    %1510 = vmatpush2.msra.mxu0 %v130
    %1511 = vmatprep.subr.mxu0 0.0
    %1512 = vmatpush2.msra.mxu0 %v129
    %1513 = vmatprep.subr.mxu0 0.0
    %1514 = vmatpush2.msra.mxu0 %v128
    %1515 = vmatprep.subr.mxu0 0.0
    %1516 = vmatpush2.msra.mxu0 %v127
    %1517 = vmatprep.mubr.f32.mxu0 %v1378
    %1518 = vmatmul.mubr.f32.gmra.mxu0 %v1372
    %v1519 = vpop.f32.mrf.mxu0
    %v1520 = vadd.f32 %v1450, %v1519
    %v1521 = vpop.f32.mrf.mxu0
    %1522 = vdwg.mxu0
    %1523 = vmatprep.subr.mxu0 0.0
    %1524 = vmatpush1.msra.mxu0 0.0
    %1525 = vmatprep.subr.mxu0 0.0
    %1526 = vmatpush1.msra.mxu0 0.0
    %1527 = vmatprep.subr.mxu0 0.0
    %1528 = vmatpush1.msra.mxu0 0.0
    %1529 = vmatprep.subr.mxu0 0.0
    %1530 = vmatpush1.msra.mxu0 0.0
    %1531 = vmatprep.subr.mxu0 0.0
    %1532 = vmatpush1.msra.mxu0 0.0
    %1533 = vmatprep.subr.mxu0 0.0
    %1534 = vmatpush1.msra.mxu0 0.0
    %1535 = vmatprep.subr.mxu0 0.0
    %1536 = vmatpush1.msra.mxu0 0.0
    %1537 = vmatprep.subr.mxu0 0.0
    %1538 = vmatpush1.msra.mxu0 0.0
    %1539 = vmatprep.subr.mxu0 0.0
    %1540 = vmatpush1.msra.mxu0 %v150
    %1541 = vmatprep.subr.mxu0 0.0
    %1542 = vmatpush1.msra.mxu0 %v149
    %1543 = vmatprep.subr.mxu0 0.0
    %1544 = vmatpush1.msra.mxu0 %v148
    %1545 = vmatprep.subr.mxu0 0.0
    %1546 = vmatpush1.msra.mxu0 %v147
    %1547 = vmatprep.subr.mxu0 0.0
    %1548 = vmatpush1.msra.mxu0 %v146
    %1549 = vmatprep.subr.mxu0 0.0
    %1550 = vmatpush1.msra.mxu0 %v145
    %1551 = vmatprep.subr.mxu0 0.0
    %1552 = vmatpush1.msra.mxu0 %v144
    %1553 = vmatprep.subr.mxu0 0.0
    %1554 = vmatpush1.msra.mxu0 %v143
    %1555 = vmatprep.subr.mxu0 0.0
    %1556 = vmatpush2.msra.mxu0 0.0
    %1557 = vmatprep.subr.mxu0 0.0
    %1558 = vmatpush2.msra.mxu0 0.0
    %1559 = vmatprep.subr.mxu0 0.0
    %1560 = vmatpush2.msra.mxu0 0.0
    %1561 = vmatprep.subr.mxu0 0.0
    %1562 = vmatpush2.msra.mxu0 0.0
    %1563 = vmatprep.subr.mxu0 0.0
    %1564 = vmatpush2.msra.mxu0 0.0
    %1565 = vmatprep.subr.mxu0 0.0
    %1566 = vmatpush2.msra.mxu0 0.0
    %1567 = vmatprep.subr.mxu0 0.0
    %1568 = vmatpush2.msra.mxu0 0.0
    %1569 = vmatprep.subr.mxu0 0.0
    %1570 = vmatpush2.msra.mxu0 0.0
    %1571 = vmatprep.subr.mxu0 0.0
    %1572 = vmatpush2.msra.mxu0 0.0
    %1573 = vmatprep.subr.mxu0 0.0
    %1574 = vmatpush2.msra.mxu0 0.0
    %1575 = vmatprep.subr.mxu0 0.0
    %1576 = vmatpush2.msra.mxu0 0.0
    %1577 = vmatprep.subr.mxu0 0.0
    %1578 = vmatpush2.msra.mxu0 0.0
    %1579 = vmatprep.subr.mxu0 0.0
    %1580 = vmatpush2.msra.mxu0 0.0
    %1581 = vmatprep.subr.mxu0 0.0
    %1582 = vmatpush2.msra.mxu0 0.0
    %1583 = vmatprep.subr.mxu0 0.0
    %1584 = vmatpush2.msra.mxu0 0.0
    %1585 = vmatprep.subr.mxu0 0.0
    %1586 = vmatpush2.msra.mxu0 0.0
    %1587 = vmatprep.mubr.f32.mxu0 0.0
    %1588 = vmatmul.mubr.f32.gmra.mxu0 %v1381
    %v1589 = vpop.f32.mrf.mxu0
    %v1590 = vadd.f32 %v1520, %v1589
    %v1591 = vpop.f32.mrf.mxu0
    %1592 = vdwg.mxu0
    %vm1593 = vcmp.ge.f32.partialorder %v1590, 0.0
    %v1594 = vmul.f32 %v1590, 0.01
    %v1595 = vsel %vm1593, %v1590, %v1594
    %s1596 = scalar_lea.vmem %s4, 768
    %v1597 = vld [vmem:[%s1596] sm:$0xff]
    %v1598 = vld [vmem:[%s1596 + $0x8] sm:$0xff]
    %v1599 = vld [vmem:[%s1596 + $0x10] sm:$0xff]
    %v1600 = vld [vmem:[%s1596 + $0x18] sm:$0xff]
    %v1601 = vld [vmem:[%s1596 + $0x20] sm:$0xff]
    %v1602 = vld [vmem:[%s1596 + $0x28] sm:$0xff]
    %v1603 = vld [vmem:[%s1596 + $0x30] sm:$0xff]
    %v1604 = vld [vmem:[%s1596 + $0x38] sm:$0xff]
    %v1605 = vld [vmem:[%s1596 + $0x40] sm:$0xff]
    %v1606 = vld [vmem:[%s1596 + $0x48] sm:$0xff]
    %v1607 = vld [vmem:[%s1596 + $0x50] sm:$0xff]
    %v1608 = vld [vmem:[%s1596 + $0x58] sm:$0xff]
    %v1609 = vld [vmem:[%s1596 + $0x60] sm:$0xff]
    %v1610 = vld [vmem:[%s1596 + $0x68] sm:$0xff]
    %v1611 = vld [vmem:[%s1596 + $0x70] sm:$0xff]
    %v1612 = vld [vmem:[%s1596 + $0x78] sm:$0xff]
    %v1613 = vld [vmem:[%s1596 + $0x80] sm:$0xff]
    %v1614 = vld [vmem:[%s1596 + $0x88] sm:$0xff]
    %v1615 = vld [vmem:[%s1596 + $0x90] sm:$0xff]
    %v1616 = vld [vmem:[%s1596 + $0x98] sm:$0xff]
    %v1617 = vld [vmem:[%s1596 + $0xa0] sm:$0xff]
    %v1618 = vld [vmem:[%s1596 + $0xa8] sm:$0xff]
    %v1619 = vld [vmem:[%s1596 + $0xb0] sm:$0xff]
    %v1620 = vld [vmem:[%s1596 + $0xb8] sm:$0xff]
    %v1621 = vld [vmem:[%s1596 + $0xc0] sm:$0xff]
    %v1622 = vld [vmem:[%s1596 + $0xc8] sm:$0xff]
    %v1623 = vld [vmem:[%s1596 + $0xd0] sm:$0xff]
    %v1624 = vld [vmem:[%s1596 + $0xd8] sm:$0xff]
    %v1625 = vld [vmem:[%s1596 + $0xe0] sm:$0xff]
    %v1626 = vld [vmem:[%s1596 + $0xe8] sm:$0xff]
    %v1627 = vld [vmem:[%s1596 + $0xf0] sm:$0xff]
    %v1628 = vld [vmem:[%s1596 + $0xf8] sm:$0xff]
    %v1630 = vsel %vm165, %v1595, 0
    %1632 = vmatprep.subr.mxu0 0.0
    %1633 = vmatpush1.msra.mxu0 0.0
    %1634 = vmatprep.subr.mxu0 0.0
    %1635 = vmatpush1.msra.mxu0 0.0
    %1636 = vmatprep.subr.mxu0 0.0
    %1637 = vmatpush1.msra.mxu0 0.0
    %1638 = vmatprep.subr.mxu0 0.0
    %1639 = vmatpush1.msra.mxu0 0.0
    %1640 = vmatprep.subr.mxu0 0.0
    %1641 = vmatpush1.msra.mxu0 0.0
    %1642 = vmatprep.subr.mxu0 0.0
    %1643 = vmatpush1.msra.mxu0 0.0
    %1644 = vmatprep.subr.mxu0 0.0
    %1645 = vmatpush1.msra.mxu0 0.0
    %1646 = vmatprep.subr.mxu0 0.0
    %1647 = vmatpush1.msra.mxu0 0.0
    %1648 = vmatprep.subr.mxu0 %v1626
    %1649 = vmatpush1.msra.mxu0 %v1625
    %1650 = vmatprep.subr.mxu0 %v1622
    %1651 = vmatpush1.msra.mxu0 %v1621
    %1652 = vmatprep.subr.mxu0 %v1618
    %1653 = vmatpush1.msra.mxu0 %v1617
    %1654 = vmatprep.subr.mxu0 %v1614
    %1655 = vmatpush1.msra.mxu0 %v1613
    %1656 = vmatprep.subr.mxu0 %v1610
    %1657 = vmatpush1.msra.mxu0 %v1609
    %1658 = vmatprep.subr.mxu0 %v1606
    %1659 = vmatpush1.msra.mxu0 %v1605
    %1660 = vmatprep.subr.mxu0 %v1602
    %1661 = vmatpush1.msra.mxu0 %v1601
    %1662 = vmatprep.subr.mxu0 %v1598
    %1663 = vmatpush1.msra.mxu0 %v1597
    %1664 = vmatprep.subr.mxu0 0.0
    %1665 = vmatpush2.msra.mxu0 0.0
    %1666 = vmatprep.subr.mxu0 0.0
    %1667 = vmatpush2.msra.mxu0 0.0
    %1668 = vmatprep.subr.mxu0 0.0
    %1669 = vmatpush2.msra.mxu0 0.0
    %1670 = vmatprep.subr.mxu0 0.0
    %1671 = vmatpush2.msra.mxu0 0.0
    %1672 = vmatprep.subr.mxu0 0.0
    %1673 = vmatpush2.msra.mxu0 0.0
    %1674 = vmatprep.subr.mxu0 0.0
    %1675 = vmatpush2.msra.mxu0 0.0
    %1676 = vmatprep.subr.mxu0 0.0
    %1677 = vmatpush2.msra.mxu0 0.0
    %1678 = vmatprep.subr.mxu0 0.0
    %1679 = vmatpush2.msra.mxu0 0.0
    %1680 = vmatprep.subr.mxu0 0.0
    %1681 = vmatpush2.msra.mxu0 0.0
    %1682 = vmatprep.subr.mxu0 0.0
    %1683 = vmatpush2.msra.mxu0 0.0
    %1684 = vmatprep.subr.mxu0 0.0
    %1685 = vmatpush2.msra.mxu0 0.0
    %1686 = vmatprep.subr.mxu0 0.0
    %1687 = vmatpush2.msra.mxu0 0.0
    %1688 = vmatprep.subr.mxu0 0.0
    %1689 = vmatpush2.msra.mxu0 0.0
    %1690 = vmatprep.subr.mxu0 0.0
    %1691 = vmatpush2.msra.mxu0 0.0
    %1692 = vmatprep.subr.mxu0 0.0
    %1693 = vmatpush2.msra.mxu0 0.0
    %1694 = vmatprep.subr.mxu0 0.0
    %1695 = vmatpush2.msra.mxu0 0.0
    %1696 = vmatprep.mubr.f32.mxu0 0.0
    %1697 = vmatmul.mubr.f32.gmra.mxu0 %v1630
    %v1698 = vpop.f32.mrf.mxu0
    %v1699 = vadd.f32 0.0, %v1698
    %v1700 = vpop.f32.mrf.mxu0
    %v1701 = vadd.f32 0.0, %v1700
    %1702 = vdwg.mxu0
    %1703 = vmatprep.subr.mxu0 0.0
    %1704 = vmatpush1.msra.mxu0 0.0
    %1705 = vmatprep.subr.mxu0 0.0
    %1706 = vmatpush1.msra.mxu0 0.0
    %1707 = vmatprep.subr.mxu0 0.0
    %1708 = vmatpush1.msra.mxu0 0.0
    %1709 = vmatprep.subr.mxu0 0.0
    %1710 = vmatpush1.msra.mxu0 0.0
    %1711 = vmatprep.subr.mxu0 0.0
    %1712 = vmatpush1.msra.mxu0 0.0
    %1713 = vmatprep.subr.mxu0 0.0
    %1714 = vmatpush1.msra.mxu0 0.0
    %1715 = vmatprep.subr.mxu0 0.0
    %1716 = vmatpush1.msra.mxu0 0.0
    %1717 = vmatprep.subr.mxu0 0.0
    %1718 = vmatpush1.msra.mxu0 0.0
    %1719 = vmatprep.subr.mxu0 %v1628
    %1720 = vmatpush1.msra.mxu0 %v1627
    %1721 = vmatprep.subr.mxu0 %v1624
    %1722 = vmatpush1.msra.mxu0 %v1623
    %1723 = vmatprep.subr.mxu0 %v1620
    %1724 = vmatpush1.msra.mxu0 %v1619
    %1725 = vmatprep.subr.mxu0 %v1616
    %1726 = vmatpush1.msra.mxu0 %v1615
    %1727 = vmatprep.subr.mxu0 %v1612
    %1728 = vmatpush1.msra.mxu0 %v1611
    %1729 = vmatprep.subr.mxu0 %v1608
    %1730 = vmatpush1.msra.mxu0 %v1607
    %1731 = vmatprep.subr.mxu0 %v1604
    %1732 = vmatpush1.msra.mxu0 %v1603
    %1733 = vmatprep.subr.mxu0 %v1600
    %1734 = vmatpush1.msra.mxu0 %v1599
    %1735 = vmatprep.subr.mxu0 0.0
    %1736 = vmatpush2.msra.mxu0 0.0
    %1737 = vmatprep.subr.mxu0 0.0
    %1738 = vmatpush2.msra.mxu0 0.0
    %1739 = vmatprep.subr.mxu0 0.0
    %1740 = vmatpush2.msra.mxu0 0.0
    %1741 = vmatprep.subr.mxu0 0.0
    %1742 = vmatpush2.msra.mxu0 0.0
    %1743 = vmatprep.subr.mxu0 0.0
    %1744 = vmatpush2.msra.mxu0 0.0
    %1745 = vmatprep.subr.mxu0 0.0
    %1746 = vmatpush2.msra.mxu0 0.0
    %1747 = vmatprep.subr.mxu0 0.0
    %1748 = vmatpush2.msra.mxu0 0.0
    %1749 = vmatprep.subr.mxu0 0.0
    %1750 = vmatpush2.msra.mxu0 0.0
    %1751 = vmatprep.subr.mxu0 0.0
    %1752 = vmatpush2.msra.mxu0 0.0
    %1753 = vmatprep.subr.mxu0 0.0
    %1754 = vmatpush2.msra.mxu0 0.0
    %1755 = vmatprep.subr.mxu0 0.0
    %1756 = vmatpush2.msra.mxu0 0.0
    %1757 = vmatprep.subr.mxu0 0.0
    %1758 = vmatpush2.msra.mxu0 0.0
    %1759 = vmatprep.subr.mxu0 0.0
    %1760 = vmatpush2.msra.mxu0 0.0
    %1761 = vmatprep.subr.mxu0 0.0
    %1762 = vmatpush2.msra.mxu0 0.0
    %1763 = vmatprep.subr.mxu0 0.0
    %1764 = vmatpush2.msra.mxu0 0.0
    %1765 = vmatprep.subr.mxu0 0.0
    %1766 = vmatpush2.msra.mxu0 0.0
    %1767 = vmatprep.mubr.f32.mxu0 0.0
    %1768 = vmatmul.mubr.f32.gmra.mxu0 %v1630
    %v1769 = vpop.f32.mrf.mxu0
    %v1770 = vadd.f32 0.0, %v1769
    %v1771 = vpop.f32.mrf.mxu0
    %v1772 = vadd.f32 0.0, %v1771
    %1773 = vdwg.mxu0
    %v1774 = vadd.f32 %v1366, %v1699
    %v1775 = vadd.f32 %v1367, %v1701
    %v1776 = vadd.f32 %v1368, %v1770
    %v1777 = vadd.f32 %v1369, %v1772
    %v1778 = vld [vmem:[%s5] sm:$0xf]
    %v1780 = vlaneseq
    %v1781 = vshrl.u32 %v1780, 7
    %v1782 = vsub.s32 0, %v1781
    %v1783 = vrot.slane %v1778, %v1782
    %v1784 = vlaneseq
    %v1785 = vshrl.u32 %v1784, 7
    %v1786 = vsub.s32 1, %v1785
    %v1787 = vrot.slane %v1778, %v1786
    %v1788 = vlaneseq
    %v1789 = vshrl.u32 %v1788, 7
    %v1790 = vsub.s32 2, %v1789
    %v1791 = vrot.slane %v1778, %v1790
    %v1792 = vlaneseq
    %v1793 = vshrl.u32 %v1792, 7
    %v1794 = vsub.s32 3, %v1793
    %v1795 = vrot.slane %v1778, %v1794
    %v1800 = vadd.f32 %v1774, %v1783
    %v1801 = vadd.f32 %v1775, %v1787
    %v1802 = vadd.f32 %v1776, %v1791
    %v1803 = vadd.f32 %v1777, %v1795
    %v1808 = vcombine.low %v1800, %v1801
    %v1809 = vcombine.low %v1802, %v1803
    %v1811 = vunpack.c.l.s4 1983009808
    %v1812 = vunpack.c.0.s8 %v1811
    %v1813 = vlaneseq
    %v1814 = vshrl.u32 %v1813, 7
    %v1815 = vsub.s32 %v1812, %v1814
    %v1816 = vrot.slane %v1808, %v1815
    %v1818 = vunpack.c.l.s4 1983009808
    %v1819 = vunpack.c.0.s8 %v1818
    %v1820 = vlaneseq
    %v1821 = vshrl.u32 %v1820, 7
    %v1822 = vsub.s32 %v1819, %v1821
    %v1823 = vrot.slane %v1809, %v1822
    %v1824 = vcombine.high %v1816, %v1823
    %1826 = vst [vmem:[#allocation2] sm:$0xff] %v1824
    %v1827 = vld [vmem:[%s6] sm:$0xff]
    %v1828 = vld [vmem:[%s6 + $0x8] sm:$0xff]
    %v1829 = vld [vmem:[%s6 + $0x10] sm:$0xff]
    %v1830 = vld [vmem:[%s6 + $0x18] sm:$0xff]
    %v1831 = vld [vmem:[%s6 + $0x20] sm:$0xff]
    %v1832 = vld [vmem:[%s6 + $0x28] sm:$0xff]
    %v1833 = vld [vmem:[%s6 + $0x30] sm:$0xff]
    %v1834 = vld [vmem:[%s6 + $0x38] sm:$0xff]
    %v1835 = vld [vmem:[%s6 + $0x40] sm:$0xff]
    %v1836 = vld [vmem:[%s6 + $0x48] sm:$0xff]
    %v1837 = vld [vmem:[%s6 + $0x50] sm:$0xff]
    %v1838 = vld [vmem:[%s6 + $0x58] sm:$0xff]
    %v1839 = vld [vmem:[%s6 + $0x60] sm:$0xff]
    %v1840 = vld [vmem:[%s6 + $0x68] sm:$0xff]
    %v1841 = vld [vmem:[%s6 + $0x70] sm:$0xff]
    %v1842 = vld [vmem:[%s6 + $0x78] sm:$0xff]
    %v1843 = vld [vmem:[%s6 + $0x80] sm:$0xff]
    %v1844 = vld [vmem:[%s6 + $0x88] sm:$0xff]
    %v1845 = vld [vmem:[%s6 + $0x90] sm:$0xff]
    %v1846 = vld [vmem:[%s6 + $0x98] sm:$0xff]
    %v1847 = vld [vmem:[%s6 + $0xa0] sm:$0xff]
    %v1848 = vld [vmem:[%s6 + $0xa8] sm:$0xff]
    %v1849 = vld [vmem:[%s6 + $0xb0] sm:$0xff]
    %v1850 = vld [vmem:[%s6 + $0xb8] sm:$0xff]
    %v1851 = vld [vmem:[%s6 + $0xc0] sm:$0xff]
    %v1852 = vld [vmem:[%s6 + $0xc8] sm:$0xff]
    %v1853 = vld [vmem:[%s6 + $0xd0] sm:$0xff]
    %v1854 = vld [vmem:[%s6 + $0xd8] sm:$0xff]
    %v1855 = vld [vmem:[%s6 + $0xe0] sm:$0xff]
    %v1856 = vld [vmem:[%s6 + $0xe8] sm:$0xff]
    %v1857 = vld [vmem:[%s6 + $0xf0] sm:$0xff]
    %v1858 = vld [vmem:[%s6 + $0xf8] sm:$0xff]
    %v1859 = vld [vmem:[%s6 + $0x100] sm:$0xff]
    %v1860 = vld [vmem:[%s6 + $0x108] sm:$0xff]
    %v1861 = vld [vmem:[%s6 + $0x110] sm:$0xff]
    %v1862 = vld [vmem:[%s6 + $0x118] sm:$0xff]
    %v1863 = vld [vmem:[%s6 + $0x120] sm:$0xff]
    %v1864 = vld [vmem:[%s6 + $0x128] sm:$0xff]
    %v1865 = vld [vmem:[%s6 + $0x130] sm:$0xff]
    %v1866 = vld [vmem:[%s6 + $0x138] sm:$0xff]
    %v1867 = vld [vmem:[%s6 + $0x140] sm:$0xff]
    %v1868 = vld [vmem:[%s6 + $0x148] sm:$0xff]
    %v1869 = vld [vmem:[%s6 + $0x150] sm:$0xff]
    %v1870 = vld [vmem:[%s6 + $0x158] sm:$0xff]
    %v1871 = vld [vmem:[%s6 + $0x160] sm:$0xff]
    %v1872 = vld [vmem:[%s6 + $0x168] sm:$0xff]
    %v1873 = vld [vmem:[%s6 + $0x170] sm:$0xff]
    %v1874 = vld [vmem:[%s6 + $0x178] sm:$0xff]
    %v1875 = vld [vmem:[%s6 + $0x180] sm:$0xff]
    %v1876 = vld [vmem:[%s6 + $0x188] sm:$0xff]
    %v1877 = vld [vmem:[%s6 + $0x190] sm:$0xff]
    %v1878 = vld [vmem:[%s6 + $0x198] sm:$0xff]
    %v1879 = vld [vmem:[%s6 + $0x1a0] sm:$0xff]
    %v1880 = vld [vmem:[%s6 + $0x1a8] sm:$0xff]
    %v1881 = vld [vmem:[%s6 + $0x1b0] sm:$0xff]
    %v1882 = vld [vmem:[%s6 + $0x1b8] sm:$0xff]
    %v1883 = vld [vmem:[%s6 + $0x1c0] sm:$0xff]
    %v1884 = vld [vmem:[%s6 + $0x1c8] sm:$0xff]
    %v1885 = vld [vmem:[%s6 + $0x1d0] sm:$0xff]
    %v1886 = vld [vmem:[%s6 + $0x1d8] sm:$0xff]
    %v1887 = vld [vmem:[%s6 + $0x1e0] sm:$0xff]
    %v1888 = vld [vmem:[%s6 + $0x1e8] sm:$0xff]
    %v1889 = vld [vmem:[%s6 + $0x1f0] sm:$0xff]
    %v1890 = vld [vmem:[%s6 + $0x1f8] sm:$0xff]
    %v1891 = vld [vmem:[%s6 + $0x200] sm:$0xff]
    %v1892 = vld [vmem:[%s6 + $0x208] sm:$0xff]
    %v1893 = vld [vmem:[%s6 + $0x210] sm:$0xff]
    %v1894 = vld [vmem:[%s6 + $0x218] sm:$0xff]
    %v1895 = vld [vmem:[%s6 + $0x220] sm:$0xff]
    %v1896 = vld [vmem:[%s6 + $0x228] sm:$0xff]
    %v1897 = vld [vmem:[%s6 + $0x230] sm:$0xff]
    %v1898 = vld [vmem:[%s6 + $0x238] sm:$0xff]
    %v1899 = vld [vmem:[%s6 + $0x240] sm:$0xff]
    %v1900 = vld [vmem:[%s6 + $0x248] sm:$0xff]
    %v1901 = vld [vmem:[%s6 + $0x250] sm:$0xff]
    %v1902 = vld [vmem:[%s6 + $0x258] sm:$0xff]
    %v1903 = vld [vmem:[%s6 + $0x260] sm:$0xff]
    %v1904 = vld [vmem:[%s6 + $0x268] sm:$0xff]
    %v1905 = vld [vmem:[%s6 + $0x270] sm:$0xff]
    %v1906 = vld [vmem:[%s6 + $0x278] sm:$0xff]
    %v1907 = vld [vmem:[%s6 + $0x280] sm:$0xff]
    %v1908 = vld [vmem:[%s6 + $0x288] sm:$0xff]
    %v1909 = vld [vmem:[%s6 + $0x290] sm:$0xff]
    %v1910 = vld [vmem:[%s6 + $0x298] sm:$0xff]
    %v1911 = vld [vmem:[%s6 + $0x2a0] sm:$0xff]
    %v1912 = vld [vmem:[%s6 + $0x2a8] sm:$0xff]
    %v1913 = vld [vmem:[%s6 + $0x2b0] sm:$0xff]
    %v1914 = vld [vmem:[%s6 + $0x2b8] sm:$0xff]
    %v1915 = vld [vmem:[%s6 + $0x2c0] sm:$0xff]
    %v1916 = vld [vmem:[%s6 + $0x2c8] sm:$0xff]
    %v1917 = vld [vmem:[%s6 + $0x2d0] sm:$0xff]
    %v1918 = vld [vmem:[%s6 + $0x2d8] sm:$0xff]
    %v1919 = vld [vmem:[%s6 + $0x2e0] sm:$0xff]
    %v1920 = vld [vmem:[%s6 + $0x2e8] sm:$0xff]
    %v1921 = vld [vmem:[%s6 + $0x2f0] sm:$0xff]
    %v1922 = vld [vmem:[%s6 + $0x2f8] sm:$0xff]
    %v1923 = vld [vmem:[%s6 + $0x300] sm:$0xff]
    %v1924 = vld [vmem:[%s6 + $0x308] sm:$0xff]
    %v1925 = vld [vmem:[%s6 + $0x310] sm:$0xff]
    %v1926 = vld [vmem:[%s6 + $0x318] sm:$0xff]
    %v1927 = vld [vmem:[%s6 + $0x320] sm:$0xff]
    %v1928 = vld [vmem:[%s6 + $0x328] sm:$0xff]
    %v1929 = vld [vmem:[%s6 + $0x330] sm:$0xff]
    %v1930 = vld [vmem:[%s6 + $0x338] sm:$0xff]
    %v1931 = vld [vmem:[%s6 + $0x340] sm:$0xff]
    %v1932 = vld [vmem:[%s6 + $0x348] sm:$0xff]
    %v1933 = vld [vmem:[%s6 + $0x350] sm:$0xff]
    %v1934 = vld [vmem:[%s6 + $0x358] sm:$0xff]
    %v1935 = vld [vmem:[%s6 + $0x360] sm:$0xff]
    %v1936 = vld [vmem:[%s6 + $0x368] sm:$0xff]
    %v1937 = vld [vmem:[%s6 + $0x370] sm:$0xff]
    %v1938 = vld [vmem:[%s6 + $0x378] sm:$0xff]
    %v1939 = vld [vmem:[%s6 + $0x380] sm:$0xff]
    %v1940 = vld [vmem:[%s6 + $0x388] sm:$0xff]
    %v1941 = vld [vmem:[%s6 + $0x390] sm:$0xff]
    %v1942 = vld [vmem:[%s6 + $0x398] sm:$0xff]
    %v1943 = vld [vmem:[%s6 + $0x3a0] sm:$0xff]
    %v1944 = vld [vmem:[%s6 + $0x3a8] sm:$0xff]
    %v1945 = vld [vmem:[%s6 + $0x3b0] sm:$0xff]
    %v1946 = vld [vmem:[%s6 + $0x3b8] sm:$0xff]
    %v1947 = vld [vmem:[%s6 + $0x3c0] sm:$0xff]
    %v1948 = vld [vmem:[%s6 + $0x3c8] sm:$0xff]
    %v1949 = vld [vmem:[%s6 + $0x3d0] sm:$0xff]
    %v1950 = vld [vmem:[%s6 + $0x3d8] sm:$0xff]
    %v1951 = vld [vmem:[%s6 + $0x3e0] sm:$0xff]
    %v1952 = vld [vmem:[%s6 + $0x3e8] sm:$0xff]
    %v1953 = vld [vmem:[%s6 + $0x3f0] sm:$0xff]
    %v1954 = vld [vmem:[%s6 + $0x3f8] sm:$0xff]
    %v1955 = vld [vmem:[%s6 + $0x400] sm:$0xff]
    %v1956 = vld [vmem:[%s6 + $0x408] sm:$0xff]
    %v1957 = vld [vmem:[%s6 + $0x410] sm:$0xff]
    %v1958 = vld [vmem:[%s6 + $0x418] sm:$0xff]
    %v1959 = vld [vmem:[%s6 + $0x420] sm:$0xff]
    %v1960 = vld [vmem:[%s6 + $0x428] sm:$0xff]
    %v1961 = vld [vmem:[%s6 + $0x430] sm:$0xff]
    %v1962 = vld [vmem:[%s6 + $0x438] sm:$0xff]
    %v1963 = vld [vmem:[%s6 + $0x440] sm:$0xff]
    %v1964 = vld [vmem:[%s6 + $0x448] sm:$0xff]
    %v1965 = vld [vmem:[%s6 + $0x450] sm:$0xff]
    %v1966 = vld [vmem:[%s6 + $0x458] sm:$0xff]
    %v1967 = vld [vmem:[%s6 + $0x460] sm:$0xff]
    %v1968 = vld [vmem:[%s6 + $0x468] sm:$0xff]
    %v1969 = vld [vmem:[%s6 + $0x470] sm:$0xff]
    %v1970 = vld [vmem:[%s6 + $0x478] sm:$0xff]
    %v1971 = vld [vmem:[%s6 + $0x480] sm:$0xff]
    %v1972 = vld [vmem:[%s6 + $0x488] sm:$0xff]
    %v1973 = vld [vmem:[%s6 + $0x490] sm:$0xff]
    %v1974 = vld [vmem:[%s6 + $0x498] sm:$0xff]
    %v1975 = vld [vmem:[%s6 + $0x4a0] sm:$0xff]
    %v1976 = vld [vmem:[%s6 + $0x4a8] sm:$0xff]
    %v1977 = vld [vmem:[%s6 + $0x4b0] sm:$0xff]
    %v1978 = vld [vmem:[%s6 + $0x4b8] sm:$0xff]
    %v1979 = vld [vmem:[%s6 + $0x4c0] sm:$0xff]
    %v1980 = vld [vmem:[%s6 + $0x4c8] sm:$0xff]
    %v1981 = vld [vmem:[%s6 + $0x4d0] sm:$0xff]
    %v1982 = vld [vmem:[%s6 + $0x4d8] sm:$0xff]
    %v1983 = vld [vmem:[%s6 + $0x4e0] sm:$0xff]
    %v1984 = vld [vmem:[%s6 + $0x4e8] sm:$0xff]
    %v1985 = vld [vmem:[%s6 + $0x4f0] sm:$0xff]
    %v1986 = vld [vmem:[%s6 + $0x4f8] sm:$0xff]
    %v1987 = vld [vmem:[%s6 + $0x500] sm:$0xff]
    %v1988 = vld [vmem:[%s6 + $0x508] sm:$0xff]
    %v1989 = vld [vmem:[%s6 + $0x510] sm:$0xff]
    %v1990 = vld [vmem:[%s6 + $0x518] sm:$0xff]
    %v1991 = vld [vmem:[%s6 + $0x520] sm:$0xff]
    %v1992 = vld [vmem:[%s6 + $0x528] sm:$0xff]
    %v1993 = vld [vmem:[%s6 + $0x530] sm:$0xff]
    %v1994 = vld [vmem:[%s6 + $0x538] sm:$0xff]
    %v1995 = vld [vmem:[%s6 + $0x540] sm:$0xff]
    %v1996 = vld [vmem:[%s6 + $0x548] sm:$0xff]
    %v1997 = vld [vmem:[%s6 + $0x550] sm:$0xff]
    %v1998 = vld [vmem:[%s6 + $0x558] sm:$0xff]
    %v1999 = vld [vmem:[%s6 + $0x560] sm:$0xff]
    %v2000 = vld [vmem:[%s6 + $0x568] sm:$0xff]
    %v2001 = vld [vmem:[%s6 + $0x570] sm:$0xff]
    %v2002 = vld [vmem:[%s6 + $0x578] sm:$0xff]
    %v2003 = vld [vmem:[%s6 + $0x580] sm:$0xff]
    %v2004 = vld [vmem:[%s6 + $0x588] sm:$0xff]
    %v2005 = vld [vmem:[%s6 + $0x590] sm:$0xff]
    %v2006 = vld [vmem:[%s6 + $0x598] sm:$0xff]
    %v2007 = vld [vmem:[%s6 + $0x5a0] sm:$0xff]
    %v2008 = vld [vmem:[%s6 + $0x5a8] sm:$0xff]
    %v2009 = vld [vmem:[%s6 + $0x5b0] sm:$0xff]
    %v2010 = vld [vmem:[%s6 + $0x5b8] sm:$0xff]
    %v2011 = vld [vmem:[%s6 + $0x5c0] sm:$0xff]
    %v2012 = vld [vmem:[%s6 + $0x5c8] sm:$0xff]
    %v2013 = vld [vmem:[%s6 + $0x5d0] sm:$0xff]
    %v2014 = vld [vmem:[%s6 + $0x5d8] sm:$0xff]
    %v2015 = vld [vmem:[%s6 + $0x5e0] sm:$0xff]
    %v2016 = vld [vmem:[%s6 + $0x5e8] sm:$0xff]
    %v2017 = vld [vmem:[%s6 + $0x5f0] sm:$0xff]
    %v2018 = vld [vmem:[%s6 + $0x5f8] sm:$0xff]
    %v2019 = vld [vmem:[%s6 + $0x600] sm:$0xff]
    %v2020 = vld [vmem:[%s6 + $0x608] sm:$0xff]
    %v2021 = vld [vmem:[%s6 + $0x610] sm:$0xff]
    %v2022 = vld [vmem:[%s6 + $0x618] sm:$0xff]
    %v2023 = vld [vmem:[%s6 + $0x620] sm:$0xff]
    %v2024 = vld [vmem:[%s6 + $0x628] sm:$0xff]
    %v2025 = vld [vmem:[%s6 + $0x630] sm:$0xff]
    %v2026 = vld [vmem:[%s6 + $0x638] sm:$0xff]
    %v2027 = vld [vmem:[%s6 + $0x640] sm:$0xff]
    %v2028 = vld [vmem:[%s6 + $0x648] sm:$0xff]
    %v2029 = vld [vmem:[%s6 + $0x650] sm:$0xff]
    %v2030 = vld [vmem:[%s6 + $0x658] sm:$0xff]
    %v2031 = vld [vmem:[%s6 + $0x660] sm:$0xff]
    %v2032 = vld [vmem:[%s6 + $0x668] sm:$0xff]
    %v2033 = vld [vmem:[%s6 + $0x670] sm:$0xff]
    %v2034 = vld [vmem:[%s6 + $0x678] sm:$0xff]
    %v2035 = vld [vmem:[%s6 + $0x680] sm:$0xff]
    %v2036 = vld [vmem:[%s6 + $0x688] sm:$0xff]
    %v2037 = vld [vmem:[%s6 + $0x690] sm:$0xff]
    %v2038 = vld [vmem:[%s6 + $0x698] sm:$0xff]
    %v2039 = vld [vmem:[%s6 + $0x6a0] sm:$0xff]
    %v2040 = vld [vmem:[%s6 + $0x6a8] sm:$0xff]
    %v2041 = vld [vmem:[%s6 + $0x6b0] sm:$0xff]
    %v2042 = vld [vmem:[%s6 + $0x6b8] sm:$0xff]
    %v2043 = vld [vmem:[%s6 + $0x6c0] sm:$0xff]
    %v2044 = vld [vmem:[%s6 + $0x6c8] sm:$0xff]
    %v2045 = vld [vmem:[%s6 + $0x6d0] sm:$0xff]
    %v2046 = vld [vmem:[%s6 + $0x6d8] sm:$0xff]
    %v2047 = vld [vmem:[%s6 + $0x6e0] sm:$0xff]
    %v2048 = vld [vmem:[%s6 + $0x6e8] sm:$0xff]
    %v2049 = vld [vmem:[%s6 + $0x6f0] sm:$0xff]
    %v2050 = vld [vmem:[%s6 + $0x6f8] sm:$0xff]
    %v2051 = vld [vmem:[%s6 + $0x700] sm:$0xff]
    %v2052 = vld [vmem:[%s6 + $0x708] sm:$0xff]
    %v2053 = vld [vmem:[%s6 + $0x710] sm:$0xff]
    %v2054 = vld [vmem:[%s6 + $0x718] sm:$0xff]
    %v2055 = vld [vmem:[%s6 + $0x720] sm:$0xff]
    %v2056 = vld [vmem:[%s6 + $0x728] sm:$0xff]
    %v2057 = vld [vmem:[%s6 + $0x730] sm:$0xff]
    %v2058 = vld [vmem:[%s6 + $0x738] sm:$0xff]
    %v2059 = vld [vmem:[%s6 + $0x740] sm:$0xff]
    %v2060 = vld [vmem:[%s6 + $0x748] sm:$0xff]
    %v2061 = vld [vmem:[%s6 + $0x750] sm:$0xff]
    %v2062 = vld [vmem:[%s6 + $0x758] sm:$0xff]
    %v2063 = vld [vmem:[%s6 + $0x760] sm:$0xff]
    %v2064 = vld [vmem:[%s6 + $0x768] sm:$0xff]
    %v2065 = vld [vmem:[%s6 + $0x770] sm:$0xff]
    %v2066 = vld [vmem:[%s6 + $0x778] sm:$0xff]
    %v2067 = vld [vmem:[%s6 + $0x780] sm:$0xff]
    %v2068 = vld [vmem:[%s6 + $0x788] sm:$0xff]
    %v2069 = vld [vmem:[%s6 + $0x790] sm:$0xff]
    %v2070 = vld [vmem:[%s6 + $0x798] sm:$0xff]
    %v2071 = vld [vmem:[%s6 + $0x7a0] sm:$0xff]
    %v2072 = vld [vmem:[%s6 + $0x7a8] sm:$0xff]
    %v2073 = vld [vmem:[%s6 + $0x7b0] sm:$0xff]
    %v2074 = vld [vmem:[%s6 + $0x7b8] sm:$0xff]
    %v2075 = vld [vmem:[%s6 + $0x7c0] sm:$0xff]
    %v2076 = vld [vmem:[%s6 + $0x7c8] sm:$0xff]
    %v2077 = vld [vmem:[%s6 + $0x7d0] sm:$0xff]
    %v2078 = vld [vmem:[%s6 + $0x7d8] sm:$0xff]
    %v2079 = vld [vmem:[%s6 + $0x7e0] sm:$0xff]
    %v2080 = vld [vmem:[%s6 + $0x7e8] sm:$0xff]
    %v2081 = vld [vmem:[%s6 + $0x7f0] sm:$0xff]
    %v2082 = vld [vmem:[%s6 + $0x7f8] sm:$0xff]
    %v2083 = vld [vmem:[%s7] sm:$0xff]
    %v2084 = vld [vmem:[%s7 + $0x8] sm:$0xff]
    %v2085 = vld [vmem:[%s7 + $0x10] sm:$0xff]
    %v2086 = vld [vmem:[%s7 + $0x18] sm:$0xff]
    %v2087 = vld [vmem:[%s7 + $0x20] sm:$0xff]
    %v2088 = vld [vmem:[%s7 + $0x28] sm:$0xff]
    %v2089 = vld [vmem:[%s7 + $0x30] sm:$0xff]
    %v2090 = vld [vmem:[%s7 + $0x38] sm:$0xff]
    %v2091 = vld [vmem:[%s7 + $0x40] sm:$0xff]
    %v2092 = vld [vmem:[%s7 + $0x48] sm:$0xff]
    %v2093 = vld [vmem:[%s7 + $0x50] sm:$0xff]
    %v2094 = vld [vmem:[%s7 + $0x58] sm:$0xff]
    %v2095 = vld [vmem:[%s7 + $0x60] sm:$0xff]
    %v2096 = vld [vmem:[%s7 + $0x68] sm:$0xff]
    %v2097 = vld [vmem:[%s7 + $0x70] sm:$0xff]
    %v2098 = vld [vmem:[%s7 + $0x78] sm:$0xff]
    %v2099 = vld [vmem:[%s7 + $0x80] sm:$0xff]
    %v2100 = vld [vmem:[%s7 + $0x88] sm:$0xff]
    %v2101 = vld [vmem:[%s7 + $0x90] sm:$0xff]
    %v2102 = vld [vmem:[%s7 + $0x98] sm:$0xff]
    %v2103 = vld [vmem:[%s7 + $0xa0] sm:$0xff]
    %v2104 = vld [vmem:[%s7 + $0xa8] sm:$0xff]
    %v2105 = vld [vmem:[%s7 + $0xb0] sm:$0xff]
    %v2106 = vld [vmem:[%s7 + $0xb8] sm:$0xff]
    %v2107 = vld [vmem:[%s7 + $0xc0] sm:$0xff]
    %v2108 = vld [vmem:[%s7 + $0xc8] sm:$0xff]
    %v2109 = vld [vmem:[%s7 + $0xd0] sm:$0xff]
    %v2110 = vld [vmem:[%s7 + $0xd8] sm:$0xff]
    %v2111 = vld [vmem:[%s7 + $0xe0] sm:$0xff]
    %v2112 = vld [vmem:[%s7 + $0xe8] sm:$0xff]
    %v2113 = vld [vmem:[%s7 + $0xf0] sm:$0xff]
    %v2114 = vld [vmem:[%s7 + $0xf8] sm:$0xff]
    %v2115 = vld [vmem:[%s7 + $0x100] sm:$0xff]
    %v2116 = vld [vmem:[%s7 + $0x108] sm:$0xff]
    %v2117 = vld [vmem:[%s7 + $0x110] sm:$0xff]
    %v2118 = vld [vmem:[%s7 + $0x118] sm:$0xff]
    %v2119 = vld [vmem:[%s7 + $0x120] sm:$0xff]
    %v2120 = vld [vmem:[%s7 + $0x128] sm:$0xff]
    %v2121 = vld [vmem:[%s7 + $0x130] sm:$0xff]
    %v2122 = vld [vmem:[%s7 + $0x138] sm:$0xff]
    %v2123 = vld [vmem:[%s7 + $0x140] sm:$0xff]
    %v2124 = vld [vmem:[%s7 + $0x148] sm:$0xff]
    %v2125 = vld [vmem:[%s7 + $0x150] sm:$0xff]
    %v2126 = vld [vmem:[%s7 + $0x158] sm:$0xff]
    %v2127 = vld [vmem:[%s7 + $0x160] sm:$0xff]
    %v2128 = vld [vmem:[%s7 + $0x168] sm:$0xff]
    %v2129 = vld [vmem:[%s7 + $0x170] sm:$0xff]
    %v2130 = vld [vmem:[%s7 + $0x178] sm:$0xff]
    %v2131 = vld [vmem:[%s7 + $0x180] sm:$0xff]
    %v2132 = vld [vmem:[%s7 + $0x188] sm:$0xff]
    %v2133 = vld [vmem:[%s7 + $0x190] sm:$0xff]
    %v2134 = vld [vmem:[%s7 + $0x198] sm:$0xff]
    %v2135 = vld [vmem:[%s7 + $0x1a0] sm:$0xff]
    %v2136 = vld [vmem:[%s7 + $0x1a8] sm:$0xff]
    %v2137 = vld [vmem:[%s7 + $0x1b0] sm:$0xff]
    %v2138 = vld [vmem:[%s7 + $0x1b8] sm:$0xff]
    %v2139 = vld [vmem:[%s7 + $0x1c0] sm:$0xff]
    %v2140 = vld [vmem:[%s7 + $0x1c8] sm:$0xff]
    %v2141 = vld [vmem:[%s7 + $0x1d0] sm:$0xff]
    %v2142 = vld [vmem:[%s7 + $0x1d8] sm:$0xff]
    %v2143 = vld [vmem:[%s7 + $0x1e0] sm:$0xff]
    %v2144 = vld [vmem:[%s7 + $0x1e8] sm:$0xff]
    %v2145 = vld [vmem:[%s7 + $0x1f0] sm:$0xff]
    %v2146 = vld [vmem:[%s7 + $0x1f8] sm:$0xff]
    %v2147 = vld [vmem:[%s7 + $0x200] sm:$0xff]
    %v2148 = vld [vmem:[%s7 + $0x208] sm:$0xff]
    %v2149 = vld [vmem:[%s7 + $0x210] sm:$0xff]
    %v2150 = vld [vmem:[%s7 + $0x218] sm:$0xff]
    %v2151 = vld [vmem:[%s7 + $0x220] sm:$0xff]
    %v2152 = vld [vmem:[%s7 + $0x228] sm:$0xff]
    %v2153 = vld [vmem:[%s7 + $0x230] sm:$0xff]
    %v2154 = vld [vmem:[%s7 + $0x238] sm:$0xff]
    %v2155 = vld [vmem:[%s7 + $0x240] sm:$0xff]
    %v2156 = vld [vmem:[%s7 + $0x248] sm:$0xff]
    %v2157 = vld [vmem:[%s7 + $0x250] sm:$0xff]
    %v2158 = vld [vmem:[%s7 + $0x258] sm:$0xff]
    %v2159 = vld [vmem:[%s7 + $0x260] sm:$0xff]
    %v2160 = vld [vmem:[%s7 + $0x268] sm:$0xff]
    %v2161 = vld [vmem:[%s7 + $0x270] sm:$0xff]
    %v2162 = vld [vmem:[%s7 + $0x278] sm:$0xff]
    %v2163 = vld [vmem:[%s7 + $0x280] sm:$0xff]
    %v2164 = vld [vmem:[%s7 + $0x288] sm:$0xff]
    %v2165 = vld [vmem:[%s7 + $0x290] sm:$0xff]
    %v2166 = vld [vmem:[%s7 + $0x298] sm:$0xff]
    %v2167 = vld [vmem:[%s7 + $0x2a0] sm:$0xff]
    %v2168 = vld [vmem:[%s7 + $0x2a8] sm:$0xff]
    %v2169 = vld [vmem:[%s7 + $0x2b0] sm:$0xff]
    %v2170 = vld [vmem:[%s7 + $0x2b8] sm:$0xff]
    %v2171 = vld [vmem:[%s7 + $0x2c0] sm:$0xff]
    %v2172 = vld [vmem:[%s7 + $0x2c8] sm:$0xff]
    %v2173 = vld [vmem:[%s7 + $0x2d0] sm:$0xff]
    %v2174 = vld [vmem:[%s7 + $0x2d8] sm:$0xff]
    %v2175 = vld [vmem:[%s7 + $0x2e0] sm:$0xff]
    %v2176 = vld [vmem:[%s7 + $0x2e8] sm:$0xff]
    %v2177 = vld [vmem:[%s7 + $0x2f0] sm:$0xff]
    %v2178 = vld [vmem:[%s7 + $0x2f8] sm:$0xff]
    %v2179 = vld [vmem:[%s7 + $0x300] sm:$0xff]
    %v2180 = vld [vmem:[%s7 + $0x308] sm:$0xff]
    %v2181 = vld [vmem:[%s7 + $0x310] sm:$0xff]
    %v2182 = vld [vmem:[%s7 + $0x318] sm:$0xff]
    %v2183 = vld [vmem:[%s7 + $0x320] sm:$0xff]
    %v2184 = vld [vmem:[%s7 + $0x328] sm:$0xff]
    %v2185 = vld [vmem:[%s7 + $0x330] sm:$0xff]
    %v2186 = vld [vmem:[%s7 + $0x338] sm:$0xff]
    %v2187 = vld [vmem:[%s7 + $0x340] sm:$0xff]
    %v2188 = vld [vmem:[%s7 + $0x348] sm:$0xff]
    %v2189 = vld [vmem:[%s7 + $0x350] sm:$0xff]
    %v2190 = vld [vmem:[%s7 + $0x358] sm:$0xff]
    %v2191 = vld [vmem:[%s7 + $0x360] sm:$0xff]
    %v2192 = vld [vmem:[%s7 + $0x368] sm:$0xff]
    %v2193 = vld [vmem:[%s7 + $0x370] sm:$0xff]
    %v2194 = vld [vmem:[%s7 + $0x378] sm:$0xff]
    %v2195 = vld [vmem:[%s7 + $0x380] sm:$0xff]
    %v2196 = vld [vmem:[%s7 + $0x388] sm:$0xff]
    %v2197 = vld [vmem:[%s7 + $0x390] sm:$0xff]
    %v2198 = vld [vmem:[%s7 + $0x398] sm:$0xff]
    %v2199 = vld [vmem:[%s7 + $0x3a0] sm:$0xff]
    %v2200 = vld [vmem:[%s7 + $0x3a8] sm:$0xff]
    %v2201 = vld [vmem:[%s7 + $0x3b0] sm:$0xff]
    %v2202 = vld [vmem:[%s7 + $0x3b8] sm:$0xff]
    %v2203 = vld [vmem:[%s7 + $0x3c0] sm:$0xff]
    %v2204 = vld [vmem:[%s7 + $0x3c8] sm:$0xff]
    %v2205 = vld [vmem:[%s7 + $0x3d0] sm:$0xff]
    %v2206 = vld [vmem:[%s7 + $0x3d8] sm:$0xff]
    %v2207 = vld [vmem:[%s7 + $0x3e0] sm:$0xff]
    %v2208 = vld [vmem:[%s7 + $0x3e8] sm:$0xff]
    %v2209 = vld [vmem:[%s7 + $0x3f0] sm:$0xff]
    %v2210 = vld [vmem:[%s7 + $0x3f8] sm:$0xff]
    %v2211 = vld [vmem:[%s7 + $0x400] sm:$0xff]
    %v2212 = vld [vmem:[%s7 + $0x408] sm:$0xff]
    %v2213 = vld [vmem:[%s7 + $0x410] sm:$0xff]
    %v2214 = vld [vmem:[%s7 + $0x418] sm:$0xff]
    %v2215 = vld [vmem:[%s7 + $0x420] sm:$0xff]
    %v2216 = vld [vmem:[%s7 + $0x428] sm:$0xff]
    %v2217 = vld [vmem:[%s7 + $0x430] sm:$0xff]
    %v2218 = vld [vmem:[%s7 + $0x438] sm:$0xff]
    %v2219 = vld [vmem:[%s7 + $0x440] sm:$0xff]
    %v2220 = vld [vmem:[%s7 + $0x448] sm:$0xff]
    %v2221 = vld [vmem:[%s7 + $0x450] sm:$0xff]
    %v2222 = vld [vmem:[%s7 + $0x458] sm:$0xff]
    %v2223 = vld [vmem:[%s7 + $0x460] sm:$0xff]
    %v2224 = vld [vmem:[%s7 + $0x468] sm:$0xff]
    %v2225 = vld [vmem:[%s7 + $0x470] sm:$0xff]
    %v2226 = vld [vmem:[%s7 + $0x478] sm:$0xff]
    %v2227 = vld [vmem:[%s7 + $0x480] sm:$0xff]
    %v2228 = vld [vmem:[%s7 + $0x488] sm:$0xff]
    %v2229 = vld [vmem:[%s7 + $0x490] sm:$0xff]
    %v2230 = vld [vmem:[%s7 + $0x498] sm:$0xff]
    %v2231 = vld [vmem:[%s7 + $0x4a0] sm:$0xff]
    %v2232 = vld [vmem:[%s7 + $0x4a8] sm:$0xff]
    %v2233 = vld [vmem:[%s7 + $0x4b0] sm:$0xff]
    %v2234 = vld [vmem:[%s7 + $0x4b8] sm:$0xff]
    %v2235 = vld [vmem:[%s7 + $0x4c0] sm:$0xff]
    %v2236 = vld [vmem:[%s7 + $0x4c8] sm:$0xff]
    %v2237 = vld [vmem:[%s7 + $0x4d0] sm:$0xff]
    %v2238 = vld [vmem:[%s7 + $0x4d8] sm:$0xff]
    %v2239 = vld [vmem:[%s7 + $0x4e0] sm:$0xff]
    %v2240 = vld [vmem:[%s7 + $0x4e8] sm:$0xff]
    %v2241 = vld [vmem:[%s7 + $0x4f0] sm:$0xff]
    %v2242 = vld [vmem:[%s7 + $0x4f8] sm:$0xff]
    %v2243 = vld [vmem:[%s7 + $0x500] sm:$0xff]
    %v2244 = vld [vmem:[%s7 + $0x508] sm:$0xff]
    %v2245 = vld [vmem:[%s7 + $0x510] sm:$0xff]
    %v2246 = vld [vmem:[%s7 + $0x518] sm:$0xff]
    %v2247 = vld [vmem:[%s7 + $0x520] sm:$0xff]
    %v2248 = vld [vmem:[%s7 + $0x528] sm:$0xff]
    %v2249 = vld [vmem:[%s7 + $0x530] sm:$0xff]
    %v2250 = vld [vmem:[%s7 + $0x538] sm:$0xff]
    %v2251 = vld [vmem:[%s7 + $0x540] sm:$0xff]
    %v2252 = vld [vmem:[%s7 + $0x548] sm:$0xff]
    %v2253 = vld [vmem:[%s7 + $0x550] sm:$0xff]
    %v2254 = vld [vmem:[%s7 + $0x558] sm:$0xff]
    %v2255 = vld [vmem:[%s7 + $0x560] sm:$0xff]
    %v2256 = vld [vmem:[%s7 + $0x568] sm:$0xff]
    %v2257 = vld [vmem:[%s7 + $0x570] sm:$0xff]
    %v2258 = vld [vmem:[%s7 + $0x578] sm:$0xff]
    %v2259 = vld [vmem:[%s7 + $0x580] sm:$0xff]
    %v2260 = vld [vmem:[%s7 + $0x588] sm:$0xff]
    %v2261 = vld [vmem:[%s7 + $0x590] sm:$0xff]
    %v2262 = vld [vmem:[%s7 + $0x598] sm:$0xff]
    %v2263 = vld [vmem:[%s7 + $0x5a0] sm:$0xff]
    %v2264 = vld [vmem:[%s7 + $0x5a8] sm:$0xff]
    %v2265 = vld [vmem:[%s7 + $0x5b0] sm:$0xff]
    %v2266 = vld [vmem:[%s7 + $0x5b8] sm:$0xff]
    %v2267 = vld [vmem:[%s7 + $0x5c0] sm:$0xff]
    %v2268 = vld [vmem:[%s7 + $0x5c8] sm:$0xff]
    %v2269 = vld [vmem:[%s7 + $0x5d0] sm:$0xff]
    %v2270 = vld [vmem:[%s7 + $0x5d8] sm:$0xff]
    %v2271 = vld [vmem:[%s7 + $0x5e0] sm:$0xff]
    %v2272 = vld [vmem:[%s7 + $0x5e8] sm:$0xff]
    %v2273 = vld [vmem:[%s7 + $0x5f0] sm:$0xff]
    %v2274 = vld [vmem:[%s7 + $0x5f8] sm:$0xff]
    %v2275 = vld [vmem:[%s7 + $0x600] sm:$0xff]
    %v2276 = vld [vmem:[%s7 + $0x608] sm:$0xff]
    %v2277 = vld [vmem:[%s7 + $0x610] sm:$0xff]
    %v2278 = vld [vmem:[%s7 + $0x618] sm:$0xff]
    %v2279 = vld [vmem:[%s7 + $0x620] sm:$0xff]
    %v2280 = vld [vmem:[%s7 + $0x628] sm:$0xff]
    %v2281 = vld [vmem:[%s7 + $0x630] sm:$0xff]
    %v2282 = vld [vmem:[%s7 + $0x638] sm:$0xff]
    %v2283 = vld [vmem:[%s7 + $0x640] sm:$0xff]
    %v2284 = vld [vmem:[%s7 + $0x648] sm:$0xff]
    %v2285 = vld [vmem:[%s7 + $0x650] sm:$0xff]
    %v2286 = vld [vmem:[%s7 + $0x658] sm:$0xff]
    %v2287 = vld [vmem:[%s7 + $0x660] sm:$0xff]
    %v2288 = vld [vmem:[%s7 + $0x668] sm:$0xff]
    %v2289 = vld [vmem:[%s7 + $0x670] sm:$0xff]
    %v2290 = vld [vmem:[%s7 + $0x678] sm:$0xff]
    %v2291 = vld [vmem:[%s7 + $0x680] sm:$0xff]
    %v2292 = vld [vmem:[%s7 + $0x688] sm:$0xff]
    %v2293 = vld [vmem:[%s7 + $0x690] sm:$0xff]
    %v2294 = vld [vmem:[%s7 + $0x698] sm:$0xff]
    %v2295 = vld [vmem:[%s7 + $0x6a0] sm:$0xff]
    %v2296 = vld [vmem:[%s7 + $0x6a8] sm:$0xff]
    %v2297 = vld [vmem:[%s7 + $0x6b0] sm:$0xff]
    %v2298 = vld [vmem:[%s7 + $0x6b8] sm:$0xff]
    %v2299 = vld [vmem:[%s7 + $0x6c0] sm:$0xff]
    %v2300 = vld [vmem:[%s7 + $0x6c8] sm:$0xff]
    %v2301 = vld [vmem:[%s7 + $0x6d0] sm:$0xff]
    %v2302 = vld [vmem:[%s7 + $0x6d8] sm:$0xff]
    %v2303 = vld [vmem:[%s7 + $0x6e0] sm:$0xff]
    %v2304 = vld [vmem:[%s7 + $0x6e8] sm:$0xff]
    %v2305 = vld [vmem:[%s7 + $0x6f0] sm:$0xff]
    %v2306 = vld [vmem:[%s7 + $0x6f8] sm:$0xff]
    %v2307 = vld [vmem:[%s7 + $0x700] sm:$0xff]
    %v2308 = vld [vmem:[%s7 + $0x708] sm:$0xff]
    %v2309 = vld [vmem:[%s7 + $0x710] sm:$0xff]
    %v2310 = vld [vmem:[%s7 + $0x718] sm:$0xff]
    %v2311 = vld [vmem:[%s7 + $0x720] sm:$0xff]
    %v2312 = vld [vmem:[%s7 + $0x728] sm:$0xff]
    %v2313 = vld [vmem:[%s7 + $0x730] sm:$0xff]
    %v2314 = vld [vmem:[%s7 + $0x738] sm:$0xff]
    %v2315 = vld [vmem:[%s7 + $0x740] sm:$0xff]
    %v2316 = vld [vmem:[%s7 + $0x748] sm:$0xff]
    %v2317 = vld [vmem:[%s7 + $0x750] sm:$0xff]
    %v2318 = vld [vmem:[%s7 + $0x758] sm:$0xff]
    %v2319 = vld [vmem:[%s7 + $0x760] sm:$0xff]
    %v2320 = vld [vmem:[%s7 + $0x768] sm:$0xff]
    %v2321 = vld [vmem:[%s7 + $0x770] sm:$0xff]
    %v2322 = vld [vmem:[%s7 + $0x778] sm:$0xff]
    %v2323 = vld [vmem:[%s7 + $0x780] sm:$0xff]
    %v2324 = vld [vmem:[%s7 + $0x788] sm:$0xff]
    %v2325 = vld [vmem:[%s7 + $0x790] sm:$0xff]
    %v2326 = vld [vmem:[%s7 + $0x798] sm:$0xff]
    %v2327 = vld [vmem:[%s7 + $0x7a0] sm:$0xff]
    %v2328 = vld [vmem:[%s7 + $0x7a8] sm:$0xff]
    %v2329 = vld [vmem:[%s7 + $0x7b0] sm:$0xff]
    %v2330 = vld [vmem:[%s7 + $0x7b8] sm:$0xff]
    %v2331 = vld [vmem:[%s7 + $0x7c0] sm:$0xff]
    %v2332 = vld [vmem:[%s7 + $0x7c8] sm:$0xff]
    %v2333 = vld [vmem:[%s7 + $0x7d0] sm:$0xff]
    %v2334 = vld [vmem:[%s7 + $0x7d8] sm:$0xff]
    %v2335 = vld [vmem:[%s7 + $0x7e0] sm:$0xff]
    %v2336 = vld [vmem:[%s7 + $0x7e8] sm:$0xff]
    %v2337 = vld [vmem:[%s7 + $0x7f0] sm:$0xff]
    %v2338 = vld [vmem:[%s7 + $0x7f8] sm:$0xff]
    %v2339 = vrot.slane %v1800, 2
    %v2340 = vrot.slane %v1801, 2
    %v2341 = vrot.slane %v1802, 2
    %v2342 = vrot.slane %v1803, 2
    %2347 = vmatprep.subr.mxu0 %v2144
    %2348 = vmatpush1.msra.mxu0 %v2143
    %2349 = vmatprep.subr.mxu0 %v2140
    %2350 = vmatpush1.msra.mxu0 %v2139
    %2351 = vmatprep.subr.mxu0 %v2136
    %2352 = vmatpush1.msra.mxu0 %v2135
    %2353 = vmatprep.subr.mxu0 %v2132
    %2354 = vmatpush1.msra.mxu0 %v2131
    %2355 = vmatprep.subr.mxu0 %v2128
    %2356 = vmatpush1.msra.mxu0 %v2127
    %2357 = vmatprep.subr.mxu0 %v2124
    %2358 = vmatpush1.msra.mxu0 %v2123
    %2359 = vmatprep.subr.mxu0 %v2120
    %2360 = vmatpush1.msra.mxu0 %v2119
    %2361 = vmatprep.subr.mxu0 %v2116
    %2362 = vmatpush1.msra.mxu0 %v2115
    %2363 = vmatprep.subr.mxu0 %v2112
    %2364 = vmatpush1.msra.mxu0 %v2111
    %2365 = vmatprep.subr.mxu0 %v2108
    %2366 = vmatpush1.msra.mxu0 %v2107
    %2367 = vmatprep.subr.mxu0 %v2104
    %2368 = vmatpush1.msra.mxu0 %v2103
    %2369 = vmatprep.subr.mxu0 %v2100
    %2370 = vmatpush1.msra.mxu0 %v2099
    %2371 = vmatprep.subr.mxu0 %v2096
    %2372 = vmatpush1.msra.mxu0 %v2095
    %2373 = vmatprep.subr.mxu0 %v2092
    %2374 = vmatpush1.msra.mxu0 %v2091
    %2375 = vmatprep.subr.mxu0 %v2088
    %2376 = vmatpush1.msra.mxu0 %v2087
    %2377 = vmatprep.subr.mxu0 %v2084
    %2378 = vmatpush1.msra.mxu0 %v2083
    %2379 = vmatprep.subr.mxu0 %v2208
    %2380 = vmatpush2.msra.mxu0 %v2207
    %2381 = vmatprep.subr.mxu0 %v2204
    %2382 = vmatpush2.msra.mxu0 %v2203
    %2383 = vmatprep.subr.mxu0 %v2200
    %2384 = vmatpush2.msra.mxu0 %v2199
    %2385 = vmatprep.subr.mxu0 %v2196
    %2386 = vmatpush2.msra.mxu0 %v2195
    %2387 = vmatprep.subr.mxu0 %v2192
    %2388 = vmatpush2.msra.mxu0 %v2191
    %2389 = vmatprep.subr.mxu0 %v2188
    %2390 = vmatpush2.msra.mxu0 %v2187
    %2391 = vmatprep.subr.mxu0 %v2184
    %2392 = vmatpush2.msra.mxu0 %v2183
    %2393 = vmatprep.subr.mxu0 %v2180
    %2394 = vmatpush2.msra.mxu0 %v2179
    %2395 = vmatprep.subr.mxu0 %v2176
    %2396 = vmatpush2.msra.mxu0 %v2175
    %2397 = vmatprep.subr.mxu0 %v2172
    %2398 = vmatpush2.msra.mxu0 %v2171
    %2399 = vmatprep.subr.mxu0 %v2168
    %2400 = vmatpush2.msra.mxu0 %v2167
    %2401 = vmatprep.subr.mxu0 %v2164
    %2402 = vmatpush2.msra.mxu0 %v2163
    %2403 = vmatprep.subr.mxu0 %v2160
    %2404 = vmatpush2.msra.mxu0 %v2159
    %2405 = vmatprep.subr.mxu0 %v2156
    %2406 = vmatpush2.msra.mxu0 %v2155
    %2407 = vmatprep.subr.mxu0 %v2152
    %2408 = vmatpush2.msra.mxu0 %v2151
    %2409 = vmatprep.subr.mxu0 %v2148
    %2410 = vmatpush2.msra.mxu0 %v2147
    %2411 = vmatprep.mubr.f32.mxu0 %v2340
    %2412 = vmatmul.mubr.f32.gmra.mxu0 %v2339
    %v2413 = vpop.f32.mrf.mxu0
    %v2414 = vadd.f32 0.0, %v2413
    %v2415 = vpop.f32.mrf.mxu0
    %v2416 = vadd.f32 0.0, %v2415
    %2417 = vdwg.mxu0
    %2418 = vmatprep.subr.mxu0 %v2272
    %2419 = vmatpush1.msra.mxu0 %v2271
    %2420 = vmatprep.subr.mxu0 %v2268
    %2421 = vmatpush1.msra.mxu0 %v2267
    %2422 = vmatprep.subr.mxu0 %v2264
    %2423 = vmatpush1.msra.mxu0 %v2263
    %2424 = vmatprep.subr.mxu0 %v2260
    %2425 = vmatpush1.msra.mxu0 %v2259
    %2426 = vmatprep.subr.mxu0 %v2256
    %2427 = vmatpush1.msra.mxu0 %v2255
    %2428 = vmatprep.subr.mxu0 %v2252
    %2429 = vmatpush1.msra.mxu0 %v2251
    %2430 = vmatprep.subr.mxu0 %v2248
    %2431 = vmatpush1.msra.mxu0 %v2247
    %2432 = vmatprep.subr.mxu0 %v2244
    %2433 = vmatpush1.msra.mxu0 %v2243
    %2434 = vmatprep.subr.mxu0 %v2240
    %2435 = vmatpush1.msra.mxu0 %v2239
    %2436 = vmatprep.subr.mxu0 %v2236
    %2437 = vmatpush1.msra.mxu0 %v2235
    %2438 = vmatprep.subr.mxu0 %v2232
    %2439 = vmatpush1.msra.mxu0 %v2231
    %2440 = vmatprep.subr.mxu0 %v2228
    %2441 = vmatpush1.msra.mxu0 %v2227
    %2442 = vmatprep.subr.mxu0 %v2224
    %2443 = vmatpush1.msra.mxu0 %v2223
    %2444 = vmatprep.subr.mxu0 %v2220
    %2445 = vmatpush1.msra.mxu0 %v2219
    %2446 = vmatprep.subr.mxu0 %v2216
    %2447 = vmatpush1.msra.mxu0 %v2215
    %2448 = vmatprep.subr.mxu0 %v2212
    %2449 = vmatpush1.msra.mxu0 %v2211
    %2450 = vmatprep.subr.mxu0 %v2336
    %2451 = vmatpush2.msra.mxu0 %v2335
    %2452 = vmatprep.subr.mxu0 %v2332
    %2453 = vmatpush2.msra.mxu0 %v2331
    %2454 = vmatprep.subr.mxu0 %v2328
    %2455 = vmatpush2.msra.mxu0 %v2327
    %2456 = vmatprep.subr.mxu0 %v2324
    %2457 = vmatpush2.msra.mxu0 %v2323
    %2458 = vmatprep.subr.mxu0 %v2320
    %2459 = vmatpush2.msra.mxu0 %v2319
    %2460 = vmatprep.subr.mxu0 %v2316
    %2461 = vmatpush2.msra.mxu0 %v2315
    %2462 = vmatprep.subr.mxu0 %v2312
    %2463 = vmatpush2.msra.mxu0 %v2311
    %2464 = vmatprep.subr.mxu0 %v2308
    %2465 = vmatpush2.msra.mxu0 %v2307
    %2466 = vmatprep.subr.mxu0 %v2304
    %2467 = vmatpush2.msra.mxu0 %v2303
    %2468 = vmatprep.subr.mxu0 %v2300
    %2469 = vmatpush2.msra.mxu0 %v2299
    %2470 = vmatprep.subr.mxu0 %v2296
    %2471 = vmatpush2.msra.mxu0 %v2295
    %2472 = vmatprep.subr.mxu0 %v2292
    %2473 = vmatpush2.msra.mxu0 %v2291
    %2474 = vmatprep.subr.mxu0 %v2288
    %2475 = vmatpush2.msra.mxu0 %v2287
    %2476 = vmatprep.subr.mxu0 %v2284
    %2477 = vmatpush2.msra.mxu0 %v2283
    %2478 = vmatprep.subr.mxu0 %v2280
    %2479 = vmatpush2.msra.mxu0 %v2279
    %2480 = vmatprep.subr.mxu0 %v2276
    %2481 = vmatpush2.msra.mxu0 %v2275
    %2482 = vmatprep.mubr.f32.mxu0 %v2342
    %2483 = vmatmul.mubr.f32.gmra.mxu0 %v2341
    %v2484 = vpop.f32.mrf.mxu0
    %v2485 = vadd.f32 %v2414, %v2484
    %v2486 = vpop.f32.mrf.mxu0
    %v2487 = vadd.f32 %v2416, %v2486
    %2488 = vdwg.mxu0
    %2489 = vmatprep.subr.mxu0 %v2146
    %2490 = vmatpush1.msra.mxu0 %v2145
    %2491 = vmatprep.subr.mxu0 %v2142
    %2492 = vmatpush1.msra.mxu0 %v2141
    %2493 = vmatprep.subr.mxu0 %v2138
    %2494 = vmatpush1.msra.mxu0 %v2137
    %2495 = vmatprep.subr.mxu0 %v2134
    %2496 = vmatpush1.msra.mxu0 %v2133
    %2497 = vmatprep.subr.mxu0 %v2130
    %2498 = vmatpush1.msra.mxu0 %v2129
    %2499 = vmatprep.subr.mxu0 %v2126
    %2500 = vmatpush1.msra.mxu0 %v2125
    %2501 = vmatprep.subr.mxu0 %v2122
    %2502 = vmatpush1.msra.mxu0 %v2121
    %2503 = vmatprep.subr.mxu0 %v2118
    %2504 = vmatpush1.msra.mxu0 %v2117
    %2505 = vmatprep.subr.mxu0 %v2114
    %2506 = vmatpush1.msra.mxu0 %v2113
    %2507 = vmatprep.subr.mxu0 %v2110
    %2508 = vmatpush1.msra.mxu0 %v2109
    %2509 = vmatprep.subr.mxu0 %v2106
    %2510 = vmatpush1.msra.mxu0 %v2105
    %2511 = vmatprep.subr.mxu0 %v2102
    %2512 = vmatpush1.msra.mxu0 %v2101
    %2513 = vmatprep.subr.mxu0 %v2098
    %2514 = vmatpush1.msra.mxu0 %v2097
    %2515 = vmatprep.subr.mxu0 %v2094
    %2516 = vmatpush1.msra.mxu0 %v2093
    %2517 = vmatprep.subr.mxu0 %v2090
    %2518 = vmatpush1.msra.mxu0 %v2089
    %2519 = vmatprep.subr.mxu0 %v2086
    %2520 = vmatpush1.msra.mxu0 %v2085
    %2521 = vmatprep.subr.mxu0 %v2210
    %2522 = vmatpush2.msra.mxu0 %v2209
    %2523 = vmatprep.subr.mxu0 %v2206
    %2524 = vmatpush2.msra.mxu0 %v2205
    %2525 = vmatprep.subr.mxu0 %v2202
    %2526 = vmatpush2.msra.mxu0 %v2201
    %2527 = vmatprep.subr.mxu0 %v2198
    %2528 = vmatpush2.msra.mxu0 %v2197
    %2529 = vmatprep.subr.mxu0 %v2194
    %2530 = vmatpush2.msra.mxu0 %v2193
    %2531 = vmatprep.subr.mxu0 %v2190
    %2532 = vmatpush2.msra.mxu0 %v2189
    %2533 = vmatprep.subr.mxu0 %v2186
    %2534 = vmatpush2.msra.mxu0 %v2185
    %2535 = vmatprep.subr.mxu0 %v2182
    %2536 = vmatpush2.msra.mxu0 %v2181
    %2537 = vmatprep.subr.mxu0 %v2178
    %2538 = vmatpush2.msra.mxu0 %v2177
    %2539 = vmatprep.subr.mxu0 %v2174
    %2540 = vmatpush2.msra.mxu0 %v2173
    %2541 = vmatprep.subr.mxu0 %v2170
    %2542 = vmatpush2.msra.mxu0 %v2169
    %2543 = vmatprep.subr.mxu0 %v2166
    %2544 = vmatpush2.msra.mxu0 %v2165
    %2545 = vmatprep.subr.mxu0 %v2162
    %2546 = vmatpush2.msra.mxu0 %v2161
    %2547 = vmatprep.subr.mxu0 %v2158
    %2548 = vmatpush2.msra.mxu0 %v2157
    %2549 = vmatprep.subr.mxu0 %v2154
    %2550 = vmatpush2.msra.mxu0 %v2153
    %2551 = vmatprep.subr.mxu0 %v2150
    %2552 = vmatpush2.msra.mxu0 %v2149
    %2553 = vmatprep.mubr.f32.mxu0 %v2340
    %2554 = vmatmul.mubr.f32.gmra.mxu0 %v2339
    %v2555 = vpop.f32.mrf.mxu0
    %v2556 = vadd.f32 0.0, %v2555
    %v2557 = vpop.f32.mrf.mxu0
    %v2558 = vadd.f32 0.0, %v2557
    %2559 = vdwg.mxu0
    %2560 = vmatprep.subr.mxu0 %v2274
    %2561 = vmatpush1.msra.mxu0 %v2273
    %2562 = vmatprep.subr.mxu0 %v2270
    %2563 = vmatpush1.msra.mxu0 %v2269
    %2564 = vmatprep.subr.mxu0 %v2266
    %2565 = vmatpush1.msra.mxu0 %v2265
    %2566 = vmatprep.subr.mxu0 %v2262
    %2567 = vmatpush1.msra.mxu0 %v2261
    %2568 = vmatprep.subr.mxu0 %v2258
    %2569 = vmatpush1.msra.mxu0 %v2257
    %2570 = vmatprep.subr.mxu0 %v2254
    %2571 = vmatpush1.msra.mxu0 %v2253
    %2572 = vmatprep.subr.mxu0 %v2250
    %2573 = vmatpush1.msra.mxu0 %v2249
    %2574 = vmatprep.subr.mxu0 %v2246
    %2575 = vmatpush1.msra.mxu0 %v2245
    %2576 = vmatprep.subr.mxu0 %v2242
    %2577 = vmatpush1.msra.mxu0 %v2241
    %2578 = vmatprep.subr.mxu0 %v2238
    %2579 = vmatpush1.msra.mxu0 %v2237
    %2580 = vmatprep.subr.mxu0 %v2234
    %2581 = vmatpush1.msra.mxu0 %v2233
    %2582 = vmatprep.subr.mxu0 %v2230
    %2583 = vmatpush1.msra.mxu0 %v2229
    %2584 = vmatprep.subr.mxu0 %v2226
    %2585 = vmatpush1.msra.mxu0 %v2225
    %2586 = vmatprep.subr.mxu0 %v2222
    %2587 = vmatpush1.msra.mxu0 %v2221
    %2588 = vmatprep.subr.mxu0 %v2218
    %2589 = vmatpush1.msra.mxu0 %v2217
    %2590 = vmatprep.subr.mxu0 %v2214
    %2591 = vmatpush1.msra.mxu0 %v2213
    %2592 = vmatprep.subr.mxu0 %v2338
    %2593 = vmatpush2.msra.mxu0 %v2337
    %2594 = vmatprep.subr.mxu0 %v2334
    %2595 = vmatpush2.msra.mxu0 %v2333
    %2596 = vmatprep.subr.mxu0 %v2330
    %2597 = vmatpush2.msra.mxu0 %v2329
    %2598 = vmatprep.subr.mxu0 %v2326
    %2599 = vmatpush2.msra.mxu0 %v2325
    %2600 = vmatprep.subr.mxu0 %v2322
    %2601 = vmatpush2.msra.mxu0 %v2321
    %2602 = vmatprep.subr.mxu0 %v2318
    %2603 = vmatpush2.msra.mxu0 %v2317
    %2604 = vmatprep.subr.mxu0 %v2314
    %2605 = vmatpush2.msra.mxu0 %v2313
    %2606 = vmatprep.subr.mxu0 %v2310
    %2607 = vmatpush2.msra.mxu0 %v2309
    %2608 = vmatprep.subr.mxu0 %v2306
    %2609 = vmatpush2.msra.mxu0 %v2305
    %2610 = vmatprep.subr.mxu0 %v2302
    %2611 = vmatpush2.msra.mxu0 %v2301
    %2612 = vmatprep.subr.mxu0 %v2298
    %2613 = vmatpush2.msra.mxu0 %v2297
    %2614 = vmatprep.subr.mxu0 %v2294
    %2615 = vmatpush2.msra.mxu0 %v2293
    %2616 = vmatprep.subr.mxu0 %v2290
    %2617 = vmatpush2.msra.mxu0 %v2289
    %2618 = vmatprep.subr.mxu0 %v2286
    %2619 = vmatpush2.msra.mxu0 %v2285
    %2620 = vmatprep.subr.mxu0 %v2282
    %2621 = vmatpush2.msra.mxu0 %v2281
    %2622 = vmatprep.subr.mxu0 %v2278
    %2623 = vmatpush2.msra.mxu0 %v2277
    %2624 = vmatprep.mubr.f32.mxu0 %v2342
    %2625 = vmatmul.mubr.f32.gmra.mxu0 %v2341
    %v2626 = vpop.f32.mrf.mxu0
    %v2627 = vadd.f32 %v2556, %v2626
    %v2628 = vpop.f32.mrf.mxu0
    %v2629 = vadd.f32 %v2558, %v2628
    %2630 = vdwg.mxu0
    %2631 = vmatprep.subr.mxu0 %v1888
    %2632 = vmatpush1.msra.mxu0 %v1887
    %2633 = vmatprep.subr.mxu0 %v1884
    %2634 = vmatpush1.msra.mxu0 %v1883
    %2635 = vmatprep.subr.mxu0 %v1880
    %2636 = vmatpush1.msra.mxu0 %v1879
    %2637 = vmatprep.subr.mxu0 %v1876
    %2638 = vmatpush1.msra.mxu0 %v1875
    %2639 = vmatprep.subr.mxu0 %v1872
    %2640 = vmatpush1.msra.mxu0 %v1871
    %2641 = vmatprep.subr.mxu0 %v1868
    %2642 = vmatpush1.msra.mxu0 %v1867
    %2643 = vmatprep.subr.mxu0 %v1864
    %2644 = vmatpush1.msra.mxu0 %v1863
    %2645 = vmatprep.subr.mxu0 %v1860
    %2646 = vmatpush1.msra.mxu0 %v1859
    %2647 = vmatprep.subr.mxu0 %v1856
    %2648 = vmatpush1.msra.mxu0 %v1855
    %2649 = vmatprep.subr.mxu0 %v1852
    %2650 = vmatpush1.msra.mxu0 %v1851
    %2651 = vmatprep.subr.mxu0 %v1848
    %2652 = vmatpush1.msra.mxu0 %v1847
    %2653 = vmatprep.subr.mxu0 %v1844
    %2654 = vmatpush1.msra.mxu0 %v1843
    %2655 = vmatprep.subr.mxu0 %v1840
    %2656 = vmatpush1.msra.mxu0 %v1839
    %2657 = vmatprep.subr.mxu0 %v1836
    %2658 = vmatpush1.msra.mxu0 %v1835
    %2659 = vmatprep.subr.mxu0 %v1832
    %2660 = vmatpush1.msra.mxu0 %v1831
    %2661 = vmatprep.subr.mxu0 %v1828
    %2662 = vmatpush1.msra.mxu0 %v1827
    %2663 = vmatprep.subr.mxu0 %v1952
    %2664 = vmatpush2.msra.mxu0 %v1951
    %2665 = vmatprep.subr.mxu0 %v1948
    %2666 = vmatpush2.msra.mxu0 %v1947
    %2667 = vmatprep.subr.mxu0 %v1944
    %2668 = vmatpush2.msra.mxu0 %v1943
    %2669 = vmatprep.subr.mxu0 %v1940
    %2670 = vmatpush2.msra.mxu0 %v1939
    %2671 = vmatprep.subr.mxu0 %v1936
    %2672 = vmatpush2.msra.mxu0 %v1935
    %2673 = vmatprep.subr.mxu0 %v1932
    %2674 = vmatpush2.msra.mxu0 %v1931
    %2675 = vmatprep.subr.mxu0 %v1928
    %2676 = vmatpush2.msra.mxu0 %v1927
    %2677 = vmatprep.subr.mxu0 %v1924
    %2678 = vmatpush2.msra.mxu0 %v1923
    %2679 = vmatprep.subr.mxu0 %v1920
    %2680 = vmatpush2.msra.mxu0 %v1919
    %2681 = vmatprep.subr.mxu0 %v1916
    %2682 = vmatpush2.msra.mxu0 %v1915
    %2683 = vmatprep.subr.mxu0 %v1912
    %2684 = vmatpush2.msra.mxu0 %v1911
    %2685 = vmatprep.subr.mxu0 %v1908
    %2686 = vmatpush2.msra.mxu0 %v1907
    %2687 = vmatprep.subr.mxu0 %v1904
    %2688 = vmatpush2.msra.mxu0 %v1903
    %2689 = vmatprep.subr.mxu0 %v1900
    %2690 = vmatpush2.msra.mxu0 %v1899
    %2691 = vmatprep.subr.mxu0 %v1896
    %2692 = vmatpush2.msra.mxu0 %v1895
    %2693 = vmatprep.subr.mxu0 %v1892
    %2694 = vmatpush2.msra.mxu0 %v1891
    %2695 = vmatprep.mubr.f32.mxu0 %v1801
    %2696 = vmatmul.mubr.f32.gmra.mxu0 %v1800
    %v2697 = vpop.f32.mrf.mxu0
    %v2698 = vadd.f32 %v2485, %v2697
    %v2699 = vpop.f32.mrf.mxu0
    %v2700 = vadd.f32 %v2487, %v2699
    %2701 = vdwg.mxu0
    %2702 = vmatprep.subr.mxu0 %v2016
    %2703 = vmatpush1.msra.mxu0 %v2015
    %2704 = vmatprep.subr.mxu0 %v2012
    %2705 = vmatpush1.msra.mxu0 %v2011
    %2706 = vmatprep.subr.mxu0 %v2008
    %2707 = vmatpush1.msra.mxu0 %v2007
    %2708 = vmatprep.subr.mxu0 %v2004
    %2709 = vmatpush1.msra.mxu0 %v2003
    %2710 = vmatprep.subr.mxu0 %v2000
    %2711 = vmatpush1.msra.mxu0 %v1999
    %2712 = vmatprep.subr.mxu0 %v1996
    %2713 = vmatpush1.msra.mxu0 %v1995
    %2714 = vmatprep.subr.mxu0 %v1992
    %2715 = vmatpush1.msra.mxu0 %v1991
    %2716 = vmatprep.subr.mxu0 %v1988
    %2717 = vmatpush1.msra.mxu0 %v1987
    %2718 = vmatprep.subr.mxu0 %v1984
    %2719 = vmatpush1.msra.mxu0 %v1983
    %2720 = vmatprep.subr.mxu0 %v1980
    %2721 = vmatpush1.msra.mxu0 %v1979
    %2722 = vmatprep.subr.mxu0 %v1976
    %2723 = vmatpush1.msra.mxu0 %v1975
    %2724 = vmatprep.subr.mxu0 %v1972
    %2725 = vmatpush1.msra.mxu0 %v1971
    %2726 = vmatprep.subr.mxu0 %v1968
    %2727 = vmatpush1.msra.mxu0 %v1967
    %2728 = vmatprep.subr.mxu0 %v1964
    %2729 = vmatpush1.msra.mxu0 %v1963
    %2730 = vmatprep.subr.mxu0 %v1960
    %2731 = vmatpush1.msra.mxu0 %v1959
    %2732 = vmatprep.subr.mxu0 %v1956
    %2733 = vmatpush1.msra.mxu0 %v1955
    %2734 = vmatprep.subr.mxu0 %v2080
    %2735 = vmatpush2.msra.mxu0 %v2079
    %2736 = vmatprep.subr.mxu0 %v2076
    %2737 = vmatpush2.msra.mxu0 %v2075
    %2738 = vmatprep.subr.mxu0 %v2072
    %2739 = vmatpush2.msra.mxu0 %v2071
    %2740 = vmatprep.subr.mxu0 %v2068
    %2741 = vmatpush2.msra.mxu0 %v2067
    %2742 = vmatprep.subr.mxu0 %v2064
    %2743 = vmatpush2.msra.mxu0 %v2063
    %2744 = vmatprep.subr.mxu0 %v2060
    %2745 = vmatpush2.msra.mxu0 %v2059
    %2746 = vmatprep.subr.mxu0 %v2056
    %2747 = vmatpush2.msra.mxu0 %v2055
    %2748 = vmatprep.subr.mxu0 %v2052
    %2749 = vmatpush2.msra.mxu0 %v2051
    %2750 = vmatprep.subr.mxu0 %v2048
    %2751 = vmatpush2.msra.mxu0 %v2047
    %2752 = vmatprep.subr.mxu0 %v2044
    %2753 = vmatpush2.msra.mxu0 %v2043
    %2754 = vmatprep.subr.mxu0 %v2040
    %2755 = vmatpush2.msra.mxu0 %v2039
    %2756 = vmatprep.subr.mxu0 %v2036
    %2757 = vmatpush2.msra.mxu0 %v2035
    %2758 = vmatprep.subr.mxu0 %v2032
    %2759 = vmatpush2.msra.mxu0 %v2031
    %2760 = vmatprep.subr.mxu0 %v2028
    %2761 = vmatpush2.msra.mxu0 %v2027
    %2762 = vmatprep.subr.mxu0 %v2024
    %2763 = vmatpush2.msra.mxu0 %v2023
    %2764 = vmatprep.subr.mxu0 %v2020
    %2765 = vmatpush2.msra.mxu0 %v2019
    %2766 = vmatprep.mubr.f32.mxu0 %v1803
    %2767 = vmatmul.mubr.f32.gmra.mxu0 %v1802
    %v2768 = vpop.f32.mrf.mxu0
    %v2769 = vadd.f32 %v2698, %v2768
    %v2770 = vpop.f32.mrf.mxu0
    %v2771 = vadd.f32 %v2700, %v2770
    %2772 = vdwg.mxu0
    %2773 = vmatprep.subr.mxu0 %v1890
    %2774 = vmatpush1.msra.mxu0 %v1889
    %2775 = vmatprep.subr.mxu0 %v1886
    %2776 = vmatpush1.msra.mxu0 %v1885
    %2777 = vmatprep.subr.mxu0 %v1882
    %2778 = vmatpush1.msra.mxu0 %v1881
    %2779 = vmatprep.subr.mxu0 %v1878
    %2780 = vmatpush1.msra.mxu0 %v1877
    %2781 = vmatprep.subr.mxu0 %v1874
    %2782 = vmatpush1.msra.mxu0 %v1873
    %2783 = vmatprep.subr.mxu0 %v1870
    %2784 = vmatpush1.msra.mxu0 %v1869
    %2785 = vmatprep.subr.mxu0 %v1866
    %2786 = vmatpush1.msra.mxu0 %v1865
    %2787 = vmatprep.subr.mxu0 %v1862
    %2788 = vmatpush1.msra.mxu0 %v1861
    %2789 = vmatprep.subr.mxu0 %v1858
    %2790 = vmatpush1.msra.mxu0 %v1857
    %2791 = vmatprep.subr.mxu0 %v1854
    %2792 = vmatpush1.msra.mxu0 %v1853
    %2793 = vmatprep.subr.mxu0 %v1850
    %2794 = vmatpush1.msra.mxu0 %v1849
    %2795 = vmatprep.subr.mxu0 %v1846
    %2796 = vmatpush1.msra.mxu0 %v1845
    %2797 = vmatprep.subr.mxu0 %v1842
    %2798 = vmatpush1.msra.mxu0 %v1841
    %2799 = vmatprep.subr.mxu0 %v1838
    %2800 = vmatpush1.msra.mxu0 %v1837
    %2801 = vmatprep.subr.mxu0 %v1834
    %2802 = vmatpush1.msra.mxu0 %v1833
    %2803 = vmatprep.subr.mxu0 %v1830
    %2804 = vmatpush1.msra.mxu0 %v1829
    %2805 = vmatprep.subr.mxu0 %v1954
    %2806 = vmatpush2.msra.mxu0 %v1953
    %2807 = vmatprep.subr.mxu0 %v1950
    %2808 = vmatpush2.msra.mxu0 %v1949
    %2809 = vmatprep.subr.mxu0 %v1946
    %2810 = vmatpush2.msra.mxu0 %v1945
    %2811 = vmatprep.subr.mxu0 %v1942
    %2812 = vmatpush2.msra.mxu0 %v1941
    %2813 = vmatprep.subr.mxu0 %v1938
    %2814 = vmatpush2.msra.mxu0 %v1937
    %2815 = vmatprep.subr.mxu0 %v1934
    %2816 = vmatpush2.msra.mxu0 %v1933
    %2817 = vmatprep.subr.mxu0 %v1930
    %2818 = vmatpush2.msra.mxu0 %v1929
    %2819 = vmatprep.subr.mxu0 %v1926
    %2820 = vmatpush2.msra.mxu0 %v1925
    %2821 = vmatprep.subr.mxu0 %v1922
    %2822 = vmatpush2.msra.mxu0 %v1921
    %2823 = vmatprep.subr.mxu0 %v1918
    %2824 = vmatpush2.msra.mxu0 %v1917
    %2825 = vmatprep.subr.mxu0 %v1914
    %2826 = vmatpush2.msra.mxu0 %v1913
    %2827 = vmatprep.subr.mxu0 %v1910
    %2828 = vmatpush2.msra.mxu0 %v1909
    %2829 = vmatprep.subr.mxu0 %v1906
    %2830 = vmatpush2.msra.mxu0 %v1905
    %2831 = vmatprep.subr.mxu0 %v1902
    %2832 = vmatpush2.msra.mxu0 %v1901
    %2833 = vmatprep.subr.mxu0 %v1898
    %2834 = vmatpush2.msra.mxu0 %v1897
    %2835 = vmatprep.subr.mxu0 %v1894
    %2836 = vmatpush2.msra.mxu0 %v1893
    %2837 = vmatprep.mubr.f32.mxu0 %v1801
    %2838 = vmatmul.mubr.f32.gmra.mxu0 %v1800
    %v2839 = vpop.f32.mrf.mxu0
    %v2840 = vadd.f32 %v2627, %v2839
    %v2841 = vpop.f32.mrf.mxu0
    %v2842 = vadd.f32 %v2629, %v2841
    %2843 = vdwg.mxu0
    %2844 = vmatprep.subr.mxu0 %v2018
    %2845 = vmatpush1.msra.mxu0 %v2017
    %2846 = vmatprep.subr.mxu0 %v2014
    %2847 = vmatpush1.msra.mxu0 %v2013
    %2848 = vmatprep.subr.mxu0 %v2010
    %2849 = vmatpush1.msra.mxu0 %v2009
    %2850 = vmatprep.subr.mxu0 %v2006
    %2851 = vmatpush1.msra.mxu0 %v2005
    %2852 = vmatprep.subr.mxu0 %v2002
    %2853 = vmatpush1.msra.mxu0 %v2001
    %2854 = vmatprep.subr.mxu0 %v1998
    %2855 = vmatpush1.msra.mxu0 %v1997
    %2856 = vmatprep.subr.mxu0 %v1994
    %2857 = vmatpush1.msra.mxu0 %v1993
    %2858 = vmatprep.subr.mxu0 %v1990
    %2859 = vmatpush1.msra.mxu0 %v1989
    %2860 = vmatprep.subr.mxu0 %v1986
    %2861 = vmatpush1.msra.mxu0 %v1985
    %2862 = vmatprep.subr.mxu0 %v1982
    %2863 = vmatpush1.msra.mxu0 %v1981
    %2864 = vmatprep.subr.mxu0 %v1978
    %2865 = vmatpush1.msra.mxu0 %v1977
    %2866 = vmatprep.subr.mxu0 %v1974
    %2867 = vmatpush1.msra.mxu0 %v1973
    %2868 = vmatprep.subr.mxu0 %v1970
    %2869 = vmatpush1.msra.mxu0 %v1969
    %2870 = vmatprep.subr.mxu0 %v1966
    %2871 = vmatpush1.msra.mxu0 %v1965
    %2872 = vmatprep.subr.mxu0 %v1962
    %2873 = vmatpush1.msra.mxu0 %v1961
    %2874 = vmatprep.subr.mxu0 %v1958
    %2875 = vmatpush1.msra.mxu0 %v1957
    %2876 = vmatprep.subr.mxu0 %v2082
    %2877 = vmatpush2.msra.mxu0 %v2081
    %2878 = vmatprep.subr.mxu0 %v2078
    %2879 = vmatpush2.msra.mxu0 %v2077
    %2880 = vmatprep.subr.mxu0 %v2074
    %2881 = vmatpush2.msra.mxu0 %v2073
    %2882 = vmatprep.subr.mxu0 %v2070
    %2883 = vmatpush2.msra.mxu0 %v2069
    %2884 = vmatprep.subr.mxu0 %v2066
    %2885 = vmatpush2.msra.mxu0 %v2065
    %2886 = vmatprep.subr.mxu0 %v2062
    %2887 = vmatpush2.msra.mxu0 %v2061
    %2888 = vmatprep.subr.mxu0 %v2058
    %2889 = vmatpush2.msra.mxu0 %v2057
    %2890 = vmatprep.subr.mxu0 %v2054
    %2891 = vmatpush2.msra.mxu0 %v2053
    %2892 = vmatprep.subr.mxu0 %v2050
    %2893 = vmatpush2.msra.mxu0 %v2049
    %2894 = vmatprep.subr.mxu0 %v2046
    %2895 = vmatpush2.msra.mxu0 %v2045
    %2896 = vmatprep.subr.mxu0 %v2042
    %2897 = vmatpush2.msra.mxu0 %v2041
    %2898 = vmatprep.subr.mxu0 %v2038
    %2899 = vmatpush2.msra.mxu0 %v2037
    %2900 = vmatprep.subr.mxu0 %v2034
    %2901 = vmatpush2.msra.mxu0 %v2033
    %2902 = vmatprep.subr.mxu0 %v2030
    %2903 = vmatpush2.msra.mxu0 %v2029
    %2904 = vmatprep.subr.mxu0 %v2026
    %2905 = vmatpush2.msra.mxu0 %v2025
    %2906 = vmatprep.subr.mxu0 %v2022
    %2907 = vmatpush2.msra.mxu0 %v2021
    %2908 = vmatprep.mubr.f32.mxu0 %v1803
    %2909 = vmatmul.mubr.f32.gmra.mxu0 %v1802
    %v2910 = vpop.f32.mrf.mxu0
    %v2911 = vadd.f32 %v2840, %v2910
    %v2912 = vpop.f32.mrf.mxu0
    %v2913 = vadd.f32 %v2842, %v2912
    %2914 = vdwg.mxu0
    %v2915 = vld [vmem:[%s8] sm:$0xf]
    %v2917 = vlaneseq
    %v2918 = vshrl.u32 %v2917, 7
    %v2919 = vsub.s32 0, %v2918
    %v2920 = vrot.slane %v2915, %v2919
    %v2921 = vlaneseq
    %v2922 = vshrl.u32 %v2921, 7
    %v2923 = vsub.s32 1, %v2922
    %v2924 = vrot.slane %v2915, %v2923
    %v2925 = vlaneseq
    %v2926 = vshrl.u32 %v2925, 7
    %v2927 = vsub.s32 2, %v2926
    %v2928 = vrot.slane %v2915, %v2927
    %v2929 = vlaneseq
    %v2930 = vshrl.u32 %v2929, 7
    %v2931 = vsub.s32 3, %v2930
    %v2932 = vrot.slane %v2915, %v2931
    %v2937 = vadd.f32 %v2769, %v2920
    %v2938 = vadd.f32 %v2771, %v2924
    %v2939 = vadd.f32 %v2911, %v2928
    %v2940 = vadd.f32 %v2913, %v2932
    %v2941 = vmax.f32 %v2937, 0.0
    %v2942 = vmax.f32 %v2938, 0.0
    %v2943 = vmax.f32 %v2939, 0.0
    %v2944 = vmax.f32 %v2940, 0.0
    %v2945 = vld [vmem:[%s9] sm:$0xff]
    %v2946 = vld [vmem:[%s9 + $0x8] sm:$0xff]
    %v2947 = vld [vmem:[%s9 + $0x10] sm:$0xff]
    %v2948 = vld [vmem:[%s9 + $0x18] sm:$0xff]
    %v2949 = vld [vmem:[%s9 + $0x20] sm:$0xff]
    %v2950 = vld [vmem:[%s9 + $0x28] sm:$0xff]
    %v2951 = vld [vmem:[%s9 + $0x30] sm:$0xff]
    %v2952 = vld [vmem:[%s9 + $0x38] sm:$0xff]
    %v2953 = vld [vmem:[%s9 + $0x40] sm:$0xff]
    %v2954 = vld [vmem:[%s9 + $0x48] sm:$0xff]
    %v2955 = vld [vmem:[%s9 + $0x50] sm:$0xff]
    %v2956 = vld [vmem:[%s9 + $0x58] sm:$0xff]
    %v2957 = vld [vmem:[%s9 + $0x60] sm:$0xff]
    %v2958 = vld [vmem:[%s9 + $0x68] sm:$0xff]
    %v2959 = vld [vmem:[%s9 + $0x70] sm:$0xff]
    %v2960 = vld [vmem:[%s9 + $0x78] sm:$0xff]
    %v2961 = vld [vmem:[%s9 + $0x80] sm:$0xff]
    %v2962 = vld [vmem:[%s9 + $0x88] sm:$0xff]
    %v2963 = vld [vmem:[%s9 + $0x90] sm:$0xff]
    %v2964 = vld [vmem:[%s9 + $0x98] sm:$0xff]
    %v2965 = vld [vmem:[%s9 + $0xa0] sm:$0xff]
    %v2966 = vld [vmem:[%s9 + $0xa8] sm:$0xff]
    %v2967 = vld [vmem:[%s9 + $0xb0] sm:$0xff]
    %v2968 = vld [vmem:[%s9 + $0xb8] sm:$0xff]
    %v2969 = vld [vmem:[%s9 + $0xc0] sm:$0xff]
    %v2970 = vld [vmem:[%s9 + $0xc8] sm:$0xff]
    %v2971 = vld [vmem:[%s9 + $0xd0] sm:$0xff]
    %v2972 = vld [vmem:[%s9 + $0xd8] sm:$0xff]
    %v2973 = vld [vmem:[%s9 + $0xe0] sm:$0xff]
    %v2974 = vld [vmem:[%s9 + $0xe8] sm:$0xff]
    %v2975 = vld [vmem:[%s9 + $0xf0] sm:$0xff]
    %v2976 = vld [vmem:[%s9 + $0xf8] sm:$0xff]
    %v2977 = vld [vmem:[%s9 + $0x100] sm:$0xff]
    %v2978 = vld [vmem:[%s9 + $0x108] sm:$0xff]
    %v2979 = vld [vmem:[%s9 + $0x110] sm:$0xff]
    %v2980 = vld [vmem:[%s9 + $0x118] sm:$0xff]
    %v2981 = vld [vmem:[%s9 + $0x120] sm:$0xff]
    %v2982 = vld [vmem:[%s9 + $0x128] sm:$0xff]
    %v2983 = vld [vmem:[%s9 + $0x130] sm:$0xff]
    %v2984 = vld [vmem:[%s9 + $0x138] sm:$0xff]
    %v2985 = vld [vmem:[%s9 + $0x140] sm:$0xff]
    %v2986 = vld [vmem:[%s9 + $0x148] sm:$0xff]
    %v2987 = vld [vmem:[%s9 + $0x150] sm:$0xff]
    %v2988 = vld [vmem:[%s9 + $0x158] sm:$0xff]
    %v2989 = vld [vmem:[%s9 + $0x160] sm:$0xff]
    %v2990 = vld [vmem:[%s9 + $0x168] sm:$0xff]
    %v2991 = vld [vmem:[%s9 + $0x170] sm:$0xff]
    %v2992 = vld [vmem:[%s9 + $0x178] sm:$0xff]
    %v2993 = vld [vmem:[%s9 + $0x180] sm:$0xff]
    %v2994 = vld [vmem:[%s9 + $0x188] sm:$0xff]
    %v2995 = vld [vmem:[%s9 + $0x190] sm:$0xff]
    %v2996 = vld [vmem:[%s9 + $0x198] sm:$0xff]
    %v2997 = vld [vmem:[%s9 + $0x1a0] sm:$0xff]
    %v2998 = vld [vmem:[%s9 + $0x1a8] sm:$0xff]
    %v2999 = vld [vmem:[%s9 + $0x1b0] sm:$0xff]
    %v3000 = vld [vmem:[%s9 + $0x1b8] sm:$0xff]
    %v3001 = vld [vmem:[%s9 + $0x1c0] sm:$0xff]
    %v3002 = vld [vmem:[%s9 + $0x1c8] sm:$0xff]
    %v3003 = vld [vmem:[%s9 + $0x1d0] sm:$0xff]
    %v3004 = vld [vmem:[%s9 + $0x1d8] sm:$0xff]
    %v3005 = vld [vmem:[%s9 + $0x1e0] sm:$0xff]
    %v3006 = vld [vmem:[%s9 + $0x1e8] sm:$0xff]
    %v3007 = vld [vmem:[%s9 + $0x1f0] sm:$0xff]
    %v3008 = vld [vmem:[%s9 + $0x1f8] sm:$0xff]
    %v3009 = vld [vmem:[%s10] sm:$0x1]
    %v3011 = vlaneseq
    %v3012 = vshrl.u32 %v3011, 7
    %v3013 = vsub.s32 0, %v3012
    %v3014 = vrot.slane %v3009, %v3013
    %3016 = vmatprep.subr.mxu0 0.0
    %3017 = vmatpush1.msra.mxu0 %v2960
    %3018 = vmatprep.subr.mxu0 0.0
    %3019 = vmatpush1.msra.mxu0 %v2959
    %3020 = vmatprep.subr.mxu0 0.0
    %3021 = vmatpush1.msra.mxu0 %v2958
    %3022 = vmatprep.subr.mxu0 0.0
    %3023 = vmatpush1.msra.mxu0 %v2957
    %3024 = vmatprep.subr.mxu0 0.0
    %3025 = vmatpush1.msra.mxu0 %v2956
    %3026 = vmatprep.subr.mxu0 0.0
    %3027 = vmatpush1.msra.mxu0 %v2955
    %3028 = vmatprep.subr.mxu0 0.0
    %3029 = vmatpush1.msra.mxu0 %v2954
    %3030 = vmatprep.subr.mxu0 0.0
    %3031 = vmatpush1.msra.mxu0 %v2953
    %3032 = vmatprep.subr.mxu0 0.0
    %3033 = vmatpush1.msra.mxu0 %v2952
    %3034 = vmatprep.subr.mxu0 0.0
    %3035 = vmatpush1.msra.mxu0 %v2951
    %3036 = vmatprep.subr.mxu0 0.0
    %3037 = vmatpush1.msra.mxu0 %v2950
    %3038 = vmatprep.subr.mxu0 0.0
    %3039 = vmatpush1.msra.mxu0 %v2949
    %3040 = vmatprep.subr.mxu0 0.0
    %3041 = vmatpush1.msra.mxu0 %v2948
    %3042 = vmatprep.subr.mxu0 0.0
    %3043 = vmatpush1.msra.mxu0 %v2947
    %3044 = vmatprep.subr.mxu0 0.0
    %3045 = vmatpush1.msra.mxu0 %v2946
    %3046 = vmatprep.subr.mxu0 0.0
    %3047 = vmatpush1.msra.mxu0 %v2945
    %3048 = vmatprep.subr.mxu0 0.0
    %3049 = vmatpush2.msra.mxu0 %v2976
    %3050 = vmatprep.subr.mxu0 0.0
    %3051 = vmatpush2.msra.mxu0 %v2975
    %3052 = vmatprep.subr.mxu0 0.0
    %3053 = vmatpush2.msra.mxu0 %v2974
    %3054 = vmatprep.subr.mxu0 0.0
    %3055 = vmatpush2.msra.mxu0 %v2973
    %3056 = vmatprep.subr.mxu0 0.0
    %3057 = vmatpush2.msra.mxu0 %v2972
    %3058 = vmatprep.subr.mxu0 0.0
    %3059 = vmatpush2.msra.mxu0 %v2971
    %3060 = vmatprep.subr.mxu0 0.0
    %3061 = vmatpush2.msra.mxu0 %v2970
    %3062 = vmatprep.subr.mxu0 0.0
    %3063 = vmatpush2.msra.mxu0 %v2969
    %3064 = vmatprep.subr.mxu0 0.0
    %3065 = vmatpush2.msra.mxu0 %v2968
    %3066 = vmatprep.subr.mxu0 0.0
    %3067 = vmatpush2.msra.mxu0 %v2967
    %3068 = vmatprep.subr.mxu0 0.0
    %3069 = vmatpush2.msra.mxu0 %v2966
    %3070 = vmatprep.subr.mxu0 0.0
    %3071 = vmatpush2.msra.mxu0 %v2965
    %3072 = vmatprep.subr.mxu0 0.0
    %3073 = vmatpush2.msra.mxu0 %v2964
    %3074 = vmatprep.subr.mxu0 0.0
    %3075 = vmatpush2.msra.mxu0 %v2963
    %3076 = vmatprep.subr.mxu0 0.0
    %3077 = vmatpush2.msra.mxu0 %v2962
    %3078 = vmatprep.subr.mxu0 0.0
    %3079 = vmatpush2.msra.mxu0 %v2961
    %3080 = vmatprep.mubr.f32.mxu0 %v2942
    %3081 = vmatmul.mubr.f32.gmra.mxu0 %v2941
    %v3082 = vpop.f32.mrf.mxu0
    %v3083 = vadd.f32 %v3014, %v3082
    %v3084 = vpop.f32.mrf.mxu0
    %3085 = vdwg.mxu0
    %3086 = vmatprep.subr.mxu0 0.0
    %3087 = vmatpush1.msra.mxu0 %v2992
    %3088 = vmatprep.subr.mxu0 0.0
    %3089 = vmatpush1.msra.mxu0 %v2991
    %3090 = vmatprep.subr.mxu0 0.0
    %3091 = vmatpush1.msra.mxu0 %v2990
    %3092 = vmatprep.subr.mxu0 0.0
    %3093 = vmatpush1.msra.mxu0 %v2989
    %3094 = vmatprep.subr.mxu0 0.0
    %3095 = vmatpush1.msra.mxu0 %v2988
    %3096 = vmatprep.subr.mxu0 0.0
    %3097 = vmatpush1.msra.mxu0 %v2987
    %3098 = vmatprep.subr.mxu0 0.0
    %3099 = vmatpush1.msra.mxu0 %v2986
    %3100 = vmatprep.subr.mxu0 0.0
    %3101 = vmatpush1.msra.mxu0 %v2985
    %3102 = vmatprep.subr.mxu0 0.0
    %3103 = vmatpush1.msra.mxu0 %v2984
    %3104 = vmatprep.subr.mxu0 0.0
    %3105 = vmatpush1.msra.mxu0 %v2983
    %3106 = vmatprep.subr.mxu0 0.0
    %3107 = vmatpush1.msra.mxu0 %v2982
    %3108 = vmatprep.subr.mxu0 0.0
    %3109 = vmatpush1.msra.mxu0 %v2981
    %3110 = vmatprep.subr.mxu0 0.0
    %3111 = vmatpush1.msra.mxu0 %v2980
    %3112 = vmatprep.subr.mxu0 0.0
    %3113 = vmatpush1.msra.mxu0 %v2979
    %3114 = vmatprep.subr.mxu0 0.0
    %3115 = vmatpush1.msra.mxu0 %v2978
    %3116 = vmatprep.subr.mxu0 0.0
    %3117 = vmatpush1.msra.mxu0 %v2977
    %3118 = vmatprep.subr.mxu0 0.0
    %3119 = vmatpush2.msra.mxu0 %v3008
    %3120 = vmatprep.subr.mxu0 0.0
    %3121 = vmatpush2.msra.mxu0 %v3007
    %3122 = vmatprep.subr.mxu0 0.0
    %3123 = vmatpush2.msra.mxu0 %v3006
    %3124 = vmatprep.subr.mxu0 0.0
    %3125 = vmatpush2.msra.mxu0 %v3005
    %3126 = vmatprep.subr.mxu0 0.0
    %3127 = vmatpush2.msra.mxu0 %v3004
    %3128 = vmatprep.subr.mxu0 0.0
    %3129 = vmatpush2.msra.mxu0 %v3003
    %3130 = vmatprep.subr.mxu0 0.0
    %3131 = vmatpush2.msra.mxu0 %v3002
    %3132 = vmatprep.subr.mxu0 0.0
    %3133 = vmatpush2.msra.mxu0 %v3001
    %3134 = vmatprep.subr.mxu0 0.0
    %3135 = vmatpush2.msra.mxu0 %v3000
    %3136 = vmatprep.subr.mxu0 0.0
    %3137 = vmatpush2.msra.mxu0 %v2999
    %3138 = vmatprep.subr.mxu0 0.0
    %3139 = vmatpush2.msra.mxu0 %v2998
    %3140 = vmatprep.subr.mxu0 0.0
    %3141 = vmatpush2.msra.mxu0 %v2997
    %3142 = vmatprep.subr.mxu0 0.0
    %3143 = vmatpush2.msra.mxu0 %v2996
    %3144 = vmatprep.subr.mxu0 0.0
    %3145 = vmatpush2.msra.mxu0 %v2995
    %3146 = vmatprep.subr.mxu0 0.0
    %3147 = vmatpush2.msra.mxu0 %v2994
    %3148 = vmatprep.subr.mxu0 0.0
    %3149 = vmatpush2.msra.mxu0 %v2993
    %3150 = vmatprep.mubr.f32.mxu0 %v2944
    %3151 = vmatmul.mubr.f32.gmra.mxu0 %v2943
    %v3152 = vpop.f32.mrf.mxu0
    %v3153 = vadd.f32 %v3083, %v3152
    %v3154 = vpop.f32.mrf.mxu0
    %3155 = vdwg.mxu0
    %vm3156 = vcmask 41984
    %v3157 = vsel %vm3156, %v3153, -inf
    %3158 = vmax.xlane.f32.xlu0 %v3157
    %v3159 = vpop.xlane.xlu0 %3158
    %v3160 = vsub.f32 %v3153, %v3159
    %v3161 = vmul.f32 %v3160, 1.442695
    %v3162 = vpow.pop %v3161
    %v3163 = vsel %vm3156, %v3162, 0.0
    %3164 = vadd.xlane.f32.xlu0 %v3163
    %v3165 = vpop.xlane.xlu0 %3164
    %v3166 = vrcp.pop %v3165
    %v3167 = vmul.f32 %v3162, %v3166
    %3168 = vst.msk [vmem:[#allocation6] sm:$0x3] %vm3156, %v3167
    %v3169 = vld [vmem:[%s1] sm:$0x3]
    %v3170 = vld [vmem:[%s11] sm:$0xff]
    %v3171 = vld [vmem:[%s11 + $0x8] sm:$0xff]
    %v3172 = vld [vmem:[%s11 + $0x10] sm:$0xff]
    %v3173 = vld [vmem:[%s11 + $0x18] sm:$0xff]
    %v3174 = vld [vmem:[%s11 + $0x20] sm:$0xff]
    %v3175 = vld [vmem:[%s11 + $0x28] sm:$0xff]
    %v3176 = vld [vmem:[%s11 + $0x30] sm:$0xff]
    %v3177 = vld [vmem:[%s11 + $0x38] sm:$0xff]
    %v3178 = vld [vmem:[%s11 + $0x40] sm:$0xff]
    %v3179 = vld [vmem:[%s11 + $0x48] sm:$0xff]
    %v3180 = vld [vmem:[%s11 + $0x50] sm:$0xff]
    %v3181 = vld [vmem:[%s11 + $0x58] sm:$0xff]
    %v3182 = vld [vmem:[%s11 + $0x60] sm:$0xff]
    %v3183 = vld [vmem:[%s11 + $0x68] sm:$0xff]
    %v3184 = vld [vmem:[%s11 + $0x70] sm:$0xff]
    %v3185 = vld [vmem:[%s11 + $0x78] sm:$0xff]
    %v3186 = vld [vmem:[%s11 + $0x80] sm:$0xff]
    %v3187 = vld [vmem:[%s11 + $0x88] sm:$0xff]
    %v3188 = vld [vmem:[%s11 + $0x90] sm:$0xff]
    %v3189 = vld [vmem:[%s11 + $0x98] sm:$0xff]
    %v3190 = vld [vmem:[%s11 + $0xa0] sm:$0xff]
    %v3191 = vld [vmem:[%s11 + $0xa8] sm:$0xff]
    %v3192 = vld [vmem:[%s11 + $0xb0] sm:$0xff]
    %v3193 = vld [vmem:[%s11 + $0xb8] sm:$0xff]
    %v3194 = vld [vmem:[%s11 + $0xc0] sm:$0xff]
    %v3195 = vld [vmem:[%s11 + $0xc8] sm:$0xff]
    %v3196 = vld [vmem:[%s11 + $0xd0] sm:$0xff]
    %v3197 = vld [vmem:[%s11 + $0xd8] sm:$0xff]
    %v3198 = vld [vmem:[%s11 + $0xe0] sm:$0xff]
    %v3199 = vld [vmem:[%s11 + $0xe8] sm:$0xff]
    %v3200 = vld [vmem:[%s11 + $0xf0] sm:$0xff]
    %v3201 = vld [vmem:[%s11 + $0xf8] sm:$0xff]
    %v3202 = vld [vmem:[%s11 + $0x100] sm:$0xff]
    %v3203 = vld [vmem:[%s11 + $0x108] sm:$0xff]
    %v3204 = vld [vmem:[%s11 + $0x110] sm:$0xff]
    %v3205 = vld [vmem:[%s11 + $0x118] sm:$0xff]
    %v3206 = vld [vmem:[%s11 + $0x120] sm:$0xff]
    %v3207 = vld [vmem:[%s11 + $0x128] sm:$0xff]
    %v3208 = vld [vmem:[%s11 + $0x130] sm:$0xff]
    %v3209 = vld [vmem:[%s11 + $0x138] sm:$0xff]
    %v3210 = vld [vmem:[%s11 + $0x140] sm:$0xff]
    %v3211 = vld [vmem:[%s11 + $0x148] sm:$0xff]
    %v3212 = vld [vmem:[%s11 + $0x150] sm:$0xff]
    %v3213 = vld [vmem:[%s11 + $0x158] sm:$0xff]
    %v3214 = vld [vmem:[%s11 + $0x160] sm:$0xff]
    %v3215 = vld [vmem:[%s11 + $0x168] sm:$0xff]
    %v3216 = vld [vmem:[%s11 + $0x170] sm:$0xff]
    %v3217 = vld [vmem:[%s11 + $0x178] sm:$0xff]
    %v3218 = vld [vmem:[%s11 + $0x180] sm:$0xff]
    %v3219 = vld [vmem:[%s11 + $0x188] sm:$0xff]
    %v3220 = vld [vmem:[%s11 + $0x190] sm:$0xff]
    %v3221 = vld [vmem:[%s11 + $0x198] sm:$0xff]
    %v3222 = vld [vmem:[%s11 + $0x1a0] sm:$0xff]
    %v3223 = vld [vmem:[%s11 + $0x1a8] sm:$0xff]
    %v3224 = vld [vmem:[%s11 + $0x1b0] sm:$0xff]
    %v3225 = vld [vmem:[%s11 + $0x1b8] sm:$0xff]
    %v3226 = vld [vmem:[%s11 + $0x1c0] sm:$0xff]
    %v3227 = vld [vmem:[%s11 + $0x1c8] sm:$0xff]
    %v3228 = vld [vmem:[%s11 + $0x1d0] sm:$0xff]
    %v3229 = vld [vmem:[%s11 + $0x1d8] sm:$0xff]
    %v3230 = vld [vmem:[%s11 + $0x1e0] sm:$0xff]
    %v3231 = vld [vmem:[%s11 + $0x1e8] sm:$0xff]
    %v3232 = vld [vmem:[%s11 + $0x1f0] sm:$0xff]
    %v3233 = vld [vmem:[%s11 + $0x1f8] sm:$0xff]
    %v3234 = vld [vmem:[%s11 + $0x200] sm:$0xff]
    %v3235 = vld [vmem:[%s11 + $0x208] sm:$0xff]
    %v3236 = vld [vmem:[%s11 + $0x210] sm:$0xff]
    %v3237 = vld [vmem:[%s11 + $0x218] sm:$0xff]
    %v3238 = vld [vmem:[%s11 + $0x220] sm:$0xff]
    %v3239 = vld [vmem:[%s11 + $0x228] sm:$0xff]
    %v3240 = vld [vmem:[%s11 + $0x230] sm:$0xff]
    %v3241 = vld [vmem:[%s11 + $0x238] sm:$0xff]
    %v3242 = vld [vmem:[%s11 + $0x240] sm:$0xff]
    %v3243 = vld [vmem:[%s11 + $0x248] sm:$0xff]
    %v3244 = vld [vmem:[%s11 + $0x250] sm:$0xff]
    %v3245 = vld [vmem:[%s11 + $0x258] sm:$0xff]
    %v3246 = vld [vmem:[%s11 + $0x260] sm:$0xff]
    %v3247 = vld [vmem:[%s11 + $0x268] sm:$0xff]
    %v3248 = vld [vmem:[%s11 + $0x270] sm:$0xff]
    %v3249 = vld [vmem:[%s11 + $0x278] sm:$0xff]
    %v3250 = vld [vmem:[%s11 + $0x280] sm:$0xff]
    %v3251 = vld [vmem:[%s11 + $0x288] sm:$0xff]
    %v3252 = vld [vmem:[%s11 + $0x290] sm:$0xff]
    %v3253 = vld [vmem:[%s11 + $0x298] sm:$0xff]
    %v3254 = vld [vmem:[%s11 + $0x2a0] sm:$0xff]
    %v3255 = vld [vmem:[%s11 + $0x2a8] sm:$0xff]
    %v3256 = vld [vmem:[%s11 + $0x2b0] sm:$0xff]
    %v3257 = vld [vmem:[%s11 + $0x2b8] sm:$0xff]
    %v3258 = vld [vmem:[%s11 + $0x2c0] sm:$0xff]
    %v3259 = vld [vmem:[%s11 + $0x2c8] sm:$0xff]
    %v3260 = vld [vmem:[%s11 + $0x2d0] sm:$0xff]
    %v3261 = vld [vmem:[%s11 + $0x2d8] sm:$0xff]
    %v3262 = vld [vmem:[%s11 + $0x2e0] sm:$0xff]
    %v3263 = vld [vmem:[%s11 + $0x2e8] sm:$0xff]
    %v3264 = vld [vmem:[%s11 + $0x2f0] sm:$0xff]
    %v3265 = vld [vmem:[%s11 + $0x2f8] sm:$0xff]
    %v3266 = vld [vmem:[%s11 + $0x300] sm:$0xff]
    %v3267 = vld [vmem:[%s11 + $0x308] sm:$0xff]
    %v3268 = vld [vmem:[%s11 + $0x310] sm:$0xff]
    %v3269 = vld [vmem:[%s11 + $0x318] sm:$0xff]
    %v3270 = vld [vmem:[%s11 + $0x320] sm:$0xff]
    %v3271 = vld [vmem:[%s11 + $0x328] sm:$0xff]
    %v3272 = vld [vmem:[%s11 + $0x330] sm:$0xff]
    %v3273 = vld [vmem:[%s11 + $0x338] sm:$0xff]
    %v3274 = vld [vmem:[%s11 + $0x340] sm:$0xff]
    %v3275 = vld [vmem:[%s11 + $0x348] sm:$0xff]
    %v3276 = vld [vmem:[%s11 + $0x350] sm:$0xff]
    %v3277 = vld [vmem:[%s11 + $0x358] sm:$0xff]
    %v3278 = vld [vmem:[%s11 + $0x360] sm:$0xff]
    %v3279 = vld [vmem:[%s11 + $0x368] sm:$0xff]
    %v3280 = vld [vmem:[%s11 + $0x370] sm:$0xff]
    %v3281 = vld [vmem:[%s11 + $0x378] sm:$0xff]
    %v3282 = vld [vmem:[%s11 + $0x380] sm:$0xff]
    %v3283 = vld [vmem:[%s11 + $0x388] sm:$0xff]
    %v3284 = vld [vmem:[%s11 + $0x390] sm:$0xff]
    %v3285 = vld [vmem:[%s11 + $0x398] sm:$0xff]
    %v3286 = vld [vmem:[%s11 + $0x3a0] sm:$0xff]
    %v3287 = vld [vmem:[%s11 + $0x3a8] sm:$0xff]
    %v3288 = vld [vmem:[%s11 + $0x3b0] sm:$0xff]
    %v3289 = vld [vmem:[%s11 + $0x3b8] sm:$0xff]
    %v3290 = vld [vmem:[%s11 + $0x3c0] sm:$0xff]
    %v3291 = vld [vmem:[%s11 + $0x3c8] sm:$0xff]
    %v3292 = vld [vmem:[%s11 + $0x3d0] sm:$0xff]
    %v3293 = vld [vmem:[%s11 + $0x3d8] sm:$0xff]
    %v3294 = vld [vmem:[%s11 + $0x3e0] sm:$0xff]
    %v3295 = vld [vmem:[%s11 + $0x3e8] sm:$0xff]
    %v3296 = vld [vmem:[%s11 + $0x3f0] sm:$0xff]
    %v3297 = vld [vmem:[%s11 + $0x3f8] sm:$0xff]
    %v3298 = vld [vmem:[%s11 + $0x400] sm:$0xff]
    %v3299 = vld [vmem:[%s11 + $0x408] sm:$0xff]
    %v3300 = vld [vmem:[%s11 + $0x410] sm:$0xff]
    %v3301 = vld [vmem:[%s11 + $0x418] sm:$0xff]
    %v3302 = vld [vmem:[%s11 + $0x420] sm:$0xff]
    %v3303 = vld [vmem:[%s11 + $0x428] sm:$0xff]
    %v3304 = vld [vmem:[%s11 + $0x430] sm:$0xff]
    %v3305 = vld [vmem:[%s11 + $0x438] sm:$0xff]
    %v3306 = vld [vmem:[%s11 + $0x440] sm:$0xff]
    %v3307 = vld [vmem:[%s11 + $0x448] sm:$0xff]
    %v3308 = vld [vmem:[%s11 + $0x450] sm:$0xff]
    %v3309 = vld [vmem:[%s11 + $0x458] sm:$0xff]
    %v3310 = vld [vmem:[%s11 + $0x460] sm:$0xff]
    %v3311 = vld [vmem:[%s11 + $0x468] sm:$0xff]
    %v3312 = vld [vmem:[%s11 + $0x470] sm:$0xff]
    %v3313 = vld [vmem:[%s11 + $0x478] sm:$0xff]
    %v3314 = vld [vmem:[%s11 + $0x480] sm:$0xff]
    %v3315 = vld [vmem:[%s11 + $0x488] sm:$0xff]
    %v3316 = vld [vmem:[%s11 + $0x490] sm:$0xff]
    %v3317 = vld [vmem:[%s11 + $0x498] sm:$0xff]
    %v3318 = vld [vmem:[%s11 + $0x4a0] sm:$0xff]
    %v3319 = vld [vmem:[%s11 + $0x4a8] sm:$0xff]
    %v3320 = vld [vmem:[%s11 + $0x4b0] sm:$0xff]
    %v3321 = vld [vmem:[%s11 + $0x4b8] sm:$0xff]
    %v3322 = vld [vmem:[%s11 + $0x4c0] sm:$0xff]
    %v3323 = vld [vmem:[%s11 + $0x4c8] sm:$0xff]
    %v3324 = vld [vmem:[%s11 + $0x4d0] sm:$0xff]
    %v3325 = vld [vmem:[%s11 + $0x4d8] sm:$0xff]
    %v3326 = vld [vmem:[%s11 + $0x4e0] sm:$0xff]
    %v3327 = vld [vmem:[%s11 + $0x4e8] sm:$0xff]
    %v3328 = vld [vmem:[%s11 + $0x4f0] sm:$0xff]
    %v3329 = vld [vmem:[%s11 + $0x4f8] sm:$0xff]
    %v3330 = vld [vmem:[%s11 + $0x500] sm:$0xff]
    %v3331 = vld [vmem:[%s11 + $0x508] sm:$0xff]
    %v3332 = vld [vmem:[%s11 + $0x510] sm:$0xff]
    %v3333 = vld [vmem:[%s11 + $0x518] sm:$0xff]
    %v3334 = vld [vmem:[%s11 + $0x520] sm:$0xff]
    %v3335 = vld [vmem:[%s11 + $0x528] sm:$0xff]
    %v3336 = vld [vmem:[%s11 + $0x530] sm:$0xff]
    %v3337 = vld [vmem:[%s11 + $0x538] sm:$0xff]
    %v3338 = vld [vmem:[%s11 + $0x540] sm:$0xff]
    %v3339 = vld [vmem:[%s11 + $0x548] sm:$0xff]
    %v3340 = vld [vmem:[%s11 + $0x550] sm:$0xff]
    %v3341 = vld [vmem:[%s11 + $0x558] sm:$0xff]
    %v3342 = vld [vmem:[%s11 + $0x560] sm:$0xff]
    %v3343 = vld [vmem:[%s11 + $0x568] sm:$0xff]
    %v3344 = vld [vmem:[%s11 + $0x570] sm:$0xff]
    %v3345 = vld [vmem:[%s11 + $0x578] sm:$0xff]
    %v3346 = vld [vmem:[%s11 + $0x580] sm:$0xff]
    %v3347 = vld [vmem:[%s11 + $0x588] sm:$0xff]
    %v3348 = vld [vmem:[%s11 + $0x590] sm:$0xff]
    %v3349 = vld [vmem:[%s11 + $0x598] sm:$0xff]
    %v3350 = vld [vmem:[%s11 + $0x5a0] sm:$0xff]
    %v3351 = vld [vmem:[%s11 + $0x5a8] sm:$0xff]
    %v3352 = vld [vmem:[%s11 + $0x5b0] sm:$0xff]
    %v3353 = vld [vmem:[%s11 + $0x5b8] sm:$0xff]
    %v3354 = vld [vmem:[%s11 + $0x5c0] sm:$0xff]
    %v3355 = vld [vmem:[%s11 + $0x5c8] sm:$0xff]
    %v3356 = vld [vmem:[%s11 + $0x5d0] sm:$0xff]
    %v3357 = vld [vmem:[%s11 + $0x5d8] sm:$0xff]
    %v3358 = vld [vmem:[%s11 + $0x5e0] sm:$0xff]
    %v3359 = vld [vmem:[%s11 + $0x5e8] sm:$0xff]
    %v3360 = vld [vmem:[%s11 + $0x5f0] sm:$0xff]
    %v3361 = vld [vmem:[%s11 + $0x5f8] sm:$0xff]
    %v3362 = vld [vmem:[%s11 + $0x600] sm:$0xff]
    %v3363 = vld [vmem:[%s11 + $0x608] sm:$0xff]
    %v3364 = vld [vmem:[%s11 + $0x610] sm:$0xff]
    %v3365 = vld [vmem:[%s11 + $0x618] sm:$0xff]
    %v3366 = vld [vmem:[%s11 + $0x620] sm:$0xff]
    %v3367 = vld [vmem:[%s11 + $0x628] sm:$0xff]
    %v3368 = vld [vmem:[%s11 + $0x630] sm:$0xff]
    %v3369 = vld [vmem:[%s11 + $0x638] sm:$0xff]
    %v3370 = vld [vmem:[%s11 + $0x640] sm:$0xff]
    %v3371 = vld [vmem:[%s11 + $0x648] sm:$0xff]
    %v3372 = vld [vmem:[%s11 + $0x650] sm:$0xff]
    %v3373 = vld [vmem:[%s11 + $0x658] sm:$0xff]
    %v3374 = vld [vmem:[%s11 + $0x660] sm:$0xff]
    %v3375 = vld [vmem:[%s11 + $0x668] sm:$0xff]
    %v3376 = vld [vmem:[%s11 + $0x670] sm:$0xff]
    %v3377 = vld [vmem:[%s11 + $0x678] sm:$0xff]
    %v3378 = vld [vmem:[%s11 + $0x680] sm:$0xff]
    %v3379 = vld [vmem:[%s11 + $0x688] sm:$0xff]
    %v3380 = vld [vmem:[%s11 + $0x690] sm:$0xff]
    %v3381 = vld [vmem:[%s11 + $0x698] sm:$0xff]
    %v3382 = vld [vmem:[%s11 + $0x6a0] sm:$0xff]
    %v3383 = vld [vmem:[%s11 + $0x6a8] sm:$0xff]
    %v3384 = vld [vmem:[%s11 + $0x6b0] sm:$0xff]
    %v3385 = vld [vmem:[%s11 + $0x6b8] sm:$0xff]
    %v3386 = vld [vmem:[%s11 + $0x6c0] sm:$0xff]
    %v3387 = vld [vmem:[%s11 + $0x6c8] sm:$0xff]
    %v3388 = vld [vmem:[%s11 + $0x6d0] sm:$0xff]
    %v3389 = vld [vmem:[%s11 + $0x6d8] sm:$0xff]
    %v3390 = vld [vmem:[%s11 + $0x6e0] sm:$0xff]
    %v3391 = vld [vmem:[%s11 + $0x6e8] sm:$0xff]
    %v3392 = vld [vmem:[%s11 + $0x6f0] sm:$0xff]
    %v3393 = vld [vmem:[%s11 + $0x6f8] sm:$0xff]
    %v3394 = vld [vmem:[%s11 + $0x700] sm:$0xff]
    %v3395 = vld [vmem:[%s11 + $0x708] sm:$0xff]
    %v3396 = vld [vmem:[%s11 + $0x710] sm:$0xff]
    %v3397 = vld [vmem:[%s11 + $0x718] sm:$0xff]
    %v3398 = vld [vmem:[%s11 + $0x720] sm:$0xff]
    %v3399 = vld [vmem:[%s11 + $0x728] sm:$0xff]
    %v3400 = vld [vmem:[%s11 + $0x730] sm:$0xff]
    %v3401 = vld [vmem:[%s11 + $0x738] sm:$0xff]
    %v3402 = vld [vmem:[%s11 + $0x740] sm:$0xff]
    %v3403 = vld [vmem:[%s11 + $0x748] sm:$0xff]
    %v3404 = vld [vmem:[%s11 + $0x750] sm:$0xff]
    %v3405 = vld [vmem:[%s11 + $0x758] sm:$0xff]
    %v3406 = vld [vmem:[%s11 + $0x760] sm:$0xff]
    %v3407 = vld [vmem:[%s11 + $0x768] sm:$0xff]
    %v3408 = vld [vmem:[%s11 + $0x770] sm:$0xff]
    %v3409 = vld [vmem:[%s11 + $0x778] sm:$0xff]
    %v3410 = vld [vmem:[%s11 + $0x780] sm:$0xff]
    %v3411 = vld [vmem:[%s11 + $0x788] sm:$0xff]
    %v3412 = vld [vmem:[%s11 + $0x790] sm:$0xff]
    %v3413 = vld [vmem:[%s11 + $0x798] sm:$0xff]
    %v3414 = vld [vmem:[%s11 + $0x7a0] sm:$0xff]
    %v3415 = vld [vmem:[%s11 + $0x7a8] sm:$0xff]
    %v3416 = vld [vmem:[%s11 + $0x7b0] sm:$0xff]
    %v3417 = vld [vmem:[%s11 + $0x7b8] sm:$0xff]
    %v3418 = vld [vmem:[%s11 + $0x7c0] sm:$0xff]
    %v3419 = vld [vmem:[%s11 + $0x7c8] sm:$0xff]
    %v3420 = vld [vmem:[%s11 + $0x7d0] sm:$0xff]
    %v3421 = vld [vmem:[%s11 + $0x7d8] sm:$0xff]
    %v3422 = vld [vmem:[%s11 + $0x7e0] sm:$0xff]
    %v3423 = vld [vmem:[%s11 + $0x7e8] sm:$0xff]
    %v3424 = vld [vmem:[%s11 + $0x7f0] sm:$0xff]
    %v3425 = vld [vmem:[%s11 + $0x7f8] sm:$0xff]
    %v3426 = vld [vmem:[%s12] sm:$0xf]
    %3428 = vset.pattern.permute.xlu0 0
    %3429 = vperm.xlu0 %3428, %v3169
    %v3430 = vpop.permute.xlu0 %3429
    %v3433 = vlaneseq
    %v3434 = vshrl.u32 %v3433, 7
    %v3435 = vsub.s32 0, %v3434
    %v3436 = vrot.slane %v3426, %v3435
    %v3437 = vlaneseq
    %v3438 = vshrl.u32 %v3437, 7
    %v3439 = vsub.s32 1, %v3438
    %v3440 = vrot.slane %v3426, %v3439
    %v3441 = vlaneseq
    %v3442 = vshrl.u32 %v3441, 7
    %v3443 = vsub.s32 2, %v3442
    %v3444 = vrot.slane %v3426, %v3443
    %v3445 = vlaneseq
    %v3446 = vshrl.u32 %v3445, 7
    %v3447 = vsub.s32 3, %v3446
    %v3448 = vrot.slane %v3426, %v3447
    %v3453 = vmul.f32 %v3430, %v3436
    %v3454 = vmul.f32 %v3430, %v3440
    %v3455 = vmul.f32 %v3430, %v3444
    %v3456 = vmul.f32 %v3430, %v3448
    %3457 = vmatprep.subr.mxu0 %v3231
    %3458 = vmatpush1.msra.mxu0 %v3230
    %3459 = vmatprep.subr.mxu0 %v3227
    %3460 = vmatpush1.msra.mxu0 %v3226
    %3461 = vmatprep.subr.mxu0 %v3223
    %3462 = vmatpush1.msra.mxu0 %v3222
    %3463 = vmatprep.subr.mxu0 %v3219
    %3464 = vmatpush1.msra.mxu0 %v3218
    %3465 = vmatprep.subr.mxu0 %v3215
    %3466 = vmatpush1.msra.mxu0 %v3214
    %3467 = vmatprep.subr.mxu0 %v3211
    %3468 = vmatpush1.msra.mxu0 %v3210
    %3469 = vmatprep.subr.mxu0 %v3207
    %3470 = vmatpush1.msra.mxu0 %v3206
    %3471 = vmatprep.subr.mxu0 %v3203
    %3472 = vmatpush1.msra.mxu0 %v3202
    %3473 = vmatprep.subr.mxu0 %v3199
    %3474 = vmatpush1.msra.mxu0 %v3198
    %3475 = vmatprep.subr.mxu0 %v3195
    %3476 = vmatpush1.msra.mxu0 %v3194
    %3477 = vmatprep.subr.mxu0 %v3191
    %3478 = vmatpush1.msra.mxu0 %v3190
    %3479 = vmatprep.subr.mxu0 %v3187
    %3480 = vmatpush1.msra.mxu0 %v3186
    %3481 = vmatprep.subr.mxu0 %v3183
    %3482 = vmatpush1.msra.mxu0 %v3182
    %3483 = vmatprep.subr.mxu0 %v3179
    %3484 = vmatpush1.msra.mxu0 %v3178
    %3485 = vmatprep.subr.mxu0 %v3175
    %3486 = vmatpush1.msra.mxu0 %v3174
    %3487 = vmatprep.subr.mxu0 %v3171
    %3488 = vmatpush1.msra.mxu0 %v3170
    %3489 = vmatprep.subr.mxu0 %v3295
    %3490 = vmatpush2.msra.mxu0 %v3294
    %3491 = vmatprep.subr.mxu0 %v3291
    %3492 = vmatpush2.msra.mxu0 %v3290
    %3493 = vmatprep.subr.mxu0 %v3287
    %3494 = vmatpush2.msra.mxu0 %v3286
    %3495 = vmatprep.subr.mxu0 %v3283
    %3496 = vmatpush2.msra.mxu0 %v3282
    %3497 = vmatprep.subr.mxu0 %v3279
    %3498 = vmatpush2.msra.mxu0 %v3278
    %3499 = vmatprep.subr.mxu0 %v3275
    %3500 = vmatpush2.msra.mxu0 %v3274
    %3501 = vmatprep.subr.mxu0 %v3271
    %3502 = vmatpush2.msra.mxu0 %v3270
    %3503 = vmatprep.subr.mxu0 %v3267
    %3504 = vmatpush2.msra.mxu0 %v3266
    %3505 = vmatprep.subr.mxu0 %v3263
    %3506 = vmatpush2.msra.mxu0 %v3262
    %3507 = vmatprep.subr.mxu0 %v3259
    %3508 = vmatpush2.msra.mxu0 %v3258
    %3509 = vmatprep.subr.mxu0 %v3255
    %3510 = vmatpush2.msra.mxu0 %v3254
    %3511 = vmatprep.subr.mxu0 %v3251
    %3512 = vmatpush2.msra.mxu0 %v3250
    %3513 = vmatprep.subr.mxu0 %v3247
    %3514 = vmatpush2.msra.mxu0 %v3246
    %3515 = vmatprep.subr.mxu0 %v3243
    %3516 = vmatpush2.msra.mxu0 %v3242
    %3517 = vmatprep.subr.mxu0 %v3239
    %3518 = vmatpush2.msra.mxu0 %v3238
    %3519 = vmatprep.subr.mxu0 %v3235
    %3520 = vmatpush2.msra.mxu0 %v3234
    %3521 = vmatprep.mubr.f32.mxu0 %v1801
    %3522 = vmatmul.mubr.f32.gmra.mxu0 %v1800
    %v3523 = vpop.f32.mrf.mxu0
    %v3524 = vadd.f32 %v3453, %v3523
    %v3525 = vpop.f32.mrf.mxu0
    %v3526 = vadd.f32 %v3454, %v3525
    %3527 = vdwg.mxu0
    %3528 = vmatprep.subr.mxu0 %v3359
    %3529 = vmatpush1.msra.mxu0 %v3358
    %3530 = vmatprep.subr.mxu0 %v3355
    %3531 = vmatpush1.msra.mxu0 %v3354
    %3532 = vmatprep.subr.mxu0 %v3351
    %3533 = vmatpush1.msra.mxu0 %v3350
    %3534 = vmatprep.subr.mxu0 %v3347
    %3535 = vmatpush1.msra.mxu0 %v3346
    %3536 = vmatprep.subr.mxu0 %v3343
    %3537 = vmatpush1.msra.mxu0 %v3342
    %3538 = vmatprep.subr.mxu0 %v3339
    %3539 = vmatpush1.msra.mxu0 %v3338
    %3540 = vmatprep.subr.mxu0 %v3335
    %3541 = vmatpush1.msra.mxu0 %v3334
    %3542 = vmatprep.subr.mxu0 %v3331
    %3543 = vmatpush1.msra.mxu0 %v3330
    %3544 = vmatprep.subr.mxu0 %v3327
    %3545 = vmatpush1.msra.mxu0 %v3326
    %3546 = vmatprep.subr.mxu0 %v3323
    %3547 = vmatpush1.msra.mxu0 %v3322
    %3548 = vmatprep.subr.mxu0 %v3319
    %3549 = vmatpush1.msra.mxu0 %v3318
    %3550 = vmatprep.subr.mxu0 %v3315
    %3551 = vmatpush1.msra.mxu0 %v3314
    %3552 = vmatprep.subr.mxu0 %v3311
    %3553 = vmatpush1.msra.mxu0 %v3310
    %3554 = vmatprep.subr.mxu0 %v3307
    %3555 = vmatpush1.msra.mxu0 %v3306
    %3556 = vmatprep.subr.mxu0 %v3303
    %3557 = vmatpush1.msra.mxu0 %v3302
    %3558 = vmatprep.subr.mxu0 %v3299
    %3559 = vmatpush1.msra.mxu0 %v3298
    %3560 = vmatprep.subr.mxu0 %v3423
    %3561 = vmatpush2.msra.mxu0 %v3422
    %3562 = vmatprep.subr.mxu0 %v3419
    %3563 = vmatpush2.msra.mxu0 %v3418
    %3564 = vmatprep.subr.mxu0 %v3415
    %3565 = vmatpush2.msra.mxu0 %v3414
    %3566 = vmatprep.subr.mxu0 %v3411
    %3567 = vmatpush2.msra.mxu0 %v3410
    %3568 = vmatprep.subr.mxu0 %v3407
    %3569 = vmatpush2.msra.mxu0 %v3406
    %3570 = vmatprep.subr.mxu0 %v3403
    %3571 = vmatpush2.msra.mxu0 %v3402
    %3572 = vmatprep.subr.mxu0 %v3399
    %3573 = vmatpush2.msra.mxu0 %v3398
    %3574 = vmatprep.subr.mxu0 %v3395
    %3575 = vmatpush2.msra.mxu0 %v3394
    %3576 = vmatprep.subr.mxu0 %v3391
    %3577 = vmatpush2.msra.mxu0 %v3390
    %3578 = vmatprep.subr.mxu0 %v3387
    %3579 = vmatpush2.msra.mxu0 %v3386
    %3580 = vmatprep.subr.mxu0 %v3383
    %3581 = vmatpush2.msra.mxu0 %v3382
    %3582 = vmatprep.subr.mxu0 %v3379
    %3583 = vmatpush2.msra.mxu0 %v3378
    %3584 = vmatprep.subr.mxu0 %v3375
    %3585 = vmatpush2.msra.mxu0 %v3374
    %3586 = vmatprep.subr.mxu0 %v3371
    %3587 = vmatpush2.msra.mxu0 %v3370
    %3588 = vmatprep.subr.mxu0 %v3367
    %3589 = vmatpush2.msra.mxu0 %v3366
    %3590 = vmatprep.subr.mxu0 %v3363
    %3591 = vmatpush2.msra.mxu0 %v3362
    %3592 = vmatprep.mubr.f32.mxu0 %v1803
    %3593 = vmatmul.mubr.f32.gmra.mxu0 %v1802
    %v3594 = vpop.f32.mrf.mxu0
    %v3595 = vadd.f32 %v3524, %v3594
    %v3596 = vpop.f32.mrf.mxu0
    %v3597 = vadd.f32 %v3526, %v3596
    %3598 = vdwg.mxu0
    %3599 = vmatprep.subr.mxu0 %v3233
    %3600 = vmatpush1.msra.mxu0 %v3232
    %3601 = vmatprep.subr.mxu0 %v3229
    %3602 = vmatpush1.msra.mxu0 %v3228
    %3603 = vmatprep.subr.mxu0 %v3225
    %3604 = vmatpush1.msra.mxu0 %v3224
    %3605 = vmatprep.subr.mxu0 %v3221
    %3606 = vmatpush1.msra.mxu0 %v3220
    %3607 = vmatprep.subr.mxu0 %v3217
    %3608 = vmatpush1.msra.mxu0 %v3216
    %3609 = vmatprep.subr.mxu0 %v3213
    %3610 = vmatpush1.msra.mxu0 %v3212
    %3611 = vmatprep.subr.mxu0 %v3209
    %3612 = vmatpush1.msra.mxu0 %v3208
    %3613 = vmatprep.subr.mxu0 %v3205
    %3614 = vmatpush1.msra.mxu0 %v3204
    %3615 = vmatprep.subr.mxu0 %v3201
    %3616 = vmatpush1.msra.mxu0 %v3200
    %3617 = vmatprep.subr.mxu0 %v3197
    %3618 = vmatpush1.msra.mxu0 %v3196
    %3619 = vmatprep.subr.mxu0 %v3193
    %3620 = vmatpush1.msra.mxu0 %v3192
    %3621 = vmatprep.subr.mxu0 %v3189
    %3622 = vmatpush1.msra.mxu0 %v3188
    %3623 = vmatprep.subr.mxu0 %v3185
    %3624 = vmatpush1.msra.mxu0 %v3184
    %3625 = vmatprep.subr.mxu0 %v3181
    %3626 = vmatpush1.msra.mxu0 %v3180
    %3627 = vmatprep.subr.mxu0 %v3177
    %3628 = vmatpush1.msra.mxu0 %v3176
    %3629 = vmatprep.subr.mxu0 %v3173
    %3630 = vmatpush1.msra.mxu0 %v3172
    %3631 = vmatprep.subr.mxu0 %v3297
    %3632 = vmatpush2.msra.mxu0 %v3296
    %3633 = vmatprep.subr.mxu0 %v3293
    %3634 = vmatpush2.msra.mxu0 %v3292
    %3635 = vmatprep.subr.mxu0 %v3289
    %3636 = vmatpush2.msra.mxu0 %v3288
    %3637 = vmatprep.subr.mxu0 %v3285
    %3638 = vmatpush2.msra.mxu0 %v3284
    %3639 = vmatprep.subr.mxu0 %v3281
    %3640 = vmatpush2.msra.mxu0 %v3280
    %3641 = vmatprep.subr.mxu0 %v3277
    %3642 = vmatpush2.msra.mxu0 %v3276
    %3643 = vmatprep.subr.mxu0 %v3273
    %3644 = vmatpush2.msra.mxu0 %v3272
    %3645 = vmatprep.subr.mxu0 %v3269
    %3646 = vmatpush2.msra.mxu0 %v3268
    %3647 = vmatprep.subr.mxu0 %v3265
    %3648 = vmatpush2.msra.mxu0 %v3264
    %3649 = vmatprep.subr.mxu0 %v3261
    %3650 = vmatpush2.msra.mxu0 %v3260
    %3651 = vmatprep.subr.mxu0 %v3257
    %3652 = vmatpush2.msra.mxu0 %v3256
    %3653 = vmatprep.subr.mxu0 %v3253
    %3654 = vmatpush2.msra.mxu0 %v3252
    %3655 = vmatprep.subr.mxu0 %v3249
    %3656 = vmatpush2.msra.mxu0 %v3248
    %3657 = vmatprep.subr.mxu0 %v3245
    %3658 = vmatpush2.msra.mxu0 %v3244
    %3659 = vmatprep.subr.mxu0 %v3241
    %3660 = vmatpush2.msra.mxu0 %v3240
    %3661 = vmatprep.subr.mxu0 %v3237
    %3662 = vmatpush2.msra.mxu0 %v3236
    %3663 = vmatprep.mubr.f32.mxu0 %v1801
    %3664 = vmatmul.mubr.f32.gmra.mxu0 %v1800
    %v3665 = vpop.f32.mrf.mxu0
    %v3666 = vadd.f32 %v3455, %v3665
    %v3667 = vpop.f32.mrf.mxu0
    %v3668 = vadd.f32 %v3456, %v3667
    %3669 = vdwg.mxu0
    %3670 = vmatprep.subr.mxu0 %v3361
    %3671 = vmatpush1.msra.mxu0 %v3360
    %3672 = vmatprep.subr.mxu0 %v3357
    %3673 = vmatpush1.msra.mxu0 %v3356
    %3674 = vmatprep.subr.mxu0 %v3353
    %3675 = vmatpush1.msra.mxu0 %v3352
    %3676 = vmatprep.subr.mxu0 %v3349
    %3677 = vmatpush1.msra.mxu0 %v3348
    %3678 = vmatprep.subr.mxu0 %v3345
    %3679 = vmatpush1.msra.mxu0 %v3344
    %3680 = vmatprep.subr.mxu0 %v3341
    %3681 = vmatpush1.msra.mxu0 %v3340
    %3682 = vmatprep.subr.mxu0 %v3337
    %3683 = vmatpush1.msra.mxu0 %v3336
    %3684 = vmatprep.subr.mxu0 %v3333
    %3685 = vmatpush1.msra.mxu0 %v3332
    %3686 = vmatprep.subr.mxu0 %v3329
    %3687 = vmatpush1.msra.mxu0 %v3328
    %3688 = vmatprep.subr.mxu0 %v3325
    %3689 = vmatpush1.msra.mxu0 %v3324
    %3690 = vmatprep.subr.mxu0 %v3321
    %3691 = vmatpush1.msra.mxu0 %v3320
    %3692 = vmatprep.subr.mxu0 %v3317
    %3693 = vmatpush1.msra.mxu0 %v3316
    %3694 = vmatprep.subr.mxu0 %v3313
    %3695 = vmatpush1.msra.mxu0 %v3312
    %3696 = vmatprep.subr.mxu0 %v3309
    %3697 = vmatpush1.msra.mxu0 %v3308
    %3698 = vmatprep.subr.mxu0 %v3305
    %3699 = vmatpush1.msra.mxu0 %v3304
    %3700 = vmatprep.subr.mxu0 %v3301
    %3701 = vmatpush1.msra.mxu0 %v3300
    %3702 = vmatprep.subr.mxu0 %v3425
    %3703 = vmatpush2.msra.mxu0 %v3424
    %3704 = vmatprep.subr.mxu0 %v3421
    %3705 = vmatpush2.msra.mxu0 %v3420
    %3706 = vmatprep.subr.mxu0 %v3417
    %3707 = vmatpush2.msra.mxu0 %v3416
    %3708 = vmatprep.subr.mxu0 %v3413
    %3709 = vmatpush2.msra.mxu0 %v3412
    %3710 = vmatprep.subr.mxu0 %v3409
    %3711 = vmatpush2.msra.mxu0 %v3408
    %3712 = vmatprep.subr.mxu0 %v3405
    %3713 = vmatpush2.msra.mxu0 %v3404
    %3714 = vmatprep.subr.mxu0 %v3401
    %3715 = vmatpush2.msra.mxu0 %v3400
    %3716 = vmatprep.subr.mxu0 %v3397
    %3717 = vmatpush2.msra.mxu0 %v3396
    %3718 = vmatprep.subr.mxu0 %v3393
    %3719 = vmatpush2.msra.mxu0 %v3392
    %3720 = vmatprep.subr.mxu0 %v3389
    %3721 = vmatpush2.msra.mxu0 %v3388
    %3722 = vmatprep.subr.mxu0 %v3385
    %3723 = vmatpush2.msra.mxu0 %v3384
    %3724 = vmatprep.subr.mxu0 %v3381
    %3725 = vmatpush2.msra.mxu0 %v3380
    %3726 = vmatprep.subr.mxu0 %v3377
    %3727 = vmatpush2.msra.mxu0 %v3376
    %3728 = vmatprep.subr.mxu0 %v3373
    %3729 = vmatpush2.msra.mxu0 %v3372
    %3730 = vmatprep.subr.mxu0 %v3369
    %3731 = vmatpush2.msra.mxu0 %v3368
    %3732 = vmatprep.subr.mxu0 %v3365
    %3733 = vmatpush2.msra.mxu0 %v3364
    %3734 = vmatprep.mubr.f32.mxu0 %v1803
    %3735 = vmatmul.mubr.f32.gmra.mxu0 %v1802
    %v3736 = vpop.f32.mrf.mxu0
    %v3737 = vadd.f32 %v3666, %v3736
    %v3738 = vpop.f32.mrf.mxu0
    %v3739 = vadd.f32 %v3668, %v3738
    %3740 = vdwg.mxu0
    %v3741 = vld [vmem:[%s13] sm:$0xf]
    %v3743 = vlaneseq
    %v3744 = vshrl.u32 %v3743, 7
    %v3745 = vsub.s32 0, %v3744
    %v3746 = vrot.slane %v3741, %v3745
    %v3747 = vlaneseq
    %v3748 = vshrl.u32 %v3747, 7
    %v3749 = vsub.s32 1, %v3748
    %v3750 = vrot.slane %v3741, %v3749
    %v3751 = vlaneseq
    %v3752 = vshrl.u32 %v3751, 7
    %v3753 = vsub.s32 2, %v3752
    %v3754 = vrot.slane %v3741, %v3753
    %v3755 = vlaneseq
    %v3756 = vshrl.u32 %v3755, 7
    %v3757 = vsub.s32 3, %v3756
    %v3758 = vrot.slane %v3741, %v3757
    %v3763 = vadd.f32 %v3595, %v3746
    %v3764 = vadd.f32 %v3597, %v3750
    %v3765 = vadd.f32 %v3737, %v3754
    %v3766 = vadd.f32 %v3739, %v3758
    %vm3767 = vcmp.ge.f32.partialorder %v3763, 0.0
    %vm3768 = vcmp.ge.f32.partialorder %v3764, 0.0
    %vm3769 = vcmp.ge.f32.partialorder %v3765, 0.0
    %vm3770 = vcmp.ge.f32.partialorder %v3766, 0.0
    %v3771 = vmul.f32 %v3763, 0.01
    %v3772 = vmul.f32 %v3764, 0.01
    %v3773 = vmul.f32 %v3765, 0.01
    %v3774 = vmul.f32 %v3766, 0.01
    %v3775 = vsel %vm3767, %v3763, %v3771
    %v3776 = vsel %vm3768, %v3764, %v3772
    %v3777 = vsel %vm3769, %v3765, %v3773
    %v3778 = vsel %vm3770, %v3766, %v3774
    %v3779 = vld [vmem:[%s15] sm:$0xf]
    %v3781 = vlaneseq
    %v3782 = vshrl.u32 %v3781, 7
    %v3783 = vsub.s32 0, %v3782
    %v3784 = vrot.slane %v3779, %v3783
    %v3785 = vlaneseq
    %v3786 = vshrl.u32 %v3785, 7
    %v3787 = vsub.s32 1, %v3786
    %v3788 = vrot.slane %v3779, %v3787
    %v3789 = vlaneseq
    %v3790 = vshrl.u32 %v3789, 7
    %v3791 = vsub.s32 2, %v3790
    %v3792 = vrot.slane %v3779, %v3791
    %v3793 = vlaneseq
    %v3794 = vshrl.u32 %v3793, 7
    %v3795 = vsub.s32 3, %v3794
    %v3796 = vrot.slane %v3779, %v3795
    %v3801 = vmul.f32 %v3430, %v3784
    %v3802 = vmul.f32 %v3430, %v3788
    %v3803 = vmul.f32 %v3430, %v3792
    %v3804 = vmul.f32 %v3430, %v3796
    %v3805 = vld [vmem:[%s16] sm:$0xf]
    %v3807 = vlaneseq
    %v3808 = vshrl.u32 %v3807, 7
    %v3809 = vsub.s32 0, %v3808
    %v3810 = vrot.slane %v3805, %v3809
    %v3811 = vlaneseq
    %v3812 = vshrl.u32 %v3811, 7
    %v3813 = vsub.s32 1, %v3812
    %v3814 = vrot.slane %v3805, %v3813
    %v3815 = vlaneseq
    %v3816 = vshrl.u32 %v3815, 7
    %v3817 = vsub.s32 2, %v3816
    %v3818 = vrot.slane %v3805, %v3817
    %v3819 = vlaneseq
    %v3820 = vshrl.u32 %v3819, 7
    %v3821 = vsub.s32 3, %v3820
    %v3822 = vrot.slane %v3805, %v3821
    %v3827 = vadd.f32 %v3801, %v3810
    %v3828 = vadd.f32 %v3802, %v3814
    %v3829 = vadd.f32 %v3803, %v3818
    %v3830 = vadd.f32 %v3804, %v3822
    %v3831 = vld [vmem:[%s20] sm:$0xf]
    %v3833 = vlaneseq
    %v3834 = vshrl.u32 %v3833, 7
    %v3835 = vsub.s32 0, %v3834
    %v3836 = vrot.slane %v3831, %v3835
    %v3837 = vlaneseq
    %v3838 = vshrl.u32 %v3837, 7
    %v3839 = vsub.s32 1, %v3838
    %v3840 = vrot.slane %v3831, %v3839
    %v3841 = vlaneseq
    %v3842 = vshrl.u32 %v3841, 7
    %v3843 = vsub.s32 2, %v3842
    %v3844 = vrot.slane %v3831, %v3843
    %v3845 = vlaneseq
    %v3846 = vshrl.u32 %v3845, 7
    %v3847 = vsub.s32 3, %v3846
    %v3848 = vrot.slane %v3831, %v3847
    %v3853 = vmul.f32 %v3430, %v3836
    %v3854 = vmul.f32 %v3430, %v3840
    %v3855 = vmul.f32 %v3430, %v3844
    %v3856 = vmul.f32 %v3430, %v3848
    %v3857 = vld [vmem:[%s21] sm:$0xf]
    %v3859 = vlaneseq
    %v3860 = vshrl.u32 %v3859, 7
    %v3861 = vsub.s32 0, %v3860
    %v3862 = vrot.slane %v3857, %v3861
    %v3863 = vlaneseq
    %v3864 = vshrl.u32 %v3863, 7
    %v3865 = vsub.s32 1, %v3864
    %v3866 = vrot.slane %v3857, %v3865
    %v3867 = vlaneseq
    %v3868 = vshrl.u32 %v3867, 7
    %v3869 = vsub.s32 2, %v3868
    %v3870 = vrot.slane %v3857, %v3869
    %v3871 = vlaneseq
    %v3872 = vshrl.u32 %v3871, 7
    %v3873 = vsub.s32 3, %v3872
    %v3874 = vrot.slane %v3857, %v3873
    %v3879 = vadd.f32 %v3853, %v3862
    %v3880 = vadd.f32 %v3854, %v3866
    %v3881 = vadd.f32 %v3855, %v3870
    %v3882 = vadd.f32 %v3856, %v3874
    %v3883 = vld [vmem:[%s14] sm:$0xff]
    %v3884 = vld [vmem:[%s14 + $0x8] sm:$0xff]
    %v3885 = vld [vmem:[%s14 + $0x10] sm:$0xff]
    %v3886 = vld [vmem:[%s14 + $0x18] sm:$0xff]
    %v3887 = vld [vmem:[%s14 + $0x20] sm:$0xff]
    %v3888 = vld [vmem:[%s14 + $0x28] sm:$0xff]
    %v3889 = vld [vmem:[%s14 + $0x30] sm:$0xff]
    %v3890 = vld [vmem:[%s14 + $0x38] sm:$0xff]
    %v3891 = vld [vmem:[%s14 + $0x40] sm:$0xff]
    %v3892 = vld [vmem:[%s14 + $0x48] sm:$0xff]
    %v3893 = vld [vmem:[%s14 + $0x50] sm:$0xff]
    %v3894 = vld [vmem:[%s14 + $0x58] sm:$0xff]
    %v3895 = vld [vmem:[%s14 + $0x60] sm:$0xff]
    %v3896 = vld [vmem:[%s14 + $0x68] sm:$0xff]
    %v3897 = vld [vmem:[%s14 + $0x70] sm:$0xff]
    %v3898 = vld [vmem:[%s14 + $0x78] sm:$0xff]
    %v3899 = vld [vmem:[%s14 + $0x80] sm:$0xff]
    %v3900 = vld [vmem:[%s14 + $0x88] sm:$0xff]
    %v3901 = vld [vmem:[%s14 + $0x90] sm:$0xff]
    %v3902 = vld [vmem:[%s14 + $0x98] sm:$0xff]
    %v3903 = vld [vmem:[%s14 + $0xa0] sm:$0xff]
    %v3904 = vld [vmem:[%s14 + $0xa8] sm:$0xff]
    %v3905 = vld [vmem:[%s14 + $0xb0] sm:$0xff]
    %v3906 = vld [vmem:[%s14 + $0xb8] sm:$0xff]
    %v3907 = vld [vmem:[%s14 + $0xc0] sm:$0xff]
    %v3908 = vld [vmem:[%s14 + $0xc8] sm:$0xff]
    %v3909 = vld [vmem:[%s14 + $0xd0] sm:$0xff]
    %v3910 = vld [vmem:[%s14 + $0xd8] sm:$0xff]
    %v3911 = vld [vmem:[%s14 + $0xe0] sm:$0xff]
    %v3912 = vld [vmem:[%s14 + $0xe8] sm:$0xff]
    %v3913 = vld [vmem:[%s14 + $0xf0] sm:$0xff]
    %v3914 = vld [vmem:[%s14 + $0xf8] sm:$0xff]
    %v3915 = vld [vmem:[%s14 + $0x100] sm:$0xff]
    %v3916 = vld [vmem:[%s14 + $0x108] sm:$0xff]
    %v3917 = vld [vmem:[%s14 + $0x110] sm:$0xff]
    %v3918 = vld [vmem:[%s14 + $0x118] sm:$0xff]
    %v3919 = vld [vmem:[%s14 + $0x120] sm:$0xff]
    %v3920 = vld [vmem:[%s14 + $0x128] sm:$0xff]
    %v3921 = vld [vmem:[%s14 + $0x130] sm:$0xff]
    %v3922 = vld [vmem:[%s14 + $0x138] sm:$0xff]
    %v3923 = vld [vmem:[%s14 + $0x140] sm:$0xff]
    %v3924 = vld [vmem:[%s14 + $0x148] sm:$0xff]
    %v3925 = vld [vmem:[%s14 + $0x150] sm:$0xff]
    %v3926 = vld [vmem:[%s14 + $0x158] sm:$0xff]
    %v3927 = vld [vmem:[%s14 + $0x160] sm:$0xff]
    %v3928 = vld [vmem:[%s14 + $0x168] sm:$0xff]
    %v3929 = vld [vmem:[%s14 + $0x170] sm:$0xff]
    %v3930 = vld [vmem:[%s14 + $0x178] sm:$0xff]
    %v3931 = vld [vmem:[%s14 + $0x180] sm:$0xff]
    %v3932 = vld [vmem:[%s14 + $0x188] sm:$0xff]
    %v3933 = vld [vmem:[%s14 + $0x190] sm:$0xff]
    %v3934 = vld [vmem:[%s14 + $0x198] sm:$0xff]
    %v3935 = vld [vmem:[%s14 + $0x1a0] sm:$0xff]
    %v3936 = vld [vmem:[%s14 + $0x1a8] sm:$0xff]
    %v3937 = vld [vmem:[%s14 + $0x1b0] sm:$0xff]
    %v3938 = vld [vmem:[%s14 + $0x1b8] sm:$0xff]
    %v3939 = vld [vmem:[%s14 + $0x1c0] sm:$0xff]
    %v3940 = vld [vmem:[%s14 + $0x1c8] sm:$0xff]
    %v3941 = vld [vmem:[%s14 + $0x1d0] sm:$0xff]
    %v3942 = vld [vmem:[%s14 + $0x1d8] sm:$0xff]
    %v3943 = vld [vmem:[%s14 + $0x1e0] sm:$0xff]
    %v3944 = vld [vmem:[%s14 + $0x1e8] sm:$0xff]
    %v3945 = vld [vmem:[%s14 + $0x1f0] sm:$0xff]
    %v3946 = vld [vmem:[%s14 + $0x1f8] sm:$0xff]
    %v3947 = vld [vmem:[%s14 + $0x200] sm:$0xff]
    %v3948 = vld [vmem:[%s14 + $0x208] sm:$0xff]
    %v3949 = vld [vmem:[%s14 + $0x210] sm:$0xff]
    %v3950 = vld [vmem:[%s14 + $0x218] sm:$0xff]
    %v3951 = vld [vmem:[%s14 + $0x220] sm:$0xff]
    %v3952 = vld [vmem:[%s14 + $0x228] sm:$0xff]
    %v3953 = vld [vmem:[%s14 + $0x230] sm:$0xff]
    %v3954 = vld [vmem:[%s14 + $0x238] sm:$0xff]
    %v3955 = vld [vmem:[%s14 + $0x240] sm:$0xff]
    %v3956 = vld [vmem:[%s14 + $0x248] sm:$0xff]
    %v3957 = vld [vmem:[%s14 + $0x250] sm:$0xff]
    %v3958 = vld [vmem:[%s14 + $0x258] sm:$0xff]
    %v3959 = vld [vmem:[%s14 + $0x260] sm:$0xff]
    %v3960 = vld [vmem:[%s14 + $0x268] sm:$0xff]
    %v3961 = vld [vmem:[%s14 + $0x270] sm:$0xff]
    %v3962 = vld [vmem:[%s14 + $0x278] sm:$0xff]
    %v3963 = vld [vmem:[%s14 + $0x280] sm:$0xff]
    %v3964 = vld [vmem:[%s14 + $0x288] sm:$0xff]
    %v3965 = vld [vmem:[%s14 + $0x290] sm:$0xff]
    %v3966 = vld [vmem:[%s14 + $0x298] sm:$0xff]
    %v3967 = vld [vmem:[%s14 + $0x2a0] sm:$0xff]
    %v3968 = vld [vmem:[%s14 + $0x2a8] sm:$0xff]
    %v3969 = vld [vmem:[%s14 + $0x2b0] sm:$0xff]
    %v3970 = vld [vmem:[%s14 + $0x2b8] sm:$0xff]
    %v3971 = vld [vmem:[%s14 + $0x2c0] sm:$0xff]
    %v3972 = vld [vmem:[%s14 + $0x2c8] sm:$0xff]
    %v3973 = vld [vmem:[%s14 + $0x2d0] sm:$0xff]
    %v3974 = vld [vmem:[%s14 + $0x2d8] sm:$0xff]
    %v3975 = vld [vmem:[%s14 + $0x2e0] sm:$0xff]
    %v3976 = vld [vmem:[%s14 + $0x2e8] sm:$0xff]
    %v3977 = vld [vmem:[%s14 + $0x2f0] sm:$0xff]
    %v3978 = vld [vmem:[%s14 + $0x2f8] sm:$0xff]
    %v3979 = vld [vmem:[%s14 + $0x300] sm:$0xff]
    %v3980 = vld [vmem:[%s14 + $0x308] sm:$0xff]
    %v3981 = vld [vmem:[%s14 + $0x310] sm:$0xff]
    %v3982 = vld [vmem:[%s14 + $0x318] sm:$0xff]
    %v3983 = vld [vmem:[%s14 + $0x320] sm:$0xff]
    %v3984 = vld [vmem:[%s14 + $0x328] sm:$0xff]
    %v3985 = vld [vmem:[%s14 + $0x330] sm:$0xff]
    %v3986 = vld [vmem:[%s14 + $0x338] sm:$0xff]
    %v3987 = vld [vmem:[%s14 + $0x340] sm:$0xff]
    %v3988 = vld [vmem:[%s14 + $0x348] sm:$0xff]
    %v3989 = vld [vmem:[%s14 + $0x350] sm:$0xff]
    %v3990 = vld [vmem:[%s14 + $0x358] sm:$0xff]
    %v3991 = vld [vmem:[%s14 + $0x360] sm:$0xff]
    %v3992 = vld [vmem:[%s14 + $0x368] sm:$0xff]
    %v3993 = vld [vmem:[%s14 + $0x370] sm:$0xff]
    %v3994 = vld [vmem:[%s14 + $0x378] sm:$0xff]
    %v3995 = vld [vmem:[%s14 + $0x380] sm:$0xff]
    %v3996 = vld [vmem:[%s14 + $0x388] sm:$0xff]
    %v3997 = vld [vmem:[%s14 + $0x390] sm:$0xff]
    %v3998 = vld [vmem:[%s14 + $0x398] sm:$0xff]
    %v3999 = vld [vmem:[%s14 + $0x3a0] sm:$0xff]
    %v4000 = vld [vmem:[%s14 + $0x3a8] sm:$0xff]
    %v4001 = vld [vmem:[%s14 + $0x3b0] sm:$0xff]
    %v4002 = vld [vmem:[%s14 + $0x3b8] sm:$0xff]
    %v4003 = vld [vmem:[%s14 + $0x3c0] sm:$0xff]
    %v4004 = vld [vmem:[%s14 + $0x3c8] sm:$0xff]
    %v4005 = vld [vmem:[%s14 + $0x3d0] sm:$0xff]
    %v4006 = vld [vmem:[%s14 + $0x3d8] sm:$0xff]
    %v4007 = vld [vmem:[%s14 + $0x3e0] sm:$0xff]
    %v4008 = vld [vmem:[%s14 + $0x3e8] sm:$0xff]
    %v4009 = vld [vmem:[%s14 + $0x3f0] sm:$0xff]
    %v4010 = vld [vmem:[%s14 + $0x3f8] sm:$0xff]
    %v4011 = vld [vmem:[%s14 + $0x400] sm:$0xff]
    %v4012 = vld [vmem:[%s14 + $0x408] sm:$0xff]
    %v4013 = vld [vmem:[%s14 + $0x410] sm:$0xff]
    %v4014 = vld [vmem:[%s14 + $0x418] sm:$0xff]
    %v4015 = vld [vmem:[%s14 + $0x420] sm:$0xff]
    %v4016 = vld [vmem:[%s14 + $0x428] sm:$0xff]
    %v4017 = vld [vmem:[%s14 + $0x430] sm:$0xff]
    %v4018 = vld [vmem:[%s14 + $0x438] sm:$0xff]
    %v4019 = vld [vmem:[%s14 + $0x440] sm:$0xff]
    %v4020 = vld [vmem:[%s14 + $0x448] sm:$0xff]
    %v4021 = vld [vmem:[%s14 + $0x450] sm:$0xff]
    %v4022 = vld [vmem:[%s14 + $0x458] sm:$0xff]
    %v4023 = vld [vmem:[%s14 + $0x460] sm:$0xff]
    %v4024 = vld [vmem:[%s14 + $0x468] sm:$0xff]
    %v4025 = vld [vmem:[%s14 + $0x470] sm:$0xff]
    %v4026 = vld [vmem:[%s14 + $0x478] sm:$0xff]
    %v4027 = vld [vmem:[%s14 + $0x480] sm:$0xff]
    %v4028 = vld [vmem:[%s14 + $0x488] sm:$0xff]
    %v4029 = vld [vmem:[%s14 + $0x490] sm:$0xff]
    %v4030 = vld [vmem:[%s14 + $0x498] sm:$0xff]
    %v4031 = vld [vmem:[%s14 + $0x4a0] sm:$0xff]
    %v4032 = vld [vmem:[%s14 + $0x4a8] sm:$0xff]
    %v4033 = vld [vmem:[%s14 + $0x4b0] sm:$0xff]
    %v4034 = vld [vmem:[%s14 + $0x4b8] sm:$0xff]
    %v4035 = vld [vmem:[%s14 + $0x4c0] sm:$0xff]
    %v4036 = vld [vmem:[%s14 + $0x4c8] sm:$0xff]
    %v4037 = vld [vmem:[%s14 + $0x4d0] sm:$0xff]
    %v4038 = vld [vmem:[%s14 + $0x4d8] sm:$0xff]
    %v4039 = vld [vmem:[%s14 + $0x4e0] sm:$0xff]
    %v4040 = vld [vmem:[%s14 + $0x4e8] sm:$0xff]
    %v4041 = vld [vmem:[%s14 + $0x4f0] sm:$0xff]
    %v4042 = vld [vmem:[%s14 + $0x4f8] sm:$0xff]
    %v4043 = vld [vmem:[%s14 + $0x500] sm:$0xff]
    %v4044 = vld [vmem:[%s14 + $0x508] sm:$0xff]
    %v4045 = vld [vmem:[%s14 + $0x510] sm:$0xff]
    %v4046 = vld [vmem:[%s14 + $0x518] sm:$0xff]
    %v4047 = vld [vmem:[%s14 + $0x520] sm:$0xff]
    %v4048 = vld [vmem:[%s14 + $0x528] sm:$0xff]
    %v4049 = vld [vmem:[%s14 + $0x530] sm:$0xff]
    %v4050 = vld [vmem:[%s14 + $0x538] sm:$0xff]
    %v4051 = vld [vmem:[%s14 + $0x540] sm:$0xff]
    %v4052 = vld [vmem:[%s14 + $0x548] sm:$0xff]
    %v4053 = vld [vmem:[%s14 + $0x550] sm:$0xff]
    %v4054 = vld [vmem:[%s14 + $0x558] sm:$0xff]
    %v4055 = vld [vmem:[%s14 + $0x560] sm:$0xff]
    %v4056 = vld [vmem:[%s14 + $0x568] sm:$0xff]
    %v4057 = vld [vmem:[%s14 + $0x570] sm:$0xff]
    %v4058 = vld [vmem:[%s14 + $0x578] sm:$0xff]
    %v4059 = vld [vmem:[%s14 + $0x580] sm:$0xff]
    %v4060 = vld [vmem:[%s14 + $0x588] sm:$0xff]
    %v4061 = vld [vmem:[%s14 + $0x590] sm:$0xff]
    %v4062 = vld [vmem:[%s14 + $0x598] sm:$0xff]
    %v4063 = vld [vmem:[%s14 + $0x5a0] sm:$0xff]
    %v4064 = vld [vmem:[%s14 + $0x5a8] sm:$0xff]
    %v4065 = vld [vmem:[%s14 + $0x5b0] sm:$0xff]
    %v4066 = vld [vmem:[%s14 + $0x5b8] sm:$0xff]
    %v4067 = vld [vmem:[%s14 + $0x5c0] sm:$0xff]
    %v4068 = vld [vmem:[%s14 + $0x5c8] sm:$0xff]
    %v4069 = vld [vmem:[%s14 + $0x5d0] sm:$0xff]
    %v4070 = vld [vmem:[%s14 + $0x5d8] sm:$0xff]
    %v4071 = vld [vmem:[%s14 + $0x5e0] sm:$0xff]
    %v4072 = vld [vmem:[%s14 + $0x5e8] sm:$0xff]
    %v4073 = vld [vmem:[%s14 + $0x5f0] sm:$0xff]
    %v4074 = vld [vmem:[%s14 + $0x5f8] sm:$0xff]
    %v4075 = vld [vmem:[%s14 + $0x600] sm:$0xff]
    %v4076 = vld [vmem:[%s14 + $0x608] sm:$0xff]
    %v4077 = vld [vmem:[%s14 + $0x610] sm:$0xff]
    %v4078 = vld [vmem:[%s14 + $0x618] sm:$0xff]
    %v4079 = vld [vmem:[%s14 + $0x620] sm:$0xff]
    %v4080 = vld [vmem:[%s14 + $0x628] sm:$0xff]
    %v4081 = vld [vmem:[%s14 + $0x630] sm:$0xff]
    %v4082 = vld [vmem:[%s14 + $0x638] sm:$0xff]
    %v4083 = vld [vmem:[%s14 + $0x640] sm:$0xff]
    %v4084 = vld [vmem:[%s14 + $0x648] sm:$0xff]
    %v4085 = vld [vmem:[%s14 + $0x650] sm:$0xff]
    %v4086 = vld [vmem:[%s14 + $0x658] sm:$0xff]
    %v4087 = vld [vmem:[%s14 + $0x660] sm:$0xff]
    %v4088 = vld [vmem:[%s14 + $0x668] sm:$0xff]
    %v4089 = vld [vmem:[%s14 + $0x670] sm:$0xff]
    %v4090 = vld [vmem:[%s14 + $0x678] sm:$0xff]
    %v4091 = vld [vmem:[%s14 + $0x680] sm:$0xff]
    %v4092 = vld [vmem:[%s14 + $0x688] sm:$0xff]
    %v4093 = vld [vmem:[%s14 + $0x690] sm:$0xff]
    %v4094 = vld [vmem:[%s14 + $0x698] sm:$0xff]
    %v4095 = vld [vmem:[%s14 + $0x6a0] sm:$0xff]
    %v4096 = vld [vmem:[%s14 + $0x6a8] sm:$0xff]
    %v4097 = vld [vmem:[%s14 + $0x6b0] sm:$0xff]
    %v4098 = vld [vmem:[%s14 + $0x6b8] sm:$0xff]
    %v4099 = vld [vmem:[%s14 + $0x6c0] sm:$0xff]
    %v4100 = vld [vmem:[%s14 + $0x6c8] sm:$0xff]
    %v4101 = vld [vmem:[%s14 + $0x6d0] sm:$0xff]
    %v4102 = vld [vmem:[%s14 + $0x6d8] sm:$0xff]
    %v4103 = vld [vmem:[%s14 + $0x6e0] sm:$0xff]
    %v4104 = vld [vmem:[%s14 + $0x6e8] sm:$0xff]
    %v4105 = vld [vmem:[%s14 + $0x6f0] sm:$0xff]
    %v4106 = vld [vmem:[%s14 + $0x6f8] sm:$0xff]
    %v4107 = vld [vmem:[%s14 + $0x700] sm:$0xff]
    %v4108 = vld [vmem:[%s14 + $0x708] sm:$0xff]
    %v4109 = vld [vmem:[%s14 + $0x710] sm:$0xff]
    %v4110 = vld [vmem:[%s14 + $0x718] sm:$0xff]
    %v4111 = vld [vmem:[%s14 + $0x720] sm:$0xff]
    %v4112 = vld [vmem:[%s14 + $0x728] sm:$0xff]
    %v4113 = vld [vmem:[%s14 + $0x730] sm:$0xff]
    %v4114 = vld [vmem:[%s14 + $0x738] sm:$0xff]
    %v4115 = vld [vmem:[%s14 + $0x740] sm:$0xff]
    %v4116 = vld [vmem:[%s14 + $0x748] sm:$0xff]
    %v4117 = vld [vmem:[%s14 + $0x750] sm:$0xff]
    %v4118 = vld [vmem:[%s14 + $0x758] sm:$0xff]
    %v4119 = vld [vmem:[%s14 + $0x760] sm:$0xff]
    %v4120 = vld [vmem:[%s14 + $0x768] sm:$0xff]
    %v4121 = vld [vmem:[%s14 + $0x770] sm:$0xff]
    %v4122 = vld [vmem:[%s14 + $0x778] sm:$0xff]
    %v4123 = vld [vmem:[%s14 + $0x780] sm:$0xff]
    %v4124 = vld [vmem:[%s14 + $0x788] sm:$0xff]
    %v4125 = vld [vmem:[%s14 + $0x790] sm:$0xff]
    %v4126 = vld [vmem:[%s14 + $0x798] sm:$0xff]
    %v4127 = vld [vmem:[%s14 + $0x7a0] sm:$0xff]
    %v4128 = vld [vmem:[%s14 + $0x7a8] sm:$0xff]
    %v4129 = vld [vmem:[%s14 + $0x7b0] sm:$0xff]
    %v4130 = vld [vmem:[%s14 + $0x7b8] sm:$0xff]
    %v4131 = vld [vmem:[%s14 + $0x7c0] sm:$0xff]
    %v4132 = vld [vmem:[%s14 + $0x7c8] sm:$0xff]
    %v4133 = vld [vmem:[%s14 + $0x7d0] sm:$0xff]
    %v4134 = vld [vmem:[%s14 + $0x7d8] sm:$0xff]
    %v4135 = vld [vmem:[%s14 + $0x7e0] sm:$0xff]
    %v4136 = vld [vmem:[%s14 + $0x7e8] sm:$0xff]
    %v4137 = vld [vmem:[%s14 + $0x7f0] sm:$0xff]
    %v4138 = vld [vmem:[%s14 + $0x7f8] sm:$0xff]
    %4139 = vmatprep.subr.mxu0 %v3944
    %4140 = vmatpush1.msra.mxu0 %v3943
    %4141 = vmatprep.subr.mxu0 %v3940
    %4142 = vmatpush1.msra.mxu0 %v3939
    %4143 = vmatprep.subr.mxu0 %v3936
    %4144 = vmatpush1.msra.mxu0 %v3935
    %4145 = vmatprep.subr.mxu0 %v3932
    %4146 = vmatpush1.msra.mxu0 %v3931
    %4147 = vmatprep.subr.mxu0 %v3928
    %4148 = vmatpush1.msra.mxu0 %v3927
    %4149 = vmatprep.subr.mxu0 %v3924
    %4150 = vmatpush1.msra.mxu0 %v3923
    %4151 = vmatprep.subr.mxu0 %v3920
    %4152 = vmatpush1.msra.mxu0 %v3919
    %4153 = vmatprep.subr.mxu0 %v3916
    %4154 = vmatpush1.msra.mxu0 %v3915
    %4155 = vmatprep.subr.mxu0 %v3912
    %4156 = vmatpush1.msra.mxu0 %v3911
    %4157 = vmatprep.subr.mxu0 %v3908
    %4158 = vmatpush1.msra.mxu0 %v3907
    %4159 = vmatprep.subr.mxu0 %v3904
    %4160 = vmatpush1.msra.mxu0 %v3903
    %4161 = vmatprep.subr.mxu0 %v3900
    %4162 = vmatpush1.msra.mxu0 %v3899
    %4163 = vmatprep.subr.mxu0 %v3896
    %4164 = vmatpush1.msra.mxu0 %v3895
    %4165 = vmatprep.subr.mxu0 %v3892
    %4166 = vmatpush1.msra.mxu0 %v3891
    %4167 = vmatprep.subr.mxu0 %v3888
    %4168 = vmatpush1.msra.mxu0 %v3887
    %4169 = vmatprep.subr.mxu0 %v3884
    %4170 = vmatpush1.msra.mxu0 %v3883
    %4171 = vmatprep.subr.mxu0 %v4008
    %4172 = vmatpush2.msra.mxu0 %v4007
    %4173 = vmatprep.subr.mxu0 %v4004
    %4174 = vmatpush2.msra.mxu0 %v4003
    %4175 = vmatprep.subr.mxu0 %v4000
    %4176 = vmatpush2.msra.mxu0 %v3999
    %4177 = vmatprep.subr.mxu0 %v3996
    %4178 = vmatpush2.msra.mxu0 %v3995
    %4179 = vmatprep.subr.mxu0 %v3992
    %4180 = vmatpush2.msra.mxu0 %v3991
    %4181 = vmatprep.subr.mxu0 %v3988
    %4182 = vmatpush2.msra.mxu0 %v3987
    %4183 = vmatprep.subr.mxu0 %v3984
    %4184 = vmatpush2.msra.mxu0 %v3983
    %4185 = vmatprep.subr.mxu0 %v3980
    %4186 = vmatpush2.msra.mxu0 %v3979
    %4187 = vmatprep.subr.mxu0 %v3976
    %4188 = vmatpush2.msra.mxu0 %v3975
    %4189 = vmatprep.subr.mxu0 %v3972
    %4190 = vmatpush2.msra.mxu0 %v3971
    %4191 = vmatprep.subr.mxu0 %v3968
    %4192 = vmatpush2.msra.mxu0 %v3967
    %4193 = vmatprep.subr.mxu0 %v3964
    %4194 = vmatpush2.msra.mxu0 %v3963
    %4195 = vmatprep.subr.mxu0 %v3960
    %4196 = vmatpush2.msra.mxu0 %v3959
    %4197 = vmatprep.subr.mxu0 %v3956
    %4198 = vmatpush2.msra.mxu0 %v3955
    %4199 = vmatprep.subr.mxu0 %v3952
    %4200 = vmatpush2.msra.mxu0 %v3951
    %4201 = vmatprep.subr.mxu0 %v3948
    %4202 = vmatpush2.msra.mxu0 %v3947
    %4203 = vmatprep.mubr.f32.mxu0 %v3776
    %4204 = vmatmul.mubr.f32.gmra.mxu0 %v3775
    %v4205 = vpop.f32.mrf.mxu0
    %v4206 = vadd.f32 %v3827, %v4205
    %v4207 = vpop.f32.mrf.mxu0
    %v4208 = vadd.f32 %v3828, %v4207
    %4209 = vdwg.mxu0
    %4210 = vmatprep.subr.mxu0 %v4072
    %4211 = vmatpush1.msra.mxu0 %v4071
    %4212 = vmatprep.subr.mxu0 %v4068
    %4213 = vmatpush1.msra.mxu0 %v4067
    %4214 = vmatprep.subr.mxu0 %v4064
    %4215 = vmatpush1.msra.mxu0 %v4063
    %4216 = vmatprep.subr.mxu0 %v4060
    %4217 = vmatpush1.msra.mxu0 %v4059
    %4218 = vmatprep.subr.mxu0 %v4056
    %4219 = vmatpush1.msra.mxu0 %v4055
    %4220 = vmatprep.subr.mxu0 %v4052
    %4221 = vmatpush1.msra.mxu0 %v4051
    %4222 = vmatprep.subr.mxu0 %v4048
    %4223 = vmatpush1.msra.mxu0 %v4047
    %4224 = vmatprep.subr.mxu0 %v4044
    %4225 = vmatpush1.msra.mxu0 %v4043
    %4226 = vmatprep.subr.mxu0 %v4040
    %4227 = vmatpush1.msra.mxu0 %v4039
    %4228 = vmatprep.subr.mxu0 %v4036
    %4229 = vmatpush1.msra.mxu0 %v4035
    %4230 = vmatprep.subr.mxu0 %v4032
    %4231 = vmatpush1.msra.mxu0 %v4031
    %4232 = vmatprep.subr.mxu0 %v4028
    %4233 = vmatpush1.msra.mxu0 %v4027
    %4234 = vmatprep.subr.mxu0 %v4024
    %4235 = vmatpush1.msra.mxu0 %v4023
    %4236 = vmatprep.subr.mxu0 %v4020
    %4237 = vmatpush1.msra.mxu0 %v4019
    %4238 = vmatprep.subr.mxu0 %v4016
    %4239 = vmatpush1.msra.mxu0 %v4015
    %4240 = vmatprep.subr.mxu0 %v4012
    %4241 = vmatpush1.msra.mxu0 %v4011
    %4242 = vmatprep.subr.mxu0 %v4136
    %4243 = vmatpush2.msra.mxu0 %v4135
    %4244 = vmatprep.subr.mxu0 %v4132
    %4245 = vmatpush2.msra.mxu0 %v4131
    %4246 = vmatprep.subr.mxu0 %v4128
    %4247 = vmatpush2.msra.mxu0 %v4127
    %4248 = vmatprep.subr.mxu0 %v4124
    %4249 = vmatpush2.msra.mxu0 %v4123
    %4250 = vmatprep.subr.mxu0 %v4120
    %4251 = vmatpush2.msra.mxu0 %v4119
    %4252 = vmatprep.subr.mxu0 %v4116
    %4253 = vmatpush2.msra.mxu0 %v4115
    %4254 = vmatprep.subr.mxu0 %v4112
    %4255 = vmatpush2.msra.mxu0 %v4111
    %4256 = vmatprep.subr.mxu0 %v4108
    %4257 = vmatpush2.msra.mxu0 %v4107
    %4258 = vmatprep.subr.mxu0 %v4104
    %4259 = vmatpush2.msra.mxu0 %v4103
    %4260 = vmatprep.subr.mxu0 %v4100
    %4261 = vmatpush2.msra.mxu0 %v4099
    %4262 = vmatprep.subr.mxu0 %v4096
    %4263 = vmatpush2.msra.mxu0 %v4095
    %4264 = vmatprep.subr.mxu0 %v4092
    %4265 = vmatpush2.msra.mxu0 %v4091
    %4266 = vmatprep.subr.mxu0 %v4088
    %4267 = vmatpush2.msra.mxu0 %v4087
    %4268 = vmatprep.subr.mxu0 %v4084
    %4269 = vmatpush2.msra.mxu0 %v4083
    %4270 = vmatprep.subr.mxu0 %v4080
    %4271 = vmatpush2.msra.mxu0 %v4079
    %4272 = vmatprep.subr.mxu0 %v4076
    %4273 = vmatpush2.msra.mxu0 %v4075
    %4274 = vmatprep.mubr.f32.mxu0 %v3778
    %4275 = vmatmul.mubr.f32.gmra.mxu0 %v3777
    %v4276 = vpop.f32.mrf.mxu0
    %v4277 = vadd.f32 %v4206, %v4276
    %v4278 = vpop.f32.mrf.mxu0
    %v4279 = vadd.f32 %v4208, %v4278
    %4280 = vdwg.mxu0
    %4281 = vmatprep.subr.mxu0 %v3946
    %4282 = vmatpush1.msra.mxu0 %v3945
    %4283 = vmatprep.subr.mxu0 %v3942
    %4284 = vmatpush1.msra.mxu0 %v3941
    %4285 = vmatprep.subr.mxu0 %v3938
    %4286 = vmatpush1.msra.mxu0 %v3937
    %4287 = vmatprep.subr.mxu0 %v3934
    %4288 = vmatpush1.msra.mxu0 %v3933
    %4289 = vmatprep.subr.mxu0 %v3930
    %4290 = vmatpush1.msra.mxu0 %v3929
    %4291 = vmatprep.subr.mxu0 %v3926
    %4292 = vmatpush1.msra.mxu0 %v3925
    %4293 = vmatprep.subr.mxu0 %v3922
    %4294 = vmatpush1.msra.mxu0 %v3921
    %4295 = vmatprep.subr.mxu0 %v3918
    %4296 = vmatpush1.msra.mxu0 %v3917
    %4297 = vmatprep.subr.mxu0 %v3914
    %4298 = vmatpush1.msra.mxu0 %v3913
    %4299 = vmatprep.subr.mxu0 %v3910
    %4300 = vmatpush1.msra.mxu0 %v3909
    %4301 = vmatprep.subr.mxu0 %v3906
    %4302 = vmatpush1.msra.mxu0 %v3905
    %4303 = vmatprep.subr.mxu0 %v3902
    %4304 = vmatpush1.msra.mxu0 %v3901
    %4305 = vmatprep.subr.mxu0 %v3898
    %4306 = vmatpush1.msra.mxu0 %v3897
    %4307 = vmatprep.subr.mxu0 %v3894
    %4308 = vmatpush1.msra.mxu0 %v3893
    %4309 = vmatprep.subr.mxu0 %v3890
    %4310 = vmatpush1.msra.mxu0 %v3889
    %4311 = vmatprep.subr.mxu0 %v3886
    %4312 = vmatpush1.msra.mxu0 %v3885
    %4313 = vmatprep.subr.mxu0 %v4010
    %4314 = vmatpush2.msra.mxu0 %v4009
    %4315 = vmatprep.subr.mxu0 %v4006
    %4316 = vmatpush2.msra.mxu0 %v4005
    %4317 = vmatprep.subr.mxu0 %v4002
    %4318 = vmatpush2.msra.mxu0 %v4001
    %4319 = vmatprep.subr.mxu0 %v3998
    %4320 = vmatpush2.msra.mxu0 %v3997
    %4321 = vmatprep.subr.mxu0 %v3994
    %4322 = vmatpush2.msra.mxu0 %v3993
    %4323 = vmatprep.subr.mxu0 %v3990
    %4324 = vmatpush2.msra.mxu0 %v3989
    %4325 = vmatprep.subr.mxu0 %v3986
    %4326 = vmatpush2.msra.mxu0 %v3985
    %4327 = vmatprep.subr.mxu0 %v3982
    %4328 = vmatpush2.msra.mxu0 %v3981
    %4329 = vmatprep.subr.mxu0 %v3978
    %4330 = vmatpush2.msra.mxu0 %v3977
    %4331 = vmatprep.subr.mxu0 %v3974
    %4332 = vmatpush2.msra.mxu0 %v3973
    %4333 = vmatprep.subr.mxu0 %v3970
    %4334 = vmatpush2.msra.mxu0 %v3969
    %4335 = vmatprep.subr.mxu0 %v3966
    %4336 = vmatpush2.msra.mxu0 %v3965
    %4337 = vmatprep.subr.mxu0 %v3962
    %4338 = vmatpush2.msra.mxu0 %v3961
    %4339 = vmatprep.subr.mxu0 %v3958
    %4340 = vmatpush2.msra.mxu0 %v3957
    %4341 = vmatprep.subr.mxu0 %v3954
    %4342 = vmatpush2.msra.mxu0 %v3953
    %4343 = vmatprep.subr.mxu0 %v3950
    %4344 = vmatpush2.msra.mxu0 %v3949
    %4345 = vmatprep.mubr.f32.mxu0 %v3776
    %4346 = vmatmul.mubr.f32.gmra.mxu0 %v3775
    %v4347 = vpop.f32.mrf.mxu0
    %v4348 = vadd.f32 %v3829, %v4347
    %v4349 = vpop.f32.mrf.mxu0
    %v4350 = vadd.f32 %v3830, %v4349
    %4351 = vdwg.mxu0
    %4352 = vmatprep.subr.mxu0 %v4074
    %4353 = vmatpush1.msra.mxu0 %v4073
    %4354 = vmatprep.subr.mxu0 %v4070
    %4355 = vmatpush1.msra.mxu0 %v4069
    %4356 = vmatprep.subr.mxu0 %v4066
    %4357 = vmatpush1.msra.mxu0 %v4065
    %4358 = vmatprep.subr.mxu0 %v4062
    %4359 = vmatpush1.msra.mxu0 %v4061
    %4360 = vmatprep.subr.mxu0 %v4058
    %4361 = vmatpush1.msra.mxu0 %v4057
    %4362 = vmatprep.subr.mxu0 %v4054
    %4363 = vmatpush1.msra.mxu0 %v4053
    %4364 = vmatprep.subr.mxu0 %v4050
    %4365 = vmatpush1.msra.mxu0 %v4049
    %4366 = vmatprep.subr.mxu0 %v4046
    %4367 = vmatpush1.msra.mxu0 %v4045
    %4368 = vmatprep.subr.mxu0 %v4042
    %4369 = vmatpush1.msra.mxu0 %v4041
    %4370 = vmatprep.subr.mxu0 %v4038
    %4371 = vmatpush1.msra.mxu0 %v4037
    %4372 = vmatprep.subr.mxu0 %v4034
    %4373 = vmatpush1.msra.mxu0 %v4033
    %4374 = vmatprep.subr.mxu0 %v4030
    %4375 = vmatpush1.msra.mxu0 %v4029
    %4376 = vmatprep.subr.mxu0 %v4026
    %4377 = vmatpush1.msra.mxu0 %v4025
    %4378 = vmatprep.subr.mxu0 %v4022
    %4379 = vmatpush1.msra.mxu0 %v4021
    %4380 = vmatprep.subr.mxu0 %v4018
    %4381 = vmatpush1.msra.mxu0 %v4017
    %4382 = vmatprep.subr.mxu0 %v4014
    %4383 = vmatpush1.msra.mxu0 %v4013
    %4384 = vmatprep.subr.mxu0 %v4138
    %4385 = vmatpush2.msra.mxu0 %v4137
    %4386 = vmatprep.subr.mxu0 %v4134
    %4387 = vmatpush2.msra.mxu0 %v4133
    %4388 = vmatprep.subr.mxu0 %v4130
    %4389 = vmatpush2.msra.mxu0 %v4129
    %4390 = vmatprep.subr.mxu0 %v4126
    %4391 = vmatpush2.msra.mxu0 %v4125
    %4392 = vmatprep.subr.mxu0 %v4122
    %4393 = vmatpush2.msra.mxu0 %v4121
    %4394 = vmatprep.subr.mxu0 %v4118
    %4395 = vmatpush2.msra.mxu0 %v4117
    %4396 = vmatprep.subr.mxu0 %v4114
    %4397 = vmatpush2.msra.mxu0 %v4113
    %4398 = vmatprep.subr.mxu0 %v4110
    %4399 = vmatpush2.msra.mxu0 %v4109
    %4400 = vmatprep.subr.mxu0 %v4106
    %4401 = vmatpush2.msra.mxu0 %v4105
    %4402 = vmatprep.subr.mxu0 %v4102
    %4403 = vmatpush2.msra.mxu0 %v4101
    %4404 = vmatprep.subr.mxu0 %v4098
    %4405 = vmatpush2.msra.mxu0 %v4097
    %4406 = vmatprep.subr.mxu0 %v4094
    %4407 = vmatpush2.msra.mxu0 %v4093
    %4408 = vmatprep.subr.mxu0 %v4090
    %4409 = vmatpush2.msra.mxu0 %v4089
    %4410 = vmatprep.subr.mxu0 %v4086
    %4411 = vmatpush2.msra.mxu0 %v4085
    %4412 = vmatprep.subr.mxu0 %v4082
    %4413 = vmatpush2.msra.mxu0 %v4081
    %4414 = vmatprep.subr.mxu0 %v4078
    %4415 = vmatpush2.msra.mxu0 %v4077
    %4416 = vmatprep.mubr.f32.mxu0 %v3778
    %4417 = vmatmul.mubr.f32.gmra.mxu0 %v3777
    %v4418 = vpop.f32.mrf.mxu0
    %v4419 = vadd.f32 %v4348, %v4418
    %v4420 = vpop.f32.mrf.mxu0
    %v4421 = vadd.f32 %v4350, %v4420
    %4422 = vdwg.mxu0
    %vm4423 = vcmp.ge.f32.partialorder %v4277, 0.0
    %vm4424 = vcmp.ge.f32.partialorder %v4279, 0.0
    %vm4425 = vcmp.ge.f32.partialorder %v4419, 0.0
    %vm4426 = vcmp.ge.f32.partialorder %v4421, 0.0
    %v4427 = vmul.f32 %v4277, 0.01
    %v4428 = vmul.f32 %v4279, 0.01
    %v4429 = vmul.f32 %v4419, 0.01
    %v4430 = vmul.f32 %v4421, 0.01
    %v4431 = vsel %vm4423, %v4277, %v4427
    %v4432 = vsel %vm4424, %v4279, %v4428
    %v4433 = vsel %vm4425, %v4419, %v4429
    %v4434 = vsel %vm4426, %v4421, %v4430
    %v4435 = vld [vmem:[%s17] sm:$0xff]
    %v4436 = vld [vmem:[%s17 + $0x8] sm:$0xff]
    %v4437 = vld [vmem:[%s17 + $0x10] sm:$0xff]
    %v4438 = vld [vmem:[%s17 + $0x18] sm:$0xff]
    %v4439 = vld [vmem:[%s17 + $0x20] sm:$0xff]
    %v4440 = vld [vmem:[%s17 + $0x28] sm:$0xff]
    %v4441 = vld [vmem:[%s17 + $0x30] sm:$0xff]
    %v4442 = vld [vmem:[%s17 + $0x38] sm:$0xff]
    %v4443 = vld [vmem:[%s17 + $0x40] sm:$0xff]
    %v4444 = vld [vmem:[%s17 + $0x48] sm:$0xff]
    %v4445 = vld [vmem:[%s17 + $0x50] sm:$0xff]
    %v4446 = vld [vmem:[%s17 + $0x58] sm:$0xff]
    %v4447 = vld [vmem:[%s17 + $0x60] sm:$0xff]
    %v4448 = vld [vmem:[%s17 + $0x68] sm:$0xff]
    %v4449 = vld [vmem:[%s17 + $0x70] sm:$0xff]
    %v4450 = vld [vmem:[%s17 + $0x78] sm:$0xff]
    %v4451 = vld [vmem:[%s17 + $0x80] sm:$0xff]
    %v4452 = vld [vmem:[%s17 + $0x88] sm:$0xff]
    %v4453 = vld [vmem:[%s17 + $0x90] sm:$0xff]
    %v4454 = vld [vmem:[%s17 + $0x98] sm:$0xff]
    %v4455 = vld [vmem:[%s17 + $0xa0] sm:$0xff]
    %v4456 = vld [vmem:[%s17 + $0xa8] sm:$0xff]
    %v4457 = vld [vmem:[%s17 + $0xb0] sm:$0xff]
    %v4458 = vld [vmem:[%s17 + $0xb8] sm:$0xff]
    %v4459 = vld [vmem:[%s17 + $0xc0] sm:$0xff]
    %v4460 = vld [vmem:[%s17 + $0xc8] sm:$0xff]
    %v4461 = vld [vmem:[%s17 + $0xd0] sm:$0xff]
    %v4462 = vld [vmem:[%s17 + $0xd8] sm:$0xff]
    %v4463 = vld [vmem:[%s17 + $0xe0] sm:$0xff]
    %v4464 = vld [vmem:[%s17 + $0xe8] sm:$0xff]
    %v4465 = vld [vmem:[%s17 + $0xf0] sm:$0xff]
    %v4466 = vld [vmem:[%s17 + $0xf8] sm:$0xff]
    %v4467 = vld [vmem:[%s17 + $0x100] sm:$0xff]
    %v4468 = vld [vmem:[%s17 + $0x108] sm:$0xff]
    %v4469 = vld [vmem:[%s17 + $0x110] sm:$0xff]
    %v4470 = vld [vmem:[%s17 + $0x118] sm:$0xff]
    %v4471 = vld [vmem:[%s17 + $0x120] sm:$0xff]
    %v4472 = vld [vmem:[%s17 + $0x128] sm:$0xff]
    %v4473 = vld [vmem:[%s17 + $0x130] sm:$0xff]
    %v4474 = vld [vmem:[%s17 + $0x138] sm:$0xff]
    %v4475 = vld [vmem:[%s17 + $0x140] sm:$0xff]
    %v4476 = vld [vmem:[%s17 + $0x148] sm:$0xff]
    %v4477 = vld [vmem:[%s17 + $0x150] sm:$0xff]
    %v4478 = vld [vmem:[%s17 + $0x158] sm:$0xff]
    %v4479 = vld [vmem:[%s17 + $0x160] sm:$0xff]
    %v4480 = vld [vmem:[%s17 + $0x168] sm:$0xff]
    %v4481 = vld [vmem:[%s17 + $0x170] sm:$0xff]
    %v4482 = vld [vmem:[%s17 + $0x178] sm:$0xff]
    %v4483 = vld [vmem:[%s17 + $0x180] sm:$0xff]
    %v4484 = vld [vmem:[%s17 + $0x188] sm:$0xff]
    %v4485 = vld [vmem:[%s17 + $0x190] sm:$0xff]
    %v4486 = vld [vmem:[%s17 + $0x198] sm:$0xff]
    %v4487 = vld [vmem:[%s17 + $0x1a0] sm:$0xff]
    %v4488 = vld [vmem:[%s17 + $0x1a8] sm:$0xff]
    %v4489 = vld [vmem:[%s17 + $0x1b0] sm:$0xff]
    %v4490 = vld [vmem:[%s17 + $0x1b8] sm:$0xff]
    %v4491 = vld [vmem:[%s17 + $0x1c0] sm:$0xff]
    %v4492 = vld [vmem:[%s17 + $0x1c8] sm:$0xff]
    %v4493 = vld [vmem:[%s17 + $0x1d0] sm:$0xff]
    %v4494 = vld [vmem:[%s17 + $0x1d8] sm:$0xff]
    %v4495 = vld [vmem:[%s17 + $0x1e0] sm:$0xff]
    %v4496 = vld [vmem:[%s17 + $0x1e8] sm:$0xff]
    %v4497 = vld [vmem:[%s17 + $0x1f0] sm:$0xff]
    %v4498 = vld [vmem:[%s17 + $0x1f8] sm:$0xff]
    %v4499 = vld [vmem:[%s17 + $0x200] sm:$0xff]
    %v4500 = vld [vmem:[%s17 + $0x208] sm:$0xff]
    %v4501 = vld [vmem:[%s17 + $0x210] sm:$0xff]
    %v4502 = vld [vmem:[%s17 + $0x218] sm:$0xff]
    %v4503 = vld [vmem:[%s17 + $0x220] sm:$0xff]
    %v4504 = vld [vmem:[%s17 + $0x228] sm:$0xff]
    %v4505 = vld [vmem:[%s17 + $0x230] sm:$0xff]
    %v4506 = vld [vmem:[%s17 + $0x238] sm:$0xff]
    %v4507 = vld [vmem:[%s17 + $0x240] sm:$0xff]
    %v4508 = vld [vmem:[%s17 + $0x248] sm:$0xff]
    %v4509 = vld [vmem:[%s17 + $0x250] sm:$0xff]
    %v4510 = vld [vmem:[%s17 + $0x258] sm:$0xff]
    %v4511 = vld [vmem:[%s17 + $0x260] sm:$0xff]
    %v4512 = vld [vmem:[%s17 + $0x268] sm:$0xff]
    %v4513 = vld [vmem:[%s17 + $0x270] sm:$0xff]
    %v4514 = vld [vmem:[%s17 + $0x278] sm:$0xff]
    %v4515 = vld [vmem:[%s17 + $0x280] sm:$0xff]
    %v4516 = vld [vmem:[%s17 + $0x288] sm:$0xff]
    %v4517 = vld [vmem:[%s17 + $0x290] sm:$0xff]
    %v4518 = vld [vmem:[%s17 + $0x298] sm:$0xff]
    %v4519 = vld [vmem:[%s17 + $0x2a0] sm:$0xff]
    %v4520 = vld [vmem:[%s17 + $0x2a8] sm:$0xff]
    %v4521 = vld [vmem:[%s17 + $0x2b0] sm:$0xff]
    %v4522 = vld [vmem:[%s17 + $0x2b8] sm:$0xff]
    %v4523 = vld [vmem:[%s17 + $0x2c0] sm:$0xff]
    %v4524 = vld [vmem:[%s17 + $0x2c8] sm:$0xff]
    %v4525 = vld [vmem:[%s17 + $0x2d0] sm:$0xff]
    %v4526 = vld [vmem:[%s17 + $0x2d8] sm:$0xff]
    %v4527 = vld [vmem:[%s17 + $0x2e0] sm:$0xff]
    %v4528 = vld [vmem:[%s17 + $0x2e8] sm:$0xff]
    %v4529 = vld [vmem:[%s17 + $0x2f0] sm:$0xff]
    %v4530 = vld [vmem:[%s17 + $0x2f8] sm:$0xff]
    %v4531 = vld [vmem:[%s17 + $0x300] sm:$0xff]
    %v4532 = vld [vmem:[%s17 + $0x308] sm:$0xff]
    %v4533 = vld [vmem:[%s17 + $0x310] sm:$0xff]
    %v4534 = vld [vmem:[%s17 + $0x318] sm:$0xff]
    %v4535 = vld [vmem:[%s17 + $0x320] sm:$0xff]
    %v4536 = vld [vmem:[%s17 + $0x328] sm:$0xff]
    %v4537 = vld [vmem:[%s17 + $0x330] sm:$0xff]
    %v4538 = vld [vmem:[%s17 + $0x338] sm:$0xff]
    %v4539 = vld [vmem:[%s17 + $0x340] sm:$0xff]
    %v4540 = vld [vmem:[%s17 + $0x348] sm:$0xff]
    %v4541 = vld [vmem:[%s17 + $0x350] sm:$0xff]
    %v4542 = vld [vmem:[%s17 + $0x358] sm:$0xff]
    %v4543 = vld [vmem:[%s17 + $0x360] sm:$0xff]
    %v4544 = vld [vmem:[%s17 + $0x368] sm:$0xff]
    %v4545 = vld [vmem:[%s17 + $0x370] sm:$0xff]
    %v4546 = vld [vmem:[%s17 + $0x378] sm:$0xff]
    %v4547 = vld [vmem:[%s17 + $0x380] sm:$0xff]
    %v4548 = vld [vmem:[%s17 + $0x388] sm:$0xff]
    %v4549 = vld [vmem:[%s17 + $0x390] sm:$0xff]
    %v4550 = vld [vmem:[%s17 + $0x398] sm:$0xff]
    %v4551 = vld [vmem:[%s17 + $0x3a0] sm:$0xff]
    %v4552 = vld [vmem:[%s17 + $0x3a8] sm:$0xff]
    %v4553 = vld [vmem:[%s17 + $0x3b0] sm:$0xff]
    %v4554 = vld [vmem:[%s17 + $0x3b8] sm:$0xff]
    %v4555 = vld [vmem:[%s17 + $0x3c0] sm:$0xff]
    %v4556 = vld [vmem:[%s17 + $0x3c8] sm:$0xff]
    %v4557 = vld [vmem:[%s17 + $0x3d0] sm:$0xff]
    %v4558 = vld [vmem:[%s17 + $0x3d8] sm:$0xff]
    %v4559 = vld [vmem:[%s17 + $0x3e0] sm:$0xff]
    %v4560 = vld [vmem:[%s17 + $0x3e8] sm:$0xff]
    %v4561 = vld [vmem:[%s17 + $0x3f0] sm:$0xff]
    %v4562 = vld [vmem:[%s17 + $0x3f8] sm:$0xff]
    %v4563 = vld [vmem:[%s17 + $0x400] sm:$0xff]
    %v4564 = vld [vmem:[%s17 + $0x408] sm:$0xff]
    %v4565 = vld [vmem:[%s17 + $0x410] sm:$0xff]
    %v4566 = vld [vmem:[%s17 + $0x418] sm:$0xff]
    %v4567 = vld [vmem:[%s17 + $0x420] sm:$0xff]
    %v4568 = vld [vmem:[%s17 + $0x428] sm:$0xff]
    %v4569 = vld [vmem:[%s17 + $0x430] sm:$0xff]
    %v4570 = vld [vmem:[%s17 + $0x438] sm:$0xff]
    %v4571 = vld [vmem:[%s17 + $0x440] sm:$0xff]
    %v4572 = vld [vmem:[%s17 + $0x448] sm:$0xff]
    %v4573 = vld [vmem:[%s17 + $0x450] sm:$0xff]
    %v4574 = vld [vmem:[%s17 + $0x458] sm:$0xff]
    %v4575 = vld [vmem:[%s17 + $0x460] sm:$0xff]
    %v4576 = vld [vmem:[%s17 + $0x468] sm:$0xff]
    %v4577 = vld [vmem:[%s17 + $0x470] sm:$0xff]
    %v4578 = vld [vmem:[%s17 + $0x478] sm:$0xff]
    %v4579 = vld [vmem:[%s17 + $0x480] sm:$0xff]
    %v4580 = vld [vmem:[%s17 + $0x488] sm:$0xff]
    %v4581 = vld [vmem:[%s17 + $0x490] sm:$0xff]
    %v4582 = vld [vmem:[%s17 + $0x498] sm:$0xff]
    %v4583 = vld [vmem:[%s17 + $0x4a0] sm:$0xff]
    %v4584 = vld [vmem:[%s17 + $0x4a8] sm:$0xff]
    %v4585 = vld [vmem:[%s17 + $0x4b0] sm:$0xff]
    %v4586 = vld [vmem:[%s17 + $0x4b8] sm:$0xff]
    %v4587 = vld [vmem:[%s17 + $0x4c0] sm:$0xff]
    %v4588 = vld [vmem:[%s17 + $0x4c8] sm:$0xff]
    %v4589 = vld [vmem:[%s17 + $0x4d0] sm:$0xff]
    %v4590 = vld [vmem:[%s17 + $0x4d8] sm:$0xff]
    %v4591 = vld [vmem:[%s17 + $0x4e0] sm:$0xff]
    %v4592 = vld [vmem:[%s17 + $0x4e8] sm:$0xff]
    %v4593 = vld [vmem:[%s17 + $0x4f0] sm:$0xff]
    %v4594 = vld [vmem:[%s17 + $0x4f8] sm:$0xff]
    %v4595 = vld [vmem:[%s17 + $0x500] sm:$0xff]
    %v4596 = vld [vmem:[%s17 + $0x508] sm:$0xff]
    %v4597 = vld [vmem:[%s17 + $0x510] sm:$0xff]
    %v4598 = vld [vmem:[%s17 + $0x518] sm:$0xff]
    %v4599 = vld [vmem:[%s17 + $0x520] sm:$0xff]
    %v4600 = vld [vmem:[%s17 + $0x528] sm:$0xff]
    %v4601 = vld [vmem:[%s17 + $0x530] sm:$0xff]
    %v4602 = vld [vmem:[%s17 + $0x538] sm:$0xff]
    %v4603 = vld [vmem:[%s17 + $0x540] sm:$0xff]
    %v4604 = vld [vmem:[%s17 + $0x548] sm:$0xff]
    %v4605 = vld [vmem:[%s17 + $0x550] sm:$0xff]
    %v4606 = vld [vmem:[%s17 + $0x558] sm:$0xff]
    %v4607 = vld [vmem:[%s17 + $0x560] sm:$0xff]
    %v4608 = vld [vmem:[%s17 + $0x568] sm:$0xff]
    %v4609 = vld [vmem:[%s17 + $0x570] sm:$0xff]
    %v4610 = vld [vmem:[%s17 + $0x578] sm:$0xff]
    %v4611 = vld [vmem:[%s17 + $0x580] sm:$0xff]
    %v4612 = vld [vmem:[%s17 + $0x588] sm:$0xff]
    %v4613 = vld [vmem:[%s17 + $0x590] sm:$0xff]
    %v4614 = vld [vmem:[%s17 + $0x598] sm:$0xff]
    %v4615 = vld [vmem:[%s17 + $0x5a0] sm:$0xff]
    %v4616 = vld [vmem:[%s17 + $0x5a8] sm:$0xff]
    %v4617 = vld [vmem:[%s17 + $0x5b0] sm:$0xff]
    %v4618 = vld [vmem:[%s17 + $0x5b8] sm:$0xff]
    %v4619 = vld [vmem:[%s17 + $0x5c0] sm:$0xff]
    %v4620 = vld [vmem:[%s17 + $0x5c8] sm:$0xff]
    %v4621 = vld [vmem:[%s17 + $0x5d0] sm:$0xff]
    %v4622 = vld [vmem:[%s17 + $0x5d8] sm:$0xff]
    %v4623 = vld [vmem:[%s17 + $0x5e0] sm:$0xff]
    %v4624 = vld [vmem:[%s17 + $0x5e8] sm:$0xff]
    %v4625 = vld [vmem:[%s17 + $0x5f0] sm:$0xff]
    %v4626 = vld [vmem:[%s17 + $0x5f8] sm:$0xff]
    %v4627 = vld [vmem:[%s17 + $0x600] sm:$0xff]
    %v4628 = vld [vmem:[%s17 + $0x608] sm:$0xff]
    %v4629 = vld [vmem:[%s17 + $0x610] sm:$0xff]
    %v4630 = vld [vmem:[%s17 + $0x618] sm:$0xff]
    %v4631 = vld [vmem:[%s17 + $0x620] sm:$0xff]
    %v4632 = vld [vmem:[%s17 + $0x628] sm:$0xff]
    %v4633 = vld [vmem:[%s17 + $0x630] sm:$0xff]
    %v4634 = vld [vmem:[%s17 + $0x638] sm:$0xff]
    %v4635 = vld [vmem:[%s17 + $0x640] sm:$0xff]
    %v4636 = vld [vmem:[%s17 + $0x648] sm:$0xff]
    %v4637 = vld [vmem:[%s17 + $0x650] sm:$0xff]
    %v4638 = vld [vmem:[%s17 + $0x658] sm:$0xff]
    %v4639 = vld [vmem:[%s17 + $0x660] sm:$0xff]
    %v4640 = vld [vmem:[%s17 + $0x668] sm:$0xff]
    %v4641 = vld [vmem:[%s17 + $0x670] sm:$0xff]
    %v4642 = vld [vmem:[%s17 + $0x678] sm:$0xff]
    %v4643 = vld [vmem:[%s17 + $0x680] sm:$0xff]
    %v4644 = vld [vmem:[%s17 + $0x688] sm:$0xff]
    %v4645 = vld [vmem:[%s17 + $0x690] sm:$0xff]
    %v4646 = vld [vmem:[%s17 + $0x698] sm:$0xff]
    %v4647 = vld [vmem:[%s17 + $0x6a0] sm:$0xff]
    %v4648 = vld [vmem:[%s17 + $0x6a8] sm:$0xff]
    %v4649 = vld [vmem:[%s17 + $0x6b0] sm:$0xff]
    %v4650 = vld [vmem:[%s17 + $0x6b8] sm:$0xff]
    %v4651 = vld [vmem:[%s17 + $0x6c0] sm:$0xff]
    %v4652 = vld [vmem:[%s17 + $0x6c8] sm:$0xff]
    %v4653 = vld [vmem:[%s17 + $0x6d0] sm:$0xff]
    %v4654 = vld [vmem:[%s17 + $0x6d8] sm:$0xff]
    %v4655 = vld [vmem:[%s17 + $0x6e0] sm:$0xff]
    %v4656 = vld [vmem:[%s17 + $0x6e8] sm:$0xff]
    %v4657 = vld [vmem:[%s17 + $0x6f0] sm:$0xff]
    %v4658 = vld [vmem:[%s17 + $0x6f8] sm:$0xff]
    %v4659 = vld [vmem:[%s17 + $0x700] sm:$0xff]
    %v4660 = vld [vmem:[%s17 + $0x708] sm:$0xff]
    %v4661 = vld [vmem:[%s17 + $0x710] sm:$0xff]
    %v4662 = vld [vmem:[%s17 + $0x718] sm:$0xff]
    %v4663 = vld [vmem:[%s17 + $0x720] sm:$0xff]
    %v4664 = vld [vmem:[%s17 + $0x728] sm:$0xff]
    %v4665 = vld [vmem:[%s17 + $0x730] sm:$0xff]
    %v4666 = vld [vmem:[%s17 + $0x738] sm:$0xff]
    %v4667 = vld [vmem:[%s17 + $0x740] sm:$0xff]
    %v4668 = vld [vmem:[%s17 + $0x748] sm:$0xff]
    %v4669 = vld [vmem:[%s17 + $0x750] sm:$0xff]
    %v4670 = vld [vmem:[%s17 + $0x758] sm:$0xff]
    %v4671 = vld [vmem:[%s17 + $0x760] sm:$0xff]
    %v4672 = vld [vmem:[%s17 + $0x768] sm:$0xff]
    %v4673 = vld [vmem:[%s17 + $0x770] sm:$0xff]
    %v4674 = vld [vmem:[%s17 + $0x778] sm:$0xff]
    %v4675 = vld [vmem:[%s17 + $0x780] sm:$0xff]
    %v4676 = vld [vmem:[%s17 + $0x788] sm:$0xff]
    %v4677 = vld [vmem:[%s17 + $0x790] sm:$0xff]
    %v4678 = vld [vmem:[%s17 + $0x798] sm:$0xff]
    %v4679 = vld [vmem:[%s17 + $0x7a0] sm:$0xff]
    %v4680 = vld [vmem:[%s17 + $0x7a8] sm:$0xff]
    %v4681 = vld [vmem:[%s17 + $0x7b0] sm:$0xff]
    %v4682 = vld [vmem:[%s17 + $0x7b8] sm:$0xff]
    %v4683 = vld [vmem:[%s17 + $0x7c0] sm:$0xff]
    %v4684 = vld [vmem:[%s17 + $0x7c8] sm:$0xff]
    %v4685 = vld [vmem:[%s17 + $0x7d0] sm:$0xff]
    %v4686 = vld [vmem:[%s17 + $0x7d8] sm:$0xff]
    %v4687 = vld [vmem:[%s17 + $0x7e0] sm:$0xff]
    %v4688 = vld [vmem:[%s17 + $0x7e8] sm:$0xff]
    %v4689 = vld [vmem:[%s17 + $0x7f0] sm:$0xff]
    %v4690 = vld [vmem:[%s17 + $0x7f8] sm:$0xff]
    %v4691 = vld [vmem:[%s18] sm:$0xf]
    %v4693 = vlaneseq
    %v4694 = vshrl.u32 %v4693, 7
    %v4695 = vsub.s32 0, %v4694
    %v4696 = vrot.slane %v4691, %v4695
    %v4697 = vlaneseq
    %v4698 = vshrl.u32 %v4697, 7
    %v4699 = vsub.s32 1, %v4698
    %v4700 = vrot.slane %v4691, %v4699
    %v4701 = vlaneseq
    %v4702 = vshrl.u32 %v4701, 7
    %v4703 = vsub.s32 2, %v4702
    %v4704 = vrot.slane %v4691, %v4703
    %v4705 = vlaneseq
    %v4706 = vshrl.u32 %v4705, 7
    %v4707 = vsub.s32 3, %v4706
    %v4708 = vrot.slane %v4691, %v4707
    %4713 = vmatprep.subr.mxu0 %v4496
    %4714 = vmatpush1.msra.mxu0 %v4495
    %4715 = vmatprep.subr.mxu0 %v4492
    %4716 = vmatpush1.msra.mxu0 %v4491
    %4717 = vmatprep.subr.mxu0 %v4488
    %4718 = vmatpush1.msra.mxu0 %v4487
    %4719 = vmatprep.subr.mxu0 %v4484
    %4720 = vmatpush1.msra.mxu0 %v4483
    %4721 = vmatprep.subr.mxu0 %v4480
    %4722 = vmatpush1.msra.mxu0 %v4479
    %4723 = vmatprep.subr.mxu0 %v4476
    %4724 = vmatpush1.msra.mxu0 %v4475
    %4725 = vmatprep.subr.mxu0 %v4472
    %4726 = vmatpush1.msra.mxu0 %v4471
    %4727 = vmatprep.subr.mxu0 %v4468
    %4728 = vmatpush1.msra.mxu0 %v4467
    %4729 = vmatprep.subr.mxu0 %v4464
    %4730 = vmatpush1.msra.mxu0 %v4463
    %4731 = vmatprep.subr.mxu0 %v4460
    %4732 = vmatpush1.msra.mxu0 %v4459
    %4733 = vmatprep.subr.mxu0 %v4456
    %4734 = vmatpush1.msra.mxu0 %v4455
    %4735 = vmatprep.subr.mxu0 %v4452
    %4736 = vmatpush1.msra.mxu0 %v4451
    %4737 = vmatprep.subr.mxu0 %v4448
    %4738 = vmatpush1.msra.mxu0 %v4447
    %4739 = vmatprep.subr.mxu0 %v4444
    %4740 = vmatpush1.msra.mxu0 %v4443
    %4741 = vmatprep.subr.mxu0 %v4440
    %4742 = vmatpush1.msra.mxu0 %v4439
    %4743 = vmatprep.subr.mxu0 %v4436
    %4744 = vmatpush1.msra.mxu0 %v4435
    %4745 = vmatprep.subr.mxu0 %v4560
    %4746 = vmatpush2.msra.mxu0 %v4559
    %4747 = vmatprep.subr.mxu0 %v4556
    %4748 = vmatpush2.msra.mxu0 %v4555
    %4749 = vmatprep.subr.mxu0 %v4552
    %4750 = vmatpush2.msra.mxu0 %v4551
    %4751 = vmatprep.subr.mxu0 %v4548
    %4752 = vmatpush2.msra.mxu0 %v4547
    %4753 = vmatprep.subr.mxu0 %v4544
    %4754 = vmatpush2.msra.mxu0 %v4543
    %4755 = vmatprep.subr.mxu0 %v4540
    %4756 = vmatpush2.msra.mxu0 %v4539
    %4757 = vmatprep.subr.mxu0 %v4536
    %4758 = vmatpush2.msra.mxu0 %v4535
    %4759 = vmatprep.subr.mxu0 %v4532
    %4760 = vmatpush2.msra.mxu0 %v4531
    %4761 = vmatprep.subr.mxu0 %v4528
    %4762 = vmatpush2.msra.mxu0 %v4527
    %4763 = vmatprep.subr.mxu0 %v4524
    %4764 = vmatpush2.msra.mxu0 %v4523
    %4765 = vmatprep.subr.mxu0 %v4520
    %4766 = vmatpush2.msra.mxu0 %v4519
    %4767 = vmatprep.subr.mxu0 %v4516
    %4768 = vmatpush2.msra.mxu0 %v4515
    %4769 = vmatprep.subr.mxu0 %v4512
    %4770 = vmatpush2.msra.mxu0 %v4511
    %4771 = vmatprep.subr.mxu0 %v4508
    %4772 = vmatpush2.msra.mxu0 %v4507
    %4773 = vmatprep.subr.mxu0 %v4504
    %4774 = vmatpush2.msra.mxu0 %v4503
    %4775 = vmatprep.subr.mxu0 %v4500
    %4776 = vmatpush2.msra.mxu0 %v4499
    %4777 = vmatprep.mubr.f32.mxu0 %v4432
    %4778 = vmatmul.mubr.f32.gmra.mxu0 %v4431
    %v4779 = vpop.f32.mrf.mxu0
    %v4780 = vadd.f32 %v4696, %v4779
    %v4781 = vpop.f32.mrf.mxu0
    %v4782 = vadd.f32 %v4700, %v4781
    %4783 = vdwg.mxu0
    %4784 = vmatprep.subr.mxu0 %v4624
    %4785 = vmatpush1.msra.mxu0 %v4623
    %4786 = vmatprep.subr.mxu0 %v4620
    %4787 = vmatpush1.msra.mxu0 %v4619
    %4788 = vmatprep.subr.mxu0 %v4616
    %4789 = vmatpush1.msra.mxu0 %v4615
    %4790 = vmatprep.subr.mxu0 %v4612
    %4791 = vmatpush1.msra.mxu0 %v4611
    %4792 = vmatprep.subr.mxu0 %v4608
    %4793 = vmatpush1.msra.mxu0 %v4607
    %4794 = vmatprep.subr.mxu0 %v4604
    %4795 = vmatpush1.msra.mxu0 %v4603
    %4796 = vmatprep.subr.mxu0 %v4600
    %4797 = vmatpush1.msra.mxu0 %v4599
    %4798 = vmatprep.subr.mxu0 %v4596
    %4799 = vmatpush1.msra.mxu0 %v4595
    %4800 = vmatprep.subr.mxu0 %v4592
    %4801 = vmatpush1.msra.mxu0 %v4591
    %4802 = vmatprep.subr.mxu0 %v4588
    %4803 = vmatpush1.msra.mxu0 %v4587
    %4804 = vmatprep.subr.mxu0 %v4584
    %4805 = vmatpush1.msra.mxu0 %v4583
    %4806 = vmatprep.subr.mxu0 %v4580
    %4807 = vmatpush1.msra.mxu0 %v4579
    %4808 = vmatprep.subr.mxu0 %v4576
    %4809 = vmatpush1.msra.mxu0 %v4575
    %4810 = vmatprep.subr.mxu0 %v4572
    %4811 = vmatpush1.msra.mxu0 %v4571
    %4812 = vmatprep.subr.mxu0 %v4568
    %4813 = vmatpush1.msra.mxu0 %v4567
    %4814 = vmatprep.subr.mxu0 %v4564
    %4815 = vmatpush1.msra.mxu0 %v4563
    %4816 = vmatprep.subr.mxu0 %v4688
    %4817 = vmatpush2.msra.mxu0 %v4687
    %4818 = vmatprep.subr.mxu0 %v4684
    %4819 = vmatpush2.msra.mxu0 %v4683
    %4820 = vmatprep.subr.mxu0 %v4680
    %4821 = vmatpush2.msra.mxu0 %v4679
    %4822 = vmatprep.subr.mxu0 %v4676
    %4823 = vmatpush2.msra.mxu0 %v4675
    %4824 = vmatprep.subr.mxu0 %v4672
    %4825 = vmatpush2.msra.mxu0 %v4671
    %4826 = vmatprep.subr.mxu0 %v4668
    %4827 = vmatpush2.msra.mxu0 %v4667
    %4828 = vmatprep.subr.mxu0 %v4664
    %4829 = vmatpush2.msra.mxu0 %v4663
    %4830 = vmatprep.subr.mxu0 %v4660
    %4831 = vmatpush2.msra.mxu0 %v4659
    %4832 = vmatprep.subr.mxu0 %v4656
    %4833 = vmatpush2.msra.mxu0 %v4655
    %4834 = vmatprep.subr.mxu0 %v4652
    %4835 = vmatpush2.msra.mxu0 %v4651
    %4836 = vmatprep.subr.mxu0 %v4648
    %4837 = vmatpush2.msra.mxu0 %v4647
    %4838 = vmatprep.subr.mxu0 %v4644
    %4839 = vmatpush2.msra.mxu0 %v4643
    %4840 = vmatprep.subr.mxu0 %v4640
    %4841 = vmatpush2.msra.mxu0 %v4639
    %4842 = vmatprep.subr.mxu0 %v4636
    %4843 = vmatpush2.msra.mxu0 %v4635
    %4844 = vmatprep.subr.mxu0 %v4632
    %4845 = vmatpush2.msra.mxu0 %v4631
    %4846 = vmatprep.subr.mxu0 %v4628
    %4847 = vmatpush2.msra.mxu0 %v4627
    %4848 = vmatprep.mubr.f32.mxu0 %v4434
    %4849 = vmatmul.mubr.f32.gmra.mxu0 %v4433
    %v4850 = vpop.f32.mrf.mxu0
    %v4851 = vadd.f32 %v4780, %v4850
    %v4852 = vpop.f32.mrf.mxu0
    %v4853 = vadd.f32 %v4782, %v4852
    %4854 = vdwg.mxu0
    %4855 = vmatprep.subr.mxu0 %v4498
    %4856 = vmatpush1.msra.mxu0 %v4497
    %4857 = vmatprep.subr.mxu0 %v4494
    %4858 = vmatpush1.msra.mxu0 %v4493
    %4859 = vmatprep.subr.mxu0 %v4490
    %4860 = vmatpush1.msra.mxu0 %v4489
    %4861 = vmatprep.subr.mxu0 %v4486
    %4862 = vmatpush1.msra.mxu0 %v4485
    %4863 = vmatprep.subr.mxu0 %v4482
    %4864 = vmatpush1.msra.mxu0 %v4481
    %4865 = vmatprep.subr.mxu0 %v4478
    %4866 = vmatpush1.msra.mxu0 %v4477
    %4867 = vmatprep.subr.mxu0 %v4474
    %4868 = vmatpush1.msra.mxu0 %v4473
    %4869 = vmatprep.subr.mxu0 %v4470
    %4870 = vmatpush1.msra.mxu0 %v4469
    %4871 = vmatprep.subr.mxu0 %v4466
    %4872 = vmatpush1.msra.mxu0 %v4465
    %4873 = vmatprep.subr.mxu0 %v4462
    %4874 = vmatpush1.msra.mxu0 %v4461
    %4875 = vmatprep.subr.mxu0 %v4458
    %4876 = vmatpush1.msra.mxu0 %v4457
    %4877 = vmatprep.subr.mxu0 %v4454
    %4878 = vmatpush1.msra.mxu0 %v4453
    %4879 = vmatprep.subr.mxu0 %v4450
    %4880 = vmatpush1.msra.mxu0 %v4449
    %4881 = vmatprep.subr.mxu0 %v4446
    %4882 = vmatpush1.msra.mxu0 %v4445
    %4883 = vmatprep.subr.mxu0 %v4442
    %4884 = vmatpush1.msra.mxu0 %v4441
    %4885 = vmatprep.subr.mxu0 %v4438
    %4886 = vmatpush1.msra.mxu0 %v4437
    %4887 = vmatprep.subr.mxu0 %v4562
    %4888 = vmatpush2.msra.mxu0 %v4561
    %4889 = vmatprep.subr.mxu0 %v4558
    %4890 = vmatpush2.msra.mxu0 %v4557
    %4891 = vmatprep.subr.mxu0 %v4554
    %4892 = vmatpush2.msra.mxu0 %v4553
    %4893 = vmatprep.subr.mxu0 %v4550
    %4894 = vmatpush2.msra.mxu0 %v4549
    %4895 = vmatprep.subr.mxu0 %v4546
    %4896 = vmatpush2.msra.mxu0 %v4545
    %4897 = vmatprep.subr.mxu0 %v4542
    %4898 = vmatpush2.msra.mxu0 %v4541
    %4899 = vmatprep.subr.mxu0 %v4538
    %4900 = vmatpush2.msra.mxu0 %v4537
    %4901 = vmatprep.subr.mxu0 %v4534
    %4902 = vmatpush2.msra.mxu0 %v4533
    %4903 = vmatprep.subr.mxu0 %v4530
    %4904 = vmatpush2.msra.mxu0 %v4529
    %4905 = vmatprep.subr.mxu0 %v4526
    %4906 = vmatpush2.msra.mxu0 %v4525
    %4907 = vmatprep.subr.mxu0 %v4522
    %4908 = vmatpush2.msra.mxu0 %v4521
    %4909 = vmatprep.subr.mxu0 %v4518
    %4910 = vmatpush2.msra.mxu0 %v4517
    %4911 = vmatprep.subr.mxu0 %v4514
    %4912 = vmatpush2.msra.mxu0 %v4513
    %4913 = vmatprep.subr.mxu0 %v4510
    %4914 = vmatpush2.msra.mxu0 %v4509
    %4915 = vmatprep.subr.mxu0 %v4506
    %4916 = vmatpush2.msra.mxu0 %v4505
    %4917 = vmatprep.subr.mxu0 %v4502
    %4918 = vmatpush2.msra.mxu0 %v4501
    %4919 = vmatprep.mubr.f32.mxu0 %v4432
    %4920 = vmatmul.mubr.f32.gmra.mxu0 %v4431
    %v4921 = vpop.f32.mrf.mxu0
    %v4922 = vadd.f32 %v4704, %v4921
    %v4923 = vpop.f32.mrf.mxu0
    %v4924 = vadd.f32 %v4708, %v4923
    %4925 = vdwg.mxu0
    %4926 = vmatprep.subr.mxu0 %v4626
    %4927 = vmatpush1.msra.mxu0 %v4625
    %4928 = vmatprep.subr.mxu0 %v4622
    %4929 = vmatpush1.msra.mxu0 %v4621
    %4930 = vmatprep.subr.mxu0 %v4618
    %4931 = vmatpush1.msra.mxu0 %v4617
    %4932 = vmatprep.subr.mxu0 %v4614
    %4933 = vmatpush1.msra.mxu0 %v4613
    %4934 = vmatprep.subr.mxu0 %v4610
    %4935 = vmatpush1.msra.mxu0 %v4609
    %4936 = vmatprep.subr.mxu0 %v4606
    %4937 = vmatpush1.msra.mxu0 %v4605
    %4938 = vmatprep.subr.mxu0 %v4602
    %4939 = vmatpush1.msra.mxu0 %v4601
    %4940 = vmatprep.subr.mxu0 %v4598
    %4941 = vmatpush1.msra.mxu0 %v4597
    %4942 = vmatprep.subr.mxu0 %v4594
    %4943 = vmatpush1.msra.mxu0 %v4593
    %4944 = vmatprep.subr.mxu0 %v4590
    %4945 = vmatpush1.msra.mxu0 %v4589
    %4946 = vmatprep.subr.mxu0 %v4586
    %4947 = vmatpush1.msra.mxu0 %v4585
    %4948 = vmatprep.subr.mxu0 %v4582
    %4949 = vmatpush1.msra.mxu0 %v4581
    %4950 = vmatprep.subr.mxu0 %v4578
    %4951 = vmatpush1.msra.mxu0 %v4577
    %4952 = vmatprep.subr.mxu0 %v4574
    %4953 = vmatpush1.msra.mxu0 %v4573
    %4954 = vmatprep.subr.mxu0 %v4570
    %4955 = vmatpush1.msra.mxu0 %v4569
    %4956 = vmatprep.subr.mxu0 %v4566
    %4957 = vmatpush1.msra.mxu0 %v4565
    %4958 = vmatprep.subr.mxu0 %v4690
    %4959 = vmatpush2.msra.mxu0 %v4689
    %4960 = vmatprep.subr.mxu0 %v4686
    %4961 = vmatpush2.msra.mxu0 %v4685
    %4962 = vmatprep.subr.mxu0 %v4682
    %4963 = vmatpush2.msra.mxu0 %v4681
    %4964 = vmatprep.subr.mxu0 %v4678
    %4965 = vmatpush2.msra.mxu0 %v4677
    %4966 = vmatprep.subr.mxu0 %v4674
    %4967 = vmatpush2.msra.mxu0 %v4673
    %4968 = vmatprep.subr.mxu0 %v4670
    %4969 = vmatpush2.msra.mxu0 %v4669
    %4970 = vmatprep.subr.mxu0 %v4666
    %4971 = vmatpush2.msra.mxu0 %v4665
    %4972 = vmatprep.subr.mxu0 %v4662
    %4973 = vmatpush2.msra.mxu0 %v4661
    %4974 = vmatprep.subr.mxu0 %v4658
    %4975 = vmatpush2.msra.mxu0 %v4657
    %4976 = vmatprep.subr.mxu0 %v4654
    %4977 = vmatpush2.msra.mxu0 %v4653
    %4978 = vmatprep.subr.mxu0 %v4650
    %4979 = vmatpush2.msra.mxu0 %v4649
    %4980 = vmatprep.subr.mxu0 %v4646
    %4981 = vmatpush2.msra.mxu0 %v4645
    %4982 = vmatprep.subr.mxu0 %v4642
    %4983 = vmatpush2.msra.mxu0 %v4641
    %4984 = vmatprep.subr.mxu0 %v4638
    %4985 = vmatpush2.msra.mxu0 %v4637
    %4986 = vmatprep.subr.mxu0 %v4634
    %4987 = vmatpush2.msra.mxu0 %v4633
    %4988 = vmatprep.subr.mxu0 %v4630
    %4989 = vmatpush2.msra.mxu0 %v4629
    %4990 = vmatprep.mubr.f32.mxu0 %v4434
    %4991 = vmatmul.mubr.f32.gmra.mxu0 %v4433
    %v4992 = vpop.f32.mrf.mxu0
    %v4993 = vadd.f32 %v4922, %v4992
    %v4994 = vpop.f32.mrf.mxu0
    %v4995 = vadd.f32 %v4924, %v4994
    %4996 = vdwg.mxu0
    %4997 = vmatprep.subr.mxu0 %v3944
    %4998 = vmatpush1.msra.mxu0 %v3943
    %4999 = vmatprep.subr.mxu0 %v3940
    %5000 = vmatpush1.msra.mxu0 %v3939
    %5001 = vmatprep.subr.mxu0 %v3936
    %5002 = vmatpush1.msra.mxu0 %v3935
    %5003 = vmatprep.subr.mxu0 %v3932
    %5004 = vmatpush1.msra.mxu0 %v3931
    %5005 = vmatprep.subr.mxu0 %v3928
    %5006 = vmatpush1.msra.mxu0 %v3927
    %5007 = vmatprep.subr.mxu0 %v3924
    %5008 = vmatpush1.msra.mxu0 %v3923
    %5009 = vmatprep.subr.mxu0 %v3920
    %5010 = vmatpush1.msra.mxu0 %v3919
    %5011 = vmatprep.subr.mxu0 %v3916
    %5012 = vmatpush1.msra.mxu0 %v3915
    %5013 = vmatprep.subr.mxu0 %v3912
    %5014 = vmatpush1.msra.mxu0 %v3911
    %5015 = vmatprep.subr.mxu0 %v3908
    %5016 = vmatpush1.msra.mxu0 %v3907
    %5017 = vmatprep.subr.mxu0 %v3904
    %5018 = vmatpush1.msra.mxu0 %v3903
    %5019 = vmatprep.subr.mxu0 %v3900
    %5020 = vmatpush1.msra.mxu0 %v3899
    %5021 = vmatprep.subr.mxu0 %v3896
    %5022 = vmatpush1.msra.mxu0 %v3895
    %5023 = vmatprep.subr.mxu0 %v3892
    %5024 = vmatpush1.msra.mxu0 %v3891
    %5025 = vmatprep.subr.mxu0 %v3888
    %5026 = vmatpush1.msra.mxu0 %v3887
    %5027 = vmatprep.subr.mxu0 %v3884
    %5028 = vmatpush1.msra.mxu0 %v3883
    %5029 = vmatprep.subr.mxu0 %v4008
    %5030 = vmatpush2.msra.mxu0 %v4007
    %5031 = vmatprep.subr.mxu0 %v4004
    %5032 = vmatpush2.msra.mxu0 %v4003
    %5033 = vmatprep.subr.mxu0 %v4000
    %5034 = vmatpush2.msra.mxu0 %v3999
    %5035 = vmatprep.subr.mxu0 %v3996
    %5036 = vmatpush2.msra.mxu0 %v3995
    %5037 = vmatprep.subr.mxu0 %v3992
    %5038 = vmatpush2.msra.mxu0 %v3991
    %5039 = vmatprep.subr.mxu0 %v3988
    %5040 = vmatpush2.msra.mxu0 %v3987
    %5041 = vmatprep.subr.mxu0 %v3984
    %5042 = vmatpush2.msra.mxu0 %v3983
    %5043 = vmatprep.subr.mxu0 %v3980
    %5044 = vmatpush2.msra.mxu0 %v3979
    %5045 = vmatprep.subr.mxu0 %v3976
    %5046 = vmatpush2.msra.mxu0 %v3975
    %5047 = vmatprep.subr.mxu0 %v3972
    %5048 = vmatpush2.msra.mxu0 %v3971
    %5049 = vmatprep.subr.mxu0 %v3968
    %5050 = vmatpush2.msra.mxu0 %v3967
    %5051 = vmatprep.subr.mxu0 %v3964
    %5052 = vmatpush2.msra.mxu0 %v3963
    %5053 = vmatprep.subr.mxu0 %v3960
    %5054 = vmatpush2.msra.mxu0 %v3959
    %5055 = vmatprep.subr.mxu0 %v3956
    %5056 = vmatpush2.msra.mxu0 %v3955
    %5057 = vmatprep.subr.mxu0 %v3952
    %5058 = vmatpush2.msra.mxu0 %v3951
    %5059 = vmatprep.subr.mxu0 %v3948
    %5060 = vmatpush2.msra.mxu0 %v3947
    %5061 = vmatprep.mubr.f32.mxu0 %v4853
    %5062 = vmatmul.mubr.f32.gmra.mxu0 %v4851
    %v5063 = vpop.f32.mrf.mxu0
    %v5064 = vadd.f32 %v3827, %v5063
    %v5065 = vpop.f32.mrf.mxu0
    %v5066 = vadd.f32 %v3828, %v5065
    %5067 = vdwg.mxu0
    %5068 = vmatprep.subr.mxu0 %v4072
    %5069 = vmatpush1.msra.mxu0 %v4071
    %5070 = vmatprep.subr.mxu0 %v4068
    %5071 = vmatpush1.msra.mxu0 %v4067
    %5072 = vmatprep.subr.mxu0 %v4064
    %5073 = vmatpush1.msra.mxu0 %v4063
    %5074 = vmatprep.subr.mxu0 %v4060
    %5075 = vmatpush1.msra.mxu0 %v4059
    %5076 = vmatprep.subr.mxu0 %v4056
    %5077 = vmatpush1.msra.mxu0 %v4055
    %5078 = vmatprep.subr.mxu0 %v4052
    %5079 = vmatpush1.msra.mxu0 %v4051
    %5080 = vmatprep.subr.mxu0 %v4048
    %5081 = vmatpush1.msra.mxu0 %v4047
    %5082 = vmatprep.subr.mxu0 %v4044
    %5083 = vmatpush1.msra.mxu0 %v4043
    %5084 = vmatprep.subr.mxu0 %v4040
    %5085 = vmatpush1.msra.mxu0 %v4039
    %5086 = vmatprep.subr.mxu0 %v4036
    %5087 = vmatpush1.msra.mxu0 %v4035
    %5088 = vmatprep.subr.mxu0 %v4032
    %5089 = vmatpush1.msra.mxu0 %v4031
    %5090 = vmatprep.subr.mxu0 %v4028
    %5091 = vmatpush1.msra.mxu0 %v4027
    %5092 = vmatprep.subr.mxu0 %v4024
    %5093 = vmatpush1.msra.mxu0 %v4023
    %5094 = vmatprep.subr.mxu0 %v4020
    %5095 = vmatpush1.msra.mxu0 %v4019
    %5096 = vmatprep.subr.mxu0 %v4016
    %5097 = vmatpush1.msra.mxu0 %v4015
    %5098 = vmatprep.subr.mxu0 %v4012
    %5099 = vmatpush1.msra.mxu0 %v4011
    %5100 = vmatprep.subr.mxu0 %v4136
    %5101 = vmatpush2.msra.mxu0 %v4135
    %5102 = vmatprep.subr.mxu0 %v4132
    %5103 = vmatpush2.msra.mxu0 %v4131
    %5104 = vmatprep.subr.mxu0 %v4128
    %5105 = vmatpush2.msra.mxu0 %v4127
    %5106 = vmatprep.subr.mxu0 %v4124
    %5107 = vmatpush2.msra.mxu0 %v4123
    %5108 = vmatprep.subr.mxu0 %v4120
    %5109 = vmatpush2.msra.mxu0 %v4119
    %5110 = vmatprep.subr.mxu0 %v4116
    %5111 = vmatpush2.msra.mxu0 %v4115
    %5112 = vmatprep.subr.mxu0 %v4112
    %5113 = vmatpush2.msra.mxu0 %v4111
    %5114 = vmatprep.subr.mxu0 %v4108
    %5115 = vmatpush2.msra.mxu0 %v4107
    %5116 = vmatprep.subr.mxu0 %v4104
    %5117 = vmatpush2.msra.mxu0 %v4103
    %5118 = vmatprep.subr.mxu0 %v4100
    %5119 = vmatpush2.msra.mxu0 %v4099
    %5120 = vmatprep.subr.mxu0 %v4096
    %5121 = vmatpush2.msra.mxu0 %v4095
    %5122 = vmatprep.subr.mxu0 %v4092
    %5123 = vmatpush2.msra.mxu0 %v4091
    %5124 = vmatprep.subr.mxu0 %v4088
    %5125 = vmatpush2.msra.mxu0 %v4087
    %5126 = vmatprep.subr.mxu0 %v4084
    %5127 = vmatpush2.msra.mxu0 %v4083
    %5128 = vmatprep.subr.mxu0 %v4080
    %5129 = vmatpush2.msra.mxu0 %v4079
    %5130 = vmatprep.subr.mxu0 %v4076
    %5131 = vmatpush2.msra.mxu0 %v4075
    %5132 = vmatprep.mubr.f32.mxu0 %v4995
    %5133 = vmatmul.mubr.f32.gmra.mxu0 %v4993
    %v5134 = vpop.f32.mrf.mxu0
    %v5135 = vadd.f32 %v5064, %v5134
    %v5136 = vpop.f32.mrf.mxu0
    %v5137 = vadd.f32 %v5066, %v5136
    %5138 = vdwg.mxu0
    %5139 = vmatprep.subr.mxu0 %v3946
    %5140 = vmatpush1.msra.mxu0 %v3945
    %5141 = vmatprep.subr.mxu0 %v3942
    %5142 = vmatpush1.msra.mxu0 %v3941
    %5143 = vmatprep.subr.mxu0 %v3938
    %5144 = vmatpush1.msra.mxu0 %v3937
    %5145 = vmatprep.subr.mxu0 %v3934
    %5146 = vmatpush1.msra.mxu0 %v3933
    %5147 = vmatprep.subr.mxu0 %v3930
    %5148 = vmatpush1.msra.mxu0 %v3929
    %5149 = vmatprep.subr.mxu0 %v3926
    %5150 = vmatpush1.msra.mxu0 %v3925
    %5151 = vmatprep.subr.mxu0 %v3922
    %5152 = vmatpush1.msra.mxu0 %v3921
    %5153 = vmatprep.subr.mxu0 %v3918
    %5154 = vmatpush1.msra.mxu0 %v3917
    %5155 = vmatprep.subr.mxu0 %v3914
    %5156 = vmatpush1.msra.mxu0 %v3913
    %5157 = vmatprep.subr.mxu0 %v3910
    %5158 = vmatpush1.msra.mxu0 %v3909
    %5159 = vmatprep.subr.mxu0 %v3906
    %5160 = vmatpush1.msra.mxu0 %v3905
    %5161 = vmatprep.subr.mxu0 %v3902
    %5162 = vmatpush1.msra.mxu0 %v3901
    %5163 = vmatprep.subr.mxu0 %v3898
    %5164 = vmatpush1.msra.mxu0 %v3897
    %5165 = vmatprep.subr.mxu0 %v3894
    %5166 = vmatpush1.msra.mxu0 %v3893
    %5167 = vmatprep.subr.mxu0 %v3890
    %5168 = vmatpush1.msra.mxu0 %v3889
    %5169 = vmatprep.subr.mxu0 %v3886
    %5170 = vmatpush1.msra.mxu0 %v3885
    %5171 = vmatprep.subr.mxu0 %v4010
    %5172 = vmatpush2.msra.mxu0 %v4009
    %5173 = vmatprep.subr.mxu0 %v4006
    %5174 = vmatpush2.msra.mxu0 %v4005
    %5175 = vmatprep.subr.mxu0 %v4002
    %5176 = vmatpush2.msra.mxu0 %v4001
    %5177 = vmatprep.subr.mxu0 %v3998
    %5178 = vmatpush2.msra.mxu0 %v3997
    %5179 = vmatprep.subr.mxu0 %v3994
    %5180 = vmatpush2.msra.mxu0 %v3993
    %5181 = vmatprep.subr.mxu0 %v3990
    %5182 = vmatpush2.msra.mxu0 %v3989
    %5183 = vmatprep.subr.mxu0 %v3986
    %5184 = vmatpush2.msra.mxu0 %v3985
    %5185 = vmatprep.subr.mxu0 %v3982
    %5186 = vmatpush2.msra.mxu0 %v3981
    %5187 = vmatprep.subr.mxu0 %v3978
    %5188 = vmatpush2.msra.mxu0 %v3977
    %5189 = vmatprep.subr.mxu0 %v3974
    %5190 = vmatpush2.msra.mxu0 %v3973
    %5191 = vmatprep.subr.mxu0 %v3970
    %5192 = vmatpush2.msra.mxu0 %v3969
    %5193 = vmatprep.subr.mxu0 %v3966
    %5194 = vmatpush2.msra.mxu0 %v3965
    %5195 = vmatprep.subr.mxu0 %v3962
    %5196 = vmatpush2.msra.mxu0 %v3961
    %5197 = vmatprep.subr.mxu0 %v3958
    %5198 = vmatpush2.msra.mxu0 %v3957
    %5199 = vmatprep.subr.mxu0 %v3954
    %5200 = vmatpush2.msra.mxu0 %v3953
    %5201 = vmatprep.subr.mxu0 %v3950
    %5202 = vmatpush2.msra.mxu0 %v3949
    %5203 = vmatprep.mubr.f32.mxu0 %v4853
    %5204 = vmatmul.mubr.f32.gmra.mxu0 %v4851
    %v5205 = vpop.f32.mrf.mxu0
    %v5206 = vadd.f32 %v3829, %v5205
    %v5207 = vpop.f32.mrf.mxu0
    %v5208 = vadd.f32 %v3830, %v5207
    %5209 = vdwg.mxu0
    %5210 = vmatprep.subr.mxu0 %v4074
    %5211 = vmatpush1.msra.mxu0 %v4073
    %5212 = vmatprep.subr.mxu0 %v4070
    %5213 = vmatpush1.msra.mxu0 %v4069
    %5214 = vmatprep.subr.mxu0 %v4066
    %5215 = vmatpush1.msra.mxu0 %v4065
    %5216 = vmatprep.subr.mxu0 %v4062
    %5217 = vmatpush1.msra.mxu0 %v4061
    %5218 = vmatprep.subr.mxu0 %v4058
    %5219 = vmatpush1.msra.mxu0 %v4057
    %5220 = vmatprep.subr.mxu0 %v4054
    %5221 = vmatpush1.msra.mxu0 %v4053
    %5222 = vmatprep.subr.mxu0 %v4050
    %5223 = vmatpush1.msra.mxu0 %v4049
    %5224 = vmatprep.subr.mxu0 %v4046
    %5225 = vmatpush1.msra.mxu0 %v4045
    %5226 = vmatprep.subr.mxu0 %v4042
    %5227 = vmatpush1.msra.mxu0 %v4041
    %5228 = vmatprep.subr.mxu0 %v4038
    %5229 = vmatpush1.msra.mxu0 %v4037
    %5230 = vmatprep.subr.mxu0 %v4034
    %5231 = vmatpush1.msra.mxu0 %v4033
    %5232 = vmatprep.subr.mxu0 %v4030
    %5233 = vmatpush1.msra.mxu0 %v4029
    %5234 = vmatprep.subr.mxu0 %v4026
    %5235 = vmatpush1.msra.mxu0 %v4025
    %5236 = vmatprep.subr.mxu0 %v4022
    %5237 = vmatpush1.msra.mxu0 %v4021
    %5238 = vmatprep.subr.mxu0 %v4018
    %5239 = vmatpush1.msra.mxu0 %v4017
    %5240 = vmatprep.subr.mxu0 %v4014
    %5241 = vmatpush1.msra.mxu0 %v4013
    %5242 = vmatprep.subr.mxu0 %v4138
    %5243 = vmatpush2.msra.mxu0 %v4137
    %5244 = vmatprep.subr.mxu0 %v4134
    %5245 = vmatpush2.msra.mxu0 %v4133
    %5246 = vmatprep.subr.mxu0 %v4130
    %5247 = vmatpush2.msra.mxu0 %v4129
    %5248 = vmatprep.subr.mxu0 %v4126
    %5249 = vmatpush2.msra.mxu0 %v4125
    %5250 = vmatprep.subr.mxu0 %v4122
    %5251 = vmatpush2.msra.mxu0 %v4121
    %5252 = vmatprep.subr.mxu0 %v4118
    %5253 = vmatpush2.msra.mxu0 %v4117
    %5254 = vmatprep.subr.mxu0 %v4114
    %5255 = vmatpush2.msra.mxu0 %v4113
    %5256 = vmatprep.subr.mxu0 %v4110
    %5257 = vmatpush2.msra.mxu0 %v4109
    %5258 = vmatprep.subr.mxu0 %v4106
    %5259 = vmatpush2.msra.mxu0 %v4105
    %5260 = vmatprep.subr.mxu0 %v4102
    %5261 = vmatpush2.msra.mxu0 %v4101
    %5262 = vmatprep.subr.mxu0 %v4098
    %5263 = vmatpush2.msra.mxu0 %v4097
    %5264 = vmatprep.subr.mxu0 %v4094
    %5265 = vmatpush2.msra.mxu0 %v4093
    %5266 = vmatprep.subr.mxu0 %v4090
    %5267 = vmatpush2.msra.mxu0 %v4089
    %5268 = vmatprep.subr.mxu0 %v4086
    %5269 = vmatpush2.msra.mxu0 %v4085
    %5270 = vmatprep.subr.mxu0 %v4082
    %5271 = vmatpush2.msra.mxu0 %v4081
    %5272 = vmatprep.subr.mxu0 %v4078
    %5273 = vmatpush2.msra.mxu0 %v4077
    %5274 = vmatprep.mubr.f32.mxu0 %v4995
    %5275 = vmatmul.mubr.f32.gmra.mxu0 %v4993
    %v5276 = vpop.f32.mrf.mxu0
    %v5277 = vadd.f32 %v5206, %v5276
    %v5278 = vpop.f32.mrf.mxu0
    %v5279 = vadd.f32 %v5208, %v5278
    %5280 = vdwg.mxu0
    %vm5281 = vcmp.ge.f32.partialorder %v5135, 0.0
    %vm5282 = vcmp.ge.f32.partialorder %v5137, 0.0
    %vm5283 = vcmp.ge.f32.partialorder %v5277, 0.0
    %vm5284 = vcmp.ge.f32.partialorder %v5279, 0.0
    %v5285 = vmul.f32 %v5135, 0.01
    %v5286 = vmul.f32 %v5137, 0.01
    %v5287 = vmul.f32 %v5277, 0.01
    %v5288 = vmul.f32 %v5279, 0.01
    %v5289 = vsel %vm5281, %v5135, %v5285
    %v5290 = vsel %vm5282, %v5137, %v5286
    %v5291 = vsel %vm5283, %v5277, %v5287
    %v5292 = vsel %vm5284, %v5279, %v5288
    %5293 = vmatprep.subr.mxu0 %v4496
    %5294 = vmatpush1.msra.mxu0 %v4495
    %5295 = vmatprep.subr.mxu0 %v4492
    %5296 = vmatpush1.msra.mxu0 %v4491
    %5297 = vmatprep.subr.mxu0 %v4488
    %5298 = vmatpush1.msra.mxu0 %v4487
    %5299 = vmatprep.subr.mxu0 %v4484
    %5300 = vmatpush1.msra.mxu0 %v4483
    %5301 = vmatprep.subr.mxu0 %v4480
    %5302 = vmatpush1.msra.mxu0 %v4479
    %5303 = vmatprep.subr.mxu0 %v4476
    %5304 = vmatpush1.msra.mxu0 %v4475
    %5305 = vmatprep.subr.mxu0 %v4472
    %5306 = vmatpush1.msra.mxu0 %v4471
    %5307 = vmatprep.subr.mxu0 %v4468
    %5308 = vmatpush1.msra.mxu0 %v4467
    %5309 = vmatprep.subr.mxu0 %v4464
    %5310 = vmatpush1.msra.mxu0 %v4463
    %5311 = vmatprep.subr.mxu0 %v4460
    %5312 = vmatpush1.msra.mxu0 %v4459
    %5313 = vmatprep.subr.mxu0 %v4456
    %5314 = vmatpush1.msra.mxu0 %v4455
    %5315 = vmatprep.subr.mxu0 %v4452
    %5316 = vmatpush1.msra.mxu0 %v4451
    %5317 = vmatprep.subr.mxu0 %v4448
    %5318 = vmatpush1.msra.mxu0 %v4447
    %5319 = vmatprep.subr.mxu0 %v4444
    %5320 = vmatpush1.msra.mxu0 %v4443
    %5321 = vmatprep.subr.mxu0 %v4440
    %5322 = vmatpush1.msra.mxu0 %v4439
    %5323 = vmatprep.subr.mxu0 %v4436
    %5324 = vmatpush1.msra.mxu0 %v4435
    %5325 = vmatprep.subr.mxu0 %v4560
    %5326 = vmatpush2.msra.mxu0 %v4559
    %5327 = vmatprep.subr.mxu0 %v4556
    %5328 = vmatpush2.msra.mxu0 %v4555
    %5329 = vmatprep.subr.mxu0 %v4552
    %5330 = vmatpush2.msra.mxu0 %v4551
    %5331 = vmatprep.subr.mxu0 %v4548
    %5332 = vmatpush2.msra.mxu0 %v4547
    %5333 = vmatprep.subr.mxu0 %v4544
    %5334 = vmatpush2.msra.mxu0 %v4543
    %5335 = vmatprep.subr.mxu0 %v4540
    %5336 = vmatpush2.msra.mxu0 %v4539
    %5337 = vmatprep.subr.mxu0 %v4536
    %5338 = vmatpush2.msra.mxu0 %v4535
    %5339 = vmatprep.subr.mxu0 %v4532
    %5340 = vmatpush2.msra.mxu0 %v4531
    %5341 = vmatprep.subr.mxu0 %v4528
    %5342 = vmatpush2.msra.mxu0 %v4527
    %5343 = vmatprep.subr.mxu0 %v4524
    %5344 = vmatpush2.msra.mxu0 %v4523
    %5345 = vmatprep.subr.mxu0 %v4520
    %5346 = vmatpush2.msra.mxu0 %v4519
    %5347 = vmatprep.subr.mxu0 %v4516
    %5348 = vmatpush2.msra.mxu0 %v4515
    %5349 = vmatprep.subr.mxu0 %v4512
    %5350 = vmatpush2.msra.mxu0 %v4511
    %5351 = vmatprep.subr.mxu0 %v4508
    %5352 = vmatpush2.msra.mxu0 %v4507
    %5353 = vmatprep.subr.mxu0 %v4504
    %5354 = vmatpush2.msra.mxu0 %v4503
    %5355 = vmatprep.subr.mxu0 %v4500
    %5356 = vmatpush2.msra.mxu0 %v4499
    %5357 = vmatprep.mubr.f32.mxu0 %v5290
    %5358 = vmatmul.mubr.f32.gmra.mxu0 %v5289
    %v5359 = vpop.f32.mrf.mxu0
    %v5360 = vadd.f32 %v4696, %v5359
    %v5361 = vpop.f32.mrf.mxu0
    %v5362 = vadd.f32 %v4700, %v5361
    %5363 = vdwg.mxu0
    %5364 = vmatprep.subr.mxu0 %v4624
    %5365 = vmatpush1.msra.mxu0 %v4623
    %5366 = vmatprep.subr.mxu0 %v4620
    %5367 = vmatpush1.msra.mxu0 %v4619
    %5368 = vmatprep.subr.mxu0 %v4616
    %5369 = vmatpush1.msra.mxu0 %v4615
    %5370 = vmatprep.subr.mxu0 %v4612
    %5371 = vmatpush1.msra.mxu0 %v4611
    %5372 = vmatprep.subr.mxu0 %v4608
    %5373 = vmatpush1.msra.mxu0 %v4607
    %5374 = vmatprep.subr.mxu0 %v4604
    %5375 = vmatpush1.msra.mxu0 %v4603
    %5376 = vmatprep.subr.mxu0 %v4600
    %5377 = vmatpush1.msra.mxu0 %v4599
    %5378 = vmatprep.subr.mxu0 %v4596
    %5379 = vmatpush1.msra.mxu0 %v4595
    %5380 = vmatprep.subr.mxu0 %v4592
    %5381 = vmatpush1.msra.mxu0 %v4591
    %5382 = vmatprep.subr.mxu0 %v4588
    %5383 = vmatpush1.msra.mxu0 %v4587
    %5384 = vmatprep.subr.mxu0 %v4584
    %5385 = vmatpush1.msra.mxu0 %v4583
    %5386 = vmatprep.subr.mxu0 %v4580
    %5387 = vmatpush1.msra.mxu0 %v4579
    %5388 = vmatprep.subr.mxu0 %v4576
    %5389 = vmatpush1.msra.mxu0 %v4575
    %5390 = vmatprep.subr.mxu0 %v4572
    %5391 = vmatpush1.msra.mxu0 %v4571
    %5392 = vmatprep.subr.mxu0 %v4568
    %5393 = vmatpush1.msra.mxu0 %v4567
    %5394 = vmatprep.subr.mxu0 %v4564
    %5395 = vmatpush1.msra.mxu0 %v4563
    %5396 = vmatprep.subr.mxu0 %v4688
    %5397 = vmatpush2.msra.mxu0 %v4687
    %5398 = vmatprep.subr.mxu0 %v4684
    %5399 = vmatpush2.msra.mxu0 %v4683
    %5400 = vmatprep.subr.mxu0 %v4680
    %5401 = vmatpush2.msra.mxu0 %v4679
    %5402 = vmatprep.subr.mxu0 %v4676
    %5403 = vmatpush2.msra.mxu0 %v4675
    %5404 = vmatprep.subr.mxu0 %v4672
    %5405 = vmatpush2.msra.mxu0 %v4671
    %5406 = vmatprep.subr.mxu0 %v4668
    %5407 = vmatpush2.msra.mxu0 %v4667
    %5408 = vmatprep.subr.mxu0 %v4664
    %5409 = vmatpush2.msra.mxu0 %v4663
    %5410 = vmatprep.subr.mxu0 %v4660
    %5411 = vmatpush2.msra.mxu0 %v4659
    %5412 = vmatprep.subr.mxu0 %v4656
    %5413 = vmatpush2.msra.mxu0 %v4655
    %5414 = vmatprep.subr.mxu0 %v4652
    %5415 = vmatpush2.msra.mxu0 %v4651
    %5416 = vmatprep.subr.mxu0 %v4648
    %5417 = vmatpush2.msra.mxu0 %v4647
    %5418 = vmatprep.subr.mxu0 %v4644
    %5419 = vmatpush2.msra.mxu0 %v4643
    %5420 = vmatprep.subr.mxu0 %v4640
    %5421 = vmatpush2.msra.mxu0 %v4639
    %5422 = vmatprep.subr.mxu0 %v4636
    %5423 = vmatpush2.msra.mxu0 %v4635
    %5424 = vmatprep.subr.mxu0 %v4632
    %5425 = vmatpush2.msra.mxu0 %v4631
    %5426 = vmatprep.subr.mxu0 %v4628
    %5427 = vmatpush2.msra.mxu0 %v4627
    %5428 = vmatprep.mubr.f32.mxu0 %v5292
    %5429 = vmatmul.mubr.f32.gmra.mxu0 %v5291
    %v5430 = vpop.f32.mrf.mxu0
    %v5431 = vadd.f32 %v5360, %v5430
    %v5432 = vpop.f32.mrf.mxu0
    %v5433 = vadd.f32 %v5362, %v5432
    %5434 = vdwg.mxu0
    %5435 = vmatprep.subr.mxu0 %v4498
    %5436 = vmatpush1.msra.mxu0 %v4497
    %5437 = vmatprep.subr.mxu0 %v4494
    %5438 = vmatpush1.msra.mxu0 %v4493
    %5439 = vmatprep.subr.mxu0 %v4490
    %5440 = vmatpush1.msra.mxu0 %v4489
    %5441 = vmatprep.subr.mxu0 %v4486
    %5442 = vmatpush1.msra.mxu0 %v4485
    %5443 = vmatprep.subr.mxu0 %v4482
    %5444 = vmatpush1.msra.mxu0 %v4481
    %5445 = vmatprep.subr.mxu0 %v4478
    %5446 = vmatpush1.msra.mxu0 %v4477
    %5447 = vmatprep.subr.mxu0 %v4474
    %5448 = vmatpush1.msra.mxu0 %v4473
    %5449 = vmatprep.subr.mxu0 %v4470
    %5450 = vmatpush1.msra.mxu0 %v4469
    %5451 = vmatprep.subr.mxu0 %v4466
    %5452 = vmatpush1.msra.mxu0 %v4465
    %5453 = vmatprep.subr.mxu0 %v4462
    %5454 = vmatpush1.msra.mxu0 %v4461
    %5455 = vmatprep.subr.mxu0 %v4458
    %5456 = vmatpush1.msra.mxu0 %v4457
    %5457 = vmatprep.subr.mxu0 %v4454
    %5458 = vmatpush1.msra.mxu0 %v4453
    %5459 = vmatprep.subr.mxu0 %v4450
    %5460 = vmatpush1.msra.mxu0 %v4449
    %5461 = vmatprep.subr.mxu0 %v4446
    %5462 = vmatpush1.msra.mxu0 %v4445
    %5463 = vmatprep.subr.mxu0 %v4442
    %5464 = vmatpush1.msra.mxu0 %v4441
    %5465 = vmatprep.subr.mxu0 %v4438
    %5466 = vmatpush1.msra.mxu0 %v4437
    %5467 = vmatprep.subr.mxu0 %v4562
    %5468 = vmatpush2.msra.mxu0 %v4561
    %5469 = vmatprep.subr.mxu0 %v4558
    %5470 = vmatpush2.msra.mxu0 %v4557
    %5471 = vmatprep.subr.mxu0 %v4554
    %5472 = vmatpush2.msra.mxu0 %v4553
    %5473 = vmatprep.subr.mxu0 %v4550
    %5474 = vmatpush2.msra.mxu0 %v4549
    %5475 = vmatprep.subr.mxu0 %v4546
    %5476 = vmatpush2.msra.mxu0 %v4545
    %5477 = vmatprep.subr.mxu0 %v4542
    %5478 = vmatpush2.msra.mxu0 %v4541
    %5479 = vmatprep.subr.mxu0 %v4538
    %5480 = vmatpush2.msra.mxu0 %v4537
    %5481 = vmatprep.subr.mxu0 %v4534
    %5482 = vmatpush2.msra.mxu0 %v4533
    %5483 = vmatprep.subr.mxu0 %v4530
    %5484 = vmatpush2.msra.mxu0 %v4529
    %5485 = vmatprep.subr.mxu0 %v4526
    %5486 = vmatpush2.msra.mxu0 %v4525
    %5487 = vmatprep.subr.mxu0 %v4522
    %5488 = vmatpush2.msra.mxu0 %v4521
    %5489 = vmatprep.subr.mxu0 %v4518
    %5490 = vmatpush2.msra.mxu0 %v4517
    %5491 = vmatprep.subr.mxu0 %v4514
    %5492 = vmatpush2.msra.mxu0 %v4513
    %5493 = vmatprep.subr.mxu0 %v4510
    %5494 = vmatpush2.msra.mxu0 %v4509
    %5495 = vmatprep.subr.mxu0 %v4506
    %5496 = vmatpush2.msra.mxu0 %v4505
    %5497 = vmatprep.subr.mxu0 %v4502
    %5498 = vmatpush2.msra.mxu0 %v4501
    %5499 = vmatprep.mubr.f32.mxu0 %v5290
    %5500 = vmatmul.mubr.f32.gmra.mxu0 %v5289
    %v5501 = vpop.f32.mrf.mxu0
    %v5502 = vadd.f32 %v4704, %v5501
    %v5503 = vpop.f32.mrf.mxu0
    %v5504 = vadd.f32 %v4708, %v5503
    %5505 = vdwg.mxu0
    %5506 = vmatprep.subr.mxu0 %v4626
    %5507 = vmatpush1.msra.mxu0 %v4625
    %5508 = vmatprep.subr.mxu0 %v4622
    %5509 = vmatpush1.msra.mxu0 %v4621
    %5510 = vmatprep.subr.mxu0 %v4618
    %5511 = vmatpush1.msra.mxu0 %v4617
    %5512 = vmatprep.subr.mxu0 %v4614
    %5513 = vmatpush1.msra.mxu0 %v4613
    %5514 = vmatprep.subr.mxu0 %v4610
    %5515 = vmatpush1.msra.mxu0 %v4609
    %5516 = vmatprep.subr.mxu0 %v4606
    %5517 = vmatpush1.msra.mxu0 %v4605
    %5518 = vmatprep.subr.mxu0 %v4602
    %5519 = vmatpush1.msra.mxu0 %v4601
    %5520 = vmatprep.subr.mxu0 %v4598
    %5521 = vmatpush1.msra.mxu0 %v4597
    %5522 = vmatprep.subr.mxu0 %v4594
    %5523 = vmatpush1.msra.mxu0 %v4593
    %5524 = vmatprep.subr.mxu0 %v4590
    %5525 = vmatpush1.msra.mxu0 %v4589
    %5526 = vmatprep.subr.mxu0 %v4586
    %5527 = vmatpush1.msra.mxu0 %v4585
    %5528 = vmatprep.subr.mxu0 %v4582
    %5529 = vmatpush1.msra.mxu0 %v4581
    %5530 = vmatprep.subr.mxu0 %v4578
    %5531 = vmatpush1.msra.mxu0 %v4577
    %5532 = vmatprep.subr.mxu0 %v4574
    %5533 = vmatpush1.msra.mxu0 %v4573
    %5534 = vmatprep.subr.mxu0 %v4570
    %5535 = vmatpush1.msra.mxu0 %v4569
    %5536 = vmatprep.subr.mxu0 %v4566
    %5537 = vmatpush1.msra.mxu0 %v4565
    %5538 = vmatprep.subr.mxu0 %v4690
    %5539 = vmatpush2.msra.mxu0 %v4689
    %5540 = vmatprep.subr.mxu0 %v4686
    %5541 = vmatpush2.msra.mxu0 %v4685
    %5542 = vmatprep.subr.mxu0 %v4682
    %5543 = vmatpush2.msra.mxu0 %v4681
    %5544 = vmatprep.subr.mxu0 %v4678
    %5545 = vmatpush2.msra.mxu0 %v4677
    %5546 = vmatprep.subr.mxu0 %v4674
    %5547 = vmatpush2.msra.mxu0 %v4673
    %5548 = vmatprep.subr.mxu0 %v4670
    %5549 = vmatpush2.msra.mxu0 %v4669
    %5550 = vmatprep.subr.mxu0 %v4666
    %5551 = vmatpush2.msra.mxu0 %v4665
    %5552 = vmatprep.subr.mxu0 %v4662
    %5553 = vmatpush2.msra.mxu0 %v4661
    %5554 = vmatprep.subr.mxu0 %v4658
    %5555 = vmatpush2.msra.mxu0 %v4657
    %5556 = vmatprep.subr.mxu0 %v4654
    %5557 = vmatpush2.msra.mxu0 %v4653
    %5558 = vmatprep.subr.mxu0 %v4650
    %5559 = vmatpush2.msra.mxu0 %v4649
    %5560 = vmatprep.subr.mxu0 %v4646
    %5561 = vmatpush2.msra.mxu0 %v4645
    %5562 = vmatprep.subr.mxu0 %v4642
    %5563 = vmatpush2.msra.mxu0 %v4641
    %5564 = vmatprep.subr.mxu0 %v4638
    %5565 = vmatpush2.msra.mxu0 %v4637
    %5566 = vmatprep.subr.mxu0 %v4634
    %5567 = vmatpush2.msra.mxu0 %v4633
    %5568 = vmatprep.subr.mxu0 %v4630
    %5569 = vmatpush2.msra.mxu0 %v4629
    %5570 = vmatprep.mubr.f32.mxu0 %v5292
    %5571 = vmatmul.mubr.f32.gmra.mxu0 %v5291
    %v5572 = vpop.f32.mrf.mxu0
    %v5573 = vadd.f32 %v5502, %v5572
    %v5574 = vpop.f32.mrf.mxu0
    %v5575 = vadd.f32 %v5504, %v5574
    %5576 = vdwg.mxu0
    %v5577 = vadd.f32 %v5431, %v3775
    %v5578 = vadd.f32 %v5433, %v3776
    %v5579 = vadd.f32 %v5573, %v3777
    %v5580 = vadd.f32 %v5575, %v3778
    %5581 = vmatprep.subr.mxu0 %v3944
    %5582 = vmatpush1.msra.mxu0 %v3943
    %5583 = vmatprep.subr.mxu0 %v3940
    %5584 = vmatpush1.msra.mxu0 %v3939
    %5585 = vmatprep.subr.mxu0 %v3936
    %5586 = vmatpush1.msra.mxu0 %v3935
    %5587 = vmatprep.subr.mxu0 %v3932
    %5588 = vmatpush1.msra.mxu0 %v3931
    %5589 = vmatprep.subr.mxu0 %v3928
    %5590 = vmatpush1.msra.mxu0 %v3927
    %5591 = vmatprep.subr.mxu0 %v3924
    %5592 = vmatpush1.msra.mxu0 %v3923
    %5593 = vmatprep.subr.mxu0 %v3920
    %5594 = vmatpush1.msra.mxu0 %v3919
    %5595 = vmatprep.subr.mxu0 %v3916
    %5596 = vmatpush1.msra.mxu0 %v3915
    %5597 = vmatprep.subr.mxu0 %v3912
    %5598 = vmatpush1.msra.mxu0 %v3911
    %5599 = vmatprep.subr.mxu0 %v3908
    %5600 = vmatpush1.msra.mxu0 %v3907
    %5601 = vmatprep.subr.mxu0 %v3904
    %5602 = vmatpush1.msra.mxu0 %v3903
    %5603 = vmatprep.subr.mxu0 %v3900
    %5604 = vmatpush1.msra.mxu0 %v3899
    %5605 = vmatprep.subr.mxu0 %v3896
    %5606 = vmatpush1.msra.mxu0 %v3895
    %5607 = vmatprep.subr.mxu0 %v3892
    %5608 = vmatpush1.msra.mxu0 %v3891
    %5609 = vmatprep.subr.mxu0 %v3888
    %5610 = vmatpush1.msra.mxu0 %v3887
    %5611 = vmatprep.subr.mxu0 %v3884
    %5612 = vmatpush1.msra.mxu0 %v3883
    %5613 = vmatprep.subr.mxu0 %v4008
    %5614 = vmatpush2.msra.mxu0 %v4007
    %5615 = vmatprep.subr.mxu0 %v4004
    %5616 = vmatpush2.msra.mxu0 %v4003
    %5617 = vmatprep.subr.mxu0 %v4000
    %5618 = vmatpush2.msra.mxu0 %v3999
    %5619 = vmatprep.subr.mxu0 %v3996
    %5620 = vmatpush2.msra.mxu0 %v3995
    %5621 = vmatprep.subr.mxu0 %v3992
    %5622 = vmatpush2.msra.mxu0 %v3991
    %5623 = vmatprep.subr.mxu0 %v3988
    %5624 = vmatpush2.msra.mxu0 %v3987
    %5625 = vmatprep.subr.mxu0 %v3984
    %5626 = vmatpush2.msra.mxu0 %v3983
    %5627 = vmatprep.subr.mxu0 %v3980
    %5628 = vmatpush2.msra.mxu0 %v3979
    %5629 = vmatprep.subr.mxu0 %v3976
    %5630 = vmatpush2.msra.mxu0 %v3975
    %5631 = vmatprep.subr.mxu0 %v3972
    %5632 = vmatpush2.msra.mxu0 %v3971
    %5633 = vmatprep.subr.mxu0 %v3968
    %5634 = vmatpush2.msra.mxu0 %v3967
    %5635 = vmatprep.subr.mxu0 %v3964
    %5636 = vmatpush2.msra.mxu0 %v3963
    %5637 = vmatprep.subr.mxu0 %v3960
    %5638 = vmatpush2.msra.mxu0 %v3959
    %5639 = vmatprep.subr.mxu0 %v3956
    %5640 = vmatpush2.msra.mxu0 %v3955
    %5641 = vmatprep.subr.mxu0 %v3952
    %5642 = vmatpush2.msra.mxu0 %v3951
    %5643 = vmatprep.subr.mxu0 %v3948
    %5644 = vmatpush2.msra.mxu0 %v3947
    %5645 = vmatprep.mubr.f32.mxu0 %v5578
    %5646 = vmatmul.mubr.f32.gmra.mxu0 %v5577
    %v5647 = vpop.f32.mrf.mxu0
    %v5648 = vadd.f32 %v3827, %v5647
    %v5649 = vpop.f32.mrf.mxu0
    %v5650 = vadd.f32 %v3828, %v5649
    %5651 = vdwg.mxu0
    %5652 = vmatprep.subr.mxu0 %v4072
    %5653 = vmatpush1.msra.mxu0 %v4071
    %5654 = vmatprep.subr.mxu0 %v4068
    %5655 = vmatpush1.msra.mxu0 %v4067
    %5656 = vmatprep.subr.mxu0 %v4064
    %5657 = vmatpush1.msra.mxu0 %v4063
    %5658 = vmatprep.subr.mxu0 %v4060
    %5659 = vmatpush1.msra.mxu0 %v4059
    %5660 = vmatprep.subr.mxu0 %v4056
    %5661 = vmatpush1.msra.mxu0 %v4055
    %5662 = vmatprep.subr.mxu0 %v4052
    %5663 = vmatpush1.msra.mxu0 %v4051
    %5664 = vmatprep.subr.mxu0 %v4048
    %5665 = vmatpush1.msra.mxu0 %v4047
    %5666 = vmatprep.subr.mxu0 %v4044
    %5667 = vmatpush1.msra.mxu0 %v4043
    %5668 = vmatprep.subr.mxu0 %v4040
    %5669 = vmatpush1.msra.mxu0 %v4039
    %5670 = vmatprep.subr.mxu0 %v4036
    %5671 = vmatpush1.msra.mxu0 %v4035
    %5672 = vmatprep.subr.mxu0 %v4032
    %5673 = vmatpush1.msra.mxu0 %v4031
    %5674 = vmatprep.subr.mxu0 %v4028
    %5675 = vmatpush1.msra.mxu0 %v4027
    %5676 = vmatprep.subr.mxu0 %v4024
    %5677 = vmatpush1.msra.mxu0 %v4023
    %5678 = vmatprep.subr.mxu0 %v4020
    %5679 = vmatpush1.msra.mxu0 %v4019
    %5680 = vmatprep.subr.mxu0 %v4016
    %5681 = vmatpush1.msra.mxu0 %v4015
    %5682 = vmatprep.subr.mxu0 %v4012
    %5683 = vmatpush1.msra.mxu0 %v4011
    %5684 = vmatprep.subr.mxu0 %v4136
    %5685 = vmatpush2.msra.mxu0 %v4135
    %5686 = vmatprep.subr.mxu0 %v4132
    %5687 = vmatpush2.msra.mxu0 %v4131
    %5688 = vmatprep.subr.mxu0 %v4128
    %5689 = vmatpush2.msra.mxu0 %v4127
    %5690 = vmatprep.subr.mxu0 %v4124
    %5691 = vmatpush2.msra.mxu0 %v4123
    %5692 = vmatprep.subr.mxu0 %v4120
    %5693 = vmatpush2.msra.mxu0 %v4119
    %5694 = vmatprep.subr.mxu0 %v4116
    %5695 = vmatpush2.msra.mxu0 %v4115
    %5696 = vmatprep.subr.mxu0 %v4112
    %5697 = vmatpush2.msra.mxu0 %v4111
    %5698 = vmatprep.subr.mxu0 %v4108
    %5699 = vmatpush2.msra.mxu0 %v4107
    %5700 = vmatprep.subr.mxu0 %v4104
    %5701 = vmatpush2.msra.mxu0 %v4103
    %5702 = vmatprep.subr.mxu0 %v4100
    %5703 = vmatpush2.msra.mxu0 %v4099
    %5704 = vmatprep.subr.mxu0 %v4096
    %5705 = vmatpush2.msra.mxu0 %v4095
    %5706 = vmatprep.subr.mxu0 %v4092
    %5707 = vmatpush2.msra.mxu0 %v4091
    %5708 = vmatprep.subr.mxu0 %v4088
    %5709 = vmatpush2.msra.mxu0 %v4087
    %5710 = vmatprep.subr.mxu0 %v4084
    %5711 = vmatpush2.msra.mxu0 %v4083
    %5712 = vmatprep.subr.mxu0 %v4080
    %5713 = vmatpush2.msra.mxu0 %v4079
    %5714 = vmatprep.subr.mxu0 %v4076
    %5715 = vmatpush2.msra.mxu0 %v4075
    %5716 = vmatprep.mubr.f32.mxu0 %v5580
    %5717 = vmatmul.mubr.f32.gmra.mxu0 %v5579
    %v5718 = vpop.f32.mrf.mxu0
    %v5719 = vadd.f32 %v5648, %v5718
    %v5720 = vpop.f32.mrf.mxu0
    %v5721 = vadd.f32 %v5650, %v5720
    %5722 = vdwg.mxu0
    %5723 = vmatprep.subr.mxu0 %v3946
    %5724 = vmatpush1.msra.mxu0 %v3945
    %5725 = vmatprep.subr.mxu0 %v3942
    %5726 = vmatpush1.msra.mxu0 %v3941
    %5727 = vmatprep.subr.mxu0 %v3938
    %5728 = vmatpush1.msra.mxu0 %v3937
    %5729 = vmatprep.subr.mxu0 %v3934
    %5730 = vmatpush1.msra.mxu0 %v3933
    %5731 = vmatprep.subr.mxu0 %v3930
    %5732 = vmatpush1.msra.mxu0 %v3929
    %5733 = vmatprep.subr.mxu0 %v3926
    %5734 = vmatpush1.msra.mxu0 %v3925
    %5735 = vmatprep.subr.mxu0 %v3922
    %5736 = vmatpush1.msra.mxu0 %v3921
    %5737 = vmatprep.subr.mxu0 %v3918
    %5738 = vmatpush1.msra.mxu0 %v3917
    %5739 = vmatprep.subr.mxu0 %v3914
    %5740 = vmatpush1.msra.mxu0 %v3913
    %5741 = vmatprep.subr.mxu0 %v3910
    %5742 = vmatpush1.msra.mxu0 %v3909
    %5743 = vmatprep.subr.mxu0 %v3906
    %5744 = vmatpush1.msra.mxu0 %v3905
    %5745 = vmatprep.subr.mxu0 %v3902
    %5746 = vmatpush1.msra.mxu0 %v3901
    %5747 = vmatprep.subr.mxu0 %v3898
    %5748 = vmatpush1.msra.mxu0 %v3897
    %5749 = vmatprep.subr.mxu0 %v3894
    %5750 = vmatpush1.msra.mxu0 %v3893
    %5751 = vmatprep.subr.mxu0 %v3890
    %5752 = vmatpush1.msra.mxu0 %v3889
    %5753 = vmatprep.subr.mxu0 %v3886
    %5754 = vmatpush1.msra.mxu0 %v3885
    %5755 = vmatprep.subr.mxu0 %v4010
    %5756 = vmatpush2.msra.mxu0 %v4009
    %5757 = vmatprep.subr.mxu0 %v4006
    %5758 = vmatpush2.msra.mxu0 %v4005
    %5759 = vmatprep.subr.mxu0 %v4002
    %5760 = vmatpush2.msra.mxu0 %v4001
    %5761 = vmatprep.subr.mxu0 %v3998
    %5762 = vmatpush2.msra.mxu0 %v3997
    %5763 = vmatprep.subr.mxu0 %v3994
    %5764 = vmatpush2.msra.mxu0 %v3993
    %5765 = vmatprep.subr.mxu0 %v3990
    %5766 = vmatpush2.msra.mxu0 %v3989
    %5767 = vmatprep.subr.mxu0 %v3986
    %5768 = vmatpush2.msra.mxu0 %v3985
    %5769 = vmatprep.subr.mxu0 %v3982
    %5770 = vmatpush2.msra.mxu0 %v3981
    %5771 = vmatprep.subr.mxu0 %v3978
    %5772 = vmatpush2.msra.mxu0 %v3977
    %5773 = vmatprep.subr.mxu0 %v3974
    %5774 = vmatpush2.msra.mxu0 %v3973
    %5775 = vmatprep.subr.mxu0 %v3970
    %5776 = vmatpush2.msra.mxu0 %v3969
    %5777 = vmatprep.subr.mxu0 %v3966
    %5778 = vmatpush2.msra.mxu0 %v3965
    %5779 = vmatprep.subr.mxu0 %v3962
    %5780 = vmatpush2.msra.mxu0 %v3961
    %5781 = vmatprep.subr.mxu0 %v3958
    %5782 = vmatpush2.msra.mxu0 %v3957
    %5783 = vmatprep.subr.mxu0 %v3954
    %5784 = vmatpush2.msra.mxu0 %v3953
    %5785 = vmatprep.subr.mxu0 %v3950
    %5786 = vmatpush2.msra.mxu0 %v3949
    %5787 = vmatprep.mubr.f32.mxu0 %v5578
    %5788 = vmatmul.mubr.f32.gmra.mxu0 %v5577
    %v5789 = vpop.f32.mrf.mxu0
    %v5790 = vadd.f32 %v3829, %v5789
    %v5791 = vpop.f32.mrf.mxu0
    %v5792 = vadd.f32 %v3830, %v5791
    %5793 = vdwg.mxu0
    %5794 = vmatprep.subr.mxu0 %v4074
    %5795 = vmatpush1.msra.mxu0 %v4073
    %5796 = vmatprep.subr.mxu0 %v4070
    %5797 = vmatpush1.msra.mxu0 %v4069
    %5798 = vmatprep.subr.mxu0 %v4066
    %5799 = vmatpush1.msra.mxu0 %v4065
    %5800 = vmatprep.subr.mxu0 %v4062
    %5801 = vmatpush1.msra.mxu0 %v4061
    %5802 = vmatprep.subr.mxu0 %v4058
    %5803 = vmatpush1.msra.mxu0 %v4057
    %5804 = vmatprep.subr.mxu0 %v4054
    %5805 = vmatpush1.msra.mxu0 %v4053
    %5806 = vmatprep.subr.mxu0 %v4050
    %5807 = vmatpush1.msra.mxu0 %v4049
    %5808 = vmatprep.subr.mxu0 %v4046
    %5809 = vmatpush1.msra.mxu0 %v4045
    %5810 = vmatprep.subr.mxu0 %v4042
    %5811 = vmatpush1.msra.mxu0 %v4041
    %5812 = vmatprep.subr.mxu0 %v4038
    %5813 = vmatpush1.msra.mxu0 %v4037
    %5814 = vmatprep.subr.mxu0 %v4034
    %5815 = vmatpush1.msra.mxu0 %v4033
    %5816 = vmatprep.subr.mxu0 %v4030
    %5817 = vmatpush1.msra.mxu0 %v4029
    %5818 = vmatprep.subr.mxu0 %v4026
    %5819 = vmatpush1.msra.mxu0 %v4025
    %5820 = vmatprep.subr.mxu0 %v4022
    %5821 = vmatpush1.msra.mxu0 %v4021
    %5822 = vmatprep.subr.mxu0 %v4018
    %5823 = vmatpush1.msra.mxu0 %v4017
    %5824 = vmatprep.subr.mxu0 %v4014
    %5825 = vmatpush1.msra.mxu0 %v4013
    %5826 = vmatprep.subr.mxu0 %v4138
    %5827 = vmatpush2.msra.mxu0 %v4137
    %5828 = vmatprep.subr.mxu0 %v4134
    %5829 = vmatpush2.msra.mxu0 %v4133
    %5830 = vmatprep.subr.mxu0 %v4130
    %5831 = vmatpush2.msra.mxu0 %v4129
    %5832 = vmatprep.subr.mxu0 %v4126
    %5833 = vmatpush2.msra.mxu0 %v4125
    %5834 = vmatprep.subr.mxu0 %v4122
    %5835 = vmatpush2.msra.mxu0 %v4121
    %5836 = vmatprep.subr.mxu0 %v4118
    %5837 = vmatpush2.msra.mxu0 %v4117
    %5838 = vmatprep.subr.mxu0 %v4114
    %5839 = vmatpush2.msra.mxu0 %v4113
    %5840 = vmatprep.subr.mxu0 %v4110
    %5841 = vmatpush2.msra.mxu0 %v4109
    %5842 = vmatprep.subr.mxu0 %v4106
    %5843 = vmatpush2.msra.mxu0 %v4105
    %5844 = vmatprep.subr.mxu0 %v4102
    %5845 = vmatpush2.msra.mxu0 %v4101
    %5846 = vmatprep.subr.mxu0 %v4098
    %5847 = vmatpush2.msra.mxu0 %v4097
    %5848 = vmatprep.subr.mxu0 %v4094
    %5849 = vmatpush2.msra.mxu0 %v4093
    %5850 = vmatprep.subr.mxu0 %v4090
    %5851 = vmatpush2.msra.mxu0 %v4089
    %5852 = vmatprep.subr.mxu0 %v4086
    %5853 = vmatpush2.msra.mxu0 %v4085
    %5854 = vmatprep.subr.mxu0 %v4082
    %5855 = vmatpush2.msra.mxu0 %v4081
    %5856 = vmatprep.subr.mxu0 %v4078
    %5857 = vmatpush2.msra.mxu0 %v4077
    %5858 = vmatprep.mubr.f32.mxu0 %v5580
    %5859 = vmatmul.mubr.f32.gmra.mxu0 %v5579
    %v5860 = vpop.f32.mrf.mxu0
    %v5861 = vadd.f32 %v5790, %v5860
    %v5862 = vpop.f32.mrf.mxu0
    %v5863 = vadd.f32 %v5792, %v5862
    %5864 = vdwg.mxu0
    %vm5865 = vcmp.ge.f32.partialorder %v5719, 0.0
    %vm5866 = vcmp.ge.f32.partialorder %v5721, 0.0
    %vm5867 = vcmp.ge.f32.partialorder %v5861, 0.0
    %vm5868 = vcmp.ge.f32.partialorder %v5863, 0.0
    %v5869 = vmul.f32 %v5719, 0.01
    %v5870 = vmul.f32 %v5721, 0.01
    %v5871 = vmul.f32 %v5861, 0.01
    %v5872 = vmul.f32 %v5863, 0.01
    %v5873 = vsel %vm5865, %v5719, %v5869
    %v5874 = vsel %vm5866, %v5721, %v5870
    %v5875 = vsel %vm5867, %v5861, %v5871
    %v5876 = vsel %vm5868, %v5863, %v5872
    %5877 = vmatprep.subr.mxu0 %v4496
    %5878 = vmatpush1.msra.mxu0 %v4495
    %5879 = vmatprep.subr.mxu0 %v4492
    %5880 = vmatpush1.msra.mxu0 %v4491
    %5881 = vmatprep.subr.mxu0 %v4488
    %5882 = vmatpush1.msra.mxu0 %v4487
    %5883 = vmatprep.subr.mxu0 %v4484
    %5884 = vmatpush1.msra.mxu0 %v4483
    %5885 = vmatprep.subr.mxu0 %v4480
    %5886 = vmatpush1.msra.mxu0 %v4479
    %5887 = vmatprep.subr.mxu0 %v4476
    %5888 = vmatpush1.msra.mxu0 %v4475
    %5889 = vmatprep.subr.mxu0 %v4472
    %5890 = vmatpush1.msra.mxu0 %v4471
    %5891 = vmatprep.subr.mxu0 %v4468
    %5892 = vmatpush1.msra.mxu0 %v4467
    %5893 = vmatprep.subr.mxu0 %v4464
    %5894 = vmatpush1.msra.mxu0 %v4463
    %5895 = vmatprep.subr.mxu0 %v4460
    %5896 = vmatpush1.msra.mxu0 %v4459
    %5897 = vmatprep.subr.mxu0 %v4456
    %5898 = vmatpush1.msra.mxu0 %v4455
    %5899 = vmatprep.subr.mxu0 %v4452
    %5900 = vmatpush1.msra.mxu0 %v4451
    %5901 = vmatprep.subr.mxu0 %v4448
    %5902 = vmatpush1.msra.mxu0 %v4447
    %5903 = vmatprep.subr.mxu0 %v4444
    %5904 = vmatpush1.msra.mxu0 %v4443
    %5905 = vmatprep.subr.mxu0 %v4440
    %5906 = vmatpush1.msra.mxu0 %v4439
    %5907 = vmatprep.subr.mxu0 %v4436
    %5908 = vmatpush1.msra.mxu0 %v4435
    %5909 = vmatprep.subr.mxu0 %v4560
    %5910 = vmatpush2.msra.mxu0 %v4559
    %5911 = vmatprep.subr.mxu0 %v4556
    %5912 = vmatpush2.msra.mxu0 %v4555
    %5913 = vmatprep.subr.mxu0 %v4552
    %5914 = vmatpush2.msra.mxu0 %v4551
    %5915 = vmatprep.subr.mxu0 %v4548
    %5916 = vmatpush2.msra.mxu0 %v4547
    %5917 = vmatprep.subr.mxu0 %v4544
    %5918 = vmatpush2.msra.mxu0 %v4543
    %5919 = vmatprep.subr.mxu0 %v4540
    %5920 = vmatpush2.msra.mxu0 %v4539
    %5921 = vmatprep.subr.mxu0 %v4536
    %5922 = vmatpush2.msra.mxu0 %v4535
    %5923 = vmatprep.subr.mxu0 %v4532
    %5924 = vmatpush2.msra.mxu0 %v4531
    %5925 = vmatprep.subr.mxu0 %v4528
    %5926 = vmatpush2.msra.mxu0 %v4527
    %5927 = vmatprep.subr.mxu0 %v4524
    %5928 = vmatpush2.msra.mxu0 %v4523
    %5929 = vmatprep.subr.mxu0 %v4520
    %5930 = vmatpush2.msra.mxu0 %v4519
    %5931 = vmatprep.subr.mxu0 %v4516
    %5932 = vmatpush2.msra.mxu0 %v4515
    %5933 = vmatprep.subr.mxu0 %v4512
    %5934 = vmatpush2.msra.mxu0 %v4511
    %5935 = vmatprep.subr.mxu0 %v4508
    %5936 = vmatpush2.msra.mxu0 %v4507
    %5937 = vmatprep.subr.mxu0 %v4504
    %5938 = vmatpush2.msra.mxu0 %v4503
    %5939 = vmatprep.subr.mxu0 %v4500
    %5940 = vmatpush2.msra.mxu0 %v4499
    %5941 = vmatprep.mubr.f32.mxu0 %v5874
    %5942 = vmatmul.mubr.f32.gmra.mxu0 %v5873
    %v5943 = vpop.f32.mrf.mxu0
    %v5944 = vadd.f32 %v4696, %v5943
    %v5945 = vpop.f32.mrf.mxu0
    %v5946 = vadd.f32 %v4700, %v5945
    %5947 = vdwg.mxu0
    %5948 = vmatprep.subr.mxu0 %v4624
    %5949 = vmatpush1.msra.mxu0 %v4623
    %5950 = vmatprep.subr.mxu0 %v4620
    %5951 = vmatpush1.msra.mxu0 %v4619
    %5952 = vmatprep.subr.mxu0 %v4616
    %5953 = vmatpush1.msra.mxu0 %v4615
    %5954 = vmatprep.subr.mxu0 %v4612
    %5955 = vmatpush1.msra.mxu0 %v4611
    %5956 = vmatprep.subr.mxu0 %v4608
    %5957 = vmatpush1.msra.mxu0 %v4607
    %5958 = vmatprep.subr.mxu0 %v4604
    %5959 = vmatpush1.msra.mxu0 %v4603
    %5960 = vmatprep.subr.mxu0 %v4600
    %5961 = vmatpush1.msra.mxu0 %v4599
    %5962 = vmatprep.subr.mxu0 %v4596
    %5963 = vmatpush1.msra.mxu0 %v4595
    %5964 = vmatprep.subr.mxu0 %v4592
    %5965 = vmatpush1.msra.mxu0 %v4591
    %5966 = vmatprep.subr.mxu0 %v4588
    %5967 = vmatpush1.msra.mxu0 %v4587
    %5968 = vmatprep.subr.mxu0 %v4584
    %5969 = vmatpush1.msra.mxu0 %v4583
    %5970 = vmatprep.subr.mxu0 %v4580
    %5971 = vmatpush1.msra.mxu0 %v4579
    %5972 = vmatprep.subr.mxu0 %v4576
    %5973 = vmatpush1.msra.mxu0 %v4575
    %5974 = vmatprep.subr.mxu0 %v4572
    %5975 = vmatpush1.msra.mxu0 %v4571
    %5976 = vmatprep.subr.mxu0 %v4568
    %5977 = vmatpush1.msra.mxu0 %v4567
    %5978 = vmatprep.subr.mxu0 %v4564
    %5979 = vmatpush1.msra.mxu0 %v4563
    %5980 = vmatprep.subr.mxu0 %v4688
    %5981 = vmatpush2.msra.mxu0 %v4687
    %5982 = vmatprep.subr.mxu0 %v4684
    %5983 = vmatpush2.msra.mxu0 %v4683
    %5984 = vmatprep.subr.mxu0 %v4680
    %5985 = vmatpush2.msra.mxu0 %v4679
    %5986 = vmatprep.subr.mxu0 %v4676
    %5987 = vmatpush2.msra.mxu0 %v4675
    %5988 = vmatprep.subr.mxu0 %v4672
    %5989 = vmatpush2.msra.mxu0 %v4671
    %5990 = vmatprep.subr.mxu0 %v4668
    %5991 = vmatpush2.msra.mxu0 %v4667
    %5992 = vmatprep.subr.mxu0 %v4664
    %5993 = vmatpush2.msra.mxu0 %v4663
    %5994 = vmatprep.subr.mxu0 %v4660
    %5995 = vmatpush2.msra.mxu0 %v4659
    %5996 = vmatprep.subr.mxu0 %v4656
    %5997 = vmatpush2.msra.mxu0 %v4655
    %5998 = vmatprep.subr.mxu0 %v4652
    %5999 = vmatpush2.msra.mxu0 %v4651
    %6000 = vmatprep.subr.mxu0 %v4648
    %6001 = vmatpush2.msra.mxu0 %v4647
    %6002 = vmatprep.subr.mxu0 %v4644
    %6003 = vmatpush2.msra.mxu0 %v4643
    %6004 = vmatprep.subr.mxu0 %v4640
    %6005 = vmatpush2.msra.mxu0 %v4639
    %6006 = vmatprep.subr.mxu0 %v4636
    %6007 = vmatpush2.msra.mxu0 %v4635
    %6008 = vmatprep.subr.mxu0 %v4632
    %6009 = vmatpush2.msra.mxu0 %v4631
    %6010 = vmatprep.subr.mxu0 %v4628
    %6011 = vmatpush2.msra.mxu0 %v4627
    %6012 = vmatprep.mubr.f32.mxu0 %v5876
    %6013 = vmatmul.mubr.f32.gmra.mxu0 %v5875
    %v6014 = vpop.f32.mrf.mxu0
    %v6015 = vadd.f32 %v5944, %v6014
    %v6016 = vpop.f32.mrf.mxu0
    %v6017 = vadd.f32 %v5946, %v6016
    %6018 = vdwg.mxu0
    %6019 = vmatprep.subr.mxu0 %v4498
    %6020 = vmatpush1.msra.mxu0 %v4497
    %6021 = vmatprep.subr.mxu0 %v4494
    %6022 = vmatpush1.msra.mxu0 %v4493
    %6023 = vmatprep.subr.mxu0 %v4490
    %6024 = vmatpush1.msra.mxu0 %v4489
    %6025 = vmatprep.subr.mxu0 %v4486
    %6026 = vmatpush1.msra.mxu0 %v4485
    %6027 = vmatprep.subr.mxu0 %v4482
    %6028 = vmatpush1.msra.mxu0 %v4481
    %6029 = vmatprep.subr.mxu0 %v4478
    %6030 = vmatpush1.msra.mxu0 %v4477
    %6031 = vmatprep.subr.mxu0 %v4474
    %6032 = vmatpush1.msra.mxu0 %v4473
    %6033 = vmatprep.subr.mxu0 %v4470
    %6034 = vmatpush1.msra.mxu0 %v4469
    %6035 = vmatprep.subr.mxu0 %v4466
    %6036 = vmatpush1.msra.mxu0 %v4465
    %6037 = vmatprep.subr.mxu0 %v4462
    %6038 = vmatpush1.msra.mxu0 %v4461
    %6039 = vmatprep.subr.mxu0 %v4458
    %6040 = vmatpush1.msra.mxu0 %v4457
    %6041 = vmatprep.subr.mxu0 %v4454
    %6042 = vmatpush1.msra.mxu0 %v4453
    %6043 = vmatprep.subr.mxu0 %v4450
    %6044 = vmatpush1.msra.mxu0 %v4449
    %6045 = vmatprep.subr.mxu0 %v4446
    %6046 = vmatpush1.msra.mxu0 %v4445
    %6047 = vmatprep.subr.mxu0 %v4442
    %6048 = vmatpush1.msra.mxu0 %v4441
    %6049 = vmatprep.subr.mxu0 %v4438
    %6050 = vmatpush1.msra.mxu0 %v4437
    %6051 = vmatprep.subr.mxu0 %v4562
    %6052 = vmatpush2.msra.mxu0 %v4561
    %6053 = vmatprep.subr.mxu0 %v4558
    %6054 = vmatpush2.msra.mxu0 %v4557
    %6055 = vmatprep.subr.mxu0 %v4554
    %6056 = vmatpush2.msra.mxu0 %v4553
    %6057 = vmatprep.subr.mxu0 %v4550
    %6058 = vmatpush2.msra.mxu0 %v4549
    %6059 = vmatprep.subr.mxu0 %v4546
    %6060 = vmatpush2.msra.mxu0 %v4545
    %6061 = vmatprep.subr.mxu0 %v4542
    %6062 = vmatpush2.msra.mxu0 %v4541
    %6063 = vmatprep.subr.mxu0 %v4538
    %6064 = vmatpush2.msra.mxu0 %v4537
    %6065 = vmatprep.subr.mxu0 %v4534
    %6066 = vmatpush2.msra.mxu0 %v4533
    %6067 = vmatprep.subr.mxu0 %v4530
    %6068 = vmatpush2.msra.mxu0 %v4529
    %6069 = vmatprep.subr.mxu0 %v4526
    %6070 = vmatpush2.msra.mxu0 %v4525
    %6071 = vmatprep.subr.mxu0 %v4522
    %6072 = vmatpush2.msra.mxu0 %v4521
    %6073 = vmatprep.subr.mxu0 %v4518
    %6074 = vmatpush2.msra.mxu0 %v4517
    %6075 = vmatprep.subr.mxu0 %v4514
    %6076 = vmatpush2.msra.mxu0 %v4513
    %6077 = vmatprep.subr.mxu0 %v4510
    %6078 = vmatpush2.msra.mxu0 %v4509
    %6079 = vmatprep.subr.mxu0 %v4506
    %6080 = vmatpush2.msra.mxu0 %v4505
    %6081 = vmatprep.subr.mxu0 %v4502
    %6082 = vmatpush2.msra.mxu0 %v4501
    %6083 = vmatprep.mubr.f32.mxu0 %v5874
    %6084 = vmatmul.mubr.f32.gmra.mxu0 %v5873
    %v6085 = vpop.f32.mrf.mxu0
    %v6086 = vadd.f32 %v4704, %v6085
    %v6087 = vpop.f32.mrf.mxu0
    %v6088 = vadd.f32 %v4708, %v6087
    %6089 = vdwg.mxu0
    %6090 = vmatprep.subr.mxu0 %v4626
    %6091 = vmatpush1.msra.mxu0 %v4625
    %6092 = vmatprep.subr.mxu0 %v4622
    %6093 = vmatpush1.msra.mxu0 %v4621
    %6094 = vmatprep.subr.mxu0 %v4618
    %6095 = vmatpush1.msra.mxu0 %v4617
    %6096 = vmatprep.subr.mxu0 %v4614
    %6097 = vmatpush1.msra.mxu0 %v4613
    %6098 = vmatprep.subr.mxu0 %v4610
    %6099 = vmatpush1.msra.mxu0 %v4609
    %6100 = vmatprep.subr.mxu0 %v4606
    %6101 = vmatpush1.msra.mxu0 %v4605
    %6102 = vmatprep.subr.mxu0 %v4602
    %6103 = vmatpush1.msra.mxu0 %v4601
    %6104 = vmatprep.subr.mxu0 %v4598
    %6105 = vmatpush1.msra.mxu0 %v4597
    %6106 = vmatprep.subr.mxu0 %v4594
    %6107 = vmatpush1.msra.mxu0 %v4593
    %6108 = vmatprep.subr.mxu0 %v4590
    %6109 = vmatpush1.msra.mxu0 %v4589
    %6110 = vmatprep.subr.mxu0 %v4586
    %6111 = vmatpush1.msra.mxu0 %v4585
    %6112 = vmatprep.subr.mxu0 %v4582
    %6113 = vmatpush1.msra.mxu0 %v4581
    %6114 = vmatprep.subr.mxu0 %v4578
    %6115 = vmatpush1.msra.mxu0 %v4577
    %6116 = vmatprep.subr.mxu0 %v4574
    %6117 = vmatpush1.msra.mxu0 %v4573
    %6118 = vmatprep.subr.mxu0 %v4570
    %6119 = vmatpush1.msra.mxu0 %v4569
    %6120 = vmatprep.subr.mxu0 %v4566
    %6121 = vmatpush1.msra.mxu0 %v4565
    %6122 = vmatprep.subr.mxu0 %v4690
    %6123 = vmatpush2.msra.mxu0 %v4689
    %6124 = vmatprep.subr.mxu0 %v4686
    %6125 = vmatpush2.msra.mxu0 %v4685
    %6126 = vmatprep.subr.mxu0 %v4682
    %6127 = vmatpush2.msra.mxu0 %v4681
    %6128 = vmatprep.subr.mxu0 %v4678
    %6129 = vmatpush2.msra.mxu0 %v4677
    %6130 = vmatprep.subr.mxu0 %v4674
    %6131 = vmatpush2.msra.mxu0 %v4673
    %6132 = vmatprep.subr.mxu0 %v4670
    %6133 = vmatpush2.msra.mxu0 %v4669
    %6134 = vmatprep.subr.mxu0 %v4666
    %6135 = vmatpush2.msra.mxu0 %v4665
    %6136 = vmatprep.subr.mxu0 %v4662
    %6137 = vmatpush2.msra.mxu0 %v4661
    %6138 = vmatprep.subr.mxu0 %v4658
    %6139 = vmatpush2.msra.mxu0 %v4657
    %6140 = vmatprep.subr.mxu0 %v4654
    %6141 = vmatpush2.msra.mxu0 %v4653
    %6142 = vmatprep.subr.mxu0 %v4650
    %6143 = vmatpush2.msra.mxu0 %v4649
    %6144 = vmatprep.subr.mxu0 %v4646
    %6145 = vmatpush2.msra.mxu0 %v4645
    %6146 = vmatprep.subr.mxu0 %v4642
    %6147 = vmatpush2.msra.mxu0 %v4641
    %6148 = vmatprep.subr.mxu0 %v4638
    %6149 = vmatpush2.msra.mxu0 %v4637
    %6150 = vmatprep.subr.mxu0 %v4634
    %6151 = vmatpush2.msra.mxu0 %v4633
    %6152 = vmatprep.subr.mxu0 %v4630
    %6153 = vmatpush2.msra.mxu0 %v4629
    %6154 = vmatprep.mubr.f32.mxu0 %v5876
    %6155 = vmatmul.mubr.f32.gmra.mxu0 %v5875
    %v6156 = vpop.f32.mrf.mxu0
    %v6157 = vadd.f32 %v6086, %v6156
    %v6158 = vpop.f32.mrf.mxu0
    %v6159 = vadd.f32 %v6088, %v6158
    %6160 = vdwg.mxu0
    %6161 = vmatprep.subr.mxu0 %v3944
    %6162 = vmatpush1.msra.mxu0 %v3943
    %6163 = vmatprep.subr.mxu0 %v3940
    %6164 = vmatpush1.msra.mxu0 %v3939
    %6165 = vmatprep.subr.mxu0 %v3936
    %6166 = vmatpush1.msra.mxu0 %v3935
    %6167 = vmatprep.subr.mxu0 %v3932
    %6168 = vmatpush1.msra.mxu0 %v3931
    %6169 = vmatprep.subr.mxu0 %v3928
    %6170 = vmatpush1.msra.mxu0 %v3927
    %6171 = vmatprep.subr.mxu0 %v3924
    %6172 = vmatpush1.msra.mxu0 %v3923
    %6173 = vmatprep.subr.mxu0 %v3920
    %6174 = vmatpush1.msra.mxu0 %v3919
    %6175 = vmatprep.subr.mxu0 %v3916
    %6176 = vmatpush1.msra.mxu0 %v3915
    %6177 = vmatprep.subr.mxu0 %v3912
    %6178 = vmatpush1.msra.mxu0 %v3911
    %6179 = vmatprep.subr.mxu0 %v3908
    %6180 = vmatpush1.msra.mxu0 %v3907
    %6181 = vmatprep.subr.mxu0 %v3904
    %6182 = vmatpush1.msra.mxu0 %v3903
    %6183 = vmatprep.subr.mxu0 %v3900
    %6184 = vmatpush1.msra.mxu0 %v3899
    %6185 = vmatprep.subr.mxu0 %v3896
    %6186 = vmatpush1.msra.mxu0 %v3895
    %6187 = vmatprep.subr.mxu0 %v3892
    %6188 = vmatpush1.msra.mxu0 %v3891
    %6189 = vmatprep.subr.mxu0 %v3888
    %6190 = vmatpush1.msra.mxu0 %v3887
    %6191 = vmatprep.subr.mxu0 %v3884
    %6192 = vmatpush1.msra.mxu0 %v3883
    %6193 = vmatprep.subr.mxu0 %v4008
    %6194 = vmatpush2.msra.mxu0 %v4007
    %6195 = vmatprep.subr.mxu0 %v4004
    %6196 = vmatpush2.msra.mxu0 %v4003
    %6197 = vmatprep.subr.mxu0 %v4000
    %6198 = vmatpush2.msra.mxu0 %v3999
    %6199 = vmatprep.subr.mxu0 %v3996
    %6200 = vmatpush2.msra.mxu0 %v3995
    %6201 = vmatprep.subr.mxu0 %v3992
    %6202 = vmatpush2.msra.mxu0 %v3991
    %6203 = vmatprep.subr.mxu0 %v3988
    %6204 = vmatpush2.msra.mxu0 %v3987
    %6205 = vmatprep.subr.mxu0 %v3984
    %6206 = vmatpush2.msra.mxu0 %v3983
    %6207 = vmatprep.subr.mxu0 %v3980
    %6208 = vmatpush2.msra.mxu0 %v3979
    %6209 = vmatprep.subr.mxu0 %v3976
    %6210 = vmatpush2.msra.mxu0 %v3975
    %6211 = vmatprep.subr.mxu0 %v3972
    %6212 = vmatpush2.msra.mxu0 %v3971
    %6213 = vmatprep.subr.mxu0 %v3968
    %6214 = vmatpush2.msra.mxu0 %v3967
    %6215 = vmatprep.subr.mxu0 %v3964
    %6216 = vmatpush2.msra.mxu0 %v3963
    %6217 = vmatprep.subr.mxu0 %v3960
    %6218 = vmatpush2.msra.mxu0 %v3959
    %6219 = vmatprep.subr.mxu0 %v3956
    %6220 = vmatpush2.msra.mxu0 %v3955
    %6221 = vmatprep.subr.mxu0 %v3952
    %6222 = vmatpush2.msra.mxu0 %v3951
    %6223 = vmatprep.subr.mxu0 %v3948
    %6224 = vmatpush2.msra.mxu0 %v3947
    %6225 = vmatprep.mubr.f32.mxu0 %v6017
    %6226 = vmatmul.mubr.f32.gmra.mxu0 %v6015
    %v6227 = vpop.f32.mrf.mxu0
    %v6228 = vadd.f32 %v3827, %v6227
    %v6229 = vpop.f32.mrf.mxu0
    %v6230 = vadd.f32 %v3828, %v6229
    %6231 = vdwg.mxu0
    %6232 = vmatprep.subr.mxu0 %v4072
    %6233 = vmatpush1.msra.mxu0 %v4071
    %6234 = vmatprep.subr.mxu0 %v4068
    %6235 = vmatpush1.msra.mxu0 %v4067
    %6236 = vmatprep.subr.mxu0 %v4064
    %6237 = vmatpush1.msra.mxu0 %v4063
    %6238 = vmatprep.subr.mxu0 %v4060
    %6239 = vmatpush1.msra.mxu0 %v4059
    %6240 = vmatprep.subr.mxu0 %v4056
    %6241 = vmatpush1.msra.mxu0 %v4055
    %6242 = vmatprep.subr.mxu0 %v4052
    %6243 = vmatpush1.msra.mxu0 %v4051
    %6244 = vmatprep.subr.mxu0 %v4048
    %6245 = vmatpush1.msra.mxu0 %v4047
    %6246 = vmatprep.subr.mxu0 %v4044
    %6247 = vmatpush1.msra.mxu0 %v4043
    %6248 = vmatprep.subr.mxu0 %v4040
    %6249 = vmatpush1.msra.mxu0 %v4039
    %6250 = vmatprep.subr.mxu0 %v4036
    %6251 = vmatpush1.msra.mxu0 %v4035
    %6252 = vmatprep.subr.mxu0 %v4032
    %6253 = vmatpush1.msra.mxu0 %v4031
    %6254 = vmatprep.subr.mxu0 %v4028
    %6255 = vmatpush1.msra.mxu0 %v4027
    %6256 = vmatprep.subr.mxu0 %v4024
    %6257 = vmatpush1.msra.mxu0 %v4023
    %6258 = vmatprep.subr.mxu0 %v4020
    %6259 = vmatpush1.msra.mxu0 %v4019
    %6260 = vmatprep.subr.mxu0 %v4016
    %6261 = vmatpush1.msra.mxu0 %v4015
    %6262 = vmatprep.subr.mxu0 %v4012
    %6263 = vmatpush1.msra.mxu0 %v4011
    %6264 = vmatprep.subr.mxu0 %v4136
    %6265 = vmatpush2.msra.mxu0 %v4135
    %6266 = vmatprep.subr.mxu0 %v4132
    %6267 = vmatpush2.msra.mxu0 %v4131
    %6268 = vmatprep.subr.mxu0 %v4128
    %6269 = vmatpush2.msra.mxu0 %v4127
    %6270 = vmatprep.subr.mxu0 %v4124
    %6271 = vmatpush2.msra.mxu0 %v4123
    %6272 = vmatprep.subr.mxu0 %v4120
    %6273 = vmatpush2.msra.mxu0 %v4119
    %6274 = vmatprep.subr.mxu0 %v4116
    %6275 = vmatpush2.msra.mxu0 %v4115
    %6276 = vmatprep.subr.mxu0 %v4112
    %6277 = vmatpush2.msra.mxu0 %v4111
    %6278 = vmatprep.subr.mxu0 %v4108
    %6279 = vmatpush2.msra.mxu0 %v4107
    %6280 = vmatprep.subr.mxu0 %v4104
    %6281 = vmatpush2.msra.mxu0 %v4103
    %6282 = vmatprep.subr.mxu0 %v4100
    %6283 = vmatpush2.msra.mxu0 %v4099
    %6284 = vmatprep.subr.mxu0 %v4096
    %6285 = vmatpush2.msra.mxu0 %v4095
    %6286 = vmatprep.subr.mxu0 %v4092
    %6287 = vmatpush2.msra.mxu0 %v4091
    %6288 = vmatprep.subr.mxu0 %v4088
    %6289 = vmatpush2.msra.mxu0 %v4087
    %6290 = vmatprep.subr.mxu0 %v4084
    %6291 = vmatpush2.msra.mxu0 %v4083
    %6292 = vmatprep.subr.mxu0 %v4080
    %6293 = vmatpush2.msra.mxu0 %v4079
    %6294 = vmatprep.subr.mxu0 %v4076
    %6295 = vmatpush2.msra.mxu0 %v4075
    %6296 = vmatprep.mubr.f32.mxu0 %v6159
    %6297 = vmatmul.mubr.f32.gmra.mxu0 %v6157
    %v6298 = vpop.f32.mrf.mxu0
    %v6299 = vadd.f32 %v6228, %v6298
    %v6300 = vpop.f32.mrf.mxu0
    %v6301 = vadd.f32 %v6230, %v6300
    %6302 = vdwg.mxu0
    %6303 = vmatprep.subr.mxu0 %v3946
    %6304 = vmatpush1.msra.mxu0 %v3945
    %6305 = vmatprep.subr.mxu0 %v3942
    %6306 = vmatpush1.msra.mxu0 %v3941
    %6307 = vmatprep.subr.mxu0 %v3938
    %6308 = vmatpush1.msra.mxu0 %v3937
    %6309 = vmatprep.subr.mxu0 %v3934
    %6310 = vmatpush1.msra.mxu0 %v3933
    %6311 = vmatprep.subr.mxu0 %v3930
    %6312 = vmatpush1.msra.mxu0 %v3929
    %6313 = vmatprep.subr.mxu0 %v3926
    %6314 = vmatpush1.msra.mxu0 %v3925
    %6315 = vmatprep.subr.mxu0 %v3922
    %6316 = vmatpush1.msra.mxu0 %v3921
    %6317 = vmatprep.subr.mxu0 %v3918
    %6318 = vmatpush1.msra.mxu0 %v3917
    %6319 = vmatprep.subr.mxu0 %v3914
    %6320 = vmatpush1.msra.mxu0 %v3913
    %6321 = vmatprep.subr.mxu0 %v3910
    %6322 = vmatpush1.msra.mxu0 %v3909
    %6323 = vmatprep.subr.mxu0 %v3906
    %6324 = vmatpush1.msra.mxu0 %v3905
    %6325 = vmatprep.subr.mxu0 %v3902
    %6326 = vmatpush1.msra.mxu0 %v3901
    %6327 = vmatprep.subr.mxu0 %v3898
    %6328 = vmatpush1.msra.mxu0 %v3897
    %6329 = vmatprep.subr.mxu0 %v3894
    %6330 = vmatpush1.msra.mxu0 %v3893
    %6331 = vmatprep.subr.mxu0 %v3890
    %6332 = vmatpush1.msra.mxu0 %v3889
    %6333 = vmatprep.subr.mxu0 %v3886
    %6334 = vmatpush1.msra.mxu0 %v3885
    %6335 = vmatprep.subr.mxu0 %v4010
    %6336 = vmatpush2.msra.mxu0 %v4009
    %6337 = vmatprep.subr.mxu0 %v4006
    %6338 = vmatpush2.msra.mxu0 %v4005
    %6339 = vmatprep.subr.mxu0 %v4002
    %6340 = vmatpush2.msra.mxu0 %v4001
    %6341 = vmatprep.subr.mxu0 %v3998
    %6342 = vmatpush2.msra.mxu0 %v3997
    %6343 = vmatprep.subr.mxu0 %v3994
    %6344 = vmatpush2.msra.mxu0 %v3993
    %6345 = vmatprep.subr.mxu0 %v3990
    %6346 = vmatpush2.msra.mxu0 %v3989
    %6347 = vmatprep.subr.mxu0 %v3986
    %6348 = vmatpush2.msra.mxu0 %v3985
    %6349 = vmatprep.subr.mxu0 %v3982
    %6350 = vmatpush2.msra.mxu0 %v3981
    %6351 = vmatprep.subr.mxu0 %v3978
    %6352 = vmatpush2.msra.mxu0 %v3977
    %6353 = vmatprep.subr.mxu0 %v3974
    %6354 = vmatpush2.msra.mxu0 %v3973
    %6355 = vmatprep.subr.mxu0 %v3970
    %6356 = vmatpush2.msra.mxu0 %v3969
    %6357 = vmatprep.subr.mxu0 %v3966
    %6358 = vmatpush2.msra.mxu0 %v3965
    %6359 = vmatprep.subr.mxu0 %v3962
    %6360 = vmatpush2.msra.mxu0 %v3961
    %6361 = vmatprep.subr.mxu0 %v3958
    %6362 = vmatpush2.msra.mxu0 %v3957
    %6363 = vmatprep.subr.mxu0 %v3954
    %6364 = vmatpush2.msra.mxu0 %v3953
    %6365 = vmatprep.subr.mxu0 %v3950
    %6366 = vmatpush2.msra.mxu0 %v3949
    %6367 = vmatprep.mubr.f32.mxu0 %v6017
    %6368 = vmatmul.mubr.f32.gmra.mxu0 %v6015
    %v6369 = vpop.f32.mrf.mxu0
    %v6370 = vadd.f32 %v3829, %v6369
    %v6371 = vpop.f32.mrf.mxu0
    %v6372 = vadd.f32 %v3830, %v6371
    %6373 = vdwg.mxu0
    %6374 = vmatprep.subr.mxu0 %v4074
    %6375 = vmatpush1.msra.mxu0 %v4073
    %6376 = vmatprep.subr.mxu0 %v4070
    %6377 = vmatpush1.msra.mxu0 %v4069
    %6378 = vmatprep.subr.mxu0 %v4066
    %6379 = vmatpush1.msra.mxu0 %v4065
    %6380 = vmatprep.subr.mxu0 %v4062
    %6381 = vmatpush1.msra.mxu0 %v4061
    %6382 = vmatprep.subr.mxu0 %v4058
    %6383 = vmatpush1.msra.mxu0 %v4057
    %6384 = vmatprep.subr.mxu0 %v4054
    %6385 = vmatpush1.msra.mxu0 %v4053
    %6386 = vmatprep.subr.mxu0 %v4050
    %6387 = vmatpush1.msra.mxu0 %v4049
    %6388 = vmatprep.subr.mxu0 %v4046
    %6389 = vmatpush1.msra.mxu0 %v4045
    %6390 = vmatprep.subr.mxu0 %v4042
    %6391 = vmatpush1.msra.mxu0 %v4041
    %6392 = vmatprep.subr.mxu0 %v4038
    %6393 = vmatpush1.msra.mxu0 %v4037
    %6394 = vmatprep.subr.mxu0 %v4034
    %6395 = vmatpush1.msra.mxu0 %v4033
    %6396 = vmatprep.subr.mxu0 %v4030
    %6397 = vmatpush1.msra.mxu0 %v4029
    %6398 = vmatprep.subr.mxu0 %v4026
    %6399 = vmatpush1.msra.mxu0 %v4025
    %6400 = vmatprep.subr.mxu0 %v4022
    %6401 = vmatpush1.msra.mxu0 %v4021
    %6402 = vmatprep.subr.mxu0 %v4018
    %6403 = vmatpush1.msra.mxu0 %v4017
    %6404 = vmatprep.subr.mxu0 %v4014
    %6405 = vmatpush1.msra.mxu0 %v4013
    %6406 = vmatprep.subr.mxu0 %v4138
    %6407 = vmatpush2.msra.mxu0 %v4137
    %6408 = vmatprep.subr.mxu0 %v4134
    %6409 = vmatpush2.msra.mxu0 %v4133
    %6410 = vmatprep.subr.mxu0 %v4130
    %6411 = vmatpush2.msra.mxu0 %v4129
    %6412 = vmatprep.subr.mxu0 %v4126
    %6413 = vmatpush2.msra.mxu0 %v4125
    %6414 = vmatprep.subr.mxu0 %v4122
    %6415 = vmatpush2.msra.mxu0 %v4121
    %6416 = vmatprep.subr.mxu0 %v4118
    %6417 = vmatpush2.msra.mxu0 %v4117
    %6418 = vmatprep.subr.mxu0 %v4114
    %6419 = vmatpush2.msra.mxu0 %v4113
    %6420 = vmatprep.subr.mxu0 %v4110
    %6421 = vmatpush2.msra.mxu0 %v4109
    %6422 = vmatprep.subr.mxu0 %v4106
    %6423 = vmatpush2.msra.mxu0 %v4105
    %6424 = vmatprep.subr.mxu0 %v4102
    %6425 = vmatpush2.msra.mxu0 %v4101
    %6426 = vmatprep.subr.mxu0 %v4098
    %6427 = vmatpush2.msra.mxu0 %v4097
    %6428 = vmatprep.subr.mxu0 %v4094
    %6429 = vmatpush2.msra.mxu0 %v4093
    %6430 = vmatprep.subr.mxu0 %v4090
    %6431 = vmatpush2.msra.mxu0 %v4089
    %6432 = vmatprep.subr.mxu0 %v4086
    %6433 = vmatpush2.msra.mxu0 %v4085
    %6434 = vmatprep.subr.mxu0 %v4082
    %6435 = vmatpush2.msra.mxu0 %v4081
    %6436 = vmatprep.subr.mxu0 %v4078
    %6437 = vmatpush2.msra.mxu0 %v4077
    %6438 = vmatprep.mubr.f32.mxu0 %v6159
    %6439 = vmatmul.mubr.f32.gmra.mxu0 %v6157
    %v6440 = vpop.f32.mrf.mxu0
    %v6441 = vadd.f32 %v6370, %v6440
    %v6442 = vpop.f32.mrf.mxu0
    %v6443 = vadd.f32 %v6372, %v6442
    %6444 = vdwg.mxu0
    %vm6445 = vcmp.ge.f32.partialorder %v6299, 0.0
    %vm6446 = vcmp.ge.f32.partialorder %v6301, 0.0
    %vm6447 = vcmp.ge.f32.partialorder %v6441, 0.0
    %vm6448 = vcmp.ge.f32.partialorder %v6443, 0.0
    %v6449 = vmul.f32 %v6299, 0.01
    %v6450 = vmul.f32 %v6301, 0.01
    %v6451 = vmul.f32 %v6441, 0.01
    %v6452 = vmul.f32 %v6443, 0.01
    %v6453 = vsel %vm6445, %v6299, %v6449
    %v6454 = vsel %vm6446, %v6301, %v6450
    %v6455 = vsel %vm6447, %v6441, %v6451
    %v6456 = vsel %vm6448, %v6443, %v6452
    %6457 = vmatprep.subr.mxu0 %v4496
    %6458 = vmatpush1.msra.mxu0 %v4495
    %6459 = vmatprep.subr.mxu0 %v4492
    %6460 = vmatpush1.msra.mxu0 %v4491
    %6461 = vmatprep.subr.mxu0 %v4488
    %6462 = vmatpush1.msra.mxu0 %v4487
    %6463 = vmatprep.subr.mxu0 %v4484
    %6464 = vmatpush1.msra.mxu0 %v4483
    %6465 = vmatprep.subr.mxu0 %v4480
    %6466 = vmatpush1.msra.mxu0 %v4479
    %6467 = vmatprep.subr.mxu0 %v4476
    %6468 = vmatpush1.msra.mxu0 %v4475
    %6469 = vmatprep.subr.mxu0 %v4472
    %6470 = vmatpush1.msra.mxu0 %v4471
    %6471 = vmatprep.subr.mxu0 %v4468
    %6472 = vmatpush1.msra.mxu0 %v4467
    %6473 = vmatprep.subr.mxu0 %v4464
    %6474 = vmatpush1.msra.mxu0 %v4463
    %6475 = vmatprep.subr.mxu0 %v4460
    %6476 = vmatpush1.msra.mxu0 %v4459
    %6477 = vmatprep.subr.mxu0 %v4456
    %6478 = vmatpush1.msra.mxu0 %v4455
    %6479 = vmatprep.subr.mxu0 %v4452
    %6480 = vmatpush1.msra.mxu0 %v4451
    %6481 = vmatprep.subr.mxu0 %v4448
    %6482 = vmatpush1.msra.mxu0 %v4447
    %6483 = vmatprep.subr.mxu0 %v4444
    %6484 = vmatpush1.msra.mxu0 %v4443
    %6485 = vmatprep.subr.mxu0 %v4440
    %6486 = vmatpush1.msra.mxu0 %v4439
    %6487 = vmatprep.subr.mxu0 %v4436
    %6488 = vmatpush1.msra.mxu0 %v4435
    %6489 = vmatprep.subr.mxu0 %v4560
    %6490 = vmatpush2.msra.mxu0 %v4559
    %6491 = vmatprep.subr.mxu0 %v4556
    %6492 = vmatpush2.msra.mxu0 %v4555
    %6493 = vmatprep.subr.mxu0 %v4552
    %6494 = vmatpush2.msra.mxu0 %v4551
    %6495 = vmatprep.subr.mxu0 %v4548
    %6496 = vmatpush2.msra.mxu0 %v4547
    %6497 = vmatprep.subr.mxu0 %v4544
    %6498 = vmatpush2.msra.mxu0 %v4543
    %6499 = vmatprep.subr.mxu0 %v4540
    %6500 = vmatpush2.msra.mxu0 %v4539
    %6501 = vmatprep.subr.mxu0 %v4536
    %6502 = vmatpush2.msra.mxu0 %v4535
    %6503 = vmatprep.subr.mxu0 %v4532
    %6504 = vmatpush2.msra.mxu0 %v4531
    %6505 = vmatprep.subr.mxu0 %v4528
    %6506 = vmatpush2.msra.mxu0 %v4527
    %6507 = vmatprep.subr.mxu0 %v4524
    %6508 = vmatpush2.msra.mxu0 %v4523
    %6509 = vmatprep.subr.mxu0 %v4520
    %6510 = vmatpush2.msra.mxu0 %v4519
    %6511 = vmatprep.subr.mxu0 %v4516
    %6512 = vmatpush2.msra.mxu0 %v4515
    %6513 = vmatprep.subr.mxu0 %v4512
    %6514 = vmatpush2.msra.mxu0 %v4511
    %6515 = vmatprep.subr.mxu0 %v4508
    %6516 = vmatpush2.msra.mxu0 %v4507
    %6517 = vmatprep.subr.mxu0 %v4504
    %6518 = vmatpush2.msra.mxu0 %v4503
    %6519 = vmatprep.subr.mxu0 %v4500
    %6520 = vmatpush2.msra.mxu0 %v4499
    %6521 = vmatprep.mubr.f32.mxu0 %v6454
    %6522 = vmatmul.mubr.f32.gmra.mxu0 %v6453
    %v6523 = vpop.f32.mrf.mxu0
    %v6524 = vadd.f32 %v4696, %v6523
    %v6525 = vpop.f32.mrf.mxu0
    %v6526 = vadd.f32 %v4700, %v6525
    %6527 = vdwg.mxu0
    %6528 = vmatprep.subr.mxu0 %v4624
    %6529 = vmatpush1.msra.mxu0 %v4623
    %6530 = vmatprep.subr.mxu0 %v4620
    %6531 = vmatpush1.msra.mxu0 %v4619
    %6532 = vmatprep.subr.mxu0 %v4616
    %6533 = vmatpush1.msra.mxu0 %v4615
    %6534 = vmatprep.subr.mxu0 %v4612
    %6535 = vmatpush1.msra.mxu0 %v4611
    %6536 = vmatprep.subr.mxu0 %v4608
    %6537 = vmatpush1.msra.mxu0 %v4607
    %6538 = vmatprep.subr.mxu0 %v4604
    %6539 = vmatpush1.msra.mxu0 %v4603
    %6540 = vmatprep.subr.mxu0 %v4600
    %6541 = vmatpush1.msra.mxu0 %v4599
    %6542 = vmatprep.subr.mxu0 %v4596
    %6543 = vmatpush1.msra.mxu0 %v4595
    %6544 = vmatprep.subr.mxu0 %v4592
    %6545 = vmatpush1.msra.mxu0 %v4591
    %6546 = vmatprep.subr.mxu0 %v4588
    %6547 = vmatpush1.msra.mxu0 %v4587
    %6548 = vmatprep.subr.mxu0 %v4584
    %6549 = vmatpush1.msra.mxu0 %v4583
    %6550 = vmatprep.subr.mxu0 %v4580
    %6551 = vmatpush1.msra.mxu0 %v4579
    %6552 = vmatprep.subr.mxu0 %v4576
    %6553 = vmatpush1.msra.mxu0 %v4575
    %6554 = vmatprep.subr.mxu0 %v4572
    %6555 = vmatpush1.msra.mxu0 %v4571
    %6556 = vmatprep.subr.mxu0 %v4568
    %6557 = vmatpush1.msra.mxu0 %v4567
    %6558 = vmatprep.subr.mxu0 %v4564
    %6559 = vmatpush1.msra.mxu0 %v4563
    %6560 = vmatprep.subr.mxu0 %v4688
    %6561 = vmatpush2.msra.mxu0 %v4687
    %6562 = vmatprep.subr.mxu0 %v4684
    %6563 = vmatpush2.msra.mxu0 %v4683
    %6564 = vmatprep.subr.mxu0 %v4680
    %6565 = vmatpush2.msra.mxu0 %v4679
    %6566 = vmatprep.subr.mxu0 %v4676
    %6567 = vmatpush2.msra.mxu0 %v4675
    %6568 = vmatprep.subr.mxu0 %v4672
    %6569 = vmatpush2.msra.mxu0 %v4671
    %6570 = vmatprep.subr.mxu0 %v4668
    %6571 = vmatpush2.msra.mxu0 %v4667
    %6572 = vmatprep.subr.mxu0 %v4664
    %6573 = vmatpush2.msra.mxu0 %v4663
    %6574 = vmatprep.subr.mxu0 %v4660
    %6575 = vmatpush2.msra.mxu0 %v4659
    %6576 = vmatprep.subr.mxu0 %v4656
    %6577 = vmatpush2.msra.mxu0 %v4655
    %6578 = vmatprep.subr.mxu0 %v4652
    %6579 = vmatpush2.msra.mxu0 %v4651
    %6580 = vmatprep.subr.mxu0 %v4648
    %6581 = vmatpush2.msra.mxu0 %v4647
    %6582 = vmatprep.subr.mxu0 %v4644
    %6583 = vmatpush2.msra.mxu0 %v4643
    %6584 = vmatprep.subr.mxu0 %v4640
    %6585 = vmatpush2.msra.mxu0 %v4639
    %6586 = vmatprep.subr.mxu0 %v4636
    %6587 = vmatpush2.msra.mxu0 %v4635
    %6588 = vmatprep.subr.mxu0 %v4632
    %6589 = vmatpush2.msra.mxu0 %v4631
    %6590 = vmatprep.subr.mxu0 %v4628
    %6591 = vmatpush2.msra.mxu0 %v4627
    %6592 = vmatprep.mubr.f32.mxu0 %v6456
    %6593 = vmatmul.mubr.f32.gmra.mxu0 %v6455
    %v6594 = vpop.f32.mrf.mxu0
    %v6595 = vadd.f32 %v6524, %v6594
    %v6596 = vpop.f32.mrf.mxu0
    %v6597 = vadd.f32 %v6526, %v6596
    %6598 = vdwg.mxu0
    %6599 = vmatprep.subr.mxu0 %v4498
    %6600 = vmatpush1.msra.mxu0 %v4497
    %6601 = vmatprep.subr.mxu0 %v4494
    %6602 = vmatpush1.msra.mxu0 %v4493
    %6603 = vmatprep.subr.mxu0 %v4490
    %6604 = vmatpush1.msra.mxu0 %v4489
    %6605 = vmatprep.subr.mxu0 %v4486
    %6606 = vmatpush1.msra.mxu0 %v4485
    %6607 = vmatprep.subr.mxu0 %v4482
    %6608 = vmatpush1.msra.mxu0 %v4481
    %6609 = vmatprep.subr.mxu0 %v4478
    %6610 = vmatpush1.msra.mxu0 %v4477
    %6611 = vmatprep.subr.mxu0 %v4474
    %6612 = vmatpush1.msra.mxu0 %v4473
    %6613 = vmatprep.subr.mxu0 %v4470
    %6614 = vmatpush1.msra.mxu0 %v4469
    %6615 = vmatprep.subr.mxu0 %v4466
    %6616 = vmatpush1.msra.mxu0 %v4465
    %6617 = vmatprep.subr.mxu0 %v4462
    %6618 = vmatpush1.msra.mxu0 %v4461
    %6619 = vmatprep.subr.mxu0 %v4458
    %6620 = vmatpush1.msra.mxu0 %v4457
    %6621 = vmatprep.subr.mxu0 %v4454
    %6622 = vmatpush1.msra.mxu0 %v4453
    %6623 = vmatprep.subr.mxu0 %v4450
    %6624 = vmatpush1.msra.mxu0 %v4449
    %6625 = vmatprep.subr.mxu0 %v4446
    %6626 = vmatpush1.msra.mxu0 %v4445
    %6627 = vmatprep.subr.mxu0 %v4442
    %6628 = vmatpush1.msra.mxu0 %v4441
    %6629 = vmatprep.subr.mxu0 %v4438
    %6630 = vmatpush1.msra.mxu0 %v4437
    %6631 = vmatprep.subr.mxu0 %v4562
    %6632 = vmatpush2.msra.mxu0 %v4561
    %6633 = vmatprep.subr.mxu0 %v4558
    %6634 = vmatpush2.msra.mxu0 %v4557
    %6635 = vmatprep.subr.mxu0 %v4554
    %6636 = vmatpush2.msra.mxu0 %v4553
    %6637 = vmatprep.subr.mxu0 %v4550
    %6638 = vmatpush2.msra.mxu0 %v4549
    %6639 = vmatprep.subr.mxu0 %v4546
    %6640 = vmatpush2.msra.mxu0 %v4545
    %6641 = vmatprep.subr.mxu0 %v4542
    %6642 = vmatpush2.msra.mxu0 %v4541
    %6643 = vmatprep.subr.mxu0 %v4538
    %6644 = vmatpush2.msra.mxu0 %v4537
    %6645 = vmatprep.subr.mxu0 %v4534
    %6646 = vmatpush2.msra.mxu0 %v4533
    %6647 = vmatprep.subr.mxu0 %v4530
    %6648 = vmatpush2.msra.mxu0 %v4529
    %6649 = vmatprep.subr.mxu0 %v4526
    %6650 = vmatpush2.msra.mxu0 %v4525
    %6651 = vmatprep.subr.mxu0 %v4522
    %6652 = vmatpush2.msra.mxu0 %v4521
    %6653 = vmatprep.subr.mxu0 %v4518
    %6654 = vmatpush2.msra.mxu0 %v4517
    %6655 = vmatprep.subr.mxu0 %v4514
    %6656 = vmatpush2.msra.mxu0 %v4513
    %6657 = vmatprep.subr.mxu0 %v4510
    %6658 = vmatpush2.msra.mxu0 %v4509
    %6659 = vmatprep.subr.mxu0 %v4506
    %6660 = vmatpush2.msra.mxu0 %v4505
    %6661 = vmatprep.subr.mxu0 %v4502
    %6662 = vmatpush2.msra.mxu0 %v4501
    %6663 = vmatprep.mubr.f32.mxu0 %v6454
    %6664 = vmatmul.mubr.f32.gmra.mxu0 %v6453
    %v6665 = vpop.f32.mrf.mxu0
    %v6666 = vadd.f32 %v4704, %v6665
    %v6667 = vpop.f32.mrf.mxu0
    %v6668 = vadd.f32 %v4708, %v6667
    %6669 = vdwg.mxu0
    %6670 = vmatprep.subr.mxu0 %v4626
    %6671 = vmatpush1.msra.mxu0 %v4625
    %6672 = vmatprep.subr.mxu0 %v4622
    %6673 = vmatpush1.msra.mxu0 %v4621
    %6674 = vmatprep.subr.mxu0 %v4618
    %6675 = vmatpush1.msra.mxu0 %v4617
    %6676 = vmatprep.subr.mxu0 %v4614
    %6677 = vmatpush1.msra.mxu0 %v4613
    %6678 = vmatprep.subr.mxu0 %v4610
    %6679 = vmatpush1.msra.mxu0 %v4609
    %6680 = vmatprep.subr.mxu0 %v4606
    %6681 = vmatpush1.msra.mxu0 %v4605
    %6682 = vmatprep.subr.mxu0 %v4602
    %6683 = vmatpush1.msra.mxu0 %v4601
    %6684 = vmatprep.subr.mxu0 %v4598
    %6685 = vmatpush1.msra.mxu0 %v4597
    %6686 = vmatprep.subr.mxu0 %v4594
    %6687 = vmatpush1.msra.mxu0 %v4593
    %6688 = vmatprep.subr.mxu0 %v4590
    %6689 = vmatpush1.msra.mxu0 %v4589
    %6690 = vmatprep.subr.mxu0 %v4586
    %6691 = vmatpush1.msra.mxu0 %v4585
    %6692 = vmatprep.subr.mxu0 %v4582
    %6693 = vmatpush1.msra.mxu0 %v4581
    %6694 = vmatprep.subr.mxu0 %v4578
    %6695 = vmatpush1.msra.mxu0 %v4577
    %6696 = vmatprep.subr.mxu0 %v4574
    %6697 = vmatpush1.msra.mxu0 %v4573
    %6698 = vmatprep.subr.mxu0 %v4570
    %6699 = vmatpush1.msra.mxu0 %v4569
    %6700 = vmatprep.subr.mxu0 %v4566
    %6701 = vmatpush1.msra.mxu0 %v4565
    %6702 = vmatprep.subr.mxu0 %v4690
    %6703 = vmatpush2.msra.mxu0 %v4689
    %6704 = vmatprep.subr.mxu0 %v4686
    %6705 = vmatpush2.msra.mxu0 %v4685
    %6706 = vmatprep.subr.mxu0 %v4682
    %6707 = vmatpush2.msra.mxu0 %v4681
    %6708 = vmatprep.subr.mxu0 %v4678
    %6709 = vmatpush2.msra.mxu0 %v4677
    %6710 = vmatprep.subr.mxu0 %v4674
    %6711 = vmatpush2.msra.mxu0 %v4673
    %6712 = vmatprep.subr.mxu0 %v4670
    %6713 = vmatpush2.msra.mxu0 %v4669
    %6714 = vmatprep.subr.mxu0 %v4666
    %6715 = vmatpush2.msra.mxu0 %v4665
    %6716 = vmatprep.subr.mxu0 %v4662
    %6717 = vmatpush2.msra.mxu0 %v4661
    %6718 = vmatprep.subr.mxu0 %v4658
    %6719 = vmatpush2.msra.mxu0 %v4657
    %6720 = vmatprep.subr.mxu0 %v4654
    %6721 = vmatpush2.msra.mxu0 %v4653
    %6722 = vmatprep.subr.mxu0 %v4650
    %6723 = vmatpush2.msra.mxu0 %v4649
    %6724 = vmatprep.subr.mxu0 %v4646
    %6725 = vmatpush2.msra.mxu0 %v4645
    %6726 = vmatprep.subr.mxu0 %v4642
    %6727 = vmatpush2.msra.mxu0 %v4641
    %6728 = vmatprep.subr.mxu0 %v4638
    %6729 = vmatpush2.msra.mxu0 %v4637
    %6730 = vmatprep.subr.mxu0 %v4634
    %6731 = vmatpush2.msra.mxu0 %v4633
    %6732 = vmatprep.subr.mxu0 %v4630
    %6733 = vmatpush2.msra.mxu0 %v4629
    %6734 = vmatprep.mubr.f32.mxu0 %v6456
    %6735 = vmatmul.mubr.f32.gmra.mxu0 %v6455
    %v6736 = vpop.f32.mrf.mxu0
    %v6737 = vadd.f32 %v6666, %v6736
    %v6738 = vpop.f32.mrf.mxu0
    %v6739 = vadd.f32 %v6668, %v6738
    %6740 = vdwg.mxu0
    %v6741 = vadd.f32 %v6595, %v5577
    %v6742 = vadd.f32 %v6597, %v5578
    %v6743 = vadd.f32 %v6737, %v5579
    %v6744 = vadd.f32 %v6739, %v5580
    %6745 = vmatprep.subr.mxu0 %v3944
    %6746 = vmatpush1.msra.mxu0 %v3943
    %6747 = vmatprep.subr.mxu0 %v3940
    %6748 = vmatpush1.msra.mxu0 %v3939
    %6749 = vmatprep.subr.mxu0 %v3936
    %6750 = vmatpush1.msra.mxu0 %v3935
    %6751 = vmatprep.subr.mxu0 %v3932
    %6752 = vmatpush1.msra.mxu0 %v3931
    %6753 = vmatprep.subr.mxu0 %v3928
    %6754 = vmatpush1.msra.mxu0 %v3927
    %6755 = vmatprep.subr.mxu0 %v3924
    %6756 = vmatpush1.msra.mxu0 %v3923
    %6757 = vmatprep.subr.mxu0 %v3920
    %6758 = vmatpush1.msra.mxu0 %v3919
    %6759 = vmatprep.subr.mxu0 %v3916
    %6760 = vmatpush1.msra.mxu0 %v3915
    %6761 = vmatprep.subr.mxu0 %v3912
    %6762 = vmatpush1.msra.mxu0 %v3911
    %6763 = vmatprep.subr.mxu0 %v3908
    %6764 = vmatpush1.msra.mxu0 %v3907
    %6765 = vmatprep.subr.mxu0 %v3904
    %6766 = vmatpush1.msra.mxu0 %v3903
    %6767 = vmatprep.subr.mxu0 %v3900
    %6768 = vmatpush1.msra.mxu0 %v3899
    %6769 = vmatprep.subr.mxu0 %v3896
    %6770 = vmatpush1.msra.mxu0 %v3895
    %6771 = vmatprep.subr.mxu0 %v3892
    %6772 = vmatpush1.msra.mxu0 %v3891
    %6773 = vmatprep.subr.mxu0 %v3888
    %6774 = vmatpush1.msra.mxu0 %v3887
    %6775 = vmatprep.subr.mxu0 %v3884
    %6776 = vmatpush1.msra.mxu0 %v3883
    %6777 = vmatprep.subr.mxu0 %v4008
    %6778 = vmatpush2.msra.mxu0 %v4007
    %6779 = vmatprep.subr.mxu0 %v4004
    %6780 = vmatpush2.msra.mxu0 %v4003
    %6781 = vmatprep.subr.mxu0 %v4000
    %6782 = vmatpush2.msra.mxu0 %v3999
    %6783 = vmatprep.subr.mxu0 %v3996
    %6784 = vmatpush2.msra.mxu0 %v3995
    %6785 = vmatprep.subr.mxu0 %v3992
    %6786 = vmatpush2.msra.mxu0 %v3991
    %6787 = vmatprep.subr.mxu0 %v3988
    %6788 = vmatpush2.msra.mxu0 %v3987
    %6789 = vmatprep.subr.mxu0 %v3984
    %6790 = vmatpush2.msra.mxu0 %v3983
    %6791 = vmatprep.subr.mxu0 %v3980
    %6792 = vmatpush2.msra.mxu0 %v3979
    %6793 = vmatprep.subr.mxu0 %v3976
    %6794 = vmatpush2.msra.mxu0 %v3975
    %6795 = vmatprep.subr.mxu0 %v3972
    %6796 = vmatpush2.msra.mxu0 %v3971
    %6797 = vmatprep.subr.mxu0 %v3968
    %6798 = vmatpush2.msra.mxu0 %v3967
    %6799 = vmatprep.subr.mxu0 %v3964
    %6800 = vmatpush2.msra.mxu0 %v3963
    %6801 = vmatprep.subr.mxu0 %v3960
    %6802 = vmatpush2.msra.mxu0 %v3959
    %6803 = vmatprep.subr.mxu0 %v3956
    %6804 = vmatpush2.msra.mxu0 %v3955
    %6805 = vmatprep.subr.mxu0 %v3952
    %6806 = vmatpush2.msra.mxu0 %v3951
    %6807 = vmatprep.subr.mxu0 %v3948
    %6808 = vmatpush2.msra.mxu0 %v3947
    %6809 = vmatprep.mubr.f32.mxu0 %v6742
    %6810 = vmatmul.mubr.f32.gmra.mxu0 %v6741
    %v6811 = vpop.f32.mrf.mxu0
    %v6812 = vadd.f32 %v3827, %v6811
    %v6813 = vpop.f32.mrf.mxu0
    %v6814 = vadd.f32 %v3828, %v6813
    %6815 = vdwg.mxu0
    %6816 = vmatprep.subr.mxu0 %v4072
    %6817 = vmatpush1.msra.mxu0 %v4071
    %6818 = vmatprep.subr.mxu0 %v4068
    %6819 = vmatpush1.msra.mxu0 %v4067
    %6820 = vmatprep.subr.mxu0 %v4064
    %6821 = vmatpush1.msra.mxu0 %v4063
    %6822 = vmatprep.subr.mxu0 %v4060
    %6823 = vmatpush1.msra.mxu0 %v4059
    %6824 = vmatprep.subr.mxu0 %v4056
    %6825 = vmatpush1.msra.mxu0 %v4055
    %6826 = vmatprep.subr.mxu0 %v4052
    %6827 = vmatpush1.msra.mxu0 %v4051
    %6828 = vmatprep.subr.mxu0 %v4048
    %6829 = vmatpush1.msra.mxu0 %v4047
    %6830 = vmatprep.subr.mxu0 %v4044
    %6831 = vmatpush1.msra.mxu0 %v4043
    %6832 = vmatprep.subr.mxu0 %v4040
    %6833 = vmatpush1.msra.mxu0 %v4039
    %6834 = vmatprep.subr.mxu0 %v4036
    %6835 = vmatpush1.msra.mxu0 %v4035
    %6836 = vmatprep.subr.mxu0 %v4032
    %6837 = vmatpush1.msra.mxu0 %v4031
    %6838 = vmatprep.subr.mxu0 %v4028
    %6839 = vmatpush1.msra.mxu0 %v4027
    %6840 = vmatprep.subr.mxu0 %v4024
    %6841 = vmatpush1.msra.mxu0 %v4023
    %6842 = vmatprep.subr.mxu0 %v4020
    %6843 = vmatpush1.msra.mxu0 %v4019
    %6844 = vmatprep.subr.mxu0 %v4016
    %6845 = vmatpush1.msra.mxu0 %v4015
    %6846 = vmatprep.subr.mxu0 %v4012
    %6847 = vmatpush1.msra.mxu0 %v4011
    %6848 = vmatprep.subr.mxu0 %v4136
    %6849 = vmatpush2.msra.mxu0 %v4135
    %6850 = vmatprep.subr.mxu0 %v4132
    %6851 = vmatpush2.msra.mxu0 %v4131
    %6852 = vmatprep.subr.mxu0 %v4128
    %6853 = vmatpush2.msra.mxu0 %v4127
    %6854 = vmatprep.subr.mxu0 %v4124
    %6855 = vmatpush2.msra.mxu0 %v4123
    %6856 = vmatprep.subr.mxu0 %v4120
    %6857 = vmatpush2.msra.mxu0 %v4119
    %6858 = vmatprep.subr.mxu0 %v4116
    %6859 = vmatpush2.msra.mxu0 %v4115
    %6860 = vmatprep.subr.mxu0 %v4112
    %6861 = vmatpush2.msra.mxu0 %v4111
    %6862 = vmatprep.subr.mxu0 %v4108
    %6863 = vmatpush2.msra.mxu0 %v4107
    %6864 = vmatprep.subr.mxu0 %v4104
    %6865 = vmatpush2.msra.mxu0 %v4103
    %6866 = vmatprep.subr.mxu0 %v4100
    %6867 = vmatpush2.msra.mxu0 %v4099
    %6868 = vmatprep.subr.mxu0 %v4096
    %6869 = vmatpush2.msra.mxu0 %v4095
    %6870 = vmatprep.subr.mxu0 %v4092
    %6871 = vmatpush2.msra.mxu0 %v4091
    %6872 = vmatprep.subr.mxu0 %v4088
    %6873 = vmatpush2.msra.mxu0 %v4087
    %6874 = vmatprep.subr.mxu0 %v4084
    %6875 = vmatpush2.msra.mxu0 %v4083
    %6876 = vmatprep.subr.mxu0 %v4080
    %6877 = vmatpush2.msra.mxu0 %v4079
    %6878 = vmatprep.subr.mxu0 %v4076
    %6879 = vmatpush2.msra.mxu0 %v4075
    %6880 = vmatprep.mubr.f32.mxu0 %v6744
    %6881 = vmatmul.mubr.f32.gmra.mxu0 %v6743
    %v6882 = vpop.f32.mrf.mxu0
    %v6883 = vadd.f32 %v6812, %v6882
    %v6884 = vpop.f32.mrf.mxu0
    %v6885 = vadd.f32 %v6814, %v6884
    %6886 = vdwg.mxu0
    %6887 = vmatprep.subr.mxu0 %v3946
    %6888 = vmatpush1.msra.mxu0 %v3945
    %6889 = vmatprep.subr.mxu0 %v3942
    %6890 = vmatpush1.msra.mxu0 %v3941
    %6891 = vmatprep.subr.mxu0 %v3938
    %6892 = vmatpush1.msra.mxu0 %v3937
    %6893 = vmatprep.subr.mxu0 %v3934
    %6894 = vmatpush1.msra.mxu0 %v3933
    %6895 = vmatprep.subr.mxu0 %v3930
    %6896 = vmatpush1.msra.mxu0 %v3929
    %6897 = vmatprep.subr.mxu0 %v3926
    %6898 = vmatpush1.msra.mxu0 %v3925
    %6899 = vmatprep.subr.mxu0 %v3922
    %6900 = vmatpush1.msra.mxu0 %v3921
    %6901 = vmatprep.subr.mxu0 %v3918
    %6902 = vmatpush1.msra.mxu0 %v3917
    %6903 = vmatprep.subr.mxu0 %v3914
    %6904 = vmatpush1.msra.mxu0 %v3913
    %6905 = vmatprep.subr.mxu0 %v3910
    %6906 = vmatpush1.msra.mxu0 %v3909
    %6907 = vmatprep.subr.mxu0 %v3906
    %6908 = vmatpush1.msra.mxu0 %v3905
    %6909 = vmatprep.subr.mxu0 %v3902
    %6910 = vmatpush1.msra.mxu0 %v3901
    %6911 = vmatprep.subr.mxu0 %v3898
    %6912 = vmatpush1.msra.mxu0 %v3897
    %6913 = vmatprep.subr.mxu0 %v3894
    %6914 = vmatpush1.msra.mxu0 %v3893
    %6915 = vmatprep.subr.mxu0 %v3890
    %6916 = vmatpush1.msra.mxu0 %v3889
    %6917 = vmatprep.subr.mxu0 %v3886
    %6918 = vmatpush1.msra.mxu0 %v3885
    %6919 = vmatprep.subr.mxu0 %v4010
    %6920 = vmatpush2.msra.mxu0 %v4009
    %6921 = vmatprep.subr.mxu0 %v4006
    %6922 = vmatpush2.msra.mxu0 %v4005
    %6923 = vmatprep.subr.mxu0 %v4002
    %6924 = vmatpush2.msra.mxu0 %v4001
    %6925 = vmatprep.subr.mxu0 %v3998
    %6926 = vmatpush2.msra.mxu0 %v3997
    %6927 = vmatprep.subr.mxu0 %v3994
    %6928 = vmatpush2.msra.mxu0 %v3993
    %6929 = vmatprep.subr.mxu0 %v3990
    %6930 = vmatpush2.msra.mxu0 %v3989
    %6931 = vmatprep.subr.mxu0 %v3986
    %6932 = vmatpush2.msra.mxu0 %v3985
    %6933 = vmatprep.subr.mxu0 %v3982
    %6934 = vmatpush2.msra.mxu0 %v3981
    %6935 = vmatprep.subr.mxu0 %v3978
    %6936 = vmatpush2.msra.mxu0 %v3977
    %6937 = vmatprep.subr.mxu0 %v3974
    %6938 = vmatpush2.msra.mxu0 %v3973
    %6939 = vmatprep.subr.mxu0 %v3970
    %6940 = vmatpush2.msra.mxu0 %v3969
    %6941 = vmatprep.subr.mxu0 %v3966
    %6942 = vmatpush2.msra.mxu0 %v3965
    %6943 = vmatprep.subr.mxu0 %v3962
    %6944 = vmatpush2.msra.mxu0 %v3961
    %6945 = vmatprep.subr.mxu0 %v3958
    %6946 = vmatpush2.msra.mxu0 %v3957
    %6947 = vmatprep.subr.mxu0 %v3954
    %6948 = vmatpush2.msra.mxu0 %v3953
    %6949 = vmatprep.subr.mxu0 %v3950
    %6950 = vmatpush2.msra.mxu0 %v3949
    %6951 = vmatprep.mubr.f32.mxu0 %v6742
    %6952 = vmatmul.mubr.f32.gmra.mxu0 %v6741
    %v6953 = vpop.f32.mrf.mxu0
    %v6954 = vadd.f32 %v3829, %v6953
    %v6955 = vpop.f32.mrf.mxu0
    %v6956 = vadd.f32 %v3830, %v6955
    %6957 = vdwg.mxu0
    %6958 = vmatprep.subr.mxu0 %v4074
    %6959 = vmatpush1.msra.mxu0 %v4073
    %6960 = vmatprep.subr.mxu0 %v4070
    %6961 = vmatpush1.msra.mxu0 %v4069
    %6962 = vmatprep.subr.mxu0 %v4066
    %6963 = vmatpush1.msra.mxu0 %v4065
    %6964 = vmatprep.subr.mxu0 %v4062
    %6965 = vmatpush1.msra.mxu0 %v4061
    %6966 = vmatprep.subr.mxu0 %v4058
    %6967 = vmatpush1.msra.mxu0 %v4057
    %6968 = vmatprep.subr.mxu0 %v4054
    %6969 = vmatpush1.msra.mxu0 %v4053
    %6970 = vmatprep.subr.mxu0 %v4050
    %6971 = vmatpush1.msra.mxu0 %v4049
    %6972 = vmatprep.subr.mxu0 %v4046
    %6973 = vmatpush1.msra.mxu0 %v4045
    %6974 = vmatprep.subr.mxu0 %v4042
    %6975 = vmatpush1.msra.mxu0 %v4041
    %6976 = vmatprep.subr.mxu0 %v4038
    %6977 = vmatpush1.msra.mxu0 %v4037
    %6978 = vmatprep.subr.mxu0 %v4034
    %6979 = vmatpush1.msra.mxu0 %v4033
    %6980 = vmatprep.subr.mxu0 %v4030
    %6981 = vmatpush1.msra.mxu0 %v4029
    %6982 = vmatprep.subr.mxu0 %v4026
    %6983 = vmatpush1.msra.mxu0 %v4025
    %6984 = vmatprep.subr.mxu0 %v4022
    %6985 = vmatpush1.msra.mxu0 %v4021
    %6986 = vmatprep.subr.mxu0 %v4018
    %6987 = vmatpush1.msra.mxu0 %v4017
    %6988 = vmatprep.subr.mxu0 %v4014
    %6989 = vmatpush1.msra.mxu0 %v4013
    %6990 = vmatprep.subr.mxu0 %v4138
    %6991 = vmatpush2.msra.mxu0 %v4137
    %6992 = vmatprep.subr.mxu0 %v4134
    %6993 = vmatpush2.msra.mxu0 %v4133
    %6994 = vmatprep.subr.mxu0 %v4130
    %6995 = vmatpush2.msra.mxu0 %v4129
    %6996 = vmatprep.subr.mxu0 %v4126
    %6997 = vmatpush2.msra.mxu0 %v4125
    %6998 = vmatprep.subr.mxu0 %v4122
    %6999 = vmatpush2.msra.mxu0 %v4121
    %7000 = vmatprep.subr.mxu0 %v4118
    %7001 = vmatpush2.msra.mxu0 %v4117
    %7002 = vmatprep.subr.mxu0 %v4114
    %7003 = vmatpush2.msra.mxu0 %v4113
    %7004 = vmatprep.subr.mxu0 %v4110
    %7005 = vmatpush2.msra.mxu0 %v4109
    %7006 = vmatprep.subr.mxu0 %v4106
    %7007 = vmatpush2.msra.mxu0 %v4105
    %7008 = vmatprep.subr.mxu0 %v4102
    %7009 = vmatpush2.msra.mxu0 %v4101
    %7010 = vmatprep.subr.mxu0 %v4098
    %7011 = vmatpush2.msra.mxu0 %v4097
    %7012 = vmatprep.subr.mxu0 %v4094
    %7013 = vmatpush2.msra.mxu0 %v4093
    %7014 = vmatprep.subr.mxu0 %v4090
    %7015 = vmatpush2.msra.mxu0 %v4089
    %7016 = vmatprep.subr.mxu0 %v4086
    %7017 = vmatpush2.msra.mxu0 %v4085
    %7018 = vmatprep.subr.mxu0 %v4082
    %7019 = vmatpush2.msra.mxu0 %v4081
    %7020 = vmatprep.subr.mxu0 %v4078
    %7021 = vmatpush2.msra.mxu0 %v4077
    %7022 = vmatprep.mubr.f32.mxu0 %v6744
    %7023 = vmatmul.mubr.f32.gmra.mxu0 %v6743
    %v7024 = vpop.f32.mrf.mxu0
    %v7025 = vadd.f32 %v6954, %v7024
    %v7026 = vpop.f32.mrf.mxu0
    %v7027 = vadd.f32 %v6956, %v7026
    %7028 = vdwg.mxu0
    %vm7029 = vcmp.ge.f32.partialorder %v6883, 0.0
    %vm7030 = vcmp.ge.f32.partialorder %v6885, 0.0
    %vm7031 = vcmp.ge.f32.partialorder %v7025, 0.0
    %vm7032 = vcmp.ge.f32.partialorder %v7027, 0.0
    %v7033 = vmul.f32 %v6883, 0.01
    %v7034 = vmul.f32 %v6885, 0.01
    %v7035 = vmul.f32 %v7025, 0.01
    %v7036 = vmul.f32 %v7027, 0.01
    %v7037 = vsel %vm7029, %v6883, %v7033
    %v7038 = vsel %vm7030, %v6885, %v7034
    %v7039 = vsel %vm7031, %v7025, %v7035
    %v7040 = vsel %vm7032, %v7027, %v7036
    %7041 = vmatprep.subr.mxu0 %v4496
    %7042 = vmatpush1.msra.mxu0 %v4495
    %7043 = vmatprep.subr.mxu0 %v4492
    %7044 = vmatpush1.msra.mxu0 %v4491
    %7045 = vmatprep.subr.mxu0 %v4488
    %7046 = vmatpush1.msra.mxu0 %v4487
    %7047 = vmatprep.subr.mxu0 %v4484
    %7048 = vmatpush1.msra.mxu0 %v4483
    %7049 = vmatprep.subr.mxu0 %v4480
    %7050 = vmatpush1.msra.mxu0 %v4479
    %7051 = vmatprep.subr.mxu0 %v4476
    %7052 = vmatpush1.msra.mxu0 %v4475
    %7053 = vmatprep.subr.mxu0 %v4472
    %7054 = vmatpush1.msra.mxu0 %v4471
    %7055 = vmatprep.subr.mxu0 %v4468
    %7056 = vmatpush1.msra.mxu0 %v4467
    %7057 = vmatprep.subr.mxu0 %v4464
    %7058 = vmatpush1.msra.mxu0 %v4463
    %7059 = vmatprep.subr.mxu0 %v4460
    %7060 = vmatpush1.msra.mxu0 %v4459
    %7061 = vmatprep.subr.mxu0 %v4456
    %7062 = vmatpush1.msra.mxu0 %v4455
    %7063 = vmatprep.subr.mxu0 %v4452
    %7064 = vmatpush1.msra.mxu0 %v4451
    %7065 = vmatprep.subr.mxu0 %v4448
    %7066 = vmatpush1.msra.mxu0 %v4447
    %7067 = vmatprep.subr.mxu0 %v4444
    %7068 = vmatpush1.msra.mxu0 %v4443
    %7069 = vmatprep.subr.mxu0 %v4440
    %7070 = vmatpush1.msra.mxu0 %v4439
    %7071 = vmatprep.subr.mxu0 %v4436
    %7072 = vmatpush1.msra.mxu0 %v4435
    %7073 = vmatprep.subr.mxu0 %v4560
    %7074 = vmatpush2.msra.mxu0 %v4559
    %7075 = vmatprep.subr.mxu0 %v4556
    %7076 = vmatpush2.msra.mxu0 %v4555
    %7077 = vmatprep.subr.mxu0 %v4552
    %7078 = vmatpush2.msra.mxu0 %v4551
    %7079 = vmatprep.subr.mxu0 %v4548
    %7080 = vmatpush2.msra.mxu0 %v4547
    %7081 = vmatprep.subr.mxu0 %v4544
    %7082 = vmatpush2.msra.mxu0 %v4543
    %7083 = vmatprep.subr.mxu0 %v4540
    %7084 = vmatpush2.msra.mxu0 %v4539
    %7085 = vmatprep.subr.mxu0 %v4536
    %7086 = vmatpush2.msra.mxu0 %v4535
    %7087 = vmatprep.subr.mxu0 %v4532
    %7088 = vmatpush2.msra.mxu0 %v4531
    %7089 = vmatprep.subr.mxu0 %v4528
    %7090 = vmatpush2.msra.mxu0 %v4527
    %7091 = vmatprep.subr.mxu0 %v4524
    %7092 = vmatpush2.msra.mxu0 %v4523
    %7093 = vmatprep.subr.mxu0 %v4520
    %7094 = vmatpush2.msra.mxu0 %v4519
    %7095 = vmatprep.subr.mxu0 %v4516
    %7096 = vmatpush2.msra.mxu0 %v4515
    %7097 = vmatprep.subr.mxu0 %v4512
    %7098 = vmatpush2.msra.mxu0 %v4511
    %7099 = vmatprep.subr.mxu0 %v4508
    %7100 = vmatpush2.msra.mxu0 %v4507
    %7101 = vmatprep.subr.mxu0 %v4504
    %7102 = vmatpush2.msra.mxu0 %v4503
    %7103 = vmatprep.subr.mxu0 %v4500
    %7104 = vmatpush2.msra.mxu0 %v4499
    %7105 = vmatprep.mubr.f32.mxu0 %v7038
    %7106 = vmatmul.mubr.f32.gmra.mxu0 %v7037
    %v7107 = vpop.f32.mrf.mxu0
    %v7108 = vadd.f32 %v4696, %v7107
    %v7109 = vpop.f32.mrf.mxu0
    %v7110 = vadd.f32 %v4700, %v7109
    %7111 = vdwg.mxu0
    %7112 = vmatprep.subr.mxu0 %v4624
    %7113 = vmatpush1.msra.mxu0 %v4623
    %7114 = vmatprep.subr.mxu0 %v4620
    %7115 = vmatpush1.msra.mxu0 %v4619
    %7116 = vmatprep.subr.mxu0 %v4616
    %7117 = vmatpush1.msra.mxu0 %v4615
    %7118 = vmatprep.subr.mxu0 %v4612
    %7119 = vmatpush1.msra.mxu0 %v4611
    %7120 = vmatprep.subr.mxu0 %v4608
    %7121 = vmatpush1.msra.mxu0 %v4607
    %7122 = vmatprep.subr.mxu0 %v4604
    %7123 = vmatpush1.msra.mxu0 %v4603
    %7124 = vmatprep.subr.mxu0 %v4600
    %7125 = vmatpush1.msra.mxu0 %v4599
    %7126 = vmatprep.subr.mxu0 %v4596
    %7127 = vmatpush1.msra.mxu0 %v4595
    %7128 = vmatprep.subr.mxu0 %v4592
    %7129 = vmatpush1.msra.mxu0 %v4591
    %7130 = vmatprep.subr.mxu0 %v4588
    %7131 = vmatpush1.msra.mxu0 %v4587
    %7132 = vmatprep.subr.mxu0 %v4584
    %7133 = vmatpush1.msra.mxu0 %v4583
    %7134 = vmatprep.subr.mxu0 %v4580
    %7135 = vmatpush1.msra.mxu0 %v4579
    %7136 = vmatprep.subr.mxu0 %v4576
    %7137 = vmatpush1.msra.mxu0 %v4575
    %7138 = vmatprep.subr.mxu0 %v4572
    %7139 = vmatpush1.msra.mxu0 %v4571
    %7140 = vmatprep.subr.mxu0 %v4568
    %7141 = vmatpush1.msra.mxu0 %v4567
    %7142 = vmatprep.subr.mxu0 %v4564
    %7143 = vmatpush1.msra.mxu0 %v4563
    %7144 = vmatprep.subr.mxu0 %v4688
    %7145 = vmatpush2.msra.mxu0 %v4687
    %7146 = vmatprep.subr.mxu0 %v4684
    %7147 = vmatpush2.msra.mxu0 %v4683
    %7148 = vmatprep.subr.mxu0 %v4680
    %7149 = vmatpush2.msra.mxu0 %v4679
    %7150 = vmatprep.subr.mxu0 %v4676
    %7151 = vmatpush2.msra.mxu0 %v4675
    %7152 = vmatprep.subr.mxu0 %v4672
    %7153 = vmatpush2.msra.mxu0 %v4671
    %7154 = vmatprep.subr.mxu0 %v4668
    %7155 = vmatpush2.msra.mxu0 %v4667
    %7156 = vmatprep.subr.mxu0 %v4664
    %7157 = vmatpush2.msra.mxu0 %v4663
    %7158 = vmatprep.subr.mxu0 %v4660
    %7159 = vmatpush2.msra.mxu0 %v4659
    %7160 = vmatprep.subr.mxu0 %v4656
    %7161 = vmatpush2.msra.mxu0 %v4655
    %7162 = vmatprep.subr.mxu0 %v4652
    %7163 = vmatpush2.msra.mxu0 %v4651
    %7164 = vmatprep.subr.mxu0 %v4648
    %7165 = vmatpush2.msra.mxu0 %v4647
    %7166 = vmatprep.subr.mxu0 %v4644
    %7167 = vmatpush2.msra.mxu0 %v4643
    %7168 = vmatprep.subr.mxu0 %v4640
    %7169 = vmatpush2.msra.mxu0 %v4639
    %7170 = vmatprep.subr.mxu0 %v4636
    %7171 = vmatpush2.msra.mxu0 %v4635
    %7172 = vmatprep.subr.mxu0 %v4632
    %7173 = vmatpush2.msra.mxu0 %v4631
    %7174 = vmatprep.subr.mxu0 %v4628
    %7175 = vmatpush2.msra.mxu0 %v4627
    %7176 = vmatprep.mubr.f32.mxu0 %v7040
    %7177 = vmatmul.mubr.f32.gmra.mxu0 %v7039
    %v7178 = vpop.f32.mrf.mxu0
    %v7179 = vadd.f32 %v7108, %v7178
    %v7180 = vpop.f32.mrf.mxu0
    %v7181 = vadd.f32 %v7110, %v7180
    %7182 = vdwg.mxu0
    %7183 = vmatprep.subr.mxu0 %v4498
    %7184 = vmatpush1.msra.mxu0 %v4497
    %7185 = vmatprep.subr.mxu0 %v4494
    %7186 = vmatpush1.msra.mxu0 %v4493
    %7187 = vmatprep.subr.mxu0 %v4490
    %7188 = vmatpush1.msra.mxu0 %v4489
    %7189 = vmatprep.subr.mxu0 %v4486
    %7190 = vmatpush1.msra.mxu0 %v4485
    %7191 = vmatprep.subr.mxu0 %v4482
    %7192 = vmatpush1.msra.mxu0 %v4481
    %7193 = vmatprep.subr.mxu0 %v4478
    %7194 = vmatpush1.msra.mxu0 %v4477
    %7195 = vmatprep.subr.mxu0 %v4474
    %7196 = vmatpush1.msra.mxu0 %v4473
    %7197 = vmatprep.subr.mxu0 %v4470
    %7198 = vmatpush1.msra.mxu0 %v4469
    %7199 = vmatprep.subr.mxu0 %v4466
    %7200 = vmatpush1.msra.mxu0 %v4465
    %7201 = vmatprep.subr.mxu0 %v4462
    %7202 = vmatpush1.msra.mxu0 %v4461
    %7203 = vmatprep.subr.mxu0 %v4458
    %7204 = vmatpush1.msra.mxu0 %v4457
    %7205 = vmatprep.subr.mxu0 %v4454
    %7206 = vmatpush1.msra.mxu0 %v4453
    %7207 = vmatprep.subr.mxu0 %v4450
    %7208 = vmatpush1.msra.mxu0 %v4449
    %7209 = vmatprep.subr.mxu0 %v4446
    %7210 = vmatpush1.msra.mxu0 %v4445
    %7211 = vmatprep.subr.mxu0 %v4442
    %7212 = vmatpush1.msra.mxu0 %v4441
    %7213 = vmatprep.subr.mxu0 %v4438
    %7214 = vmatpush1.msra.mxu0 %v4437
    %7215 = vmatprep.subr.mxu0 %v4562
    %7216 = vmatpush2.msra.mxu0 %v4561
    %7217 = vmatprep.subr.mxu0 %v4558
    %7218 = vmatpush2.msra.mxu0 %v4557
    %7219 = vmatprep.subr.mxu0 %v4554
    %7220 = vmatpush2.msra.mxu0 %v4553
    %7221 = vmatprep.subr.mxu0 %v4550
    %7222 = vmatpush2.msra.mxu0 %v4549
    %7223 = vmatprep.subr.mxu0 %v4546
    %7224 = vmatpush2.msra.mxu0 %v4545
    %7225 = vmatprep.subr.mxu0 %v4542
    %7226 = vmatpush2.msra.mxu0 %v4541
    %7227 = vmatprep.subr.mxu0 %v4538
    %7228 = vmatpush2.msra.mxu0 %v4537
    %7229 = vmatprep.subr.mxu0 %v4534
    %7230 = vmatpush2.msra.mxu0 %v4533
    %7231 = vmatprep.subr.mxu0 %v4530
    %7232 = vmatpush2.msra.mxu0 %v4529
    %7233 = vmatprep.subr.mxu0 %v4526
    %7234 = vmatpush2.msra.mxu0 %v4525
    %7235 = vmatprep.subr.mxu0 %v4522
    %7236 = vmatpush2.msra.mxu0 %v4521
    %7237 = vmatprep.subr.mxu0 %v4518
    %7238 = vmatpush2.msra.mxu0 %v4517
    %7239 = vmatprep.subr.mxu0 %v4514
    %7240 = vmatpush2.msra.mxu0 %v4513
    %7241 = vmatprep.subr.mxu0 %v4510
    %7242 = vmatpush2.msra.mxu0 %v4509
    %7243 = vmatprep.subr.mxu0 %v4506
    %7244 = vmatpush2.msra.mxu0 %v4505
    %7245 = vmatprep.subr.mxu0 %v4502
    %7246 = vmatpush2.msra.mxu0 %v4501
    %7247 = vmatprep.mubr.f32.mxu0 %v7038
    %7248 = vmatmul.mubr.f32.gmra.mxu0 %v7037
    %v7249 = vpop.f32.mrf.mxu0
    %v7250 = vadd.f32 %v4704, %v7249
    %v7251 = vpop.f32.mrf.mxu0
    %v7252 = vadd.f32 %v4708, %v7251
    %7253 = vdwg.mxu0
    %7254 = vmatprep.subr.mxu0 %v4626
    %7255 = vmatpush1.msra.mxu0 %v4625
    %7256 = vmatprep.subr.mxu0 %v4622
    %7257 = vmatpush1.msra.mxu0 %v4621
    %7258 = vmatprep.subr.mxu0 %v4618
    %7259 = vmatpush1.msra.mxu0 %v4617
    %7260 = vmatprep.subr.mxu0 %v4614
    %7261 = vmatpush1.msra.mxu0 %v4613
    %7262 = vmatprep.subr.mxu0 %v4610
    %7263 = vmatpush1.msra.mxu0 %v4609
    %7264 = vmatprep.subr.mxu0 %v4606
    %7265 = vmatpush1.msra.mxu0 %v4605
    %7266 = vmatprep.subr.mxu0 %v4602
    %7267 = vmatpush1.msra.mxu0 %v4601
    %7268 = vmatprep.subr.mxu0 %v4598
    %7269 = vmatpush1.msra.mxu0 %v4597
    %7270 = vmatprep.subr.mxu0 %v4594
    %7271 = vmatpush1.msra.mxu0 %v4593
    %7272 = vmatprep.subr.mxu0 %v4590
    %7273 = vmatpush1.msra.mxu0 %v4589
    %7274 = vmatprep.subr.mxu0 %v4586
    %7275 = vmatpush1.msra.mxu0 %v4585
    %7276 = vmatprep.subr.mxu0 %v4582
    %7277 = vmatpush1.msra.mxu0 %v4581
    %7278 = vmatprep.subr.mxu0 %v4578
    %7279 = vmatpush1.msra.mxu0 %v4577
    %7280 = vmatprep.subr.mxu0 %v4574
    %7281 = vmatpush1.msra.mxu0 %v4573
    %7282 = vmatprep.subr.mxu0 %v4570
    %7283 = vmatpush1.msra.mxu0 %v4569
    %7284 = vmatprep.subr.mxu0 %v4566
    %7285 = vmatpush1.msra.mxu0 %v4565
    %7286 = vmatprep.subr.mxu0 %v4690
    %7287 = vmatpush2.msra.mxu0 %v4689
    %7288 = vmatprep.subr.mxu0 %v4686
    %7289 = vmatpush2.msra.mxu0 %v4685
    %7290 = vmatprep.subr.mxu0 %v4682
    %7291 = vmatpush2.msra.mxu0 %v4681
    %7292 = vmatprep.subr.mxu0 %v4678
    %7293 = vmatpush2.msra.mxu0 %v4677
    %7294 = vmatprep.subr.mxu0 %v4674
    %7295 = vmatpush2.msra.mxu0 %v4673
    %7296 = vmatprep.subr.mxu0 %v4670
    %7297 = vmatpush2.msra.mxu0 %v4669
    %7298 = vmatprep.subr.mxu0 %v4666
    %7299 = vmatpush2.msra.mxu0 %v4665
    %7300 = vmatprep.subr.mxu0 %v4662
    %7301 = vmatpush2.msra.mxu0 %v4661
    %7302 = vmatprep.subr.mxu0 %v4658
    %7303 = vmatpush2.msra.mxu0 %v4657
    %7304 = vmatprep.subr.mxu0 %v4654
    %7305 = vmatpush2.msra.mxu0 %v4653
    %7306 = vmatprep.subr.mxu0 %v4650
    %7307 = vmatpush2.msra.mxu0 %v4649
    %7308 = vmatprep.subr.mxu0 %v4646
    %7309 = vmatpush2.msra.mxu0 %v4645
    %7310 = vmatprep.subr.mxu0 %v4642
    %7311 = vmatpush2.msra.mxu0 %v4641
    %7312 = vmatprep.subr.mxu0 %v4638
    %7313 = vmatpush2.msra.mxu0 %v4637
    %7314 = vmatprep.subr.mxu0 %v4634
    %7315 = vmatpush2.msra.mxu0 %v4633
    %7316 = vmatprep.subr.mxu0 %v4630
    %7317 = vmatpush2.msra.mxu0 %v4629
    %7318 = vmatprep.mubr.f32.mxu0 %v7040
    %7319 = vmatmul.mubr.f32.gmra.mxu0 %v7039
    %v7320 = vpop.f32.mrf.mxu0
    %v7321 = vadd.f32 %v7250, %v7320
    %v7322 = vpop.f32.mrf.mxu0
    %v7323 = vadd.f32 %v7252, %v7322
    %7324 = vdwg.mxu0
    %7325 = vmatprep.subr.mxu0 %v3944
    %7326 = vmatpush1.msra.mxu0 %v3943
    %7327 = vmatprep.subr.mxu0 %v3940
    %7328 = vmatpush1.msra.mxu0 %v3939
    %7329 = vmatprep.subr.mxu0 %v3936
    %7330 = vmatpush1.msra.mxu0 %v3935
    %7331 = vmatprep.subr.mxu0 %v3932
    %7332 = vmatpush1.msra.mxu0 %v3931
    %7333 = vmatprep.subr.mxu0 %v3928
    %7334 = vmatpush1.msra.mxu0 %v3927
    %7335 = vmatprep.subr.mxu0 %v3924
    %7336 = vmatpush1.msra.mxu0 %v3923
    %7337 = vmatprep.subr.mxu0 %v3920
    %7338 = vmatpush1.msra.mxu0 %v3919
    %7339 = vmatprep.subr.mxu0 %v3916
    %7340 = vmatpush1.msra.mxu0 %v3915
    %7341 = vmatprep.subr.mxu0 %v3912
    %7342 = vmatpush1.msra.mxu0 %v3911
    %7343 = vmatprep.subr.mxu0 %v3908
    %7344 = vmatpush1.msra.mxu0 %v3907
    %7345 = vmatprep.subr.mxu0 %v3904
    %7346 = vmatpush1.msra.mxu0 %v3903
    %7347 = vmatprep.subr.mxu0 %v3900
    %7348 = vmatpush1.msra.mxu0 %v3899
    %7349 = vmatprep.subr.mxu0 %v3896
    %7350 = vmatpush1.msra.mxu0 %v3895
    %7351 = vmatprep.subr.mxu0 %v3892
    %7352 = vmatpush1.msra.mxu0 %v3891
    %7353 = vmatprep.subr.mxu0 %v3888
    %7354 = vmatpush1.msra.mxu0 %v3887
    %7355 = vmatprep.subr.mxu0 %v3884
    %7356 = vmatpush1.msra.mxu0 %v3883
    %7357 = vmatprep.subr.mxu0 %v4008
    %7358 = vmatpush2.msra.mxu0 %v4007
    %7359 = vmatprep.subr.mxu0 %v4004
    %7360 = vmatpush2.msra.mxu0 %v4003
    %7361 = vmatprep.subr.mxu0 %v4000
    %7362 = vmatpush2.msra.mxu0 %v3999
    %7363 = vmatprep.subr.mxu0 %v3996
    %7364 = vmatpush2.msra.mxu0 %v3995
    %7365 = vmatprep.subr.mxu0 %v3992
    %7366 = vmatpush2.msra.mxu0 %v3991
    %7367 = vmatprep.subr.mxu0 %v3988
    %7368 = vmatpush2.msra.mxu0 %v3987
    %7369 = vmatprep.subr.mxu0 %v3984
    %7370 = vmatpush2.msra.mxu0 %v3983
    %7371 = vmatprep.subr.mxu0 %v3980
    %7372 = vmatpush2.msra.mxu0 %v3979
    %7373 = vmatprep.subr.mxu0 %v3976
    %7374 = vmatpush2.msra.mxu0 %v3975
    %7375 = vmatprep.subr.mxu0 %v3972
    %7376 = vmatpush2.msra.mxu0 %v3971
    %7377 = vmatprep.subr.mxu0 %v3968
    %7378 = vmatpush2.msra.mxu0 %v3967
    %7379 = vmatprep.subr.mxu0 %v3964
    %7380 = vmatpush2.msra.mxu0 %v3963
    %7381 = vmatprep.subr.mxu0 %v3960
    %7382 = vmatpush2.msra.mxu0 %v3959
    %7383 = vmatprep.subr.mxu0 %v3956
    %7384 = vmatpush2.msra.mxu0 %v3955
    %7385 = vmatprep.subr.mxu0 %v3952
    %7386 = vmatpush2.msra.mxu0 %v3951
    %7387 = vmatprep.subr.mxu0 %v3948
    %7388 = vmatpush2.msra.mxu0 %v3947
    %7389 = vmatprep.mubr.f32.mxu0 %v7181
    %7390 = vmatmul.mubr.f32.gmra.mxu0 %v7179
    %v7391 = vpop.f32.mrf.mxu0
    %v7392 = vadd.f32 %v3827, %v7391
    %v7393 = vpop.f32.mrf.mxu0
    %v7394 = vadd.f32 %v3828, %v7393
    %7395 = vdwg.mxu0
    %7396 = vmatprep.subr.mxu0 %v4072
    %7397 = vmatpush1.msra.mxu0 %v4071
    %7398 = vmatprep.subr.mxu0 %v4068
    %7399 = vmatpush1.msra.mxu0 %v4067
    %7400 = vmatprep.subr.mxu0 %v4064
    %7401 = vmatpush1.msra.mxu0 %v4063
    %7402 = vmatprep.subr.mxu0 %v4060
    %7403 = vmatpush1.msra.mxu0 %v4059
    %7404 = vmatprep.subr.mxu0 %v4056
    %7405 = vmatpush1.msra.mxu0 %v4055
    %7406 = vmatprep.subr.mxu0 %v4052
    %7407 = vmatpush1.msra.mxu0 %v4051
    %7408 = vmatprep.subr.mxu0 %v4048
    %7409 = vmatpush1.msra.mxu0 %v4047
    %7410 = vmatprep.subr.mxu0 %v4044
    %7411 = vmatpush1.msra.mxu0 %v4043
    %7412 = vmatprep.subr.mxu0 %v4040
    %7413 = vmatpush1.msra.mxu0 %v4039
    %7414 = vmatprep.subr.mxu0 %v4036
    %7415 = vmatpush1.msra.mxu0 %v4035
    %7416 = vmatprep.subr.mxu0 %v4032
    %7417 = vmatpush1.msra.mxu0 %v4031
    %7418 = vmatprep.subr.mxu0 %v4028
    %7419 = vmatpush1.msra.mxu0 %v4027
    %7420 = vmatprep.subr.mxu0 %v4024
    %7421 = vmatpush1.msra.mxu0 %v4023
    %7422 = vmatprep.subr.mxu0 %v4020
    %7423 = vmatpush1.msra.mxu0 %v4019
    %7424 = vmatprep.subr.mxu0 %v4016
    %7425 = vmatpush1.msra.mxu0 %v4015
    %7426 = vmatprep.subr.mxu0 %v4012
    %7427 = vmatpush1.msra.mxu0 %v4011
    %7428 = vmatprep.subr.mxu0 %v4136
    %7429 = vmatpush2.msra.mxu0 %v4135
    %7430 = vmatprep.subr.mxu0 %v4132
    %7431 = vmatpush2.msra.mxu0 %v4131
    %7432 = vmatprep.subr.mxu0 %v4128
    %7433 = vmatpush2.msra.mxu0 %v4127
    %7434 = vmatprep.subr.mxu0 %v4124
    %7435 = vmatpush2.msra.mxu0 %v4123
    %7436 = vmatprep.subr.mxu0 %v4120
    %7437 = vmatpush2.msra.mxu0 %v4119
    %7438 = vmatprep.subr.mxu0 %v4116
    %7439 = vmatpush2.msra.mxu0 %v4115
    %7440 = vmatprep.subr.mxu0 %v4112
    %7441 = vmatpush2.msra.mxu0 %v4111
    %7442 = vmatprep.subr.mxu0 %v4108
    %7443 = vmatpush2.msra.mxu0 %v4107
    %7444 = vmatprep.subr.mxu0 %v4104
    %7445 = vmatpush2.msra.mxu0 %v4103
    %7446 = vmatprep.subr.mxu0 %v4100
    %7447 = vmatpush2.msra.mxu0 %v4099
    %7448 = vmatprep.subr.mxu0 %v4096
    %7449 = vmatpush2.msra.mxu0 %v4095
    %7450 = vmatprep.subr.mxu0 %v4092
    %7451 = vmatpush2.msra.mxu0 %v4091
    %7452 = vmatprep.subr.mxu0 %v4088
    %7453 = vmatpush2.msra.mxu0 %v4087
    %7454 = vmatprep.subr.mxu0 %v4084
    %7455 = vmatpush2.msra.mxu0 %v4083
    %7456 = vmatprep.subr.mxu0 %v4080
    %7457 = vmatpush2.msra.mxu0 %v4079
    %7458 = vmatprep.subr.mxu0 %v4076
    %7459 = vmatpush2.msra.mxu0 %v4075
    %7460 = vmatprep.mubr.f32.mxu0 %v7323
    %7461 = vmatmul.mubr.f32.gmra.mxu0 %v7321
    %v7462 = vpop.f32.mrf.mxu0
    %v7463 = vadd.f32 %v7392, %v7462
    %v7464 = vpop.f32.mrf.mxu0
    %v7465 = vadd.f32 %v7394, %v7464
    %7466 = vdwg.mxu0
    %7467 = vmatprep.subr.mxu0 %v3946
    %7468 = vmatpush1.msra.mxu0 %v3945
    %7469 = vmatprep.subr.mxu0 %v3942
    %7470 = vmatpush1.msra.mxu0 %v3941
    %7471 = vmatprep.subr.mxu0 %v3938
    %7472 = vmatpush1.msra.mxu0 %v3937
    %7473 = vmatprep.subr.mxu0 %v3934
    %7474 = vmatpush1.msra.mxu0 %v3933
    %7475 = vmatprep.subr.mxu0 %v3930
    %7476 = vmatpush1.msra.mxu0 %v3929
    %7477 = vmatprep.subr.mxu0 %v3926
    %7478 = vmatpush1.msra.mxu0 %v3925
    %7479 = vmatprep.subr.mxu0 %v3922
    %7480 = vmatpush1.msra.mxu0 %v3921
    %7481 = vmatprep.subr.mxu0 %v3918
    %7482 = vmatpush1.msra.mxu0 %v3917
    %7483 = vmatprep.subr.mxu0 %v3914
    %7484 = vmatpush1.msra.mxu0 %v3913
    %7485 = vmatprep.subr.mxu0 %v3910
    %7486 = vmatpush1.msra.mxu0 %v3909
    %7487 = vmatprep.subr.mxu0 %v3906
    %7488 = vmatpush1.msra.mxu0 %v3905
    %7489 = vmatprep.subr.mxu0 %v3902
    %7490 = vmatpush1.msra.mxu0 %v3901
    %7491 = vmatprep.subr.mxu0 %v3898
    %7492 = vmatpush1.msra.mxu0 %v3897
    %7493 = vmatprep.subr.mxu0 %v3894
    %7494 = vmatpush1.msra.mxu0 %v3893
    %7495 = vmatprep.subr.mxu0 %v3890
    %7496 = vmatpush1.msra.mxu0 %v3889
    %7497 = vmatprep.subr.mxu0 %v3886
    %7498 = vmatpush1.msra.mxu0 %v3885
    %7499 = vmatprep.subr.mxu0 %v4010
    %7500 = vmatpush2.msra.mxu0 %v4009
    %7501 = vmatprep.subr.mxu0 %v4006
    %7502 = vmatpush2.msra.mxu0 %v4005
    %7503 = vmatprep.subr.mxu0 %v4002
    %7504 = vmatpush2.msra.mxu0 %v4001
    %7505 = vmatprep.subr.mxu0 %v3998
    %7506 = vmatpush2.msra.mxu0 %v3997
    %7507 = vmatprep.subr.mxu0 %v3994
    %7508 = vmatpush2.msra.mxu0 %v3993
    %7509 = vmatprep.subr.mxu0 %v3990
    %7510 = vmatpush2.msra.mxu0 %v3989
    %7511 = vmatprep.subr.mxu0 %v3986
    %7512 = vmatpush2.msra.mxu0 %v3985
    %7513 = vmatprep.subr.mxu0 %v3982
    %7514 = vmatpush2.msra.mxu0 %v3981
    %7515 = vmatprep.subr.mxu0 %v3978
    %7516 = vmatpush2.msra.mxu0 %v3977
    %7517 = vmatprep.subr.mxu0 %v3974
    %7518 = vmatpush2.msra.mxu0 %v3973
    %7519 = vmatprep.subr.mxu0 %v3970
    %7520 = vmatpush2.msra.mxu0 %v3969
    %7521 = vmatprep.subr.mxu0 %v3966
    %7522 = vmatpush2.msra.mxu0 %v3965
    %7523 = vmatprep.subr.mxu0 %v3962
    %7524 = vmatpush2.msra.mxu0 %v3961
    %7525 = vmatprep.subr.mxu0 %v3958
    %7526 = vmatpush2.msra.mxu0 %v3957
    %7527 = vmatprep.subr.mxu0 %v3954
    %7528 = vmatpush2.msra.mxu0 %v3953
    %7529 = vmatprep.subr.mxu0 %v3950
    %7530 = vmatpush2.msra.mxu0 %v3949
    %7531 = vmatprep.mubr.f32.mxu0 %v7181
    %7532 = vmatmul.mubr.f32.gmra.mxu0 %v7179
    %v7533 = vpop.f32.mrf.mxu0
    %v7534 = vadd.f32 %v3829, %v7533
    %v7535 = vpop.f32.mrf.mxu0
    %v7536 = vadd.f32 %v3830, %v7535
    %7537 = vdwg.mxu0
    %7538 = vmatprep.subr.mxu0 %v4074
    %7539 = vmatpush1.msra.mxu0 %v4073
    %7540 = vmatprep.subr.mxu0 %v4070
    %7541 = vmatpush1.msra.mxu0 %v4069
    %7542 = vmatprep.subr.mxu0 %v4066
    %7543 = vmatpush1.msra.mxu0 %v4065
    %7544 = vmatprep.subr.mxu0 %v4062
    %7545 = vmatpush1.msra.mxu0 %v4061
    %7546 = vmatprep.subr.mxu0 %v4058
    %7547 = vmatpush1.msra.mxu0 %v4057
    %7548 = vmatprep.subr.mxu0 %v4054
    %7549 = vmatpush1.msra.mxu0 %v4053
    %7550 = vmatprep.subr.mxu0 %v4050
    %7551 = vmatpush1.msra.mxu0 %v4049
    %7552 = vmatprep.subr.mxu0 %v4046
    %7553 = vmatpush1.msra.mxu0 %v4045
    %7554 = vmatprep.subr.mxu0 %v4042
    %7555 = vmatpush1.msra.mxu0 %v4041
    %7556 = vmatprep.subr.mxu0 %v4038
    %7557 = vmatpush1.msra.mxu0 %v4037
    %7558 = vmatprep.subr.mxu0 %v4034
    %7559 = vmatpush1.msra.mxu0 %v4033
    %7560 = vmatprep.subr.mxu0 %v4030
    %7561 = vmatpush1.msra.mxu0 %v4029
    %7562 = vmatprep.subr.mxu0 %v4026
    %7563 = vmatpush1.msra.mxu0 %v4025
    %7564 = vmatprep.subr.mxu0 %v4022
    %7565 = vmatpush1.msra.mxu0 %v4021
    %7566 = vmatprep.subr.mxu0 %v4018
    %7567 = vmatpush1.msra.mxu0 %v4017
    %7568 = vmatprep.subr.mxu0 %v4014
    %7569 = vmatpush1.msra.mxu0 %v4013
    %7570 = vmatprep.subr.mxu0 %v4138
    %7571 = vmatpush2.msra.mxu0 %v4137
    %7572 = vmatprep.subr.mxu0 %v4134
    %7573 = vmatpush2.msra.mxu0 %v4133
    %7574 = vmatprep.subr.mxu0 %v4130
    %7575 = vmatpush2.msra.mxu0 %v4129
    %7576 = vmatprep.subr.mxu0 %v4126
    %7577 = vmatpush2.msra.mxu0 %v4125
    %7578 = vmatprep.subr.mxu0 %v4122
    %7579 = vmatpush2.msra.mxu0 %v4121
    %7580 = vmatprep.subr.mxu0 %v4118
    %7581 = vmatpush2.msra.mxu0 %v4117
    %7582 = vmatprep.subr.mxu0 %v4114
    %7583 = vmatpush2.msra.mxu0 %v4113
    %7584 = vmatprep.subr.mxu0 %v4110
    %7585 = vmatpush2.msra.mxu0 %v4109
    %7586 = vmatprep.subr.mxu0 %v4106
    %7587 = vmatpush2.msra.mxu0 %v4105
    %7588 = vmatprep.subr.mxu0 %v4102
    %7589 = vmatpush2.msra.mxu0 %v4101
    %7590 = vmatprep.subr.mxu0 %v4098
    %7591 = vmatpush2.msra.mxu0 %v4097
    %7592 = vmatprep.subr.mxu0 %v4094
    %7593 = vmatpush2.msra.mxu0 %v4093
    %7594 = vmatprep.subr.mxu0 %v4090
    %7595 = vmatpush2.msra.mxu0 %v4089
    %7596 = vmatprep.subr.mxu0 %v4086
    %7597 = vmatpush2.msra.mxu0 %v4085
    %7598 = vmatprep.subr.mxu0 %v4082
    %7599 = vmatpush2.msra.mxu0 %v4081
    %7600 = vmatprep.subr.mxu0 %v4078
    %7601 = vmatpush2.msra.mxu0 %v4077
    %7602 = vmatprep.mubr.f32.mxu0 %v7323
    %7603 = vmatmul.mubr.f32.gmra.mxu0 %v7321
    %v7604 = vpop.f32.mrf.mxu0
    %v7605 = vadd.f32 %v7534, %v7604
    %v7606 = vpop.f32.mrf.mxu0
    %v7607 = vadd.f32 %v7536, %v7606
    %7608 = vdwg.mxu0
    %vm7609 = vcmp.ge.f32.partialorder %v7463, 0.0
    %vm7610 = vcmp.ge.f32.partialorder %v7465, 0.0
    %vm7611 = vcmp.ge.f32.partialorder %v7605, 0.0
    %vm7612 = vcmp.ge.f32.partialorder %v7607, 0.0
    %v7613 = vmul.f32 %v7463, 0.01
    %v7614 = vmul.f32 %v7465, 0.01
    %v7615 = vmul.f32 %v7605, 0.01
    %v7616 = vmul.f32 %v7607, 0.01
    %v7617 = vsel %vm7609, %v7463, %v7613
    %v7618 = vsel %vm7610, %v7465, %v7614
    %v7619 = vsel %vm7611, %v7605, %v7615
    %v7620 = vsel %vm7612, %v7607, %v7616
    %7621 = vmatprep.subr.mxu0 %v4496
    %7622 = vmatpush1.msra.mxu0 %v4495
    %7623 = vmatprep.subr.mxu0 %v4492
    %7624 = vmatpush1.msra.mxu0 %v4491
    %7625 = vmatprep.subr.mxu0 %v4488
    %7626 = vmatpush1.msra.mxu0 %v4487
    %7627 = vmatprep.subr.mxu0 %v4484
    %7628 = vmatpush1.msra.mxu0 %v4483
    %7629 = vmatprep.subr.mxu0 %v4480
    %7630 = vmatpush1.msra.mxu0 %v4479
    %7631 = vmatprep.subr.mxu0 %v4476
    %7632 = vmatpush1.msra.mxu0 %v4475
    %7633 = vmatprep.subr.mxu0 %v4472
    %7634 = vmatpush1.msra.mxu0 %v4471
    %7635 = vmatprep.subr.mxu0 %v4468
    %7636 = vmatpush1.msra.mxu0 %v4467
    %7637 = vmatprep.subr.mxu0 %v4464
    %7638 = vmatpush1.msra.mxu0 %v4463
    %7639 = vmatprep.subr.mxu0 %v4460
    %7640 = vmatpush1.msra.mxu0 %v4459
    %7641 = vmatprep.subr.mxu0 %v4456
    %7642 = vmatpush1.msra.mxu0 %v4455
    %7643 = vmatprep.subr.mxu0 %v4452
    %7644 = vmatpush1.msra.mxu0 %v4451
    %7645 = vmatprep.subr.mxu0 %v4448
    %7646 = vmatpush1.msra.mxu0 %v4447
    %7647 = vmatprep.subr.mxu0 %v4444
    %7648 = vmatpush1.msra.mxu0 %v4443
    %7649 = vmatprep.subr.mxu0 %v4440
    %7650 = vmatpush1.msra.mxu0 %v4439
    %7651 = vmatprep.subr.mxu0 %v4436
    %7652 = vmatpush1.msra.mxu0 %v4435
    %7653 = vmatprep.subr.mxu0 %v4560
    %7654 = vmatpush2.msra.mxu0 %v4559
    %7655 = vmatprep.subr.mxu0 %v4556
    %7656 = vmatpush2.msra.mxu0 %v4555
    %7657 = vmatprep.subr.mxu0 %v4552
    %7658 = vmatpush2.msra.mxu0 %v4551
    %7659 = vmatprep.subr.mxu0 %v4548
    %7660 = vmatpush2.msra.mxu0 %v4547
    %7661 = vmatprep.subr.mxu0 %v4544
    %7662 = vmatpush2.msra.mxu0 %v4543
    %7663 = vmatprep.subr.mxu0 %v4540
    %7664 = vmatpush2.msra.mxu0 %v4539
    %7665 = vmatprep.subr.mxu0 %v4536
    %7666 = vmatpush2.msra.mxu0 %v4535
    %7667 = vmatprep.subr.mxu0 %v4532
    %7668 = vmatpush2.msra.mxu0 %v4531
    %7669 = vmatprep.subr.mxu0 %v4528
    %7670 = vmatpush2.msra.mxu0 %v4527
    %7671 = vmatprep.subr.mxu0 %v4524
    %7672 = vmatpush2.msra.mxu0 %v4523
    %7673 = vmatprep.subr.mxu0 %v4520
    %7674 = vmatpush2.msra.mxu0 %v4519
    %7675 = vmatprep.subr.mxu0 %v4516
    %7676 = vmatpush2.msra.mxu0 %v4515
    %7677 = vmatprep.subr.mxu0 %v4512
    %7678 = vmatpush2.msra.mxu0 %v4511
    %7679 = vmatprep.subr.mxu0 %v4508
    %7680 = vmatpush2.msra.mxu0 %v4507
    %7681 = vmatprep.subr.mxu0 %v4504
    %7682 = vmatpush2.msra.mxu0 %v4503
    %7683 = vmatprep.subr.mxu0 %v4500
    %7684 = vmatpush2.msra.mxu0 %v4499
    %7685 = vmatprep.mubr.f32.mxu0 %v7618
    %7686 = vmatmul.mubr.f32.gmra.mxu0 %v7617
    %v7687 = vpop.f32.mrf.mxu0
    %v7688 = vadd.f32 %v4696, %v7687
    %v7689 = vpop.f32.mrf.mxu0
    %v7690 = vadd.f32 %v4700, %v7689
    %7691 = vdwg.mxu0
    %7692 = vmatprep.subr.mxu0 %v4624
    %7693 = vmatpush1.msra.mxu0 %v4623
    %7694 = vmatprep.subr.mxu0 %v4620
    %7695 = vmatpush1.msra.mxu0 %v4619
    %7696 = vmatprep.subr.mxu0 %v4616
    %7697 = vmatpush1.msra.mxu0 %v4615
    %7698 = vmatprep.subr.mxu0 %v4612
    %7699 = vmatpush1.msra.mxu0 %v4611
    %7700 = vmatprep.subr.mxu0 %v4608
    %7701 = vmatpush1.msra.mxu0 %v4607
    %7702 = vmatprep.subr.mxu0 %v4604
    %7703 = vmatpush1.msra.mxu0 %v4603
    %7704 = vmatprep.subr.mxu0 %v4600
    %7705 = vmatpush1.msra.mxu0 %v4599
    %7706 = vmatprep.subr.mxu0 %v4596
    %7707 = vmatpush1.msra.mxu0 %v4595
    %7708 = vmatprep.subr.mxu0 %v4592
    %7709 = vmatpush1.msra.mxu0 %v4591
    %7710 = vmatprep.subr.mxu0 %v4588
    %7711 = vmatpush1.msra.mxu0 %v4587
    %7712 = vmatprep.subr.mxu0 %v4584
    %7713 = vmatpush1.msra.mxu0 %v4583
    %7714 = vmatprep.subr.mxu0 %v4580
    %7715 = vmatpush1.msra.mxu0 %v4579
    %7716 = vmatprep.subr.mxu0 %v4576
    %7717 = vmatpush1.msra.mxu0 %v4575
    %7718 = vmatprep.subr.mxu0 %v4572
    %7719 = vmatpush1.msra.mxu0 %v4571
    %7720 = vmatprep.subr.mxu0 %v4568
    %7721 = vmatpush1.msra.mxu0 %v4567
    %7722 = vmatprep.subr.mxu0 %v4564
    %7723 = vmatpush1.msra.mxu0 %v4563
    %7724 = vmatprep.subr.mxu0 %v4688
    %7725 = vmatpush2.msra.mxu0 %v4687
    %7726 = vmatprep.subr.mxu0 %v4684
    %7727 = vmatpush2.msra.mxu0 %v4683
    %7728 = vmatprep.subr.mxu0 %v4680
    %7729 = vmatpush2.msra.mxu0 %v4679
    %7730 = vmatprep.subr.mxu0 %v4676
    %7731 = vmatpush2.msra.mxu0 %v4675
    %7732 = vmatprep.subr.mxu0 %v4672
    %7733 = vmatpush2.msra.mxu0 %v4671
    %7734 = vmatprep.subr.mxu0 %v4668
    %7735 = vmatpush2.msra.mxu0 %v4667
    %7736 = vmatprep.subr.mxu0 %v4664
    %7737 = vmatpush2.msra.mxu0 %v4663
    %7738 = vmatprep.subr.mxu0 %v4660
    %7739 = vmatpush2.msra.mxu0 %v4659
    %7740 = vmatprep.subr.mxu0 %v4656
    %7741 = vmatpush2.msra.mxu0 %v4655
    %7742 = vmatprep.subr.mxu0 %v4652
    %7743 = vmatpush2.msra.mxu0 %v4651
    %7744 = vmatprep.subr.mxu0 %v4648
    %7745 = vmatpush2.msra.mxu0 %v4647
    %7746 = vmatprep.subr.mxu0 %v4644
    %7747 = vmatpush2.msra.mxu0 %v4643
    %7748 = vmatprep.subr.mxu0 %v4640
    %7749 = vmatpush2.msra.mxu0 %v4639
    %7750 = vmatprep.subr.mxu0 %v4636
    %7751 = vmatpush2.msra.mxu0 %v4635
    %7752 = vmatprep.subr.mxu0 %v4632
    %7753 = vmatpush2.msra.mxu0 %v4631
    %7754 = vmatprep.subr.mxu0 %v4628
    %7755 = vmatpush2.msra.mxu0 %v4627
    %7756 = vmatprep.mubr.f32.mxu0 %v7620
    %7757 = vmatmul.mubr.f32.gmra.mxu0 %v7619
    %v7758 = vpop.f32.mrf.mxu0
    %v7759 = vadd.f32 %v7688, %v7758
    %v7760 = vpop.f32.mrf.mxu0
    %v7761 = vadd.f32 %v7690, %v7760
    %7762 = vdwg.mxu0
    %7763 = vmatprep.subr.mxu0 %v4498
    %7764 = vmatpush1.msra.mxu0 %v4497
    %7765 = vmatprep.subr.mxu0 %v4494
    %7766 = vmatpush1.msra.mxu0 %v4493
    %7767 = vmatprep.subr.mxu0 %v4490
    %7768 = vmatpush1.msra.mxu0 %v4489
    %7769 = vmatprep.subr.mxu0 %v4486
    %7770 = vmatpush1.msra.mxu0 %v4485
    %7771 = vmatprep.subr.mxu0 %v4482
    %7772 = vmatpush1.msra.mxu0 %v4481
    %7773 = vmatprep.subr.mxu0 %v4478
    %7774 = vmatpush1.msra.mxu0 %v4477
    %7775 = vmatprep.subr.mxu0 %v4474
    %7776 = vmatpush1.msra.mxu0 %v4473
    %7777 = vmatprep.subr.mxu0 %v4470
    %7778 = vmatpush1.msra.mxu0 %v4469
    %7779 = vmatprep.subr.mxu0 %v4466
    %7780 = vmatpush1.msra.mxu0 %v4465
    %7781 = vmatprep.subr.mxu0 %v4462
    %7782 = vmatpush1.msra.mxu0 %v4461
    %7783 = vmatprep.subr.mxu0 %v4458
    %7784 = vmatpush1.msra.mxu0 %v4457
    %7785 = vmatprep.subr.mxu0 %v4454
    %7786 = vmatpush1.msra.mxu0 %v4453
    %7787 = vmatprep.subr.mxu0 %v4450
    %7788 = vmatpush1.msra.mxu0 %v4449
    %7789 = vmatprep.subr.mxu0 %v4446
    %7790 = vmatpush1.msra.mxu0 %v4445
    %7791 = vmatprep.subr.mxu0 %v4442
    %7792 = vmatpush1.msra.mxu0 %v4441
    %7793 = vmatprep.subr.mxu0 %v4438
    %7794 = vmatpush1.msra.mxu0 %v4437
    %7795 = vmatprep.subr.mxu0 %v4562
    %7796 = vmatpush2.msra.mxu0 %v4561
    %7797 = vmatprep.subr.mxu0 %v4558
    %7798 = vmatpush2.msra.mxu0 %v4557
    %7799 = vmatprep.subr.mxu0 %v4554
    %7800 = vmatpush2.msra.mxu0 %v4553
    %7801 = vmatprep.subr.mxu0 %v4550
    %7802 = vmatpush2.msra.mxu0 %v4549
    %7803 = vmatprep.subr.mxu0 %v4546
    %7804 = vmatpush2.msra.mxu0 %v4545
    %7805 = vmatprep.subr.mxu0 %v4542
    %7806 = vmatpush2.msra.mxu0 %v4541
    %7807 = vmatprep.subr.mxu0 %v4538
    %7808 = vmatpush2.msra.mxu0 %v4537
    %7809 = vmatprep.subr.mxu0 %v4534
    %7810 = vmatpush2.msra.mxu0 %v4533
    %7811 = vmatprep.subr.mxu0 %v4530
    %7812 = vmatpush2.msra.mxu0 %v4529
    %7813 = vmatprep.subr.mxu0 %v4526
    %7814 = vmatpush2.msra.mxu0 %v4525
    %7815 = vmatprep.subr.mxu0 %v4522
    %7816 = vmatpush2.msra.mxu0 %v4521
    %7817 = vmatprep.subr.mxu0 %v4518
    %7818 = vmatpush2.msra.mxu0 %v4517
    %7819 = vmatprep.subr.mxu0 %v4514
    %7820 = vmatpush2.msra.mxu0 %v4513
    %7821 = vmatprep.subr.mxu0 %v4510
    %7822 = vmatpush2.msra.mxu0 %v4509
    %7823 = vmatprep.subr.mxu0 %v4506
    %7824 = vmatpush2.msra.mxu0 %v4505
    %7825 = vmatprep.subr.mxu0 %v4502
    %7826 = vmatpush2.msra.mxu0 %v4501
    %7827 = vmatprep.mubr.f32.mxu0 %v7618
    %7828 = vmatmul.mubr.f32.gmra.mxu0 %v7617
    %v7829 = vpop.f32.mrf.mxu0
    %v7830 = vadd.f32 %v4704, %v7829
    %v7831 = vpop.f32.mrf.mxu0
    %v7832 = vadd.f32 %v4708, %v7831
    %7833 = vdwg.mxu0
    %7834 = vmatprep.subr.mxu0 %v4626
    %7835 = vmatpush1.msra.mxu0 %v4625
    %7836 = vmatprep.subr.mxu0 %v4622
    %7837 = vmatpush1.msra.mxu0 %v4621
    %7838 = vmatprep.subr.mxu0 %v4618
    %7839 = vmatpush1.msra.mxu0 %v4617
    %7840 = vmatprep.subr.mxu0 %v4614
    %7841 = vmatpush1.msra.mxu0 %v4613
    %7842 = vmatprep.subr.mxu0 %v4610
    %7843 = vmatpush1.msra.mxu0 %v4609
    %7844 = vmatprep.subr.mxu0 %v4606
    %7845 = vmatpush1.msra.mxu0 %v4605
    %7846 = vmatprep.subr.mxu0 %v4602
    %7847 = vmatpush1.msra.mxu0 %v4601
    %7848 = vmatprep.subr.mxu0 %v4598
    %7849 = vmatpush1.msra.mxu0 %v4597
    %7850 = vmatprep.subr.mxu0 %v4594
    %7851 = vmatpush1.msra.mxu0 %v4593
    %7852 = vmatprep.subr.mxu0 %v4590
    %7853 = vmatpush1.msra.mxu0 %v4589
    %7854 = vmatprep.subr.mxu0 %v4586
    %7855 = vmatpush1.msra.mxu0 %v4585
    %7856 = vmatprep.subr.mxu0 %v4582
    %7857 = vmatpush1.msra.mxu0 %v4581
    %7858 = vmatprep.subr.mxu0 %v4578
    %7859 = vmatpush1.msra.mxu0 %v4577
    %7860 = vmatprep.subr.mxu0 %v4574
    %7861 = vmatpush1.msra.mxu0 %v4573
    %7862 = vmatprep.subr.mxu0 %v4570
    %7863 = vmatpush1.msra.mxu0 %v4569
    %7864 = vmatprep.subr.mxu0 %v4566
    %7865 = vmatpush1.msra.mxu0 %v4565
    %7866 = vmatprep.subr.mxu0 %v4690
    %7867 = vmatpush2.msra.mxu0 %v4689
    %7868 = vmatprep.subr.mxu0 %v4686
    %7869 = vmatpush2.msra.mxu0 %v4685
    %7870 = vmatprep.subr.mxu0 %v4682
    %7871 = vmatpush2.msra.mxu0 %v4681
    %7872 = vmatprep.subr.mxu0 %v4678
    %7873 = vmatpush2.msra.mxu0 %v4677
    %7874 = vmatprep.subr.mxu0 %v4674
    %7875 = vmatpush2.msra.mxu0 %v4673
    %7876 = vmatprep.subr.mxu0 %v4670
    %7877 = vmatpush2.msra.mxu0 %v4669
    %7878 = vmatprep.subr.mxu0 %v4666
    %7879 = vmatpush2.msra.mxu0 %v4665
    %7880 = vmatprep.subr.mxu0 %v4662
    %7881 = vmatpush2.msra.mxu0 %v4661
    %7882 = vmatprep.subr.mxu0 %v4658
    %7883 = vmatpush2.msra.mxu0 %v4657
    %7884 = vmatprep.subr.mxu0 %v4654
    %7885 = vmatpush2.msra.mxu0 %v4653
    %7886 = vmatprep.subr.mxu0 %v4650
    %7887 = vmatpush2.msra.mxu0 %v4649
    %7888 = vmatprep.subr.mxu0 %v4646
    %7889 = vmatpush2.msra.mxu0 %v4645
    %7890 = vmatprep.subr.mxu0 %v4642
    %7891 = vmatpush2.msra.mxu0 %v4641
    %7892 = vmatprep.subr.mxu0 %v4638
    %7893 = vmatpush2.msra.mxu0 %v4637
    %7894 = vmatprep.subr.mxu0 %v4634
    %7895 = vmatpush2.msra.mxu0 %v4633
    %7896 = vmatprep.subr.mxu0 %v4630
    %7897 = vmatpush2.msra.mxu0 %v4629
    %7898 = vmatprep.mubr.f32.mxu0 %v7620
    %7899 = vmatmul.mubr.f32.gmra.mxu0 %v7619
    %v7900 = vpop.f32.mrf.mxu0
    %v7901 = vadd.f32 %v7830, %v7900
    %v7902 = vpop.f32.mrf.mxu0
    %v7903 = vadd.f32 %v7832, %v7902
    %7904 = vdwg.mxu0
    %v7905 = vadd.f32 %v7759, %v6741
    %v7906 = vadd.f32 %v7761, %v6742
    %v7907 = vadd.f32 %v7901, %v6743
    %v7908 = vadd.f32 %v7903, %v6744
    %7909 = vmatprep.subr.mxu0 %v3944
    %7910 = vmatpush1.msra.mxu0 %v3943
    %7911 = vmatprep.subr.mxu0 %v3940
    %7912 = vmatpush1.msra.mxu0 %v3939
    %7913 = vmatprep.subr.mxu0 %v3936
    %7914 = vmatpush1.msra.mxu0 %v3935
    %7915 = vmatprep.subr.mxu0 %v3932
    %7916 = vmatpush1.msra.mxu0 %v3931
    %7917 = vmatprep.subr.mxu0 %v3928
    %7918 = vmatpush1.msra.mxu0 %v3927
    %7919 = vmatprep.subr.mxu0 %v3924
    %7920 = vmatpush1.msra.mxu0 %v3923
    %7921 = vmatprep.subr.mxu0 %v3920
    %7922 = vmatpush1.msra.mxu0 %v3919
    %7923 = vmatprep.subr.mxu0 %v3916
    %7924 = vmatpush1.msra.mxu0 %v3915
    %7925 = vmatprep.subr.mxu0 %v3912
    %7926 = vmatpush1.msra.mxu0 %v3911
    %7927 = vmatprep.subr.mxu0 %v3908
    %7928 = vmatpush1.msra.mxu0 %v3907
    %7929 = vmatprep.subr.mxu0 %v3904
    %7930 = vmatpush1.msra.mxu0 %v3903
    %7931 = vmatprep.subr.mxu0 %v3900
    %7932 = vmatpush1.msra.mxu0 %v3899
    %7933 = vmatprep.subr.mxu0 %v3896
    %7934 = vmatpush1.msra.mxu0 %v3895
    %7935 = vmatprep.subr.mxu0 %v3892
    %7936 = vmatpush1.msra.mxu0 %v3891
    %7937 = vmatprep.subr.mxu0 %v3888
    %7938 = vmatpush1.msra.mxu0 %v3887
    %7939 = vmatprep.subr.mxu0 %v3884
    %7940 = vmatpush1.msra.mxu0 %v3883
    %7941 = vmatprep.subr.mxu0 %v4008
    %7942 = vmatpush2.msra.mxu0 %v4007
    %7943 = vmatprep.subr.mxu0 %v4004
    %7944 = vmatpush2.msra.mxu0 %v4003
    %7945 = vmatprep.subr.mxu0 %v4000
    %7946 = vmatpush2.msra.mxu0 %v3999
    %7947 = vmatprep.subr.mxu0 %v3996
    %7948 = vmatpush2.msra.mxu0 %v3995
    %7949 = vmatprep.subr.mxu0 %v3992
    %7950 = vmatpush2.msra.mxu0 %v3991
    %7951 = vmatprep.subr.mxu0 %v3988
    %7952 = vmatpush2.msra.mxu0 %v3987
    %7953 = vmatprep.subr.mxu0 %v3984
    %7954 = vmatpush2.msra.mxu0 %v3983
    %7955 = vmatprep.subr.mxu0 %v3980
    %7956 = vmatpush2.msra.mxu0 %v3979
    %7957 = vmatprep.subr.mxu0 %v3976
    %7958 = vmatpush2.msra.mxu0 %v3975
    %7959 = vmatprep.subr.mxu0 %v3972
    %7960 = vmatpush2.msra.mxu0 %v3971
    %7961 = vmatprep.subr.mxu0 %v3968
    %7962 = vmatpush2.msra.mxu0 %v3967
    %7963 = vmatprep.subr.mxu0 %v3964
    %7964 = vmatpush2.msra.mxu0 %v3963
    %7965 = vmatprep.subr.mxu0 %v3960
    %7966 = vmatpush2.msra.mxu0 %v3959
    %7967 = vmatprep.subr.mxu0 %v3956
    %7968 = vmatpush2.msra.mxu0 %v3955
    %7969 = vmatprep.subr.mxu0 %v3952
    %7970 = vmatpush2.msra.mxu0 %v3951
    %7971 = vmatprep.subr.mxu0 %v3948
    %7972 = vmatpush2.msra.mxu0 %v3947
    %7973 = vmatprep.mubr.f32.mxu0 %v7906
    %7974 = vmatmul.mubr.f32.gmra.mxu0 %v7905
    %v7975 = vpop.f32.mrf.mxu0
    %v7976 = vadd.f32 %v3827, %v7975
    %v7977 = vpop.f32.mrf.mxu0
    %v7978 = vadd.f32 %v3828, %v7977
    %7979 = vdwg.mxu0
    %7980 = vmatprep.subr.mxu0 %v4072
    %7981 = vmatpush1.msra.mxu0 %v4071
    %7982 = vmatprep.subr.mxu0 %v4068
    %7983 = vmatpush1.msra.mxu0 %v4067
    %7984 = vmatprep.subr.mxu0 %v4064
    %7985 = vmatpush1.msra.mxu0 %v4063
    %7986 = vmatprep.subr.mxu0 %v4060
    %7987 = vmatpush1.msra.mxu0 %v4059
    %7988 = vmatprep.subr.mxu0 %v4056
    %7989 = vmatpush1.msra.mxu0 %v4055
    %7990 = vmatprep.subr.mxu0 %v4052
    %7991 = vmatpush1.msra.mxu0 %v4051
    %7992 = vmatprep.subr.mxu0 %v4048
    %7993 = vmatpush1.msra.mxu0 %v4047
    %7994 = vmatprep.subr.mxu0 %v4044
    %7995 = vmatpush1.msra.mxu0 %v4043
    %7996 = vmatprep.subr.mxu0 %v4040
    %7997 = vmatpush1.msra.mxu0 %v4039
    %7998 = vmatprep.subr.mxu0 %v4036
    %7999 = vmatpush1.msra.mxu0 %v4035
    %8000 = vmatprep.subr.mxu0 %v4032
    %8001 = vmatpush1.msra.mxu0 %v4031
    %8002 = vmatprep.subr.mxu0 %v4028
    %8003 = vmatpush1.msra.mxu0 %v4027
    %8004 = vmatprep.subr.mxu0 %v4024
    %8005 = vmatpush1.msra.mxu0 %v4023
    %8006 = vmatprep.subr.mxu0 %v4020
    %8007 = vmatpush1.msra.mxu0 %v4019
    %8008 = vmatprep.subr.mxu0 %v4016
    %8009 = vmatpush1.msra.mxu0 %v4015
    %8010 = vmatprep.subr.mxu0 %v4012
    %8011 = vmatpush1.msra.mxu0 %v4011
    %8012 = vmatprep.subr.mxu0 %v4136
    %8013 = vmatpush2.msra.mxu0 %v4135
    %8014 = vmatprep.subr.mxu0 %v4132
    %8015 = vmatpush2.msra.mxu0 %v4131
    %8016 = vmatprep.subr.mxu0 %v4128
    %8017 = vmatpush2.msra.mxu0 %v4127
    %8018 = vmatprep.subr.mxu0 %v4124
    %8019 = vmatpush2.msra.mxu0 %v4123
    %8020 = vmatprep.subr.mxu0 %v4120
    %8021 = vmatpush2.msra.mxu0 %v4119
    %8022 = vmatprep.subr.mxu0 %v4116
    %8023 = vmatpush2.msra.mxu0 %v4115
    %8024 = vmatprep.subr.mxu0 %v4112
    %8025 = vmatpush2.msra.mxu0 %v4111
    %8026 = vmatprep.subr.mxu0 %v4108
    %8027 = vmatpush2.msra.mxu0 %v4107
    %8028 = vmatprep.subr.mxu0 %v4104
    %8029 = vmatpush2.msra.mxu0 %v4103
    %8030 = vmatprep.subr.mxu0 %v4100
    %8031 = vmatpush2.msra.mxu0 %v4099
    %8032 = vmatprep.subr.mxu0 %v4096
    %8033 = vmatpush2.msra.mxu0 %v4095
    %8034 = vmatprep.subr.mxu0 %v4092
    %8035 = vmatpush2.msra.mxu0 %v4091
    %8036 = vmatprep.subr.mxu0 %v4088
    %8037 = vmatpush2.msra.mxu0 %v4087
    %8038 = vmatprep.subr.mxu0 %v4084
    %8039 = vmatpush2.msra.mxu0 %v4083
    %8040 = vmatprep.subr.mxu0 %v4080
    %8041 = vmatpush2.msra.mxu0 %v4079
    %8042 = vmatprep.subr.mxu0 %v4076
    %8043 = vmatpush2.msra.mxu0 %v4075
    %8044 = vmatprep.mubr.f32.mxu0 %v7908
    %8045 = vmatmul.mubr.f32.gmra.mxu0 %v7907
    %v8046 = vpop.f32.mrf.mxu0
    %v8047 = vadd.f32 %v7976, %v8046
    %v8048 = vpop.f32.mrf.mxu0
    %v8049 = vadd.f32 %v7978, %v8048
    %8050 = vdwg.mxu0
    %8051 = vmatprep.subr.mxu0 %v3946
    %8052 = vmatpush1.msra.mxu0 %v3945
    %8053 = vmatprep.subr.mxu0 %v3942
    %8054 = vmatpush1.msra.mxu0 %v3941
    %8055 = vmatprep.subr.mxu0 %v3938
    %8056 = vmatpush1.msra.mxu0 %v3937
    %8057 = vmatprep.subr.mxu0 %v3934
    %8058 = vmatpush1.msra.mxu0 %v3933
    %8059 = vmatprep.subr.mxu0 %v3930
    %8060 = vmatpush1.msra.mxu0 %v3929
    %8061 = vmatprep.subr.mxu0 %v3926
    %8062 = vmatpush1.msra.mxu0 %v3925
    %8063 = vmatprep.subr.mxu0 %v3922
    %8064 = vmatpush1.msra.mxu0 %v3921
    %8065 = vmatprep.subr.mxu0 %v3918
    %8066 = vmatpush1.msra.mxu0 %v3917
    %8067 = vmatprep.subr.mxu0 %v3914
    %8068 = vmatpush1.msra.mxu0 %v3913
    %8069 = vmatprep.subr.mxu0 %v3910
    %8070 = vmatpush1.msra.mxu0 %v3909
    %8071 = vmatprep.subr.mxu0 %v3906
    %8072 = vmatpush1.msra.mxu0 %v3905
    %8073 = vmatprep.subr.mxu0 %v3902
    %8074 = vmatpush1.msra.mxu0 %v3901
    %8075 = vmatprep.subr.mxu0 %v3898
    %8076 = vmatpush1.msra.mxu0 %v3897
    %8077 = vmatprep.subr.mxu0 %v3894
    %8078 = vmatpush1.msra.mxu0 %v3893
    %8079 = vmatprep.subr.mxu0 %v3890
    %8080 = vmatpush1.msra.mxu0 %v3889
    %8081 = vmatprep.subr.mxu0 %v3886
    %8082 = vmatpush1.msra.mxu0 %v3885
    %8083 = vmatprep.subr.mxu0 %v4010
    %8084 = vmatpush2.msra.mxu0 %v4009
    %8085 = vmatprep.subr.mxu0 %v4006
    %8086 = vmatpush2.msra.mxu0 %v4005
    %8087 = vmatprep.subr.mxu0 %v4002
    %8088 = vmatpush2.msra.mxu0 %v4001
    %8089 = vmatprep.subr.mxu0 %v3998
    %8090 = vmatpush2.msra.mxu0 %v3997
    %8091 = vmatprep.subr.mxu0 %v3994
    %8092 = vmatpush2.msra.mxu0 %v3993
    %8093 = vmatprep.subr.mxu0 %v3990
    %8094 = vmatpush2.msra.mxu0 %v3989
    %8095 = vmatprep.subr.mxu0 %v3986
    %8096 = vmatpush2.msra.mxu0 %v3985
    %8097 = vmatprep.subr.mxu0 %v3982
    %8098 = vmatpush2.msra.mxu0 %v3981
    %8099 = vmatprep.subr.mxu0 %v3978
    %8100 = vmatpush2.msra.mxu0 %v3977
    %8101 = vmatprep.subr.mxu0 %v3974
    %8102 = vmatpush2.msra.mxu0 %v3973
    %8103 = vmatprep.subr.mxu0 %v3970
    %8104 = vmatpush2.msra.mxu0 %v3969
    %8105 = vmatprep.subr.mxu0 %v3966
    %8106 = vmatpush2.msra.mxu0 %v3965
    %8107 = vmatprep.subr.mxu0 %v3962
    %8108 = vmatpush2.msra.mxu0 %v3961
    %8109 = vmatprep.subr.mxu0 %v3958
    %8110 = vmatpush2.msra.mxu0 %v3957
    %8111 = vmatprep.subr.mxu0 %v3954
    %8112 = vmatpush2.msra.mxu0 %v3953
    %8113 = vmatprep.subr.mxu0 %v3950
    %8114 = vmatpush2.msra.mxu0 %v3949
    %8115 = vmatprep.mubr.f32.mxu0 %v7906
    %8116 = vmatmul.mubr.f32.gmra.mxu0 %v7905
    %v8117 = vpop.f32.mrf.mxu0
    %v8118 = vadd.f32 %v3829, %v8117
    %v8119 = vpop.f32.mrf.mxu0
    %v8120 = vadd.f32 %v3830, %v8119
    %8121 = vdwg.mxu0
    %8122 = vmatprep.subr.mxu0 %v4074
    %8123 = vmatpush1.msra.mxu0 %v4073
    %8124 = vmatprep.subr.mxu0 %v4070
    %8125 = vmatpush1.msra.mxu0 %v4069
    %8126 = vmatprep.subr.mxu0 %v4066
    %8127 = vmatpush1.msra.mxu0 %v4065
    %8128 = vmatprep.subr.mxu0 %v4062
    %8129 = vmatpush1.msra.mxu0 %v4061
    %8130 = vmatprep.subr.mxu0 %v4058
    %8131 = vmatpush1.msra.mxu0 %v4057
    %8132 = vmatprep.subr.mxu0 %v4054
    %8133 = vmatpush1.msra.mxu0 %v4053
    %8134 = vmatprep.subr.mxu0 %v4050
    %8135 = vmatpush1.msra.mxu0 %v4049
    %8136 = vmatprep.subr.mxu0 %v4046
    %8137 = vmatpush1.msra.mxu0 %v4045
    %8138 = vmatprep.subr.mxu0 %v4042
    %8139 = vmatpush1.msra.mxu0 %v4041
    %8140 = vmatprep.subr.mxu0 %v4038
    %8141 = vmatpush1.msra.mxu0 %v4037
    %8142 = vmatprep.subr.mxu0 %v4034
    %8143 = vmatpush1.msra.mxu0 %v4033
    %8144 = vmatprep.subr.mxu0 %v4030
    %8145 = vmatpush1.msra.mxu0 %v4029
    %8146 = vmatprep.subr.mxu0 %v4026
    %8147 = vmatpush1.msra.mxu0 %v4025
    %8148 = vmatprep.subr.mxu0 %v4022
    %8149 = vmatpush1.msra.mxu0 %v4021
    %8150 = vmatprep.subr.mxu0 %v4018
    %8151 = vmatpush1.msra.mxu0 %v4017
    %8152 = vmatprep.subr.mxu0 %v4014
    %8153 = vmatpush1.msra.mxu0 %v4013
    %8154 = vmatprep.subr.mxu0 %v4138
    %8155 = vmatpush2.msra.mxu0 %v4137
    %8156 = vmatprep.subr.mxu0 %v4134
    %8157 = vmatpush2.msra.mxu0 %v4133
    %8158 = vmatprep.subr.mxu0 %v4130
    %8159 = vmatpush2.msra.mxu0 %v4129
    %8160 = vmatprep.subr.mxu0 %v4126
    %8161 = vmatpush2.msra.mxu0 %v4125
    %8162 = vmatprep.subr.mxu0 %v4122
    %8163 = vmatpush2.msra.mxu0 %v4121
    %8164 = vmatprep.subr.mxu0 %v4118
    %8165 = vmatpush2.msra.mxu0 %v4117
    %8166 = vmatprep.subr.mxu0 %v4114
    %8167 = vmatpush2.msra.mxu0 %v4113
    %8168 = vmatprep.subr.mxu0 %v4110
    %8169 = vmatpush2.msra.mxu0 %v4109
    %8170 = vmatprep.subr.mxu0 %v4106
    %8171 = vmatpush2.msra.mxu0 %v4105
    %8172 = vmatprep.subr.mxu0 %v4102
    %8173 = vmatpush2.msra.mxu0 %v4101
    %8174 = vmatprep.subr.mxu0 %v4098
    %8175 = vmatpush2.msra.mxu0 %v4097
    %8176 = vmatprep.subr.mxu0 %v4094
    %8177 = vmatpush2.msra.mxu0 %v4093
    %8178 = vmatprep.subr.mxu0 %v4090
    %8179 = vmatpush2.msra.mxu0 %v4089
    %8180 = vmatprep.subr.mxu0 %v4086
    %8181 = vmatpush2.msra.mxu0 %v4085
    %8182 = vmatprep.subr.mxu0 %v4082
    %8183 = vmatpush2.msra.mxu0 %v4081
    %8184 = vmatprep.subr.mxu0 %v4078
    %8185 = vmatpush2.msra.mxu0 %v4077
    %8186 = vmatprep.mubr.f32.mxu0 %v7908
    %8187 = vmatmul.mubr.f32.gmra.mxu0 %v7907
    %v8188 = vpop.f32.mrf.mxu0
    %v8189 = vadd.f32 %v8118, %v8188
    %v8190 = vpop.f32.mrf.mxu0
    %v8191 = vadd.f32 %v8120, %v8190
    %8192 = vdwg.mxu0
    %vm8193 = vcmp.ge.f32.partialorder %v8047, 0.0
    %vm8194 = vcmp.ge.f32.partialorder %v8049, 0.0
    %vm8195 = vcmp.ge.f32.partialorder %v8189, 0.0
    %vm8196 = vcmp.ge.f32.partialorder %v8191, 0.0
    %v8197 = vmul.f32 %v8047, 0.01
    %v8198 = vmul.f32 %v8049, 0.01
    %v8199 = vmul.f32 %v8189, 0.01
    %v8200 = vmul.f32 %v8191, 0.01
    %v8201 = vsel %vm8193, %v8047, %v8197
    %v8202 = vsel %vm8194, %v8049, %v8198
    %v8203 = vsel %vm8195, %v8189, %v8199
    %v8204 = vsel %vm8196, %v8191, %v8200
    %8205 = vmatprep.subr.mxu0 %v4496
    %8206 = vmatpush1.msra.mxu0 %v4495
    %8207 = vmatprep.subr.mxu0 %v4492
    %8208 = vmatpush1.msra.mxu0 %v4491
    %8209 = vmatprep.subr.mxu0 %v4488
    %8210 = vmatpush1.msra.mxu0 %v4487
    %8211 = vmatprep.subr.mxu0 %v4484
    %8212 = vmatpush1.msra.mxu0 %v4483
    %8213 = vmatprep.subr.mxu0 %v4480
    %8214 = vmatpush1.msra.mxu0 %v4479
    %8215 = vmatprep.subr.mxu0 %v4476
    %8216 = vmatpush1.msra.mxu0 %v4475
    %8217 = vmatprep.subr.mxu0 %v4472
    %8218 = vmatpush1.msra.mxu0 %v4471
    %8219 = vmatprep.subr.mxu0 %v4468
    %8220 = vmatpush1.msra.mxu0 %v4467
    %8221 = vmatprep.subr.mxu0 %v4464
    %8222 = vmatpush1.msra.mxu0 %v4463
    %8223 = vmatprep.subr.mxu0 %v4460
    %8224 = vmatpush1.msra.mxu0 %v4459
    %8225 = vmatprep.subr.mxu0 %v4456
    %8226 = vmatpush1.msra.mxu0 %v4455
    %8227 = vmatprep.subr.mxu0 %v4452
    %8228 = vmatpush1.msra.mxu0 %v4451
    %8229 = vmatprep.subr.mxu0 %v4448
    %8230 = vmatpush1.msra.mxu0 %v4447
    %8231 = vmatprep.subr.mxu0 %v4444
    %8232 = vmatpush1.msra.mxu0 %v4443
    %8233 = vmatprep.subr.mxu0 %v4440
    %8234 = vmatpush1.msra.mxu0 %v4439
    %8235 = vmatprep.subr.mxu0 %v4436
    %8236 = vmatpush1.msra.mxu0 %v4435
    %8237 = vmatprep.subr.mxu0 %v4560
    %8238 = vmatpush2.msra.mxu0 %v4559
    %8239 = vmatprep.subr.mxu0 %v4556
    %8240 = vmatpush2.msra.mxu0 %v4555
    %8241 = vmatprep.subr.mxu0 %v4552
    %8242 = vmatpush2.msra.mxu0 %v4551
    %8243 = vmatprep.subr.mxu0 %v4548
    %8244 = vmatpush2.msra.mxu0 %v4547
    %8245 = vmatprep.subr.mxu0 %v4544
    %8246 = vmatpush2.msra.mxu0 %v4543
    %8247 = vmatprep.subr.mxu0 %v4540
    %8248 = vmatpush2.msra.mxu0 %v4539
    %8249 = vmatprep.subr.mxu0 %v4536
    %8250 = vmatpush2.msra.mxu0 %v4535
    %8251 = vmatprep.subr.mxu0 %v4532
    %8252 = vmatpush2.msra.mxu0 %v4531
    %8253 = vmatprep.subr.mxu0 %v4528
    %8254 = vmatpush2.msra.mxu0 %v4527
    %8255 = vmatprep.subr.mxu0 %v4524
    %8256 = vmatpush2.msra.mxu0 %v4523
    %8257 = vmatprep.subr.mxu0 %v4520
    %8258 = vmatpush2.msra.mxu0 %v4519
    %8259 = vmatprep.subr.mxu0 %v4516
    %8260 = vmatpush2.msra.mxu0 %v4515
    %8261 = vmatprep.subr.mxu0 %v4512
    %8262 = vmatpush2.msra.mxu0 %v4511
    %8263 = vmatprep.subr.mxu0 %v4508
    %8264 = vmatpush2.msra.mxu0 %v4507
    %8265 = vmatprep.subr.mxu0 %v4504
    %8266 = vmatpush2.msra.mxu0 %v4503
    %8267 = vmatprep.subr.mxu0 %v4500
    %8268 = vmatpush2.msra.mxu0 %v4499
    %8269 = vmatprep.mubr.f32.mxu0 %v8202
    %8270 = vmatmul.mubr.f32.gmra.mxu0 %v8201
    %v8271 = vpop.f32.mrf.mxu0
    %v8272 = vadd.f32 %v4696, %v8271
    %v8273 = vpop.f32.mrf.mxu0
    %v8274 = vadd.f32 %v4700, %v8273
    %8275 = vdwg.mxu0
    %8276 = vmatprep.subr.mxu0 %v4624
    %8277 = vmatpush1.msra.mxu0 %v4623
    %8278 = vmatprep.subr.mxu0 %v4620
    %8279 = vmatpush1.msra.mxu0 %v4619
    %8280 = vmatprep.subr.mxu0 %v4616
    %8281 = vmatpush1.msra.mxu0 %v4615
    %8282 = vmatprep.subr.mxu0 %v4612
    %8283 = vmatpush1.msra.mxu0 %v4611
    %8284 = vmatprep.subr.mxu0 %v4608
    %8285 = vmatpush1.msra.mxu0 %v4607
    %8286 = vmatprep.subr.mxu0 %v4604
    %8287 = vmatpush1.msra.mxu0 %v4603
    %8288 = vmatprep.subr.mxu0 %v4600
    %8289 = vmatpush1.msra.mxu0 %v4599
    %8290 = vmatprep.subr.mxu0 %v4596
    %8291 = vmatpush1.msra.mxu0 %v4595
    %8292 = vmatprep.subr.mxu0 %v4592
    %8293 = vmatpush1.msra.mxu0 %v4591
    %8294 = vmatprep.subr.mxu0 %v4588
    %8295 = vmatpush1.msra.mxu0 %v4587
    %8296 = vmatprep.subr.mxu0 %v4584
    %8297 = vmatpush1.msra.mxu0 %v4583
    %8298 = vmatprep.subr.mxu0 %v4580
    %8299 = vmatpush1.msra.mxu0 %v4579
    %8300 = vmatprep.subr.mxu0 %v4576
    %8301 = vmatpush1.msra.mxu0 %v4575
    %8302 = vmatprep.subr.mxu0 %v4572
    %8303 = vmatpush1.msra.mxu0 %v4571
    %8304 = vmatprep.subr.mxu0 %v4568
    %8305 = vmatpush1.msra.mxu0 %v4567
    %8306 = vmatprep.subr.mxu0 %v4564
    %8307 = vmatpush1.msra.mxu0 %v4563
    %8308 = vmatprep.subr.mxu0 %v4688
    %8309 = vmatpush2.msra.mxu0 %v4687
    %8310 = vmatprep.subr.mxu0 %v4684
    %8311 = vmatpush2.msra.mxu0 %v4683
    %8312 = vmatprep.subr.mxu0 %v4680
    %8313 = vmatpush2.msra.mxu0 %v4679
    %8314 = vmatprep.subr.mxu0 %v4676
    %8315 = vmatpush2.msra.mxu0 %v4675
    %8316 = vmatprep.subr.mxu0 %v4672
    %8317 = vmatpush2.msra.mxu0 %v4671
    %8318 = vmatprep.subr.mxu0 %v4668
    %8319 = vmatpush2.msra.mxu0 %v4667
    %8320 = vmatprep.subr.mxu0 %v4664
    %8321 = vmatpush2.msra.mxu0 %v4663
    %8322 = vmatprep.subr.mxu0 %v4660
    %8323 = vmatpush2.msra.mxu0 %v4659
    %8324 = vmatprep.subr.mxu0 %v4656
    %8325 = vmatpush2.msra.mxu0 %v4655
    %8326 = vmatprep.subr.mxu0 %v4652
    %8327 = vmatpush2.msra.mxu0 %v4651
    %8328 = vmatprep.subr.mxu0 %v4648
    %8329 = vmatpush2.msra.mxu0 %v4647
    %8330 = vmatprep.subr.mxu0 %v4644
    %8331 = vmatpush2.msra.mxu0 %v4643
    %8332 = vmatprep.subr.mxu0 %v4640
    %8333 = vmatpush2.msra.mxu0 %v4639
    %8334 = vmatprep.subr.mxu0 %v4636
    %8335 = vmatpush2.msra.mxu0 %v4635
    %8336 = vmatprep.subr.mxu0 %v4632
    %8337 = vmatpush2.msra.mxu0 %v4631
    %8338 = vmatprep.subr.mxu0 %v4628
    %8339 = vmatpush2.msra.mxu0 %v4627
    %8340 = vmatprep.mubr.f32.mxu0 %v8204
    %8341 = vmatmul.mubr.f32.gmra.mxu0 %v8203
    %v8342 = vpop.f32.mrf.mxu0
    %v8343 = vadd.f32 %v8272, %v8342
    %v8344 = vpop.f32.mrf.mxu0
    %v8345 = vadd.f32 %v8274, %v8344
    %8346 = vdwg.mxu0
    %8347 = vmatprep.subr.mxu0 %v4498
    %8348 = vmatpush1.msra.mxu0 %v4497
    %8349 = vmatprep.subr.mxu0 %v4494
    %8350 = vmatpush1.msra.mxu0 %v4493
    %8351 = vmatprep.subr.mxu0 %v4490
    %8352 = vmatpush1.msra.mxu0 %v4489
    %8353 = vmatprep.subr.mxu0 %v4486
    %8354 = vmatpush1.msra.mxu0 %v4485
    %8355 = vmatprep.subr.mxu0 %v4482
    %8356 = vmatpush1.msra.mxu0 %v4481
    %8357 = vmatprep.subr.mxu0 %v4478
    %8358 = vmatpush1.msra.mxu0 %v4477
    %8359 = vmatprep.subr.mxu0 %v4474
    %8360 = vmatpush1.msra.mxu0 %v4473
    %8361 = vmatprep.subr.mxu0 %v4470
    %8362 = vmatpush1.msra.mxu0 %v4469
    %8363 = vmatprep.subr.mxu0 %v4466
    %8364 = vmatpush1.msra.mxu0 %v4465
    %8365 = vmatprep.subr.mxu0 %v4462
    %8366 = vmatpush1.msra.mxu0 %v4461
    %8367 = vmatprep.subr.mxu0 %v4458
    %8368 = vmatpush1.msra.mxu0 %v4457
    %8369 = vmatprep.subr.mxu0 %v4454
    %8370 = vmatpush1.msra.mxu0 %v4453
    %8371 = vmatprep.subr.mxu0 %v4450
    %8372 = vmatpush1.msra.mxu0 %v4449
    %8373 = vmatprep.subr.mxu0 %v4446
    %8374 = vmatpush1.msra.mxu0 %v4445
    %8375 = vmatprep.subr.mxu0 %v4442
    %8376 = vmatpush1.msra.mxu0 %v4441
    %8377 = vmatprep.subr.mxu0 %v4438
    %8378 = vmatpush1.msra.mxu0 %v4437
    %8379 = vmatprep.subr.mxu0 %v4562
    %8380 = vmatpush2.msra.mxu0 %v4561
    %8381 = vmatprep.subr.mxu0 %v4558
    %8382 = vmatpush2.msra.mxu0 %v4557
    %8383 = vmatprep.subr.mxu0 %v4554
    %8384 = vmatpush2.msra.mxu0 %v4553
    %8385 = vmatprep.subr.mxu0 %v4550
    %8386 = vmatpush2.msra.mxu0 %v4549
    %8387 = vmatprep.subr.mxu0 %v4546
    %8388 = vmatpush2.msra.mxu0 %v4545
    %8389 = vmatprep.subr.mxu0 %v4542
    %8390 = vmatpush2.msra.mxu0 %v4541
    %8391 = vmatprep.subr.mxu0 %v4538
    %8392 = vmatpush2.msra.mxu0 %v4537
    %8393 = vmatprep.subr.mxu0 %v4534
    %8394 = vmatpush2.msra.mxu0 %v4533
    %8395 = vmatprep.subr.mxu0 %v4530
    %8396 = vmatpush2.msra.mxu0 %v4529
    %8397 = vmatprep.subr.mxu0 %v4526
    %8398 = vmatpush2.msra.mxu0 %v4525
    %8399 = vmatprep.subr.mxu0 %v4522
    %8400 = vmatpush2.msra.mxu0 %v4521
    %8401 = vmatprep.subr.mxu0 %v4518
    %8402 = vmatpush2.msra.mxu0 %v4517
    %8403 = vmatprep.subr.mxu0 %v4514
    %8404 = vmatpush2.msra.mxu0 %v4513
    %8405 = vmatprep.subr.mxu0 %v4510
    %8406 = vmatpush2.msra.mxu0 %v4509
    %8407 = vmatprep.subr.mxu0 %v4506
    %8408 = vmatpush2.msra.mxu0 %v4505
    %8409 = vmatprep.subr.mxu0 %v4502
    %8410 = vmatpush2.msra.mxu0 %v4501
    %8411 = vmatprep.mubr.f32.mxu0 %v8202
    %8412 = vmatmul.mubr.f32.gmra.mxu0 %v8201
    %v8413 = vpop.f32.mrf.mxu0
    %v8414 = vadd.f32 %v4704, %v8413
    %v8415 = vpop.f32.mrf.mxu0
    %v8416 = vadd.f32 %v4708, %v8415
    %8417 = vdwg.mxu0
    %8418 = vmatprep.subr.mxu0 %v4626
    %8419 = vmatpush1.msra.mxu0 %v4625
    %8420 = vmatprep.subr.mxu0 %v4622
    %8421 = vmatpush1.msra.mxu0 %v4621
    %8422 = vmatprep.subr.mxu0 %v4618
    %8423 = vmatpush1.msra.mxu0 %v4617
    %8424 = vmatprep.subr.mxu0 %v4614
    %8425 = vmatpush1.msra.mxu0 %v4613
    %8426 = vmatprep.subr.mxu0 %v4610
    %8427 = vmatpush1.msra.mxu0 %v4609
    %8428 = vmatprep.subr.mxu0 %v4606
    %8429 = vmatpush1.msra.mxu0 %v4605
    %8430 = vmatprep.subr.mxu0 %v4602
    %8431 = vmatpush1.msra.mxu0 %v4601
    %8432 = vmatprep.subr.mxu0 %v4598
    %8433 = vmatpush1.msra.mxu0 %v4597
    %8434 = vmatprep.subr.mxu0 %v4594
    %8435 = vmatpush1.msra.mxu0 %v4593
    %8436 = vmatprep.subr.mxu0 %v4590
    %8437 = vmatpush1.msra.mxu0 %v4589
    %8438 = vmatprep.subr.mxu0 %v4586
    %8439 = vmatpush1.msra.mxu0 %v4585
    %8440 = vmatprep.subr.mxu0 %v4582
    %8441 = vmatpush1.msra.mxu0 %v4581
    %8442 = vmatprep.subr.mxu0 %v4578
    %8443 = vmatpush1.msra.mxu0 %v4577
    %8444 = vmatprep.subr.mxu0 %v4574
    %8445 = vmatpush1.msra.mxu0 %v4573
    %8446 = vmatprep.subr.mxu0 %v4570
    %8447 = vmatpush1.msra.mxu0 %v4569
    %8448 = vmatprep.subr.mxu0 %v4566
    %8449 = vmatpush1.msra.mxu0 %v4565
    %8450 = vmatprep.subr.mxu0 %v4690
    %8451 = vmatpush2.msra.mxu0 %v4689
    %8452 = vmatprep.subr.mxu0 %v4686
    %8453 = vmatpush2.msra.mxu0 %v4685
    %8454 = vmatprep.subr.mxu0 %v4682
    %8455 = vmatpush2.msra.mxu0 %v4681
    %8456 = vmatprep.subr.mxu0 %v4678
    %8457 = vmatpush2.msra.mxu0 %v4677
    %8458 = vmatprep.subr.mxu0 %v4674
    %8459 = vmatpush2.msra.mxu0 %v4673
    %8460 = vmatprep.subr.mxu0 %v4670
    %8461 = vmatpush2.msra.mxu0 %v4669
    %8462 = vmatprep.subr.mxu0 %v4666
    %8463 = vmatpush2.msra.mxu0 %v4665
    %8464 = vmatprep.subr.mxu0 %v4662
    %8465 = vmatpush2.msra.mxu0 %v4661
    %8466 = vmatprep.subr.mxu0 %v4658
    %8467 = vmatpush2.msra.mxu0 %v4657
    %8468 = vmatprep.subr.mxu0 %v4654
    %8469 = vmatpush2.msra.mxu0 %v4653
    %8470 = vmatprep.subr.mxu0 %v4650
    %8471 = vmatpush2.msra.mxu0 %v4649
    %8472 = vmatprep.subr.mxu0 %v4646
    %8473 = vmatpush2.msra.mxu0 %v4645
    %8474 = vmatprep.subr.mxu0 %v4642
    %8475 = vmatpush2.msra.mxu0 %v4641
    %8476 = vmatprep.subr.mxu0 %v4638
    %8477 = vmatpush2.msra.mxu0 %v4637
    %8478 = vmatprep.subr.mxu0 %v4634
    %8479 = vmatpush2.msra.mxu0 %v4633
    %8480 = vmatprep.subr.mxu0 %v4630
    %8481 = vmatpush2.msra.mxu0 %v4629
    %8482 = vmatprep.mubr.f32.mxu0 %v8204
    %8483 = vmatmul.mubr.f32.gmra.mxu0 %v8203
    %v8484 = vpop.f32.mrf.mxu0
    %v8485 = vadd.f32 %v8414, %v8484
    %v8486 = vpop.f32.mrf.mxu0
    %v8487 = vadd.f32 %v8416, %v8486
    %8488 = vdwg.mxu0
    %8489 = vmatprep.subr.mxu0 %v3944
    %8490 = vmatpush1.msra.mxu0 %v3943
    %8491 = vmatprep.subr.mxu0 %v3940
    %8492 = vmatpush1.msra.mxu0 %v3939
    %8493 = vmatprep.subr.mxu0 %v3936
    %8494 = vmatpush1.msra.mxu0 %v3935
    %8495 = vmatprep.subr.mxu0 %v3932
    %8496 = vmatpush1.msra.mxu0 %v3931
    %8497 = vmatprep.subr.mxu0 %v3928
    %8498 = vmatpush1.msra.mxu0 %v3927
    %8499 = vmatprep.subr.mxu0 %v3924
    %8500 = vmatpush1.msra.mxu0 %v3923
    %8501 = vmatprep.subr.mxu0 %v3920
    %8502 = vmatpush1.msra.mxu0 %v3919
    %8503 = vmatprep.subr.mxu0 %v3916
    %8504 = vmatpush1.msra.mxu0 %v3915
    %8505 = vmatprep.subr.mxu0 %v3912
    %8506 = vmatpush1.msra.mxu0 %v3911
    %8507 = vmatprep.subr.mxu0 %v3908
    %8508 = vmatpush1.msra.mxu0 %v3907
    %8509 = vmatprep.subr.mxu0 %v3904
    %8510 = vmatpush1.msra.mxu0 %v3903
    %8511 = vmatprep.subr.mxu0 %v3900
    %8512 = vmatpush1.msra.mxu0 %v3899
    %8513 = vmatprep.subr.mxu0 %v3896
    %8514 = vmatpush1.msra.mxu0 %v3895
    %8515 = vmatprep.subr.mxu0 %v3892
    %8516 = vmatpush1.msra.mxu0 %v3891
    %8517 = vmatprep.subr.mxu0 %v3888
    %8518 = vmatpush1.msra.mxu0 %v3887
    %8519 = vmatprep.subr.mxu0 %v3884
    %8520 = vmatpush1.msra.mxu0 %v3883
    %8521 = vmatprep.subr.mxu0 %v4008
    %8522 = vmatpush2.msra.mxu0 %v4007
    %8523 = vmatprep.subr.mxu0 %v4004
    %8524 = vmatpush2.msra.mxu0 %v4003
    %8525 = vmatprep.subr.mxu0 %v4000
    %8526 = vmatpush2.msra.mxu0 %v3999
    %8527 = vmatprep.subr.mxu0 %v3996
    %8528 = vmatpush2.msra.mxu0 %v3995
    %8529 = vmatprep.subr.mxu0 %v3992
    %8530 = vmatpush2.msra.mxu0 %v3991
    %8531 = vmatprep.subr.mxu0 %v3988
    %8532 = vmatpush2.msra.mxu0 %v3987
    %8533 = vmatprep.subr.mxu0 %v3984
    %8534 = vmatpush2.msra.mxu0 %v3983
    %8535 = vmatprep.subr.mxu0 %v3980
    %8536 = vmatpush2.msra.mxu0 %v3979
    %8537 = vmatprep.subr.mxu0 %v3976
    %8538 = vmatpush2.msra.mxu0 %v3975
    %8539 = vmatprep.subr.mxu0 %v3972
    %8540 = vmatpush2.msra.mxu0 %v3971
    %8541 = vmatprep.subr.mxu0 %v3968
    %8542 = vmatpush2.msra.mxu0 %v3967
    %8543 = vmatprep.subr.mxu0 %v3964
    %8544 = vmatpush2.msra.mxu0 %v3963
    %8545 = vmatprep.subr.mxu0 %v3960
    %8546 = vmatpush2.msra.mxu0 %v3959
    %8547 = vmatprep.subr.mxu0 %v3956
    %8548 = vmatpush2.msra.mxu0 %v3955
    %8549 = vmatprep.subr.mxu0 %v3952
    %8550 = vmatpush2.msra.mxu0 %v3951
    %8551 = vmatprep.subr.mxu0 %v3948
    %8552 = vmatpush2.msra.mxu0 %v3947
    %8553 = vmatprep.mubr.f32.mxu0 %v8345
    %8554 = vmatmul.mubr.f32.gmra.mxu0 %v8343
    %v8555 = vpop.f32.mrf.mxu0
    %v8556 = vadd.f32 %v3827, %v8555
    %v8557 = vpop.f32.mrf.mxu0
    %v8558 = vadd.f32 %v3828, %v8557
    %8559 = vdwg.mxu0
    %8560 = vmatprep.subr.mxu0 %v4072
    %8561 = vmatpush1.msra.mxu0 %v4071
    %8562 = vmatprep.subr.mxu0 %v4068
    %8563 = vmatpush1.msra.mxu0 %v4067
    %8564 = vmatprep.subr.mxu0 %v4064
    %8565 = vmatpush1.msra.mxu0 %v4063
    %8566 = vmatprep.subr.mxu0 %v4060
    %8567 = vmatpush1.msra.mxu0 %v4059
    %8568 = vmatprep.subr.mxu0 %v4056
    %8569 = vmatpush1.msra.mxu0 %v4055
    %8570 = vmatprep.subr.mxu0 %v4052
    %8571 = vmatpush1.msra.mxu0 %v4051
    %8572 = vmatprep.subr.mxu0 %v4048
    %8573 = vmatpush1.msra.mxu0 %v4047
    %8574 = vmatprep.subr.mxu0 %v4044
    %8575 = vmatpush1.msra.mxu0 %v4043
    %8576 = vmatprep.subr.mxu0 %v4040
    %8577 = vmatpush1.msra.mxu0 %v4039
    %8578 = vmatprep.subr.mxu0 %v4036
    %8579 = vmatpush1.msra.mxu0 %v4035
    %8580 = vmatprep.subr.mxu0 %v4032
    %8581 = vmatpush1.msra.mxu0 %v4031
    %8582 = vmatprep.subr.mxu0 %v4028
    %8583 = vmatpush1.msra.mxu0 %v4027
    %8584 = vmatprep.subr.mxu0 %v4024
    %8585 = vmatpush1.msra.mxu0 %v4023
    %8586 = vmatprep.subr.mxu0 %v4020
    %8587 = vmatpush1.msra.mxu0 %v4019
    %8588 = vmatprep.subr.mxu0 %v4016
    %8589 = vmatpush1.msra.mxu0 %v4015
    %8590 = vmatprep.subr.mxu0 %v4012
    %8591 = vmatpush1.msra.mxu0 %v4011
    %8592 = vmatprep.subr.mxu0 %v4136
    %8593 = vmatpush2.msra.mxu0 %v4135
    %8594 = vmatprep.subr.mxu0 %v4132
    %8595 = vmatpush2.msra.mxu0 %v4131
    %8596 = vmatprep.subr.mxu0 %v4128
    %8597 = vmatpush2.msra.mxu0 %v4127
    %8598 = vmatprep.subr.mxu0 %v4124
    %8599 = vmatpush2.msra.mxu0 %v4123
    %8600 = vmatprep.subr.mxu0 %v4120
    %8601 = vmatpush2.msra.mxu0 %v4119
    %8602 = vmatprep.subr.mxu0 %v4116
    %8603 = vmatpush2.msra.mxu0 %v4115
    %8604 = vmatprep.subr.mxu0 %v4112
    %8605 = vmatpush2.msra.mxu0 %v4111
    %8606 = vmatprep.subr.mxu0 %v4108
    %8607 = vmatpush2.msra.mxu0 %v4107
    %8608 = vmatprep.subr.mxu0 %v4104
    %8609 = vmatpush2.msra.mxu0 %v4103
    %8610 = vmatprep.subr.mxu0 %v4100
    %8611 = vmatpush2.msra.mxu0 %v4099
    %8612 = vmatprep.subr.mxu0 %v4096
    %8613 = vmatpush2.msra.mxu0 %v4095
    %8614 = vmatprep.subr.mxu0 %v4092
    %8615 = vmatpush2.msra.mxu0 %v4091
    %8616 = vmatprep.subr.mxu0 %v4088
    %8617 = vmatpush2.msra.mxu0 %v4087
    %8618 = vmatprep.subr.mxu0 %v4084
    %8619 = vmatpush2.msra.mxu0 %v4083
    %8620 = vmatprep.subr.mxu0 %v4080
    %8621 = vmatpush2.msra.mxu0 %v4079
    %8622 = vmatprep.subr.mxu0 %v4076
    %8623 = vmatpush2.msra.mxu0 %v4075
    %8624 = vmatprep.mubr.f32.mxu0 %v8487
    %8625 = vmatmul.mubr.f32.gmra.mxu0 %v8485
    %v8626 = vpop.f32.mrf.mxu0
    %v8627 = vadd.f32 %v8556, %v8626
    %v8628 = vpop.f32.mrf.mxu0
    %v8629 = vadd.f32 %v8558, %v8628
    %8630 = vdwg.mxu0
    %8631 = vmatprep.subr.mxu0 %v3946
    %8632 = vmatpush1.msra.mxu0 %v3945
    %8633 = vmatprep.subr.mxu0 %v3942
    %8634 = vmatpush1.msra.mxu0 %v3941
    %8635 = vmatprep.subr.mxu0 %v3938
    %8636 = vmatpush1.msra.mxu0 %v3937
    %8637 = vmatprep.subr.mxu0 %v3934
    %8638 = vmatpush1.msra.mxu0 %v3933
    %8639 = vmatprep.subr.mxu0 %v3930
    %8640 = vmatpush1.msra.mxu0 %v3929
    %8641 = vmatprep.subr.mxu0 %v3926
    %8642 = vmatpush1.msra.mxu0 %v3925
    %8643 = vmatprep.subr.mxu0 %v3922
    %8644 = vmatpush1.msra.mxu0 %v3921
    %8645 = vmatprep.subr.mxu0 %v3918
    %8646 = vmatpush1.msra.mxu0 %v3917
    %8647 = vmatprep.subr.mxu0 %v3914
    %8648 = vmatpush1.msra.mxu0 %v3913
    %8649 = vmatprep.subr.mxu0 %v3910
    %8650 = vmatpush1.msra.mxu0 %v3909
    %8651 = vmatprep.subr.mxu0 %v3906
    %8652 = vmatpush1.msra.mxu0 %v3905
    %8653 = vmatprep.subr.mxu0 %v3902
    %8654 = vmatpush1.msra.mxu0 %v3901
    %8655 = vmatprep.subr.mxu0 %v3898
    %8656 = vmatpush1.msra.mxu0 %v3897
    %8657 = vmatprep.subr.mxu0 %v3894
    %8658 = vmatpush1.msra.mxu0 %v3893
    %8659 = vmatprep.subr.mxu0 %v3890
    %8660 = vmatpush1.msra.mxu0 %v3889
    %8661 = vmatprep.subr.mxu0 %v3886
    %8662 = vmatpush1.msra.mxu0 %v3885
    %8663 = vmatprep.subr.mxu0 %v4010
    %8664 = vmatpush2.msra.mxu0 %v4009
    %8665 = vmatprep.subr.mxu0 %v4006
    %8666 = vmatpush2.msra.mxu0 %v4005
    %8667 = vmatprep.subr.mxu0 %v4002
    %8668 = vmatpush2.msra.mxu0 %v4001
    %8669 = vmatprep.subr.mxu0 %v3998
    %8670 = vmatpush2.msra.mxu0 %v3997
    %8671 = vmatprep.subr.mxu0 %v3994
    %8672 = vmatpush2.msra.mxu0 %v3993
    %8673 = vmatprep.subr.mxu0 %v3990
    %8674 = vmatpush2.msra.mxu0 %v3989
    %8675 = vmatprep.subr.mxu0 %v3986
    %8676 = vmatpush2.msra.mxu0 %v3985
    %8677 = vmatprep.subr.mxu0 %v3982
    %8678 = vmatpush2.msra.mxu0 %v3981
    %8679 = vmatprep.subr.mxu0 %v3978
    %8680 = vmatpush2.msra.mxu0 %v3977
    %8681 = vmatprep.subr.mxu0 %v3974
    %8682 = vmatpush2.msra.mxu0 %v3973
    %8683 = vmatprep.subr.mxu0 %v3970
    %8684 = vmatpush2.msra.mxu0 %v3969
    %8685 = vmatprep.subr.mxu0 %v3966
    %8686 = vmatpush2.msra.mxu0 %v3965
    %8687 = vmatprep.subr.mxu0 %v3962
    %8688 = vmatpush2.msra.mxu0 %v3961
    %8689 = vmatprep.subr.mxu0 %v3958
    %8690 = vmatpush2.msra.mxu0 %v3957
    %8691 = vmatprep.subr.mxu0 %v3954
    %8692 = vmatpush2.msra.mxu0 %v3953
    %8693 = vmatprep.subr.mxu0 %v3950
    %8694 = vmatpush2.msra.mxu0 %v3949
    %8695 = vmatprep.mubr.f32.mxu0 %v8345
    %8696 = vmatmul.mubr.f32.gmra.mxu0 %v8343
    %v8697 = vpop.f32.mrf.mxu0
    %v8698 = vadd.f32 %v3829, %v8697
    %v8699 = vpop.f32.mrf.mxu0
    %v8700 = vadd.f32 %v3830, %v8699
    %8701 = vdwg.mxu0
    %8702 = vmatprep.subr.mxu0 %v4074
    %8703 = vmatpush1.msra.mxu0 %v4073
    %8704 = vmatprep.subr.mxu0 %v4070
    %8705 = vmatpush1.msra.mxu0 %v4069
    %8706 = vmatprep.subr.mxu0 %v4066
    %8707 = vmatpush1.msra.mxu0 %v4065
    %8708 = vmatprep.subr.mxu0 %v4062
    %8709 = vmatpush1.msra.mxu0 %v4061
    %8710 = vmatprep.subr.mxu0 %v4058
    %8711 = vmatpush1.msra.mxu0 %v4057
    %8712 = vmatprep.subr.mxu0 %v4054
    %8713 = vmatpush1.msra.mxu0 %v4053
    %8714 = vmatprep.subr.mxu0 %v4050
    %8715 = vmatpush1.msra.mxu0 %v4049
    %8716 = vmatprep.subr.mxu0 %v4046
    %8717 = vmatpush1.msra.mxu0 %v4045
    %8718 = vmatprep.subr.mxu0 %v4042
    %8719 = vmatpush1.msra.mxu0 %v4041
    %8720 = vmatprep.subr.mxu0 %v4038
    %8721 = vmatpush1.msra.mxu0 %v4037
    %8722 = vmatprep.subr.mxu0 %v4034
    %8723 = vmatpush1.msra.mxu0 %v4033
    %8724 = vmatprep.subr.mxu0 %v4030
    %8725 = vmatpush1.msra.mxu0 %v4029
    %8726 = vmatprep.subr.mxu0 %v4026
    %8727 = vmatpush1.msra.mxu0 %v4025
    %8728 = vmatprep.subr.mxu0 %v4022
    %8729 = vmatpush1.msra.mxu0 %v4021
    %8730 = vmatprep.subr.mxu0 %v4018
    %8731 = vmatpush1.msra.mxu0 %v4017
    %8732 = vmatprep.subr.mxu0 %v4014
    %8733 = vmatpush1.msra.mxu0 %v4013
    %8734 = vmatprep.subr.mxu0 %v4138
    %8735 = vmatpush2.msra.mxu0 %v4137
    %8736 = vmatprep.subr.mxu0 %v4134
    %8737 = vmatpush2.msra.mxu0 %v4133
    %8738 = vmatprep.subr.mxu0 %v4130
    %8739 = vmatpush2.msra.mxu0 %v4129
    %8740 = vmatprep.subr.mxu0 %v4126
    %8741 = vmatpush2.msra.mxu0 %v4125
    %8742 = vmatprep.subr.mxu0 %v4122
    %8743 = vmatpush2.msra.mxu0 %v4121
    %8744 = vmatprep.subr.mxu0 %v4118
    %8745 = vmatpush2.msra.mxu0 %v4117
    %8746 = vmatprep.subr.mxu0 %v4114
    %8747 = vmatpush2.msra.mxu0 %v4113
    %8748 = vmatprep.subr.mxu0 %v4110
    %8749 = vmatpush2.msra.mxu0 %v4109
    %8750 = vmatprep.subr.mxu0 %v4106
    %8751 = vmatpush2.msra.mxu0 %v4105
    %8752 = vmatprep.subr.mxu0 %v4102
    %8753 = vmatpush2.msra.mxu0 %v4101
    %8754 = vmatprep.subr.mxu0 %v4098
    %8755 = vmatpush2.msra.mxu0 %v4097
    %8756 = vmatprep.subr.mxu0 %v4094
    %8757 = vmatpush2.msra.mxu0 %v4093
    %8758 = vmatprep.subr.mxu0 %v4090
    %8759 = vmatpush2.msra.mxu0 %v4089
    %8760 = vmatprep.subr.mxu0 %v4086
    %8761 = vmatpush2.msra.mxu0 %v4085
    %8762 = vmatprep.subr.mxu0 %v4082
    %8763 = vmatpush2.msra.mxu0 %v4081
    %8764 = vmatprep.subr.mxu0 %v4078
    %8765 = vmatpush2.msra.mxu0 %v4077
    %8766 = vmatprep.mubr.f32.mxu0 %v8487
    %8767 = vmatmul.mubr.f32.gmra.mxu0 %v8485
    %v8768 = vpop.f32.mrf.mxu0
    %v8769 = vadd.f32 %v8698, %v8768
    %v8770 = vpop.f32.mrf.mxu0
    %v8771 = vadd.f32 %v8700, %v8770
    %8772 = vdwg.mxu0
    %vm8773 = vcmp.ge.f32.partialorder %v8627, 0.0
    %vm8774 = vcmp.ge.f32.partialorder %v8629, 0.0
    %vm8775 = vcmp.ge.f32.partialorder %v8769, 0.0
    %vm8776 = vcmp.ge.f32.partialorder %v8771, 0.0
    %v8777 = vmul.f32 %v8627, 0.01
    %v8778 = vmul.f32 %v8629, 0.01
    %v8779 = vmul.f32 %v8769, 0.01
    %v8780 = vmul.f32 %v8771, 0.01
    %v8781 = vsel %vm8773, %v8627, %v8777
    %v8782 = vsel %vm8774, %v8629, %v8778
    %v8783 = vsel %vm8775, %v8769, %v8779
    %v8784 = vsel %vm8776, %v8771, %v8780
    %8785 = vmatprep.subr.mxu0 %v4496
    %8786 = vmatpush1.msra.mxu0 %v4495
    %8787 = vmatprep.subr.mxu0 %v4492
    %8788 = vmatpush1.msra.mxu0 %v4491
    %8789 = vmatprep.subr.mxu0 %v4488
    %8790 = vmatpush1.msra.mxu0 %v4487
    %8791 = vmatprep.subr.mxu0 %v4484
    %8792 = vmatpush1.msra.mxu0 %v4483
    %8793 = vmatprep.subr.mxu0 %v4480
    %8794 = vmatpush1.msra.mxu0 %v4479
    %8795 = vmatprep.subr.mxu0 %v4476
    %8796 = vmatpush1.msra.mxu0 %v4475
    %8797 = vmatprep.subr.mxu0 %v4472
    %8798 = vmatpush1.msra.mxu0 %v4471
    %8799 = vmatprep.subr.mxu0 %v4468
    %8800 = vmatpush1.msra.mxu0 %v4467
    %8801 = vmatprep.subr.mxu0 %v4464
    %8802 = vmatpush1.msra.mxu0 %v4463
    %8803 = vmatprep.subr.mxu0 %v4460
    %8804 = vmatpush1.msra.mxu0 %v4459
    %8805 = vmatprep.subr.mxu0 %v4456
    %8806 = vmatpush1.msra.mxu0 %v4455
    %8807 = vmatprep.subr.mxu0 %v4452
    %8808 = vmatpush1.msra.mxu0 %v4451
    %8809 = vmatprep.subr.mxu0 %v4448
    %8810 = vmatpush1.msra.mxu0 %v4447
    %8811 = vmatprep.subr.mxu0 %v4444
    %8812 = vmatpush1.msra.mxu0 %v4443
    %8813 = vmatprep.subr.mxu0 %v4440
    %8814 = vmatpush1.msra.mxu0 %v4439
    %8815 = vmatprep.subr.mxu0 %v4436
    %8816 = vmatpush1.msra.mxu0 %v4435
    %8817 = vmatprep.subr.mxu0 %v4560
    %8818 = vmatpush2.msra.mxu0 %v4559
    %8819 = vmatprep.subr.mxu0 %v4556
    %8820 = vmatpush2.msra.mxu0 %v4555
    %8821 = vmatprep.subr.mxu0 %v4552
    %8822 = vmatpush2.msra.mxu0 %v4551
    %8823 = vmatprep.subr.mxu0 %v4548
    %8824 = vmatpush2.msra.mxu0 %v4547
    %8825 = vmatprep.subr.mxu0 %v4544
    %8826 = vmatpush2.msra.mxu0 %v4543
    %8827 = vmatprep.subr.mxu0 %v4540
    %8828 = vmatpush2.msra.mxu0 %v4539
    %8829 = vmatprep.subr.mxu0 %v4536
    %8830 = vmatpush2.msra.mxu0 %v4535
    %8831 = vmatprep.subr.mxu0 %v4532
    %8832 = vmatpush2.msra.mxu0 %v4531
    %8833 = vmatprep.subr.mxu0 %v4528
    %8834 = vmatpush2.msra.mxu0 %v4527
    %8835 = vmatprep.subr.mxu0 %v4524
    %8836 = vmatpush2.msra.mxu0 %v4523
    %8837 = vmatprep.subr.mxu0 %v4520
    %8838 = vmatpush2.msra.mxu0 %v4519
    %8839 = vmatprep.subr.mxu0 %v4516
    %8840 = vmatpush2.msra.mxu0 %v4515
    %8841 = vmatprep.subr.mxu0 %v4512
    %8842 = vmatpush2.msra.mxu0 %v4511
    %8843 = vmatprep.subr.mxu0 %v4508
    %8844 = vmatpush2.msra.mxu0 %v4507
    %8845 = vmatprep.subr.mxu0 %v4504
    %8846 = vmatpush2.msra.mxu0 %v4503
    %8847 = vmatprep.subr.mxu0 %v4500
    %8848 = vmatpush2.msra.mxu0 %v4499
    %8849 = vmatprep.mubr.f32.mxu0 %v8782
    %8850 = vmatmul.mubr.f32.gmra.mxu0 %v8781
    %v8851 = vpop.f32.mrf.mxu0
    %v8852 = vadd.f32 %v4696, %v8851
    %v8853 = vpop.f32.mrf.mxu0
    %v8854 = vadd.f32 %v4700, %v8853
    %8855 = vdwg.mxu0
    %8856 = vmatprep.subr.mxu0 %v4624
    %8857 = vmatpush1.msra.mxu0 %v4623
    %8858 = vmatprep.subr.mxu0 %v4620
    %8859 = vmatpush1.msra.mxu0 %v4619
    %8860 = vmatprep.subr.mxu0 %v4616
    %8861 = vmatpush1.msra.mxu0 %v4615
    %8862 = vmatprep.subr.mxu0 %v4612
    %8863 = vmatpush1.msra.mxu0 %v4611
    %8864 = vmatprep.subr.mxu0 %v4608
    %8865 = vmatpush1.msra.mxu0 %v4607
    %8866 = vmatprep.subr.mxu0 %v4604
    %8867 = vmatpush1.msra.mxu0 %v4603
    %8868 = vmatprep.subr.mxu0 %v4600
    %8869 = vmatpush1.msra.mxu0 %v4599
    %8870 = vmatprep.subr.mxu0 %v4596
    %8871 = vmatpush1.msra.mxu0 %v4595
    %8872 = vmatprep.subr.mxu0 %v4592
    %8873 = vmatpush1.msra.mxu0 %v4591
    %8874 = vmatprep.subr.mxu0 %v4588
    %8875 = vmatpush1.msra.mxu0 %v4587
    %8876 = vmatprep.subr.mxu0 %v4584
    %8877 = vmatpush1.msra.mxu0 %v4583
    %8878 = vmatprep.subr.mxu0 %v4580
    %8879 = vmatpush1.msra.mxu0 %v4579
    %8880 = vmatprep.subr.mxu0 %v4576
    %8881 = vmatpush1.msra.mxu0 %v4575
    %8882 = vmatprep.subr.mxu0 %v4572
    %8883 = vmatpush1.msra.mxu0 %v4571
    %8884 = vmatprep.subr.mxu0 %v4568
    %8885 = vmatpush1.msra.mxu0 %v4567
    %8886 = vmatprep.subr.mxu0 %v4564
    %8887 = vmatpush1.msra.mxu0 %v4563
    %8888 = vmatprep.subr.mxu0 %v4688
    %8889 = vmatpush2.msra.mxu0 %v4687
    %8890 = vmatprep.subr.mxu0 %v4684
    %8891 = vmatpush2.msra.mxu0 %v4683
    %8892 = vmatprep.subr.mxu0 %v4680
    %8893 = vmatpush2.msra.mxu0 %v4679
    %8894 = vmatprep.subr.mxu0 %v4676
    %8895 = vmatpush2.msra.mxu0 %v4675
    %8896 = vmatprep.subr.mxu0 %v4672
    %8897 = vmatpush2.msra.mxu0 %v4671
    %8898 = vmatprep.subr.mxu0 %v4668
    %8899 = vmatpush2.msra.mxu0 %v4667
    %8900 = vmatprep.subr.mxu0 %v4664
    %8901 = vmatpush2.msra.mxu0 %v4663
    %8902 = vmatprep.subr.mxu0 %v4660
    %8903 = vmatpush2.msra.mxu0 %v4659
    %8904 = vmatprep.subr.mxu0 %v4656
    %8905 = vmatpush2.msra.mxu0 %v4655
    %8906 = vmatprep.subr.mxu0 %v4652
    %8907 = vmatpush2.msra.mxu0 %v4651
    %8908 = vmatprep.subr.mxu0 %v4648
    %8909 = vmatpush2.msra.mxu0 %v4647
    %8910 = vmatprep.subr.mxu0 %v4644
    %8911 = vmatpush2.msra.mxu0 %v4643
    %8912 = vmatprep.subr.mxu0 %v4640
    %8913 = vmatpush2.msra.mxu0 %v4639
    %8914 = vmatprep.subr.mxu0 %v4636
    %8915 = vmatpush2.msra.mxu0 %v4635
    %8916 = vmatprep.subr.mxu0 %v4632
    %8917 = vmatpush2.msra.mxu0 %v4631
    %8918 = vmatprep.subr.mxu0 %v4628
    %8919 = vmatpush2.msra.mxu0 %v4627
    %8920 = vmatprep.mubr.f32.mxu0 %v8784
    %8921 = vmatmul.mubr.f32.gmra.mxu0 %v8783
    %v8922 = vpop.f32.mrf.mxu0
    %v8923 = vadd.f32 %v8852, %v8922
    %v8924 = vpop.f32.mrf.mxu0
    %v8925 = vadd.f32 %v8854, %v8924
    %8926 = vdwg.mxu0
    %8927 = vmatprep.subr.mxu0 %v4498
    %8928 = vmatpush1.msra.mxu0 %v4497
    %8929 = vmatprep.subr.mxu0 %v4494
    %8930 = vmatpush1.msra.mxu0 %v4493
    %8931 = vmatprep.subr.mxu0 %v4490
    %8932 = vmatpush1.msra.mxu0 %v4489
    %8933 = vmatprep.subr.mxu0 %v4486
    %8934 = vmatpush1.msra.mxu0 %v4485
    %8935 = vmatprep.subr.mxu0 %v4482
    %8936 = vmatpush1.msra.mxu0 %v4481
    %8937 = vmatprep.subr.mxu0 %v4478
    %8938 = vmatpush1.msra.mxu0 %v4477
    %8939 = vmatprep.subr.mxu0 %v4474
    %8940 = vmatpush1.msra.mxu0 %v4473
    %8941 = vmatprep.subr.mxu0 %v4470
    %8942 = vmatpush1.msra.mxu0 %v4469
    %8943 = vmatprep.subr.mxu0 %v4466
    %8944 = vmatpush1.msra.mxu0 %v4465
    %8945 = vmatprep.subr.mxu0 %v4462
    %8946 = vmatpush1.msra.mxu0 %v4461
    %8947 = vmatprep.subr.mxu0 %v4458
    %8948 = vmatpush1.msra.mxu0 %v4457
    %8949 = vmatprep.subr.mxu0 %v4454
    %8950 = vmatpush1.msra.mxu0 %v4453
    %8951 = vmatprep.subr.mxu0 %v4450
    %8952 = vmatpush1.msra.mxu0 %v4449
    %8953 = vmatprep.subr.mxu0 %v4446
    %8954 = vmatpush1.msra.mxu0 %v4445
    %8955 = vmatprep.subr.mxu0 %v4442
    %8956 = vmatpush1.msra.mxu0 %v4441
    %8957 = vmatprep.subr.mxu0 %v4438
    %8958 = vmatpush1.msra.mxu0 %v4437
    %8959 = vmatprep.subr.mxu0 %v4562
    %8960 = vmatpush2.msra.mxu0 %v4561
    %8961 = vmatprep.subr.mxu0 %v4558
    %8962 = vmatpush2.msra.mxu0 %v4557
    %8963 = vmatprep.subr.mxu0 %v4554
    %8964 = vmatpush2.msra.mxu0 %v4553
    %8965 = vmatprep.subr.mxu0 %v4550
    %8966 = vmatpush2.msra.mxu0 %v4549
    %8967 = vmatprep.subr.mxu0 %v4546
    %8968 = vmatpush2.msra.mxu0 %v4545
    %8969 = vmatprep.subr.mxu0 %v4542
    %8970 = vmatpush2.msra.mxu0 %v4541
    %8971 = vmatprep.subr.mxu0 %v4538
    %8972 = vmatpush2.msra.mxu0 %v4537
    %8973 = vmatprep.subr.mxu0 %v4534
    %8974 = vmatpush2.msra.mxu0 %v4533
    %8975 = vmatprep.subr.mxu0 %v4530
    %8976 = vmatpush2.msra.mxu0 %v4529
    %8977 = vmatprep.subr.mxu0 %v4526
    %8978 = vmatpush2.msra.mxu0 %v4525
    %8979 = vmatprep.subr.mxu0 %v4522
    %8980 = vmatpush2.msra.mxu0 %v4521
    %8981 = vmatprep.subr.mxu0 %v4518
    %8982 = vmatpush2.msra.mxu0 %v4517
    %8983 = vmatprep.subr.mxu0 %v4514
    %8984 = vmatpush2.msra.mxu0 %v4513
    %8985 = vmatprep.subr.mxu0 %v4510
    %8986 = vmatpush2.msra.mxu0 %v4509
    %8987 = vmatprep.subr.mxu0 %v4506
    %8988 = vmatpush2.msra.mxu0 %v4505
    %8989 = vmatprep.subr.mxu0 %v4502
    %8990 = vmatpush2.msra.mxu0 %v4501
    %8991 = vmatprep.mubr.f32.mxu0 %v8782
    %8992 = vmatmul.mubr.f32.gmra.mxu0 %v8781
    %v8993 = vpop.f32.mrf.mxu0
    %v8994 = vadd.f32 %v4704, %v8993
    %v8995 = vpop.f32.mrf.mxu0
    %v8996 = vadd.f32 %v4708, %v8995
    %8997 = vdwg.mxu0
    %8998 = vmatprep.subr.mxu0 %v4626
    %8999 = vmatpush1.msra.mxu0 %v4625
    %9000 = vmatprep.subr.mxu0 %v4622
    %9001 = vmatpush1.msra.mxu0 %v4621
    %9002 = vmatprep.subr.mxu0 %v4618
    %9003 = vmatpush1.msra.mxu0 %v4617
    %9004 = vmatprep.subr.mxu0 %v4614
    %9005 = vmatpush1.msra.mxu0 %v4613
    %9006 = vmatprep.subr.mxu0 %v4610
    %9007 = vmatpush1.msra.mxu0 %v4609
    %9008 = vmatprep.subr.mxu0 %v4606
    %9009 = vmatpush1.msra.mxu0 %v4605
    %9010 = vmatprep.subr.mxu0 %v4602
    %9011 = vmatpush1.msra.mxu0 %v4601
    %9012 = vmatprep.subr.mxu0 %v4598
    %9013 = vmatpush1.msra.mxu0 %v4597
    %9014 = vmatprep.subr.mxu0 %v4594
    %9015 = vmatpush1.msra.mxu0 %v4593
    %9016 = vmatprep.subr.mxu0 %v4590
    %9017 = vmatpush1.msra.mxu0 %v4589
    %9018 = vmatprep.subr.mxu0 %v4586
    %9019 = vmatpush1.msra.mxu0 %v4585
    %9020 = vmatprep.subr.mxu0 %v4582
    %9021 = vmatpush1.msra.mxu0 %v4581
    %9022 = vmatprep.subr.mxu0 %v4578
    %9023 = vmatpush1.msra.mxu0 %v4577
    %9024 = vmatprep.subr.mxu0 %v4574
    %9025 = vmatpush1.msra.mxu0 %v4573
    %9026 = vmatprep.subr.mxu0 %v4570
    %9027 = vmatpush1.msra.mxu0 %v4569
    %9028 = vmatprep.subr.mxu0 %v4566
    %9029 = vmatpush1.msra.mxu0 %v4565
    %9030 = vmatprep.subr.mxu0 %v4690
    %9031 = vmatpush2.msra.mxu0 %v4689
    %9032 = vmatprep.subr.mxu0 %v4686
    %9033 = vmatpush2.msra.mxu0 %v4685
    %9034 = vmatprep.subr.mxu0 %v4682
    %9035 = vmatpush2.msra.mxu0 %v4681
    %9036 = vmatprep.subr.mxu0 %v4678
    %9037 = vmatpush2.msra.mxu0 %v4677
    %9038 = vmatprep.subr.mxu0 %v4674
    %9039 = vmatpush2.msra.mxu0 %v4673
    %9040 = vmatprep.subr.mxu0 %v4670
    %9041 = vmatpush2.msra.mxu0 %v4669
    %9042 = vmatprep.subr.mxu0 %v4666
    %9043 = vmatpush2.msra.mxu0 %v4665
    %9044 = vmatprep.subr.mxu0 %v4662
    %9045 = vmatpush2.msra.mxu0 %v4661
    %9046 = vmatprep.subr.mxu0 %v4658
    %9047 = vmatpush2.msra.mxu0 %v4657
    %9048 = vmatprep.subr.mxu0 %v4654
    %9049 = vmatpush2.msra.mxu0 %v4653
    %9050 = vmatprep.subr.mxu0 %v4650
    %9051 = vmatpush2.msra.mxu0 %v4649
    %9052 = vmatprep.subr.mxu0 %v4646
    %9053 = vmatpush2.msra.mxu0 %v4645
    %9054 = vmatprep.subr.mxu0 %v4642
    %9055 = vmatpush2.msra.mxu0 %v4641
    %9056 = vmatprep.subr.mxu0 %v4638
    %9057 = vmatpush2.msra.mxu0 %v4637
    %9058 = vmatprep.subr.mxu0 %v4634
    %9059 = vmatpush2.msra.mxu0 %v4633
    %9060 = vmatprep.subr.mxu0 %v4630
    %9061 = vmatpush2.msra.mxu0 %v4629
    %9062 = vmatprep.mubr.f32.mxu0 %v8784
    %9063 = vmatmul.mubr.f32.gmra.mxu0 %v8783
    %v9064 = vpop.f32.mrf.mxu0
    %v9065 = vadd.f32 %v8994, %v9064
    %v9066 = vpop.f32.mrf.mxu0
    %v9067 = vadd.f32 %v8996, %v9066
    %9068 = vdwg.mxu0
    %v9069 = vadd.f32 %v8923, %v7905
    %v9070 = vadd.f32 %v8925, %v7906
    %v9071 = vadd.f32 %v9065, %v7907
    %v9072 = vadd.f32 %v9067, %v7908
    %v9073 = vld [vmem:[%s19] sm:$0xff]
    %v9074 = vld [vmem:[%s19 + $0x8] sm:$0xff]
    %v9075 = vld [vmem:[%s19 + $0x10] sm:$0xff]
    %v9076 = vld [vmem:[%s19 + $0x18] sm:$0xff]
    %v9077 = vld [vmem:[%s19 + $0x20] sm:$0xff]
    %v9078 = vld [vmem:[%s19 + $0x28] sm:$0xff]
    %v9079 = vld [vmem:[%s19 + $0x30] sm:$0xff]
    %v9080 = vld [vmem:[%s19 + $0x38] sm:$0xff]
    %v9081 = vld [vmem:[%s19 + $0x40] sm:$0xff]
    %v9082 = vld [vmem:[%s19 + $0x48] sm:$0xff]
    %v9083 = vld [vmem:[%s19 + $0x50] sm:$0xff]
    %v9084 = vld [vmem:[%s19 + $0x58] sm:$0xff]
    %v9085 = vld [vmem:[%s19 + $0x60] sm:$0xff]
    %v9086 = vld [vmem:[%s19 + $0x68] sm:$0xff]
    %v9087 = vld [vmem:[%s19 + $0x70] sm:$0xff]
    %v9088 = vld [vmem:[%s19 + $0x78] sm:$0xff]
    %v9089 = vld [vmem:[%s19 + $0x80] sm:$0xff]
    %v9090 = vld [vmem:[%s19 + $0x88] sm:$0xff]
    %v9091 = vld [vmem:[%s19 + $0x90] sm:$0xff]
    %v9092 = vld [vmem:[%s19 + $0x98] sm:$0xff]
    %v9093 = vld [vmem:[%s19 + $0xa0] sm:$0xff]
    %v9094 = vld [vmem:[%s19 + $0xa8] sm:$0xff]
    %v9095 = vld [vmem:[%s19 + $0xb0] sm:$0xff]
    %v9096 = vld [vmem:[%s19 + $0xb8] sm:$0xff]
    %v9097 = vld [vmem:[%s19 + $0xc0] sm:$0xff]
    %v9098 = vld [vmem:[%s19 + $0xc8] sm:$0xff]
    %v9099 = vld [vmem:[%s19 + $0xd0] sm:$0xff]
    %v9100 = vld [vmem:[%s19 + $0xd8] sm:$0xff]
    %v9101 = vld [vmem:[%s19 + $0xe0] sm:$0xff]
    %v9102 = vld [vmem:[%s19 + $0xe8] sm:$0xff]
    %v9103 = vld [vmem:[%s19 + $0xf0] sm:$0xff]
    %v9104 = vld [vmem:[%s19 + $0xf8] sm:$0xff]
    %v9105 = vld [vmem:[%s19 + $0x100] sm:$0xff]
    %v9106 = vld [vmem:[%s19 + $0x108] sm:$0xff]
    %v9107 = vld [vmem:[%s19 + $0x110] sm:$0xff]
    %v9108 = vld [vmem:[%s19 + $0x118] sm:$0xff]
    %v9109 = vld [vmem:[%s19 + $0x120] sm:$0xff]
    %v9110 = vld [vmem:[%s19 + $0x128] sm:$0xff]
    %v9111 = vld [vmem:[%s19 + $0x130] sm:$0xff]
    %v9112 = vld [vmem:[%s19 + $0x138] sm:$0xff]
    %v9113 = vld [vmem:[%s19 + $0x140] sm:$0xff]
    %v9114 = vld [vmem:[%s19 + $0x148] sm:$0xff]
    %v9115 = vld [vmem:[%s19 + $0x150] sm:$0xff]
    %v9116 = vld [vmem:[%s19 + $0x158] sm:$0xff]
    %v9117 = vld [vmem:[%s19 + $0x160] sm:$0xff]
    %v9118 = vld [vmem:[%s19 + $0x168] sm:$0xff]
    %v9119 = vld [vmem:[%s19 + $0x170] sm:$0xff]
    %v9120 = vld [vmem:[%s19 + $0x178] sm:$0xff]
    %v9121 = vld [vmem:[%s19 + $0x180] sm:$0xff]
    %v9122 = vld [vmem:[%s19 + $0x188] sm:$0xff]
    %v9123 = vld [vmem:[%s19 + $0x190] sm:$0xff]
    %v9124 = vld [vmem:[%s19 + $0x198] sm:$0xff]
    %v9125 = vld [vmem:[%s19 + $0x1a0] sm:$0xff]
    %v9126 = vld [vmem:[%s19 + $0x1a8] sm:$0xff]
    %v9127 = vld [vmem:[%s19 + $0x1b0] sm:$0xff]
    %v9128 = vld [vmem:[%s19 + $0x1b8] sm:$0xff]
    %v9129 = vld [vmem:[%s19 + $0x1c0] sm:$0xff]
    %v9130 = vld [vmem:[%s19 + $0x1c8] sm:$0xff]
    %v9131 = vld [vmem:[%s19 + $0x1d0] sm:$0xff]
    %v9132 = vld [vmem:[%s19 + $0x1d8] sm:$0xff]
    %v9133 = vld [vmem:[%s19 + $0x1e0] sm:$0xff]
    %v9134 = vld [vmem:[%s19 + $0x1e8] sm:$0xff]
    %v9135 = vld [vmem:[%s19 + $0x1f0] sm:$0xff]
    %v9136 = vld [vmem:[%s19 + $0x1f8] sm:$0xff]
    %v9137 = vld [vmem:[%s19 + $0x200] sm:$0xff]
    %v9138 = vld [vmem:[%s19 + $0x208] sm:$0xff]
    %v9139 = vld [vmem:[%s19 + $0x210] sm:$0xff]
    %v9140 = vld [vmem:[%s19 + $0x218] sm:$0xff]
    %v9141 = vld [vmem:[%s19 + $0x220] sm:$0xff]
    %v9142 = vld [vmem:[%s19 + $0x228] sm:$0xff]
    %v9143 = vld [vmem:[%s19 + $0x230] sm:$0xff]
    %v9144 = vld [vmem:[%s19 + $0x238] sm:$0xff]
    %v9145 = vld [vmem:[%s19 + $0x240] sm:$0xff]
    %v9146 = vld [vmem:[%s19 + $0x248] sm:$0xff]
    %v9147 = vld [vmem:[%s19 + $0x250] sm:$0xff]
    %v9148 = vld [vmem:[%s19 + $0x258] sm:$0xff]
    %v9149 = vld [vmem:[%s19 + $0x260] sm:$0xff]
    %v9150 = vld [vmem:[%s19 + $0x268] sm:$0xff]
    %v9151 = vld [vmem:[%s19 + $0x270] sm:$0xff]
    %v9152 = vld [vmem:[%s19 + $0x278] sm:$0xff]
    %v9153 = vld [vmem:[%s19 + $0x280] sm:$0xff]
    %v9154 = vld [vmem:[%s19 + $0x288] sm:$0xff]
    %v9155 = vld [vmem:[%s19 + $0x290] sm:$0xff]
    %v9156 = vld [vmem:[%s19 + $0x298] sm:$0xff]
    %v9157 = vld [vmem:[%s19 + $0x2a0] sm:$0xff]
    %v9158 = vld [vmem:[%s19 + $0x2a8] sm:$0xff]
    %v9159 = vld [vmem:[%s19 + $0x2b0] sm:$0xff]
    %v9160 = vld [vmem:[%s19 + $0x2b8] sm:$0xff]
    %v9161 = vld [vmem:[%s19 + $0x2c0] sm:$0xff]
    %v9162 = vld [vmem:[%s19 + $0x2c8] sm:$0xff]
    %v9163 = vld [vmem:[%s19 + $0x2d0] sm:$0xff]
    %v9164 = vld [vmem:[%s19 + $0x2d8] sm:$0xff]
    %v9165 = vld [vmem:[%s19 + $0x2e0] sm:$0xff]
    %v9166 = vld [vmem:[%s19 + $0x2e8] sm:$0xff]
    %v9167 = vld [vmem:[%s19 + $0x2f0] sm:$0xff]
    %v9168 = vld [vmem:[%s19 + $0x2f8] sm:$0xff]
    %v9169 = vld [vmem:[%s19 + $0x300] sm:$0xff]
    %v9170 = vld [vmem:[%s19 + $0x308] sm:$0xff]
    %v9171 = vld [vmem:[%s19 + $0x310] sm:$0xff]
    %v9172 = vld [vmem:[%s19 + $0x318] sm:$0xff]
    %v9173 = vld [vmem:[%s19 + $0x320] sm:$0xff]
    %v9174 = vld [vmem:[%s19 + $0x328] sm:$0xff]
    %v9175 = vld [vmem:[%s19 + $0x330] sm:$0xff]
    %v9176 = vld [vmem:[%s19 + $0x338] sm:$0xff]
    %v9177 = vld [vmem:[%s19 + $0x340] sm:$0xff]
    %v9178 = vld [vmem:[%s19 + $0x348] sm:$0xff]
    %v9179 = vld [vmem:[%s19 + $0x350] sm:$0xff]
    %v9180 = vld [vmem:[%s19 + $0x358] sm:$0xff]
    %v9181 = vld [vmem:[%s19 + $0x360] sm:$0xff]
    %v9182 = vld [vmem:[%s19 + $0x368] sm:$0xff]
    %v9183 = vld [vmem:[%s19 + $0x370] sm:$0xff]
    %v9184 = vld [vmem:[%s19 + $0x378] sm:$0xff]
    %v9185 = vld [vmem:[%s19 + $0x380] sm:$0xff]
    %v9186 = vld [vmem:[%s19 + $0x388] sm:$0xff]
    %v9187 = vld [vmem:[%s19 + $0x390] sm:$0xff]
    %v9188 = vld [vmem:[%s19 + $0x398] sm:$0xff]
    %v9189 = vld [vmem:[%s19 + $0x3a0] sm:$0xff]
    %v9190 = vld [vmem:[%s19 + $0x3a8] sm:$0xff]
    %v9191 = vld [vmem:[%s19 + $0x3b0] sm:$0xff]
    %v9192 = vld [vmem:[%s19 + $0x3b8] sm:$0xff]
    %v9193 = vld [vmem:[%s19 + $0x3c0] sm:$0xff]
    %v9194 = vld [vmem:[%s19 + $0x3c8] sm:$0xff]
    %v9195 = vld [vmem:[%s19 + $0x3d0] sm:$0xff]
    %v9196 = vld [vmem:[%s19 + $0x3d8] sm:$0xff]
    %v9197 = vld [vmem:[%s19 + $0x3e0] sm:$0xff]
    %v9198 = vld [vmem:[%s19 + $0x3e8] sm:$0xff]
    %v9199 = vld [vmem:[%s19 + $0x3f0] sm:$0xff]
    %v9200 = vld [vmem:[%s19 + $0x3f8] sm:$0xff]
    %v9201 = vld [vmem:[%s19 + $0x400] sm:$0xff]
    %v9202 = vld [vmem:[%s19 + $0x408] sm:$0xff]
    %v9203 = vld [vmem:[%s19 + $0x410] sm:$0xff]
    %v9204 = vld [vmem:[%s19 + $0x418] sm:$0xff]
    %v9205 = vld [vmem:[%s19 + $0x420] sm:$0xff]
    %v9206 = vld [vmem:[%s19 + $0x428] sm:$0xff]
    %v9207 = vld [vmem:[%s19 + $0x430] sm:$0xff]
    %v9208 = vld [vmem:[%s19 + $0x438] sm:$0xff]
    %v9209 = vld [vmem:[%s19 + $0x440] sm:$0xff]
    %v9210 = vld [vmem:[%s19 + $0x448] sm:$0xff]
    %v9211 = vld [vmem:[%s19 + $0x450] sm:$0xff]
    %v9212 = vld [vmem:[%s19 + $0x458] sm:$0xff]
    %v9213 = vld [vmem:[%s19 + $0x460] sm:$0xff]
    %v9214 = vld [vmem:[%s19 + $0x468] sm:$0xff]
    %v9215 = vld [vmem:[%s19 + $0x470] sm:$0xff]
    %v9216 = vld [vmem:[%s19 + $0x478] sm:$0xff]
    %v9217 = vld [vmem:[%s19 + $0x480] sm:$0xff]
    %v9218 = vld [vmem:[%s19 + $0x488] sm:$0xff]
    %v9219 = vld [vmem:[%s19 + $0x490] sm:$0xff]
    %v9220 = vld [vmem:[%s19 + $0x498] sm:$0xff]
    %v9221 = vld [vmem:[%s19 + $0x4a0] sm:$0xff]
    %v9222 = vld [vmem:[%s19 + $0x4a8] sm:$0xff]
    %v9223 = vld [vmem:[%s19 + $0x4b0] sm:$0xff]
    %v9224 = vld [vmem:[%s19 + $0x4b8] sm:$0xff]
    %v9225 = vld [vmem:[%s19 + $0x4c0] sm:$0xff]
    %v9226 = vld [vmem:[%s19 + $0x4c8] sm:$0xff]
    %v9227 = vld [vmem:[%s19 + $0x4d0] sm:$0xff]
    %v9228 = vld [vmem:[%s19 + $0x4d8] sm:$0xff]
    %v9229 = vld [vmem:[%s19 + $0x4e0] sm:$0xff]
    %v9230 = vld [vmem:[%s19 + $0x4e8] sm:$0xff]
    %v9231 = vld [vmem:[%s19 + $0x4f0] sm:$0xff]
    %v9232 = vld [vmem:[%s19 + $0x4f8] sm:$0xff]
    %v9233 = vld [vmem:[%s19 + $0x500] sm:$0xff]
    %v9234 = vld [vmem:[%s19 + $0x508] sm:$0xff]
    %v9235 = vld [vmem:[%s19 + $0x510] sm:$0xff]
    %v9236 = vld [vmem:[%s19 + $0x518] sm:$0xff]
    %v9237 = vld [vmem:[%s19 + $0x520] sm:$0xff]
    %v9238 = vld [vmem:[%s19 + $0x528] sm:$0xff]
    %v9239 = vld [vmem:[%s19 + $0x530] sm:$0xff]
    %v9240 = vld [vmem:[%s19 + $0x538] sm:$0xff]
    %v9241 = vld [vmem:[%s19 + $0x540] sm:$0xff]
    %v9242 = vld [vmem:[%s19 + $0x548] sm:$0xff]
    %v9243 = vld [vmem:[%s19 + $0x550] sm:$0xff]
    %v9244 = vld [vmem:[%s19 + $0x558] sm:$0xff]
    %v9245 = vld [vmem:[%s19 + $0x560] sm:$0xff]
    %v9246 = vld [vmem:[%s19 + $0x568] sm:$0xff]
    %v9247 = vld [vmem:[%s19 + $0x570] sm:$0xff]
    %v9248 = vld [vmem:[%s19 + $0x578] sm:$0xff]
    %v9249 = vld [vmem:[%s19 + $0x580] sm:$0xff]
    %v9250 = vld [vmem:[%s19 + $0x588] sm:$0xff]
    %v9251 = vld [vmem:[%s19 + $0x590] sm:$0xff]
    %v9252 = vld [vmem:[%s19 + $0x598] sm:$0xff]
    %v9253 = vld [vmem:[%s19 + $0x5a0] sm:$0xff]
    %v9254 = vld [vmem:[%s19 + $0x5a8] sm:$0xff]
    %v9255 = vld [vmem:[%s19 + $0x5b0] sm:$0xff]
    %v9256 = vld [vmem:[%s19 + $0x5b8] sm:$0xff]
    %v9257 = vld [vmem:[%s19 + $0x5c0] sm:$0xff]
    %v9258 = vld [vmem:[%s19 + $0x5c8] sm:$0xff]
    %v9259 = vld [vmem:[%s19 + $0x5d0] sm:$0xff]
    %v9260 = vld [vmem:[%s19 + $0x5d8] sm:$0xff]
    %v9261 = vld [vmem:[%s19 + $0x5e0] sm:$0xff]
    %v9262 = vld [vmem:[%s19 + $0x5e8] sm:$0xff]
    %v9263 = vld [vmem:[%s19 + $0x5f0] sm:$0xff]
    %v9264 = vld [vmem:[%s19 + $0x5f8] sm:$0xff]
    %v9265 = vld [vmem:[%s19 + $0x600] sm:$0xff]
    %v9266 = vld [vmem:[%s19 + $0x608] sm:$0xff]
    %v9267 = vld [vmem:[%s19 + $0x610] sm:$0xff]
    %v9268 = vld [vmem:[%s19 + $0x618] sm:$0xff]
    %v9269 = vld [vmem:[%s19 + $0x620] sm:$0xff]
    %v9270 = vld [vmem:[%s19 + $0x628] sm:$0xff]
    %v9271 = vld [vmem:[%s19 + $0x630] sm:$0xff]
    %v9272 = vld [vmem:[%s19 + $0x638] sm:$0xff]
    %v9273 = vld [vmem:[%s19 + $0x640] sm:$0xff]
    %v9274 = vld [vmem:[%s19 + $0x648] sm:$0xff]
    %v9275 = vld [vmem:[%s19 + $0x650] sm:$0xff]
    %v9276 = vld [vmem:[%s19 + $0x658] sm:$0xff]
    %v9277 = vld [vmem:[%s19 + $0x660] sm:$0xff]
    %v9278 = vld [vmem:[%s19 + $0x668] sm:$0xff]
    %v9279 = vld [vmem:[%s19 + $0x670] sm:$0xff]
    %v9280 = vld [vmem:[%s19 + $0x678] sm:$0xff]
    %v9281 = vld [vmem:[%s19 + $0x680] sm:$0xff]
    %v9282 = vld [vmem:[%s19 + $0x688] sm:$0xff]
    %v9283 = vld [vmem:[%s19 + $0x690] sm:$0xff]
    %v9284 = vld [vmem:[%s19 + $0x698] sm:$0xff]
    %v9285 = vld [vmem:[%s19 + $0x6a0] sm:$0xff]
    %v9286 = vld [vmem:[%s19 + $0x6a8] sm:$0xff]
    %v9287 = vld [vmem:[%s19 + $0x6b0] sm:$0xff]
    %v9288 = vld [vmem:[%s19 + $0x6b8] sm:$0xff]
    %v9289 = vld [vmem:[%s19 + $0x6c0] sm:$0xff]
    %v9290 = vld [vmem:[%s19 + $0x6c8] sm:$0xff]
    %v9291 = vld [vmem:[%s19 + $0x6d0] sm:$0xff]
    %v9292 = vld [vmem:[%s19 + $0x6d8] sm:$0xff]
    %v9293 = vld [vmem:[%s19 + $0x6e0] sm:$0xff]
    %v9294 = vld [vmem:[%s19 + $0x6e8] sm:$0xff]
    %v9295 = vld [vmem:[%s19 + $0x6f0] sm:$0xff]
    %v9296 = vld [vmem:[%s19 + $0x6f8] sm:$0xff]
    %v9297 = vld [vmem:[%s19 + $0x700] sm:$0xff]
    %v9298 = vld [vmem:[%s19 + $0x708] sm:$0xff]
    %v9299 = vld [vmem:[%s19 + $0x710] sm:$0xff]
    %v9300 = vld [vmem:[%s19 + $0x718] sm:$0xff]
    %v9301 = vld [vmem:[%s19 + $0x720] sm:$0xff]
    %v9302 = vld [vmem:[%s19 + $0x728] sm:$0xff]
    %v9303 = vld [vmem:[%s19 + $0x730] sm:$0xff]
    %v9304 = vld [vmem:[%s19 + $0x738] sm:$0xff]
    %v9305 = vld [vmem:[%s19 + $0x740] sm:$0xff]
    %v9306 = vld [vmem:[%s19 + $0x748] sm:$0xff]
    %v9307 = vld [vmem:[%s19 + $0x750] sm:$0xff]
    %v9308 = vld [vmem:[%s19 + $0x758] sm:$0xff]
    %v9309 = vld [vmem:[%s19 + $0x760] sm:$0xff]
    %v9310 = vld [vmem:[%s19 + $0x768] sm:$0xff]
    %v9311 = vld [vmem:[%s19 + $0x770] sm:$0xff]
    %v9312 = vld [vmem:[%s19 + $0x778] sm:$0xff]
    %v9313 = vld [vmem:[%s19 + $0x780] sm:$0xff]
    %v9314 = vld [vmem:[%s19 + $0x788] sm:$0xff]
    %v9315 = vld [vmem:[%s19 + $0x790] sm:$0xff]
    %v9316 = vld [vmem:[%s19 + $0x798] sm:$0xff]
    %v9317 = vld [vmem:[%s19 + $0x7a0] sm:$0xff]
    %v9318 = vld [vmem:[%s19 + $0x7a8] sm:$0xff]
    %v9319 = vld [vmem:[%s19 + $0x7b0] sm:$0xff]
    %v9320 = vld [vmem:[%s19 + $0x7b8] sm:$0xff]
    %v9321 = vld [vmem:[%s19 + $0x7c0] sm:$0xff]
    %v9322 = vld [vmem:[%s19 + $0x7c8] sm:$0xff]
    %v9323 = vld [vmem:[%s19 + $0x7d0] sm:$0xff]
    %v9324 = vld [vmem:[%s19 + $0x7d8] sm:$0xff]
    %v9325 = vld [vmem:[%s19 + $0x7e0] sm:$0xff]
    %v9326 = vld [vmem:[%s19 + $0x7e8] sm:$0xff]
    %v9327 = vld [vmem:[%s19 + $0x7f0] sm:$0xff]
    %v9328 = vld [vmem:[%s19 + $0x7f8] sm:$0xff]
    %9329 = vmatprep.subr.mxu0 %v9134
    %9330 = vmatpush1.msra.mxu0 %v9133
    %9331 = vmatprep.subr.mxu0 %v9130
    %9332 = vmatpush1.msra.mxu0 %v9129
    %9333 = vmatprep.subr.mxu0 %v9126
    %9334 = vmatpush1.msra.mxu0 %v9125
    %9335 = vmatprep.subr.mxu0 %v9122
    %9336 = vmatpush1.msra.mxu0 %v9121
    %9337 = vmatprep.subr.mxu0 %v9118
    %9338 = vmatpush1.msra.mxu0 %v9117
    %9339 = vmatprep.subr.mxu0 %v9114
    %9340 = vmatpush1.msra.mxu0 %v9113
    %9341 = vmatprep.subr.mxu0 %v9110
    %9342 = vmatpush1.msra.mxu0 %v9109
    %9343 = vmatprep.subr.mxu0 %v9106
    %9344 = vmatpush1.msra.mxu0 %v9105
    %9345 = vmatprep.subr.mxu0 %v9102
    %9346 = vmatpush1.msra.mxu0 %v9101
    %9347 = vmatprep.subr.mxu0 %v9098
    %9348 = vmatpush1.msra.mxu0 %v9097
    %9349 = vmatprep.subr.mxu0 %v9094
    %9350 = vmatpush1.msra.mxu0 %v9093
    %9351 = vmatprep.subr.mxu0 %v9090
    %9352 = vmatpush1.msra.mxu0 %v9089
    %9353 = vmatprep.subr.mxu0 %v9086
    %9354 = vmatpush1.msra.mxu0 %v9085
    %9355 = vmatprep.subr.mxu0 %v9082
    %9356 = vmatpush1.msra.mxu0 %v9081
    %9357 = vmatprep.subr.mxu0 %v9078
    %9358 = vmatpush1.msra.mxu0 %v9077
    %9359 = vmatprep.subr.mxu0 %v9074
    %9360 = vmatpush1.msra.mxu0 %v9073
    %9361 = vmatprep.subr.mxu0 %v9198
    %9362 = vmatpush2.msra.mxu0 %v9197
    %9363 = vmatprep.subr.mxu0 %v9194
    %9364 = vmatpush2.msra.mxu0 %v9193
    %9365 = vmatprep.subr.mxu0 %v9190
    %9366 = vmatpush2.msra.mxu0 %v9189
    %9367 = vmatprep.subr.mxu0 %v9186
    %9368 = vmatpush2.msra.mxu0 %v9185
    %9369 = vmatprep.subr.mxu0 %v9182
    %9370 = vmatpush2.msra.mxu0 %v9181
    %9371 = vmatprep.subr.mxu0 %v9178
    %9372 = vmatpush2.msra.mxu0 %v9177
    %9373 = vmatprep.subr.mxu0 %v9174
    %9374 = vmatpush2.msra.mxu0 %v9173
    %9375 = vmatprep.subr.mxu0 %v9170
    %9376 = vmatpush2.msra.mxu0 %v9169
    %9377 = vmatprep.subr.mxu0 %v9166
    %9378 = vmatpush2.msra.mxu0 %v9165
    %9379 = vmatprep.subr.mxu0 %v9162
    %9380 = vmatpush2.msra.mxu0 %v9161
    %9381 = vmatprep.subr.mxu0 %v9158
    %9382 = vmatpush2.msra.mxu0 %v9157
    %9383 = vmatprep.subr.mxu0 %v9154
    %9384 = vmatpush2.msra.mxu0 %v9153
    %9385 = vmatprep.subr.mxu0 %v9150
    %9386 = vmatpush2.msra.mxu0 %v9149
    %9387 = vmatprep.subr.mxu0 %v9146
    %9388 = vmatpush2.msra.mxu0 %v9145
    %9389 = vmatprep.subr.mxu0 %v9142
    %9390 = vmatpush2.msra.mxu0 %v9141
    %9391 = vmatprep.subr.mxu0 %v9138
    %9392 = vmatpush2.msra.mxu0 %v9137
    %9393 = vmatprep.mubr.f32.mxu0 %v9070
    %9394 = vmatmul.mubr.f32.gmra.mxu0 %v9069
    %v9395 = vpop.f32.mrf.mxu0
    %v9396 = vadd.f32 %v3879, %v9395
    %v9397 = vpop.f32.mrf.mxu0
    %v9398 = vadd.f32 %v3880, %v9397
    %9399 = vdwg.mxu0
    %9400 = vmatprep.subr.mxu0 %v9262
    %9401 = vmatpush1.msra.mxu0 %v9261
    %9402 = vmatprep.subr.mxu0 %v9258
    %9403 = vmatpush1.msra.mxu0 %v9257
    %9404 = vmatprep.subr.mxu0 %v9254
    %9405 = vmatpush1.msra.mxu0 %v9253
    %9406 = vmatprep.subr.mxu0 %v9250
    %9407 = vmatpush1.msra.mxu0 %v9249
    %9408 = vmatprep.subr.mxu0 %v9246
    %9409 = vmatpush1.msra.mxu0 %v9245
    %9410 = vmatprep.subr.mxu0 %v9242
    %9411 = vmatpush1.msra.mxu0 %v9241
    %9412 = vmatprep.subr.mxu0 %v9238
    %9413 = vmatpush1.msra.mxu0 %v9237
    %9414 = vmatprep.subr.mxu0 %v9234
    %9415 = vmatpush1.msra.mxu0 %v9233
    %9416 = vmatprep.subr.mxu0 %v9230
    %9417 = vmatpush1.msra.mxu0 %v9229
    %9418 = vmatprep.subr.mxu0 %v9226
    %9419 = vmatpush1.msra.mxu0 %v9225
    %9420 = vmatprep.subr.mxu0 %v9222
    %9421 = vmatpush1.msra.mxu0 %v9221
    %9422 = vmatprep.subr.mxu0 %v9218
    %9423 = vmatpush1.msra.mxu0 %v9217
    %9424 = vmatprep.subr.mxu0 %v9214
    %9425 = vmatpush1.msra.mxu0 %v9213
    %9426 = vmatprep.subr.mxu0 %v9210
    %9427 = vmatpush1.msra.mxu0 %v9209
    %9428 = vmatprep.subr.mxu0 %v9206
    %9429 = vmatpush1.msra.mxu0 %v9205
    %9430 = vmatprep.subr.mxu0 %v9202
    %9431 = vmatpush1.msra.mxu0 %v9201
    %9432 = vmatprep.subr.mxu0 %v9326
    %9433 = vmatpush2.msra.mxu0 %v9325
    %9434 = vmatprep.subr.mxu0 %v9322
    %9435 = vmatpush2.msra.mxu0 %v9321
    %9436 = vmatprep.subr.mxu0 %v9318
    %9437 = vmatpush2.msra.mxu0 %v9317
    %9438 = vmatprep.subr.mxu0 %v9314
    %9439 = vmatpush2.msra.mxu0 %v9313
    %9440 = vmatprep.subr.mxu0 %v9310
    %9441 = vmatpush2.msra.mxu0 %v9309
    %9442 = vmatprep.subr.mxu0 %v9306
    %9443 = vmatpush2.msra.mxu0 %v9305
    %9444 = vmatprep.subr.mxu0 %v9302
    %9445 = vmatpush2.msra.mxu0 %v9301
    %9446 = vmatprep.subr.mxu0 %v9298
    %9447 = vmatpush2.msra.mxu0 %v9297
    %9448 = vmatprep.subr.mxu0 %v9294
    %9449 = vmatpush2.msra.mxu0 %v9293
    %9450 = vmatprep.subr.mxu0 %v9290
    %9451 = vmatpush2.msra.mxu0 %v9289
    %9452 = vmatprep.subr.mxu0 %v9286
    %9453 = vmatpush2.msra.mxu0 %v9285
    %9454 = vmatprep.subr.mxu0 %v9282
    %9455 = vmatpush2.msra.mxu0 %v9281
    %9456 = vmatprep.subr.mxu0 %v9278
    %9457 = vmatpush2.msra.mxu0 %v9277
    %9458 = vmatprep.subr.mxu0 %v9274
    %9459 = vmatpush2.msra.mxu0 %v9273
    %9460 = vmatprep.subr.mxu0 %v9270
    %9461 = vmatpush2.msra.mxu0 %v9269
    %9462 = vmatprep.subr.mxu0 %v9266
    %9463 = vmatpush2.msra.mxu0 %v9265
    %9464 = vmatprep.mubr.f32.mxu0 %v9072
    %9465 = vmatmul.mubr.f32.gmra.mxu0 %v9071
    %v9466 = vpop.f32.mrf.mxu0
    %v9467 = vadd.f32 %v9396, %v9466
    %v9468 = vpop.f32.mrf.mxu0
    %v9469 = vadd.f32 %v9398, %v9468
    %9470 = vdwg.mxu0
    %9471 = vmatprep.subr.mxu0 %v9136
    %9472 = vmatpush1.msra.mxu0 %v9135
    %9473 = vmatprep.subr.mxu0 %v9132
    %9474 = vmatpush1.msra.mxu0 %v9131
    %9475 = vmatprep.subr.mxu0 %v9128
    %9476 = vmatpush1.msra.mxu0 %v9127
    %9477 = vmatprep.subr.mxu0 %v9124
    %9478 = vmatpush1.msra.mxu0 %v9123
    %9479 = vmatprep.subr.mxu0 %v9120
    %9480 = vmatpush1.msra.mxu0 %v9119
    %9481 = vmatprep.subr.mxu0 %v9116
    %9482 = vmatpush1.msra.mxu0 %v9115
    %9483 = vmatprep.subr.mxu0 %v9112
    %9484 = vmatpush1.msra.mxu0 %v9111
    %9485 = vmatprep.subr.mxu0 %v9108
    %9486 = vmatpush1.msra.mxu0 %v9107
    %9487 = vmatprep.subr.mxu0 %v9104
    %9488 = vmatpush1.msra.mxu0 %v9103
    %9489 = vmatprep.subr.mxu0 %v9100
    %9490 = vmatpush1.msra.mxu0 %v9099
    %9491 = vmatprep.subr.mxu0 %v9096
    %9492 = vmatpush1.msra.mxu0 %v9095
    %9493 = vmatprep.subr.mxu0 %v9092
    %9494 = vmatpush1.msra.mxu0 %v9091
    %9495 = vmatprep.subr.mxu0 %v9088
    %9496 = vmatpush1.msra.mxu0 %v9087
    %9497 = vmatprep.subr.mxu0 %v9084
    %9498 = vmatpush1.msra.mxu0 %v9083
    %9499 = vmatprep.subr.mxu0 %v9080
    %9500 = vmatpush1.msra.mxu0 %v9079
    %9501 = vmatprep.subr.mxu0 %v9076
    %9502 = vmatpush1.msra.mxu0 %v9075
    %9503 = vmatprep.subr.mxu0 %v9200
    %9504 = vmatpush2.msra.mxu0 %v9199
    %9505 = vmatprep.subr.mxu0 %v9196
    %9506 = vmatpush2.msra.mxu0 %v9195
    %9507 = vmatprep.subr.mxu0 %v9192
    %9508 = vmatpush2.msra.mxu0 %v9191
    %9509 = vmatprep.subr.mxu0 %v9188
    %9510 = vmatpush2.msra.mxu0 %v9187
    %9511 = vmatprep.subr.mxu0 %v9184
    %9512 = vmatpush2.msra.mxu0 %v9183
    %9513 = vmatprep.subr.mxu0 %v9180
    %9514 = vmatpush2.msra.mxu0 %v9179
    %9515 = vmatprep.subr.mxu0 %v9176
    %9516 = vmatpush2.msra.mxu0 %v9175
    %9517 = vmatprep.subr.mxu0 %v9172
    %9518 = vmatpush2.msra.mxu0 %v9171
    %9519 = vmatprep.subr.mxu0 %v9168
    %9520 = vmatpush2.msra.mxu0 %v9167
    %9521 = vmatprep.subr.mxu0 %v9164
    %9522 = vmatpush2.msra.mxu0 %v9163
    %9523 = vmatprep.subr.mxu0 %v9160
    %9524 = vmatpush2.msra.mxu0 %v9159
    %9525 = vmatprep.subr.mxu0 %v9156
    %9526 = vmatpush2.msra.mxu0 %v9155
    %9527 = vmatprep.subr.mxu0 %v9152
    %9528 = vmatpush2.msra.mxu0 %v9151
    %9529 = vmatprep.subr.mxu0 %v9148
    %9530 = vmatpush2.msra.mxu0 %v9147
    %9531 = vmatprep.subr.mxu0 %v9144
    %9532 = vmatpush2.msra.mxu0 %v9143
    %9533 = vmatprep.subr.mxu0 %v9140
    %9534 = vmatpush2.msra.mxu0 %v9139
    %9535 = vmatprep.mubr.f32.mxu0 %v9070
    %9536 = vmatmul.mubr.f32.gmra.mxu0 %v9069
    %v9537 = vpop.f32.mrf.mxu0
    %v9538 = vadd.f32 %v3881, %v9537
    %v9539 = vpop.f32.mrf.mxu0
    %v9540 = vadd.f32 %v3882, %v9539
    %9541 = vdwg.mxu0
    %9542 = vmatprep.subr.mxu0 %v9264
    %9543 = vmatpush1.msra.mxu0 %v9263
    %9544 = vmatprep.subr.mxu0 %v9260
    %9545 = vmatpush1.msra.mxu0 %v9259
    %9546 = vmatprep.subr.mxu0 %v9256
    %9547 = vmatpush1.msra.mxu0 %v9255
    %9548 = vmatprep.subr.mxu0 %v9252
    %9549 = vmatpush1.msra.mxu0 %v9251
    %9550 = vmatprep.subr.mxu0 %v9248
    %9551 = vmatpush1.msra.mxu0 %v9247
    %9552 = vmatprep.subr.mxu0 %v9244
    %9553 = vmatpush1.msra.mxu0 %v9243
    %9554 = vmatprep.subr.mxu0 %v9240
    %9555 = vmatpush1.msra.mxu0 %v9239
    %9556 = vmatprep.subr.mxu0 %v9236
    %9557 = vmatpush1.msra.mxu0 %v9235
    %9558 = vmatprep.subr.mxu0 %v9232
    %9559 = vmatpush1.msra.mxu0 %v9231
    %9560 = vmatprep.subr.mxu0 %v9228
    %9561 = vmatpush1.msra.mxu0 %v9227
    %9562 = vmatprep.subr.mxu0 %v9224
    %9563 = vmatpush1.msra.mxu0 %v9223
    %9564 = vmatprep.subr.mxu0 %v9220
    %9565 = vmatpush1.msra.mxu0 %v9219
    %9566 = vmatprep.subr.mxu0 %v9216
    %9567 = vmatpush1.msra.mxu0 %v9215
    %9568 = vmatprep.subr.mxu0 %v9212
    %9569 = vmatpush1.msra.mxu0 %v9211
    %9570 = vmatprep.subr.mxu0 %v9208
    %9571 = vmatpush1.msra.mxu0 %v9207
    %9572 = vmatprep.subr.mxu0 %v9204
    %9573 = vmatpush1.msra.mxu0 %v9203
    %9574 = vmatprep.subr.mxu0 %v9328
    %9575 = vmatpush2.msra.mxu0 %v9327
    %9576 = vmatprep.subr.mxu0 %v9324
    %9577 = vmatpush2.msra.mxu0 %v9323
    %9578 = vmatprep.subr.mxu0 %v9320
    %9579 = vmatpush2.msra.mxu0 %v9319
    %9580 = vmatprep.subr.mxu0 %v9316
    %9581 = vmatpush2.msra.mxu0 %v9315
    %9582 = vmatprep.subr.mxu0 %v9312
    %9583 = vmatpush2.msra.mxu0 %v9311
    %9584 = vmatprep.subr.mxu0 %v9308
    %9585 = vmatpush2.msra.mxu0 %v9307
    %9586 = vmatprep.subr.mxu0 %v9304
    %9587 = vmatpush2.msra.mxu0 %v9303
    %9588 = vmatprep.subr.mxu0 %v9300
    %9589 = vmatpush2.msra.mxu0 %v9299
    %9590 = vmatprep.subr.mxu0 %v9296
    %9591 = vmatpush2.msra.mxu0 %v9295
    %9592 = vmatprep.subr.mxu0 %v9292
    %9593 = vmatpush2.msra.mxu0 %v9291
    %9594 = vmatprep.subr.mxu0 %v9288
    %9595 = vmatpush2.msra.mxu0 %v9287
    %9596 = vmatprep.subr.mxu0 %v9284
    %9597 = vmatpush2.msra.mxu0 %v9283
    %9598 = vmatprep.subr.mxu0 %v9280
    %9599 = vmatpush2.msra.mxu0 %v9279
    %9600 = vmatprep.subr.mxu0 %v9276
    %9601 = vmatpush2.msra.mxu0 %v9275
    %9602 = vmatprep.subr.mxu0 %v9272
    %9603 = vmatpush2.msra.mxu0 %v9271
    %9604 = vmatprep.subr.mxu0 %v9268
    %9605 = vmatpush2.msra.mxu0 %v9267
    %9606 = vmatprep.mubr.f32.mxu0 %v9072
    %9607 = vmatmul.mubr.f32.gmra.mxu0 %v9071
    %v9608 = vpop.f32.mrf.mxu0
    %v9609 = vadd.f32 %v9538, %v9608
    %v9610 = vpop.f32.mrf.mxu0
    %v9611 = vadd.f32 %v9540, %v9610
    %9612 = vdwg.mxu0
    %v9617 = vcombine.low %v9467, %v9469
    %v9618 = vcombine.low %v9609, %v9611
    %v9620 = vunpack.c.l.s4 1983009808
    %v9621 = vunpack.c.0.s8 %v9620
    %v9622 = vlaneseq
    %v9623 = vshrl.u32 %v9622, 7
    %v9624 = vsub.s32 %v9621, %v9623
    %v9625 = vrot.slane %v9617, %v9624
    %v9627 = vunpack.c.l.s4 1983009808
    %v9628 = vunpack.c.0.s8 %v9627
    %v9629 = vlaneseq
    %v9630 = vshrl.u32 %v9629, 7
    %v9631 = vsub.s32 %v9628, %v9630
    %v9632 = vrot.slane %v9618, %v9631
    %v9633 = vcombine.low %v9625, %v9632
    %9635 = vst [vmem:[#allocation4] sm:$0xff] %v9633
    // Predicated region
    $region90: #{icm_forward.5} parent=1 // pred_check
      _
    $region91: #{icm_forward.5} parent=1 // pred_check_branch
      %9637 = sbr.rel (0) target = $region93
    $region92: #{icm_forward.5} parent=1 // pred_region
      %s9639 = ssub.s32 128, 128
      %9640 = vsyncadd [#allocation3], %s9639
      %s9642 = sshll.u32 [#allocation2], 4
      %s9643 = int_to_ptr.vmem [resolvable:$true] %s9642
      %9645 = dma.vmem_to_hbm [thread:$0]  %s9643, 128, %s22, [#allocation3]
    $region93: #{icm_forward.5} parent=1 // pred_fallthru
      _
    // Predicated region
    $region94: #{icm_forward.5} parent=1 // pred_check
      _
    $region95: #{icm_forward.5} parent=1 // pred_check_branch
      %9647 = sbr.rel (0) target = $region97
    $region96: #{icm_forward.5} parent=1 // pred_region
      %s9649 = ssub.s32 128, 128
      %9650 = vsyncadd [#allocation5], %s9649
      %s9652 = sshll.u32 [#allocation4], 4
      %s9653 = int_to_ptr.vmem [resolvable:$true] %s9652
      %9655 = dma.vmem_to_hbm [thread:$0]  %s9653, 128, %s23, [#allocation5]
    $region97: #{icm_forward.5} parent=1 // pred_fallthru
      _
    // Predicated region
    $region98: #{icm_forward.5} parent=1 // pred_check
      _
    $region99: #{icm_forward.5} parent=1 // pred_check_branch
      %9657 = sbr.rel (0) target = $region101
    $region100: #{icm_forward.5} parent=1 // pred_region
      %s9659 = ssub.s32 32, 32
      %9660 = vsyncadd [#allocation5], %s9659
      %s9662 = sshll.u32 [#allocation6], 4
      %s9663 = int_to_ptr.vmem [resolvable:$true] %s9662
      %9665 = dma.vmem_to_hbm [thread:$0]  %s9663, 32, %s24, [#allocation5]
    $region101: #{icm_forward.5} parent=1 // pred_fallthru
      _
    // Predicated region
    $region102: #{icm_forward.5} parent=1 // pred_check
      _
    $region103: #{icm_forward.5} parent=1 // pred_check_branch
      %9667 = sbr.rel (0) target = $region105
    $region104: #{icm_forward.5} parent=1 // pred_region
      %9668 = dma.done [#allocation3], 128
    $region105: #{icm_forward.5} parent=1 // pred_fallthru
      _
    // Predicated region
    $region106: #{icm_forward.5} parent=1 // pred_check
      _
    $region107: #{icm_forward.5} parent=1 // pred_check_branch
      %9670 = sbr.rel (0) target = $region109
    $region108: #{icm_forward.5} parent=1 // pred_region
      %9671 = dma.done [#allocation5], 128
    $region109: #{icm_forward.5} parent=1 // pred_fallthru
      _
    // Predicated region
    $region110: #{icm_forward.5} parent=1 // pred_check
      _
    $region111: #{icm_forward.5} parent=1 // pred_check_branch
      %9673 = sbr.rel (0) target = $region113
    $region112: #{icm_forward.5} parent=1 // pred_region
      %9674 = dma.done [#allocation5], 32
    $region113: #{icm_forward.5} parent=1 // pred_fallthru
      _
    %9675 = vsyncpa [#allocation3], 1
    %9676 = vsyncpa [#allocation5], 1

</llo_original>
